<compile_context>
chip_gen: v6e
topology: v6e:2x2x1
jax: 0.10.0
libtpu: 0.0.40
codegen_flags: <defaults>
</compile_context>

<pallas_src>
import math
import functools

import jax
import jax.numpy as jnp
from jax import lax
from jax.experimental import pallas as pl
from jax.experimental.pallas import tpu as pltpu

# ---------------- config (small, consistent with the module) ----------------
BATCH = 2
SEQ = 8
HIDDEN = 32
NUM_HEADS = 4
HEAD_SIZE = HIDDEN // NUM_HEADS
INTERMEDIATE = 64
NUM_LAYERS = 2
LN_EPS = 1e-12
NUM_STRUCT = 5                          # num_structural_dependencies in SSAN
NPROJ = 3 + NUM_STRUCT                  # q | k | v | 5 folded biaffine projections
VEC_ROWS = 8 + NUM_HEADS * NUM_STRUCT   # packed small-vector rows per layer
ABS_ROW0 = 8                            # first abs_bias row inside the vec pack
NEG_INF = -1.0e9                        # cross-batch additive mask


# ---------------------------- in-kernel helpers ------------------------------
def _layer_norm(x, gamma, beta, eps):
    # PyTorch LayerNorm semantics (biased variance over last dim), f32.
    mu = jnp.mean(x, axis=-1, keepdims=True)
    var = jnp.mean((x - mu) ** 2, axis=-1, keepdims=True)
    return (x - mu) / jnp.sqrt(var + eps) * gamma[None, :] + beta[None, :]


def _gelu_new(x):
    # config.hidden_act = 'gelu_new' (tanh approximation), f32.
    return 0.5 * x * (1.0 + jnp.tanh(
        math.sqrt(2.0 / math.pi) * (x + 0.044715 * x * x * x)))


# ------------------------------- Pallas kernel -------------------------------
def bert_encoder_kernel(
    x_ref, amask_ref, smask_ref,
    wbig_ref, bbig_ref, wo_ref, wi_ref, wo2_ref, vecs_ref,
    out_ref,
    *, num_layers, num_heads, head_size, num_struct, hidden, inter_size, ln_eps,
):
    R = x_ref.shape[0]                       # B * S rows
    H = hidden
    dh = head_size
    per_head = (3 + num_struct) * dh         # head-major column stride in proj
    inv_sqrt_d = 1.0 / math.sqrt(dh)
    nt = (((1,), (1,)), ((), ()))            # A @ B^T dimension numbers

    x = x_ref[...]                           # (R, H) f32, all batches folded
    amask = amask_ref[...]                   # (R, R) additive (incl. cross-batch)
    smask = smask_ref[...]                   # (NS, R, R) block-diag over batches

    for l in range(num_layers):              # statically unrolled; weights resident
        # --- fused Q|K|V|biaffine projection: ONE matmul for all batches ---
        proj = (jnp.dot(x, wbig_ref[l], preferred_element_type=jnp.float32)
                + bbig_ref[l, 0][None, :])                      # (R, NPROJ*H)

        attn_pre = jnp.zeros((R, H), jnp.float32)
        for h in range(num_heads):           # statically unrolled
            base = h * per_head              # contiguous head-major lane slices
            q_h = proj[:, base:base + dh]
            k_h = proj[:, base + dh:base + 2 * dh]
            v_h = proj[:, base + 2 * dh:base + 3 * dh]

            scores = lax.dot_general(q_h, k_h, nt,
                                     preferred_element_type=jnp.float32)
            for t in range(num_struct):
                off = base + (3 + t) * dh
                sb = lax.dot_general(proj[:, off:off + dh], k_h, nt,
                                     preferred_element_type=jnp.float32)
                # abs_bias scalar, pre-broadcast along lanes at pack time
                absb = vecs_ref[l, ABS_ROW0 + h * num_struct + t][0:R]
                scores = scores + (sb + absb[None, :]) * smask[t]

            scores = scores * inv_sqrt_d + amask

            # softmax (f32, exact); dropout = identity (eval mode)
            m = jnp.max(scores, axis=-1, keepdims=True)
            e = jnp.exp(scores - m)
            probs = e / jnp.sum(e, axis=-1, keepdims=True)

            ctx = jnp.dot(probs, v_h, preferred_element_type=jnp.float32)
            # per-head slice of BertSelfOutput.dense fuses "concat heads"+dense
            attn_pre = attn_pre + jnp.dot(ctx, wo_ref[l, h],
                                          preferred_element_type=jnp.float32)

        # --- BertSelfOutput: dense bias + residual + LayerNorm ---
        bo = vecs_ref[l, 0][0:H]
        g1 = vecs_ref[l, 1][0:H]
        b1 = vecs_ref[l, 2][0:H]
        attn = _layer_norm(attn_pre + bo[None, :] + x, g1, b1, ln_eps)

        # --- BertIntermediate: dense + gelu_new ---
        bi = vecs_ref[l, 3][0:inter_size]
        ffn = (jnp.dot(attn, wi_ref[l], preferred_element_type=jnp.float32)
               + bi[None, :])
        ffn = _gelu_new(ffn)

        # --- BertOutput: dense + residual + LayerNorm ---
        bo2 = vecs_ref[l, 4][0:H]
        g2 = vecs_ref[l, 5][0:H]
        b2 = vecs_ref[l, 6][0:H]
        out = (jnp.dot(ffn, wo2_ref[l], preferred_element_type=jnp.float32)
               + bo2[None, :])
        x = _layer_norm(out + attn, g2, b2, ln_eps)       # carry to next layer

    out_ref[...] = x                                       # single store


# ------------------- one-time host-side weight packing -----------------------
def pack_params(layer_params):
    """Called ONCE at init; hoisted out of the per-call path."""
    H, nH, dh, NS, I = HIDDEN, NUM_HEADS, HEAD_SIZE, NUM_STRUCT, INTERMEDIATE
    L = len(layer_params)
    wbig_l, bbig_l, vec_l = [], [], []
    for p in layer_params:
        # head-major fused projection columns: per head [q | k | v | qb0..qb4]
        w_cols, b_cols = [], []
        for h in range(nH):
            sl = slice(h * dh, (h + 1) * dh)
            w_cols += [p['wq'][:, sl], p['wk'][:, sl], p['wv'][:, sl]]
            b_cols += [p['bq'][sl], p['bk'][sl], p['bv'][sl]]
            for t in range(NS):
                # fold the q projection into the biaffine form:
                # (x @ Wq_h + bq_h) @ bili = x @ (Wq_h @ bili) + (bq_h @ bili)
                w_cols.append(p['wq'][:, sl] @ p['bili'][t, h])
                b_cols.append(p['bq'][sl] @ p['bili'][t, h])
        wbig_l.append(jnp.concatenate(w_cols, axis=1))       # (H, NPROJ*H)
        bbig_l.append(jnp.concatenate(b_cols, axis=0))       # (NPROJ*H,)

        # all tiny per-layer vectors packed into one (VEC_ROWS, 128) slab
        v = jnp.zeros((VEC_ROWS, 128), jnp.float32)
        v = v.at[0, :H].set(p['bo'])
        v = v.at[1, :H].set(p['ln1g'])
        v = v.at[2, :H].set(p['ln1b'])
        v = v.at[3, :I].set(p['bi'])
        v = v.at[4, :H].set(p['bo2'])
        v = v.at[5, :H].set(p['ln2g'])
        v = v.at[6, :H].set(p['ln2b'])
        for h in range(nH):
            for t in range(NS):
                # abs_bias scalar pre-broadcast along lanes
                v = v.at[ABS_ROW0 + h * NS + t, :].set(p['absb'][t, h])
        vec_l.append(v)

    return dict(
        wbig=jnp.stack(wbig_l).astype(jnp.float32),          # (L, H, NPROJ*H)
        bbig=jnp.stack(bbig_l)[:, None, :].astype(jnp.float32),  # (L, 1, NPROJ*H)
        wo=jnp.stack([p['wo'] for p in layer_params]
                     ).reshape(L, nH, dh, H).astype(jnp.float32),
        wi=jnp.stack([p['wi'] for p in layer_params]).astype(jnp.float32),
        wo2=jnp.stack([p['wo2'] for p in layer_params]).astype(jnp.float32),
        vecs=jnp.stack(vec_l),                               # (L, VEC_ROWS, 128)
    )


# ------------------------------ wrapper ---------------------------------------
@jax.jit
def bert_encoder_pallas(hidden_states, attention_mask, structure_mask, packed):
    B, S, H = hidden_states.shape
    R = B * S
    NS, nH, dh, I, L = NUM_STRUCT, NUM_HEADS, HEAD_SIZE, INTERMEDIATE, NUM_LAYERS

    x2d = hidden_states.reshape(R, H).astype(jnp.float32)

    # Block-structured masks: the input additive attention mask inside each
    # batch's diagonal block, -1e9 for cross-batch entries (exp underflows to
    # exactly 0 so the fused softmax equals the per-batch reference softmax);
    # structural masks become block-diagonal (0 off-block).
    amask = jnp.full((R, R), NEG_INF, jnp.float32)
    smask = jnp.zeros((NS, R, R), jnp.float32)
    for b in range(B):
        blk = slice(b * S, (b + 1) * S)
        amask = amask.at[blk, blk].set(jnp.broadcast_to(
            attention_mask[b][None, :].astype(jnp.float32), (S, S)))
        smask = smask.at[:, blk, blk].set(structure_mask[:, b].astype(jnp.float32))

    kernel = functools.partial(
        bert_encoder_kernel, num_layers=L, num_heads=nH, head_size=dh,
        num_struct=NS, hidden=H, inter_size=I, ln_eps=LN_EPS)

    def full_spec(shape):
        nd = len(shape)
        return pl.BlockSpec(shape, lambda i, _n=nd: (0,) * _n)

    args = (x2d, amask, smask, packed['wbig'], packed['bbig'],
            packed['wo'], packed['wi'], packed['wo2'], packed['vecs'])

    out2d = pl.pallas_call(
        kernel,
        out_shape=jax.ShapeDtypeStruct((R, H), jnp.float32),
        grid=(1,),                                    # single invocation
        in_specs=[full_spec(a.shape) for a in args],  # everything resident in VMEM
        out_specs=pl.BlockSpec((R, H), lambda i: (0, 0)),
        compiler_params=pltpu.CompilerParams(
            dimension_semantics=("arbitrary",)),
    )(*args)

    return out2d.reshape(B, S, H)


# --------------------------- plain-JAX reference -----------------------------
def reference_layer(h, amask, smask, p):
    B, S, H = h.shape
    nH, dh = NUM_HEADS, HEAD_SIZE
    h2 = h.reshape(B * S, H)
    q = (h2 @ p['wq'] + p['bq']).reshape(B, S, nH, dh).transpose(0, 2, 1, 3)
    k = (h2 @ p['wk'] + p['bk']).reshape(B, S, nH, dh).transpose(0, 2, 1, 3)
    v = (h2 @ p['wv'] + p['bv']).reshape(B, S, nH, dh).transpose(0, 2, 1, 3)
    scores = jnp.einsum('bnid,bnjd->bnij', q, k)
    for i in range(NUM_STRUCT):
        bias = jnp.einsum('bnip,npq,bnjq->bnij', q, p['bili'][i], k)
        scores = scores + (bias + p['absb'][i][None, :, None, None]) * smask[i][:, None]
    scores = scores / math.sqrt(dh) + amask[:, None, None, :]
    probs = jax.nn.softmax(scores, axis=-1)
    ctx = jnp.einsum('bnij,bnjd->bnid', probs, v).transpose(0, 2, 1, 3).reshape(B * S, H)

    def ln(x, g, b):
        mu = jnp.mean(x, -1, keepdims=True)
        var = jnp.mean((x - mu) ** 2, -1, keepdims=True)
        return (x - mu) / jnp.sqrt(var + LN_EPS) * g + b

    attn_out = ln(ctx @ p['wo'] + p['bo'] + h2, p['ln1g'], p['ln1b'])
    inter = attn_out @ p['wi'] + p['bi']
    inter = 0.5 * inter * (1.0 + jnp.tanh(math.sqrt(2.0 / math.pi)
                                          * (inter + 0.044715 * inter ** 3)))
    out = ln(inter @ p['wo2'] + p['bo2'] + attn_out, p['ln2g'], p['ln2b'])
    return out.reshape(B, S, H)


def reference_encoder(h, amask, smask, layer_params):
    for p in layer_params:
        h = reference_layer(h, amask, smask, p)
    return h


# ------------------------------ param init -----------------------------------
def init_layer_params(key):
    ks = jax.random.split(key, 8)
    lin = lambda k, fi, fo: (0.02 * jax.random.normal(k, (fi, fo), jnp.float32))
    return dict(
        wq=lin(ks[0], HIDDEN, HIDDEN), bq=jnp.zeros((HIDDEN,), jnp.float32),
        wk=lin(ks[1], HIDDEN, HIDDEN), bk=jnp.zeros((HIDDEN,), jnp.float32),
        wv=lin(ks[2], HIDDEN, HIDDEN), bv=jnp.zeros((HIDDEN,), jnp.float32),
        bili=(jax.random.normal(ks[3], (NUM_STRUCT, NUM_HEADS, HEAD_SIZE, HEAD_SIZE),
                                jnp.float32) / math.sqrt(HEAD_SIZE)),
        absb=jnp.zeros((NUM_STRUCT, NUM_HEADS), jnp.float32),
        wo=lin(ks[4], HIDDEN, HIDDEN), bo=jnp.zeros((HIDDEN,), jnp.float32),
        ln1g=jnp.ones((HIDDEN,), jnp.float32), ln1b=jnp.zeros((HIDDEN,), jnp.float32),
        wi=lin(ks[5], HIDDEN, INTERMEDIATE), bi=jnp.zeros((INTERMEDIATE,), jnp.float32),
        wo2=lin(ks[6], INTERMEDIATE, HIDDEN), bo2=jnp.zeros((HIDDEN,), jnp.float32),
        ln2g=jnp.ones((HIDDEN,), jnp.float32), ln2b=jnp.zeros((HIDDEN,), jnp.float32),
    )


# --------------------------------- main ---------------------------------------
if __name__ == "__main__":
    root = jax.random.PRNGKey(0)
    k_h, k_m, k_s, k_p = jax.random.split(root, 4)

    hidden_states = jax.random.normal(k_h, (BATCH, SEQ, HIDDEN), jnp.float32)

    # additive attention mask: last position of every sequence masked out
    valid = jnp.ones((BATCH, SEQ), jnp.float32).at[:, -1].set(0.0)
    attention_mask = (1.0 - valid) * -10000.0                      # (B, S)

    # 0/1 structural-dependency masks, shared across heads
    structure_mask = jax.random.bernoulli(
        k_s, 0.3, (NUM_STRUCT, BATCH, SEQ, SEQ)).astype(jnp.float32)

    layer_params = [init_layer_params(k)
                    for k in jax.random.split(k_p, NUM_LAYERS)]

    # one-time weight packing (hoisted out of the per-call path)
    packed = pack_params(layer_params)
    packed = jax.tree_util.tree_map(jax.block_until_ready, packed)

    out = bert_encoder_pallas(hidden_states, attention_mask,
                              structure_mask, packed)
    out = jax.block_until_ready(out)

    ref = reference_encoder(hidden_states, attention_mask,
                            structure_mask, layer_params)
    ref = jax.block_until_ready(ref)

    assert out.shape == (BATCH, SEQ, HIDDEN)
    err = float(jnp.max(jnp.abs(out - ref)))
    assert err < 2e-2, f"mismatch: {err}"

    # TODO(synk): attention/hidden dropout are identity (eval mode); head_mask
    # is None; is_decoder cross-attention and output_attentions /
    # output_hidden_states tuples are not produced.
    print("KERNEL_OK")
</pallas_src>

<mosaic_0001>
module attributes {stable_mosaic.version = 11 : i64} {
  func.func @bert_encoder_kernel(%arg0: i32, %arg1: memref<16x32xf32, #tpu.memory_space<vmem>>, %arg2: memref<16x16xf32, #tpu.memory_space<vmem>>, %arg3: memref<5x16x16xf32, #tpu.memory_space<vmem>>, %arg4: memref<2x32x256xf32, #tpu.memory_space<vmem>>, %arg5: memref<2x1x256xf32, #tpu.memory_space<vmem>>, %arg6: memref<2x4x8x32xf32, #tpu.memory_space<vmem>>, %arg7: memref<2x32x64xf32, #tpu.memory_space<vmem>>, %arg8: memref<2x64x32xf32, #tpu.memory_space<vmem>>, %arg9: memref<2x28x128xf32, #tpu.memory_space<vmem>>, %arg10: memref<16x32xf32, #tpu.memory_space<vmem>>) attributes {dimension_semantics = [#tpu.dimension_semantics<arbitrary>], iteration_bounds = array<i64: 1>, scalar_prefetch = 0 : i64, scratch_operands = 0 : i64, tpu.core_type = #tpu.core_type<tc>, window_params = [{pipeline_mode = #tpu.pipeline_mode<synchronous>, transform_indices = @transform_0, window_bounds = array<i64: 16, 32>}, {pipeline_mode = #tpu.pipeline_mode<synchronous>, transform_indices = @transform_1, window_bounds = array<i64: 16, 16>}, {pipeline_mode = #tpu.pipeline_mode<synchronous>, transform_indices = @transform_2, window_bounds = array<i64: 5, 16, 16>}, {pipeline_mode = #tpu.pipeline_mode<synchronous>, transform_indices = @transform_3, window_bounds = array<i64: 2, 32, 256>}, {pipeline_mode = #tpu.pipeline_mode<synchronous>, transform_indices = @transform_4, window_bounds = array<i64: 2, 1, 256>}, {pipeline_mode = #tpu.pipeline_mode<synchronous>, transform_indices = @transform_5, window_bounds = array<i64: 2, 4, 8, 32>}, {pipeline_mode = #tpu.pipeline_mode<synchronous>, transform_indices = @transform_6, window_bounds = array<i64: 2, 32, 64>}, {pipeline_mode = #tpu.pipeline_mode<synchronous>, transform_indices = @transform_7, window_bounds = array<i64: 2, 64, 32>}, {pipeline_mode = #tpu.pipeline_mode<synchronous>, transform_indices = @transform_8, window_bounds = array<i64: 2, 28, 128>}, {pipeline_mode = #tpu.pipeline_mode<synchronous>, transform_indices = @transform_9, window_bounds = array<i64: 16, 32>}]} {
    %c0 = arith.constant 0 : index
    %c0_0 = arith.constant 0 : index
    %0 = vector.load %arg1[%c0, %c0_0] : memref<16x32xf32, #tpu.memory_space<vmem>>, vector<16x32xf32>
    %c0_1 = arith.constant 0 : index
    %c0_2 = arith.constant 0 : index
    %1 = vector.load %arg2[%c0_1, %c0_2] : memref<16x16xf32, #tpu.memory_space<vmem>>, vector<16x16xf32>
    %c0_3 = arith.constant 0 : index
    %c0_4 = arith.constant 0 : index
    %c0_5 = arith.constant 0 : index
    %2 = vector.load %arg3[%c0_3, %c0_4, %c0_5] : memref<5x16x16xf32, #tpu.memory_space<vmem>>, vector<5x16x16xf32>
    %c0_6 = arith.constant 0 : index
    %c0_7 = arith.constant 0 : index
    %c0_8 = arith.constant 0 : index
    %3 = vector.load %arg4[%c0_6, %c0_7, %c0_8] : memref<2x32x256xf32, #tpu.memory_space<vmem>>, vector<1x32x256xf32>
    %4 = vector.shape_cast %3 : vector<1x32x256xf32> to vector<32x256xf32>
    %cst = arith.constant dense<0.000000e+00> : vector<16x256xf32>
    %5 = tpu.matmul %0, %4, %cst {dimension_numbers = #tpu.dot_dimension_numbers<[1], [0], [0], [1], [0, 0, 1, 1], [], []>} : vector<16x32xf32>, vector<32x256xf32>, vector<16x256xf32> -> vector<16x256xf32>
    %c0_9 = arith.constant 0 : index
    %c0_10 = arith.constant 0 : index
    %c0_11 = arith.constant 0 : index
    %6 = vector.load %arg5[%c0_9, %c0_10, %c0_11] : memref<2x1x256xf32, #tpu.memory_space<vmem>>, vector<1x1x256xf32>
    %7 = vector.shape_cast %6 : vector<1x1x256xf32> to vector<256xf32>
    %8 = vector.shape_cast %7 : vector<256xf32> to vector<1x256xf32>
    %9 = vector.broadcast %8 : vector<1x256xf32> to vector<16x256xf32>
    %10 = arith.addf %5, %9 : vector<16x256xf32>
    %cst_12 = arith.constant 0.000000e+00 : f32
    %11 = vector.broadcast %cst_12 : f32 to vector<16x32xf32>
    %12 = vector.extract_strided_slice %10 {offsets = [0, 0], sizes = [16, 8], strides = [1, 1]} : vector<16x256xf32> to vector<16x8xf32>
    %13 = vector.extract_strided_slice %10 {offsets = [0, 8], sizes = [16, 8], strides = [1, 1]} : vector<16x256xf32> to vector<16x8xf32>
    %14 = vector.extract_strided_slice %10 {offsets = [0, 16], sizes = [16, 8], strides = [1, 1]} : vector<16x256xf32> to vector<16x8xf32>
    %cst_13 = arith.constant dense<0.000000e+00> : vector<16x16xf32>
    %15 = tpu.matmul %12, %13, %cst_13 {dimension_numbers = #tpu.dot_dimension_numbers<[1], [1], [0], [0], [0, 0, 1, 0], [], []>} : vector<16x8xf32>, vector<16x8xf32>, vector<16x16xf32> -> vector<16x16xf32>
    %16 = vector.extract_strided_slice %10 {offsets = [0, 24], sizes = [16, 8], strides = [1, 1]} : vector<16x256xf32> to vector<16x8xf32>
    %cst_14 = arith.constant dense<0.000000e+00> : vector<16x16xf32>
    %17 = tpu.matmul %16, %13, %cst_14 {dimension_numbers = #tpu.dot_dimension_numbers<[1], [1], [0], [0], [0, 0, 1, 0], [], []>} : vector<16x8xf32>, vector<16x8xf32>, vector<16x16xf32> -> vector<16x16xf32>
    %c0_15 = arith.constant 0 : index
    %c8 = arith.constant 8 : index
    %c0_16 = arith.constant 0 : index
    %18 = vector.load %arg9[%c0_15, %c8, %c0_16] : memref<2x28x128xf32, #tpu.memory_space<vmem>>, vector<1x1x128xf32>
    %19 = vector.shape_cast %18 : vector<1x1x128xf32> to vector<128xf32>
    %20 = vector.extract_strided_slice %19 {offsets = [0], sizes = [16], strides = [1]} : vector<128xf32> to vector<16xf32>
    %21 = vector.shape_cast %20 : vector<16xf32> to vector<1x16xf32>
    %22 = vector.broadcast %21 : vector<1x16xf32> to vector<16x16xf32>
    %23 = arith.addf %17, %22 : vector<16x16xf32>
    %24 = vector.extract_strided_slice %2 {offsets = [0, 0, 0], sizes = [1, 16, 16], strides = [1, 1, 1]} : vector<5x16x16xf32> to vector<1x16x16xf32>
    %25 = vector.shape_cast %24 : vector<1x16x16xf32> to vector<16x16xf32>
    %26 = arith.mulf %23, %25 : vector<16x16xf32>
    %27 = arith.addf %15, %26 : vector<16x16xf32>
    %28 = vector.extract_strided_slice %10 {offsets = [0, 32], sizes = [16, 8], strides = [1, 1]} : vector<16x256xf32> to vector<16x8xf32>
    %cst_17 = arith.constant dense<0.000000e+00> : vector<16x16xf32>
    %29 = tpu.matmul %28, %13, %cst_17 {dimension_numbers = #tpu.dot_dimension_numbers<[1], [1], [0], [0], [0, 0, 1, 0], [], []>} : vector<16x8xf32>, vector<16x8xf32>, vector<16x16xf32> -> vector<16x16xf32>
    %c0_18 = arith.constant 0 : index
    %c9 = arith.constant 9 : index
    %c0_19 = arith.constant 0 : index
    %30 = vector.load %arg9[%c0_18, %c9, %c0_19] : memref<2x28x128xf32, #tpu.memory_space<vmem>>, vector<1x1x128xf32>
    %31 = vector.shape_cast %30 : vector<1x1x128xf32> to vector<128xf32>
    %32 = vector.extract_strided_slice %31 {offsets = [0], sizes = [16], strides = [1]} : vector<128xf32> to vector<16xf32>
    %33 = vector.shape_cast %32 : vector<16xf32> to vector<1x16xf32>
    %34 = vector.broadcast %33 : vector<1x16xf32> to vector<16x16xf32>
    %35 = arith.addf %29, %34 : vector<16x16xf32>
    %36 = vector.extract_strided_slice %2 {offsets = [1, 0, 0], sizes = [1, 16, 16], strides = [1, 1, 1]} : vector<5x16x16xf32> to vector<1x16x16xf32>
    %37 = vector.shape_cast %36 : vector<1x16x16xf32> to vector<16x16xf32>
    %38 = arith.mulf %35, %37 : vector<16x16xf32>
    %39 = arith.addf %27, %38 : vector<16x16xf32>
    %40 = vector.extract_strided_slice %10 {offsets = [0, 40], sizes = [16, 8], strides = [1, 1]} : vector<16x256xf32> to vector<16x8xf32>
    %cst_20 = arith.constant dense<0.000000e+00> : vector<16x16xf32>
    %41 = tpu.matmul %40, %13, %cst_20 {dimension_numbers = #tpu.dot_dimension_numbers<[1], [1], [0], [0], [0, 0, 1, 0], [], []>} : vector<16x8xf32>, vector<16x8xf32>, vector<16x16xf32> -> vector<16x16xf32>
    %c0_21 = arith.constant 0 : index
    %c10 = arith.constant 10 : index
    %c0_22 = arith.constant 0 : index
    %42 = vector.load %arg9[%c0_21, %c10, %c0_22] : memref<2x28x128xf32, #tpu.memory_space<vmem>>, vector<1x1x128xf32>
    %43 = vector.shape_cast %42 : vector<1x1x128xf32> to vector<128xf32>
    %44 = vector.extract_strided_slice %43 {offsets = [0], sizes = [16], strides = [1]} : vector<128xf32> to vector<16xf32>
    %45 = vector.shape_cast %44 : vector<16xf32> to vector<1x16xf32>
    %46 = vector.broadcast %45 : vector<1x16xf32> to vector<16x16xf32>
    %47 = arith.addf %41, %46 : vector<16x16xf32>
    %48 = vector.extract_strided_slice %2 {offsets = [2, 0, 0], sizes = [1, 16, 16], strides = [1, 1, 1]} : vector<5x16x16xf32> to vector<1x16x16xf32>
    %49 = vector.shape_cast %48 : vector<1x16x16xf32> to vector<16x16xf32>
    %50 = arith.mulf %47, %49 : vector<16x16xf32>
    %51 = arith.addf %39, %50 : vector<16x16xf32>
    %52 = vector.extract_strided_slice %10 {offsets = [0, 48], sizes = [16, 8], strides = [1, 1]} : vector<16x256xf32> to vector<16x8xf32>
    %cst_23 = arith.constant dense<0.000000e+00> : vector<16x16xf32>
    %53 = tpu.matmul %52, %13, %cst_23 {dimension_numbers = #tpu.dot_dimension_numbers<[1], [1], [0], [0], [0, 0, 1, 0], [], []>} : vector<16x8xf32>, vector<16x8xf32>, vector<16x16xf32> -> vector<16x16xf32>
    %c0_24 = arith.constant 0 : index
    %c11 = arith.constant 11 : index
    %c0_25 = arith.constant 0 : index
    %54 = vector.load %arg9[%c0_24, %c11, %c0_25] : memref<2x28x128xf32, #tpu.memory_space<vmem>>, vector<1x1x128xf32>
    %55 = vector.shape_cast %54 : vector<1x1x128xf32> to vector<128xf32>
    %56 = vector.extract_strided_slice %55 {offsets = [0], sizes = [16], strides = [1]} : vector<128xf32> to vector<16xf32>
    %57 = vector.shape_cast %56 : vector<16xf32> to vector<1x16xf32>
    %58 = vector.broadcast %57 : vector<1x16xf32> to vector<16x16xf32>
    %59 = arith.addf %53, %58 : vector<16x16xf32>
    %60 = vector.extract_strided_slice %2 {offsets = [3, 0, 0], sizes = [1, 16, 16], strides = [1, 1, 1]} : vector<5x16x16xf32> to vector<1x16x16xf32>
    %61 = vector.shape_cast %60 : vector<1x16x16xf32> to vector<16x16xf32>
    %62 = arith.mulf %59, %61 : vector<16x16xf32>
    %63 = arith.addf %51, %62 : vector<16x16xf32>
    %64 = vector.extract_strided_slice %10 {offsets = [0, 56], sizes = [16, 8], strides = [1, 1]} : vector<16x256xf32> to vector<16x8xf32>
    %cst_26 = arith.constant dense<0.000000e+00> : vector<16x16xf32>
    %65 = tpu.matmul %64, %13, %cst_26 {dimension_numbers = #tpu.dot_dimension_numbers<[1], [1], [0], [0], [0, 0, 1, 0], [], []>} : vector<16x8xf32>, vector<16x8xf32>, vector<16x16xf32> -> vector<16x16xf32>
    %c0_27 = arith.constant 0 : index
    %c12 = arith.constant 12 : index
    %c0_28 = arith.constant 0 : index
    %66 = vector.load %arg9[%c0_27, %c12, %c0_28] : memref<2x28x128xf32, #tpu.memory_space<vmem>>, vector<1x1x128xf32>
    %67 = vector.shape_cast %66 : vector<1x1x128xf32> to vector<128xf32>
    %68 = vector.extract_strided_slice %67 {offsets = [0], sizes = [16], strides = [1]} : vector<128xf32> to vector<16xf32>
    %69 = vector.shape_cast %68 : vector<16xf32> to vector<1x16xf32>
    %70 = vector.broadcast %69 : vector<1x16xf32> to vector<16x16xf32>
    %71 = arith.addf %65, %70 : vector<16x16xf32>
    %72 = vector.extract_strided_slice %2 {offsets = [4, 0, 0], sizes = [1, 16, 16], strides = [1, 1, 1]} : vector<5x16x16xf32> to vector<1x16x16xf32>
    %73 = vector.shape_cast %72 : vector<1x16x16xf32> to vector<16x16xf32>
    %74 = arith.mulf %71, %73 : vector<16x16xf32>
    %75 = arith.addf %63, %74 : vector<16x16xf32>
    %cst_29 = arith.constant 0.353553385 : f32
    %76 = vector.broadcast %cst_29 : f32 to vector<16x16xf32>
    %77 = arith.mulf %75, %76 : vector<16x16xf32>
    %78 = arith.addf %77, %1 : vector<16x16xf32>
    %cst_30 = arith.constant dense<0xFF800000> : vector<16xf32>
    %79 = vector.multi_reduction <maximumf>, %78, %cst_30 [1] : vector<16x16xf32> to vector<16xf32>
    %80 = vector.shape_cast %79 : vector<16xf32> to vector<16x1xf32>
    %81 = vector.broadcast %80 : vector<16x1xf32> to vector<16x16xf32>
    %82 = arith.subf %78, %81 : vector<16x16xf32>
    %83 = math.exp %82 : vector<16x16xf32>
    %cst_31 = arith.constant dense<0.000000e+00> : vector<16xf32>
    %84 = vector.multi_reduction <add>, %83, %cst_31 [1] : vector<16x16xf32> to vector<16xf32>
    %85 = vector.shape_cast %84 : vector<16xf32> to vector<16x1xf32>
    %86 = vector.broadcast %85 : vector<16x1xf32> to vector<16x16xf32>
    %87 = arith.divf %83, %86 : vector<16x16xf32>
    %cst_32 = arith.constant dense<0.000000e+00> : vector<16x8xf32>
    %88 = tpu.matmul %87, %14, %cst_32 {dimension_numbers = #tpu.dot_dimension_numbers<[1], [0], [0], [1], [0, 0, 1, 1], [], []>} : vector<16x16xf32>, vector<16x8xf32>, vector<16x8xf32> -> vector<16x8xf32>
    %c0_33 = arith.constant 0 : index
    %c0_34 = arith.constant 0 : index
    %c0_35 = arith.constant 0 : index
    %c0_36 = arith.constant 0 : index
    %89 = vector.load %arg6[%c0_33, %c0_34, %c0_35, %c0_36] : memref<2x4x8x32xf32, #tpu.memory_space<vmem>>, vector<1x1x8x32xf32>
    %90 = vector.shape_cast %89 : vector<1x1x8x32xf32> to vector<8x32xf32>
    %cst_37 = arith.constant dense<0.000000e+00> : vector<16x32xf32>
    %91 = tpu.matmul %88, %90, %cst_37 {dimension_numbers = #tpu.dot_dimension_numbers<[1], [0], [0], [1], [0, 0, 1, 1], [], []>} : vector<16x8xf32>, vector<8x32xf32>, vector<16x32xf32> -> vector<16x32xf32>
    %92 = arith.addf %11, %91 : vector<16x32xf32>
    %93 = vector.extract_strided_slice %10 {offsets = [0, 64], sizes = [16, 8], strides = [1, 1]} : vector<16x256xf32> to vector<16x8xf32>
    %94 = vector.extract_strided_slice %10 {offsets = [0, 72], sizes = [16, 8], strides = [1, 1]} : vector<16x256xf32> to vector<16x8xf32>
    %95 = vector.extract_strided_slice %10 {offsets = [0, 80], sizes = [16, 8], strides = [1, 1]} : vector<16x256xf32> to vector<16x8xf32>
    %cst_38 = arith.constant dense<0.000000e+00> : vector<16x16xf32>
    %96 = tpu.matmul %93, %94, %cst_38 {dimension_numbers = #tpu.dot_dimension_numbers<[1], [1], [0], [0], [0, 0, 1, 0], [], []>} : vector<16x8xf32>, vector<16x8xf32>, vector<16x16xf32> -> vector<16x16xf32>
    %97 = vector.extract_strided_slice %10 {offsets = [0, 88], sizes = [16, 8], strides = [1, 1]} : vector<16x256xf32> to vector<16x8xf32>
    %cst_39 = arith.constant dense<0.000000e+00> : vector<16x16xf32>
    %98 = tpu.matmul %97, %94, %cst_39 {dimension_numbers = #tpu.dot_dimension_numbers<[1], [1], [0], [0], [0, 0, 1, 0], [], []>} : vector<16x8xf32>, vector<16x8xf32>, vector<16x16xf32> -> vector<16x16xf32>
    %c0_40 = arith.constant 0 : index
    %c13 = arith.constant 13 : index
    %c0_41 = arith.constant 0 : index
    %99 = vector.load %arg9[%c0_40, %c13, %c0_41] : memref<2x28x128xf32, #tpu.memory_space<vmem>>, vector<1x1x128xf32>
    %100 = vector.shape_cast %99 : vector<1x1x128xf32> to vector<128xf32>
    %101 = vector.extract_strided_slice %100 {offsets = [0], sizes = [16], strides = [1]} : vector<128xf32> to vector<16xf32>
    %102 = vector.shape_cast %101 : vector<16xf32> to vector<1x16xf32>
    %103 = vector.broadcast %102 : vector<1x16xf32> to vector<16x16xf32>
    %104 = arith.addf %98, %103 : vector<16x16xf32>
    %105 = vector.extract_strided_slice %2 {offsets = [0, 0, 0], sizes = [1, 16, 16], strides = [1, 1, 1]} : vector<5x16x16xf32> to vector<1x16x16xf32>
    %106 = vector.shape_cast %105 : vector<1x16x16xf32> to vector<16x16xf32>
    %107 = arith.mulf %104, %106 : vector<16x16xf32>
    %108 = arith.addf %96, %107 : vector<16x16xf32>
    %109 = vector.extract_strided_slice %10 {offsets = [0, 96], sizes = [16, 8], strides = [1, 1]} : vector<16x256xf32> to vector<16x8xf32>
    %cst_42 = arith.constant dense<0.000000e+00> : vector<16x16xf32>
    %110 = tpu.matmul %109, %94, %cst_42 {dimension_numbers = #tpu.dot_dimension_numbers<[1], [1], [0], [0], [0, 0, 1, 0], [], []>} : vector<16x8xf32>, vector<16x8xf32>, vector<16x16xf32> -> vector<16x16xf32>
    %c0_43 = arith.constant 0 : index
    %c14 = arith.constant 14 : index
    %c0_44 = arith.constant 0 : index
    %111 = vector.load %arg9[%c0_43, %c14, %c0_44] : memref<2x28x128xf32, #tpu.memory_space<vmem>>, vector<1x1x128xf32>
    %112 = vector.shape_cast %111 : vector<1x1x128xf32> to vector<128xf32>
    %113 = vector.extract_strided_slice %112 {offsets = [0], sizes = [16], strides = [1]} : vector<128xf32> to vector<16xf32>
    %114 = vector.shape_cast %113 : vector<16xf32> to vector<1x16xf32>
    %115 = vector.broadcast %114 : vector<1x16xf32> to vector<16x16xf32>
    %116 = arith.addf %110, %115 : vector<16x16xf32>
    %117 = vector.extract_strided_slice %2 {offsets = [1, 0, 0], sizes = [1, 16, 16], strides = [1, 1, 1]} : vector<5x16x16xf32> to vector<1x16x16xf32>
    %118 = vector.shape_cast %117 : vector<1x16x16xf32> to vector<16x16xf32>
    %119 = arith.mulf %116, %118 : vector<16x16xf32>
    %120 = arith.addf %108, %119 : vector<16x16xf32>
    %121 = vector.extract_strided_slice %10 {offsets = [0, 104], sizes = [16, 8], strides = [1, 1]} : vector<16x256xf32> to vector<16x8xf32>
    %cst_45 = arith.constant dense<0.000000e+00> : vector<16x16xf32>
    %122 = tpu.matmul %121, %94, %cst_45 {dimension_numbers = #tpu.dot_dimension_numbers<[1], [1], [0], [0], [0, 0, 1, 0], [], []>} : vector<16x8xf32>, vector<16x8xf32>, vector<16x16xf32> -> vector<16x16xf32>
    %c0_46 = arith.constant 0 : index
    %c15 = arith.constant 15 : index
    %c0_47 = arith.constant 0 : index
    %123 = vector.load %arg9[%c0_46, %c15, %c0_47] : memref<2x28x128xf32, #tpu.memory_space<vmem>>, vector<1x1x128xf32>
    %124 = vector.shape_cast %123 : vector<1x1x128xf32> to vector<128xf32>
    %125 = vector.extract_strided_slice %124 {offsets = [0], sizes = [16], strides = [1]} : vector<128xf32> to vector<16xf32>
    %126 = vector.shape_cast %125 : vector<16xf32> to vector<1x16xf32>
    %127 = vector.broadcast %126 : vector<1x16xf32> to vector<16x16xf32>
    %128 = arith.addf %122, %127 : vector<16x16xf32>
    %129 = vector.extract_strided_slice %2 {offsets = [2, 0, 0], sizes = [1, 16, 16], strides = [1, 1, 1]} : vector<5x16x16xf32> to vector<1x16x16xf32>
    %130 = vector.shape_cast %129 : vector<1x16x16xf32> to vector<16x16xf32>
    %131 = arith.mulf %128, %130 : vector<16x16xf32>
    %132 = arith.addf %120, %131 : vector<16x16xf32>
    %133 = vector.extract_strided_slice %10 {offsets = [0, 112], sizes = [16, 8], strides = [1, 1]} : vector<16x256xf32> to vector<16x8xf32>
    %cst_48 = arith.constant dense<0.000000e+00> : vector<16x16xf32>
    %134 = tpu.matmul %133, %94, %cst_48 {dimension_numbers = #tpu.dot_dimension_numbers<[1], [1], [0], [0], [0, 0, 1, 0], [], []>} : vector<16x8xf32>, vector<16x8xf32>, vector<16x16xf32> -> vector<16x16xf32>
    %c0_49 = arith.constant 0 : index
    %c16 = arith.constant 16 : index
    %c0_50 = arith.constant 0 : index
    %135 = vector.load %arg9[%c0_49, %c16, %c0_50] : memref<2x28x128xf32, #tpu.memory_space<vmem>>, vector<1x1x128xf32>
    %136 = vector.shape_cast %135 : vector<1x1x128xf32> to vector<128xf32>
    %137 = vector.extract_strided_slice %136 {offsets = [0], sizes = [16], strides = [1]} : vector<128xf32> to vector<16xf32>
    %138 = vector.shape_cast %137 : vector<16xf32> to vector<1x16xf32>
    %139 = vector.broadcast %138 : vector<1x16xf32> to vector<16x16xf32>
    %140 = arith.addf %134, %139 : vector<16x16xf32>
    %141 = vector.extract_strided_slice %2 {offsets = [3, 0, 0], sizes = [1, 16, 16], strides = [1, 1, 1]} : vector<5x16x16xf32> to vector<1x16x16xf32>
    %142 = vector.shape_cast %141 : vector<1x16x16xf32> to vector<16x16xf32>
    %143 = arith.mulf %140, %142 : vector<16x16xf32>
    %144 = arith.addf %132, %143 : vector<16x16xf32>
    %145 = vector.extract_strided_slice %10 {offsets = [0, 120], sizes = [16, 8], strides = [1, 1]} : vector<16x256xf32> to vector<16x8xf32>
    %cst_51 = arith.constant dense<0.000000e+00> : vector<16x16xf32>
    %146 = tpu.matmul %145, %94, %cst_51 {dimension_numbers = #tpu.dot_dimension_numbers<[1], [1], [0], [0], [0, 0, 1, 0], [], []>} : vector<16x8xf32>, vector<16x8xf32>, vector<16x16xf32> -> vector<16x16xf32>
    %c0_52 = arith.constant 0 : index
    %c17 = arith.constant 17 : index
    %c0_53 = arith.constant 0 : index
    %147 = vector.load %arg9[%c0_52, %c17, %c0_53] : memref<2x28x128xf32, #tpu.memory_space<vmem>>, vector<1x1x128xf32>
    %148 = vector.shape_cast %147 : vector<1x1x128xf32> to vector<128xf32>
    %149 = vector.extract_strided_slice %148 {offsets = [0], sizes = [16], strides = [1]} : vector<128xf32> to vector<16xf32>
    %150 = vector.shape_cast %149 : vector<16xf32> to vector<1x16xf32>
    %151 = vector.broadcast %150 : vector<1x16xf32> to vector<16x16xf32>
    %152 = arith.addf %146, %151 : vector<16x16xf32>
    %153 = vector.extract_strided_slice %2 {offsets = [4, 0, 0], sizes = [1, 16, 16], strides = [1, 1, 1]} : vector<5x16x16xf32> to vector<1x16x16xf32>
    %154 = vector.shape_cast %153 : vector<1x16x16xf32> to vector<16x16xf32>
    %155 = arith.mulf %152, %154 : vector<16x16xf32>
    %156 = arith.addf %144, %155 : vector<16x16xf32>
    %cst_54 = arith.constant 0.353553385 : f32
    %157 = vector.broadcast %cst_54 : f32 to vector<16x16xf32>
    %158 = arith.mulf %156, %157 : vector<16x16xf32>
    %159 = arith.addf %158, %1 : vector<16x16xf32>
    %cst_55 = arith.constant dense<0xFF800000> : vector<16xf32>
    %160 = vector.multi_reduction <maximumf>, %159, %cst_55 [1] : vector<16x16xf32> to vector<16xf32>
    %161 = vector.shape_cast %160 : vector<16xf32> to vector<16x1xf32>
    %162 = vector.broadcast %161 : vector<16x1xf32> to vector<16x16xf32>
    %163 = arith.subf %159, %162 : vector<16x16xf32>
    %164 = math.exp %163 : vector<16x16xf32>
    %cst_56 = arith.constant dense<0.000000e+00> : vector<16xf32>
    %165 = vector.multi_reduction <add>, %164, %cst_56 [1] : vector<16x16xf32> to vector<16xf32>
    %166 = vector.shape_cast %165 : vector<16xf32> to vector<16x1xf32>
    %167 = vector.broadcast %166 : vector<16x1xf32> to vector<16x16xf32>
    %168 = arith.divf %164, %167 : vector<16x16xf32>
    %cst_57 = arith.constant dense<0.000000e+00> : vector<16x8xf32>
    %169 = tpu.matmul %168, %95, %cst_57 {dimension_numbers = #tpu.dot_dimension_numbers<[1], [0], [0], [1], [0, 0, 1, 1], [], []>} : vector<16x16xf32>, vector<16x8xf32>, vector<16x8xf32> -> vector<16x8xf32>
    %c0_58 = arith.constant 0 : index
    %c1 = arith.constant 1 : index
    %c0_59 = arith.constant 0 : index
    %c0_60 = arith.constant 0 : index
    %170 = vector.load %arg6[%c0_58, %c1, %c0_59, %c0_60] : memref<2x4x8x32xf32, #tpu.memory_space<vmem>>, vector<1x1x8x32xf32>
    %171 = vector.shape_cast %170 : vector<1x1x8x32xf32> to vector<8x32xf32>
    %cst_61 = arith.constant dense<0.000000e+00> : vector<16x32xf32>
    %172 = tpu.matmul %169, %171, %cst_61 {dimension_numbers = #tpu.dot_dimension_numbers<[1], [0], [0], [1], [0, 0, 1, 1], [], []>} : vector<16x8xf32>, vector<8x32xf32>, vector<16x32xf32> -> vector<16x32xf32>
    %173 = arith.addf %92, %172 : vector<16x32xf32>
    %174 = vector.extract_strided_slice %10 {offsets = [0, 128], sizes = [16, 8], strides = [1, 1]} : vector<16x256xf32> to vector<16x8xf32>
    %175 = vector.extract_strided_slice %10 {offsets = [0, 136], sizes = [16, 8], strides = [1, 1]} : vector<16x256xf32> to vector<16x8xf32>
    %176 = vector.extract_strided_slice %10 {offsets = [0, 144], sizes = [16, 8], strides = [1, 1]} : vector<16x256xf32> to vector<16x8xf32>
    %cst_62 = arith.constant dense<0.000000e+00> : vector<16x16xf32>
    %177 = tpu.matmul %174, %175, %cst_62 {dimension_numbers = #tpu.dot_dimension_numbers<[1], [1], [0], [0], [0, 0, 1, 0], [], []>} : vector<16x8xf32>, vector<16x8xf32>, vector<16x16xf32> -> vector<16x16xf32>
    %178 = vector.extract_strided_slice %10 {offsets = [0, 152], sizes = [16, 8], strides = [1, 1]} : vector<16x256xf32> to vector<16x8xf32>
    %cst_63 = arith.constant dense<0.000000e+00> : vector<16x16xf32>
    %179 = tpu.matmul %178, %175, %cst_63 {dimension_numbers = #tpu.dot_dimension_numbers<[1], [1], [0], [0], [0, 0, 1, 0], [], []>} : vector<16x8xf32>, vector<16x8xf32>, vector<16x16xf32> -> vector<16x16xf32>
    %c0_64 = arith.constant 0 : index
    %c18 = arith.constant 18 : index
    %c0_65 = arith.constant 0 : index
    %180 = vector.load %arg9[%c0_64, %c18, %c0_65] : memref<2x28x128xf32, #tpu.memory_space<vmem>>, vector<1x1x128xf32>
    %181 = vector.shape_cast %180 : vector<1x1x128xf32> to vector<128xf32>
    %182 = vector.extract_strided_slice %181 {offsets = [0], sizes = [16], strides = [1]} : vector<128xf32> to vector<16xf32>
    %183 = vector.shape_cast %182 : vector<16xf32> to vector<1x16xf32>
    %184 = vector.broadcast %183 : vector<1x16xf32> to vector<16x16xf32>
    %185 = arith.addf %179, %184 : vector<16x16xf32>
    %186 = vector.extract_strided_slice %2 {offsets = [0, 0, 0], sizes = [1, 16, 16], strides = [1, 1, 1]} : vector<5x16x16xf32> to vector<1x16x16xf32>
    %187 = vector.shape_cast %186 : vector<1x16x16xf32> to vector<16x16xf32>
    %188 = arith.mulf %185, %187 : vector<16x16xf32>
    %189 = arith.addf %177, %188 : vector<16x16xf32>
    %190 = vector.extract_strided_slice %10 {offsets = [0, 160], sizes = [16, 8], strides = [1, 1]} : vector<16x256xf32> to vector<16x8xf32>
    %cst_66 = arith.constant dense<0.000000e+00> : vector<16x16xf32>
    %191 = tpu.matmul %190, %175, %cst_66 {dimension_numbers = #tpu.dot_dimension_numbers<[1], [1], [0], [0], [0, 0, 1, 0], [], []>} : vector<16x8xf32>, vector<16x8xf32>, vector<16x16xf32> -> vector<16x16xf32>
    %c0_67 = arith.constant 0 : index
    %c19 = arith.constant 19 : index
    %c0_68 = arith.constant 0 : index
    %192 = vector.load %arg9[%c0_67, %c19, %c0_68] : memref<2x28x128xf32, #tpu.memory_space<vmem>>, vector<1x1x128xf32>
    %193 = vector.shape_cast %192 : vector<1x1x128xf32> to vector<128xf32>
    %194 = vector.extract_strided_slice %193 {offsets = [0], sizes = [16], strides = [1]} : vector<128xf32> to vector<16xf32>
    %195 = vector.shape_cast %194 : vector<16xf32> to vector<1x16xf32>
    %196 = vector.broadcast %195 : vector<1x16xf32> to vector<16x16xf32>
    %197 = arith.addf %191, %196 : vector<16x16xf32>
    %198 = vector.extract_strided_slice %2 {offsets = [1, 0, 0], sizes = [1, 16, 16], strides = [1, 1, 1]} : vector<5x16x16xf32> to vector<1x16x16xf32>
    %199 = vector.shape_cast %198 : vector<1x16x16xf32> to vector<16x16xf32>
    %200 = arith.mulf %197, %199 : vector<16x16xf32>
    %201 = arith.addf %189, %200 : vector<16x16xf32>
    %202 = vector.extract_strided_slice %10 {offsets = [0, 168], sizes = [16, 8], strides = [1, 1]} : vector<16x256xf32> to vector<16x8xf32>
    %cst_69 = arith.constant dense<0.000000e+00> : vector<16x16xf32>
    %203 = tpu.matmul %202, %175, %cst_69 {dimension_numbers = #tpu.dot_dimension_numbers<[1], [1], [0], [0], [0, 0, 1, 0], [], []>} : vector<16x8xf32>, vector<16x8xf32>, vector<16x16xf32> -> vector<16x16xf32>
    %c0_70 = arith.constant 0 : index
    %c20 = arith.constant 20 : index
    %c0_71 = arith.constant 0 : index
    %204 = vector.load %arg9[%c0_70, %c20, %c0_71] : memref<2x28x128xf32, #tpu.memory_space<vmem>>, vector<1x1x128xf32>
    %205 = vector.shape_cast %204 : vector<1x1x128xf32> to vector<128xf32>
    %206 = vector.extract_strided_slice %205 {offsets = [0], sizes = [16], strides = [1]} : vector<128xf32> to vector<16xf32>
    %207 = vector.shape_cast %206 : vector<16xf32> to vector<1x16xf32>
    %208 = vector.broadcast %207 : vector<1x16xf32> to vector<16x16xf32>
    %209 = arith.addf %203, %208 : vector<16x16xf32>
    %210 = vector.extract_strided_slice %2 {offsets = [2, 0, 0], sizes = [1, 16, 16], strides = [1, 1, 1]} : vector<5x16x16xf32> to vector<1x16x16xf32>
    %211 = vector.shape_cast %210 : vector<1x16x16xf32> to vector<16x16xf32>
    %212 = arith.mulf %209, %211 : vector<16x16xf32>
    %213 = arith.addf %201, %212 : vector<16x16xf32>
    %214 = vector.extract_strided_slice %10 {offsets = [0, 176], sizes = [16, 8], strides = [1, 1]} : vector<16x256xf32> to vector<16x8xf32>
    %cst_72 = arith.constant dense<0.000000e+00> : vector<16x16xf32>
    %215 = tpu.matmul %214, %175, %cst_72 {dimension_numbers = #tpu.dot_dimension_numbers<[1], [1], [0], [0], [0, 0, 1, 0], [], []>} : vector<16x8xf32>, vector<16x8xf32>, vector<16x16xf32> -> vector<16x16xf32>
    %c0_73 = arith.constant 0 : index
    %c21 = arith.constant 21 : index
    %c0_74 = arith.constant 0 : index
    %216 = vector.load %arg9[%c0_73, %c21, %c0_74] : memref<2x28x128xf32, #tpu.memory_space<vmem>>, vector<1x1x128xf32>
    %217 = vector.shape_cast %216 : vector<1x1x128xf32> to vector<128xf32>
    %218 = vector.extract_strided_slice %217 {offsets = [0], sizes = [16], strides = [1]} : vector<128xf32> to vector<16xf32>
    %219 = vector.shape_cast %218 : vector<16xf32> to vector<1x16xf32>
    %220 = vector.broadcast %219 : vector<1x16xf32> to vector<16x16xf32>
    %221 = arith.addf %215, %220 : vector<16x16xf32>
    %222 = vector.extract_strided_slice %2 {offsets = [3, 0, 0], sizes = [1, 16, 16], strides = [1, 1, 1]} : vector<5x16x16xf32> to vector<1x16x16xf32>
    %223 = vector.shape_cast %222 : vector<1x16x16xf32> to vector<16x16xf32>
    %224 = arith.mulf %221, %223 : vector<16x16xf32>
    %225 = arith.addf %213, %224 : vector<16x16xf32>
    %226 = vector.extract_strided_slice %10 {offsets = [0, 184], sizes = [16, 8], strides = [1, 1]} : vector<16x256xf32> to vector<16x8xf32>
    %cst_75 = arith.constant dense<0.000000e+00> : vector<16x16xf32>
    %227 = tpu.matmul %226, %175, %cst_75 {dimension_numbers = #tpu.dot_dimension_numbers<[1], [1], [0], [0], [0, 0, 1, 0], [], []>} : vector<16x8xf32>, vector<16x8xf32>, vector<16x16xf32> -> vector<16x16xf32>
    %c0_76 = arith.constant 0 : index
    %c22 = arith.constant 22 : index
    %c0_77 = arith.constant 0 : index
    %228 = vector.load %arg9[%c0_76, %c22, %c0_77] : memref<2x28x128xf32, #tpu.memory_space<vmem>>, vector<1x1x128xf32>
    %229 = vector.shape_cast %228 : vector<1x1x128xf32> to vector<128xf32>
    %230 = vector.extract_strided_slice %229 {offsets = [0], sizes = [16], strides = [1]} : vector<128xf32> to vector<16xf32>
    %231 = vector.shape_cast %230 : vector<16xf32> to vector<1x16xf32>
    %232 = vector.broadcast %231 : vector<1x16xf32> to vector<16x16xf32>
    %233 = arith.addf %227, %232 : vector<16x16xf32>
    %234 = vector.extract_strided_slice %2 {offsets = [4, 0, 0], sizes = [1, 16, 16], strides = [1, 1, 1]} : vector<5x16x16xf32> to vector<1x16x16xf32>
    %235 = vector.shape_cast %234 : vector<1x16x16xf32> to vector<16x16xf32>
    %236 = arith.mulf %233, %235 : vector<16x16xf32>
    %237 = arith.addf %225, %236 : vector<16x16xf32>
    %cst_78 = arith.constant 0.353553385 : f32
    %238 = vector.broadcast %cst_78 : f32 to vector<16x16xf32>
    %239 = arith.mulf %237, %238 : vector<16x16xf32>
    %240 = arith.addf %239, %1 : vector<16x16xf32>
    %cst_79 = arith.constant dense<0xFF800000> : vector<16xf32>
    %241 = vector.multi_reduction <maximumf>, %240, %cst_79 [1] : vector<16x16xf32> to vector<16xf32>
    %242 = vector.shape_cast %241 : vector<16xf32> to vector<16x1xf32>
    %243 = vector.broadcast %242 : vector<16x1xf32> to vector<16x16xf32>
    %244 = arith.subf %240, %243 : vector<16x16xf32>
    %245 = math.exp %244 : vector<16x16xf32>
    %cst_80 = arith.constant dense<0.000000e+00> : vector<16xf32>
    %246 = vector.multi_reduction <add>, %245, %cst_80 [1] : vector<16x16xf32> to vector<16xf32>
    %247 = vector.shape_cast %246 : vector<16xf32> to vector<16x1xf32>
    %248 = vector.broadcast %247 : vector<16x1xf32> to vector<16x16xf32>
    %249 = arith.divf %245, %248 : vector<16x16xf32>
    %cst_81 = arith.constant dense<0.000000e+00> : vector<16x8xf32>
    %250 = tpu.matmul %249, %176, %cst_81 {dimension_numbers = #tpu.dot_dimension_numbers<[1], [0], [0], [1], [0, 0, 1, 1], [], []>} : vector<16x16xf32>, vector<16x8xf32>, vector<16x8xf32> -> vector<16x8xf32>
    %c0_82 = arith.constant 0 : index
    %c2 = arith.constant 2 : index
    %c0_83 = arith.constant 0 : index
    %c0_84 = arith.constant 0 : index
    %251 = vector.load %arg6[%c0_82, %c2, %c0_83, %c0_84] : memref<2x4x8x32xf32, #tpu.memory_space<vmem>>, vector<1x1x8x32xf32>
    %252 = vector.shape_cast %251 : vector<1x1x8x32xf32> to vector<8x32xf32>
    %cst_85 = arith.constant dense<0.000000e+00> : vector<16x32xf32>
    %253 = tpu.matmul %250, %252, %cst_85 {dimension_numbers = #tpu.dot_dimension_numbers<[1], [0], [0], [1], [0, 0, 1, 1], [], []>} : vector<16x8xf32>, vector<8x32xf32>, vector<16x32xf32> -> vector<16x32xf32>
    %254 = arith.addf %173, %253 : vector<16x32xf32>
    %255 = vector.extract_strided_slice %10 {offsets = [0, 192], sizes = [16, 8], strides = [1, 1]} : vector<16x256xf32> to vector<16x8xf32>
    %256 = vector.extract_strided_slice %10 {offsets = [0, 200], sizes = [16, 8], strides = [1, 1]} : vector<16x256xf32> to vector<16x8xf32>
    %257 = vector.extract_strided_slice %10 {offsets = [0, 208], sizes = [16, 8], strides = [1, 1]} : vector<16x256xf32> to vector<16x8xf32>
    %cst_86 = arith.constant dense<0.000000e+00> : vector<16x16xf32>
    %258 = tpu.matmul %255, %256, %cst_86 {dimension_numbers = #tpu.dot_dimension_numbers<[1], [1], [0], [0], [0, 0, 1, 0], [], []>} : vector<16x8xf32>, vector<16x8xf32>, vector<16x16xf32> -> vector<16x16xf32>
    %259 = vector.extract_strided_slice %10 {offsets = [0, 216], sizes = [16, 8], strides = [1, 1]} : vector<16x256xf32> to vector<16x8xf32>
    %cst_87 = arith.constant dense<0.000000e+00> : vector<16x16xf32>
    %260 = tpu.matmul %259, %256, %cst_87 {dimension_numbers = #tpu.dot_dimension_numbers<[1], [1], [0], [0], [0, 0, 1, 0], [], []>} : vector<16x8xf32>, vector<16x8xf32>, vector<16x16xf32> -> vector<16x16xf32>
    %c0_88 = arith.constant 0 : index
    %c23 = arith.constant 23 : index
    %c0_89 = arith.constant 0 : index
    %261 = vector.load %arg9[%c0_88, %c23, %c0_89] : memref<2x28x128xf32, #tpu.memory_space<vmem>>, vector<1x1x128xf32>
    %262 = vector.shape_cast %261 : vector<1x1x128xf32> to vector<128xf32>
    %263 = vector.extract_strided_slice %262 {offsets = [0], sizes = [16], strides = [1]} : vector<128xf32> to vector<16xf32>
    %264 = vector.shape_cast %263 : vector<16xf32> to vector<1x16xf32>
    %265 = vector.broadcast %264 : vector<1x16xf32> to vector<16x16xf32>
    %266 = arith.addf %260, %265 : vector<16x16xf32>
    %267 = vector.extract_strided_slice %2 {offsets = [0, 0, 0], sizes = [1, 16, 16], strides = [1, 1, 1]} : vector<5x16x16xf32> to vector<1x16x16xf32>
    %268 = vector.shape_cast %267 : vector<1x16x16xf32> to vector<16x16xf32>
    %269 = arith.mulf %266, %268 : vector<16x16xf32>
    %270 = arith.addf %258, %269 : vector<16x16xf32>
    %271 = vector.extract_strided_slice %10 {offsets = [0, 224], sizes = [16, 8], strides = [1, 1]} : vector<16x256xf32> to vector<16x8xf32>
    %cst_90 = arith.constant dense<0.000000e+00> : vector<16x16xf32>
    %272 = tpu.matmul %271, %256, %cst_90 {dimension_numbers = #tpu.dot_dimension_numbers<[1], [1], [0], [0], [0, 0, 1, 0], [], []>} : vector<16x8xf32>, vector<16x8xf32>, vector<16x16xf32> -> vector<16x16xf32>
    %c0_91 = arith.constant 0 : index
    %c24 = arith.constant 24 : index
    %c0_92 = arith.constant 0 : index
    %273 = vector.load %arg9[%c0_91, %c24, %c0_92] : memref<2x28x128xf32, #tpu.memory_space<vmem>>, vector<1x1x128xf32>
    %274 = vector.shape_cast %273 : vector<1x1x128xf32> to vector<128xf32>
    %275 = vector.extract_strided_slice %274 {offsets = [0], sizes = [16], strides = [1]} : vector<128xf32> to vector<16xf32>
    %276 = vector.shape_cast %275 : vector<16xf32> to vector<1x16xf32>
    %277 = vector.broadcast %276 : vector<1x16xf32> to vector<16x16xf32>
    %278 = arith.addf %272, %277 : vector<16x16xf32>
    %279 = vector.extract_strided_slice %2 {offsets = [1, 0, 0], sizes = [1, 16, 16], strides = [1, 1, 1]} : vector<5x16x16xf32> to vector<1x16x16xf32>
    %280 = vector.shape_cast %279 : vector<1x16x16xf32> to vector<16x16xf32>
    %281 = arith.mulf %278, %280 : vector<16x16xf32>
    %282 = arith.addf %270, %281 : vector<16x16xf32>
    %283 = vector.extract_strided_slice %10 {offsets = [0, 232], sizes = [16, 8], strides = [1, 1]} : vector<16x256xf32> to vector<16x8xf32>
    %cst_93 = arith.constant dense<0.000000e+00> : vector<16x16xf32>
    %284 = tpu.matmul %283, %256, %cst_93 {dimension_numbers = #tpu.dot_dimension_numbers<[1], [1], [0], [0], [0, 0, 1, 0], [], []>} : vector<16x8xf32>, vector<16x8xf32>, vector<16x16xf32> -> vector<16x16xf32>
    %c0_94 = arith.constant 0 : index
    %c25 = arith.constant 25 : index
    %c0_95 = arith.constant 0 : index
    %285 = vector.load %arg9[%c0_94, %c25, %c0_95] : memref<2x28x128xf32, #tpu.memory_space<vmem>>, vector<1x1x128xf32>
    %286 = vector.shape_cast %285 : vector<1x1x128xf32> to vector<128xf32>
    %287 = vector.extract_strided_slice %286 {offsets = [0], sizes = [16], strides = [1]} : vector<128xf32> to vector<16xf32>
    %288 = vector.shape_cast %287 : vector<16xf32> to vector<1x16xf32>
    %289 = vector.broadcast %288 : vector<1x16xf32> to vector<16x16xf32>
    %290 = arith.addf %284, %289 : vector<16x16xf32>
    %291 = vector.extract_strided_slice %2 {offsets = [2, 0, 0], sizes = [1, 16, 16], strides = [1, 1, 1]} : vector<5x16x16xf32> to vector<1x16x16xf32>
    %292 = vector.shape_cast %291 : vector<1x16x16xf32> to vector<16x16xf32>
    %293 = arith.mulf %290, %292 : vector<16x16xf32>
    %294 = arith.addf %282, %293 : vector<16x16xf32>
    %295 = vector.extract_strided_slice %10 {offsets = [0, 240], sizes = [16, 8], strides = [1, 1]} : vector<16x256xf32> to vector<16x8xf32>
    %cst_96 = arith.constant dense<0.000000e+00> : vector<16x16xf32>
    %296 = tpu.matmul %295, %256, %cst_96 {dimension_numbers = #tpu.dot_dimension_numbers<[1], [1], [0], [0], [0, 0, 1, 0], [], []>} : vector<16x8xf32>, vector<16x8xf32>, vector<16x16xf32> -> vector<16x16xf32>
    %c0_97 = arith.constant 0 : index
    %c26 = arith.constant 26 : index
    %c0_98 = arith.constant 0 : index
    %297 = vector.load %arg9[%c0_97, %c26, %c0_98] : memref<2x28x128xf32, #tpu.memory_space<vmem>>, vector<1x1x128xf32>
    %298 = vector.shape_cast %297 : vector<1x1x128xf32> to vector<128xf32>
    %299 = vector.extract_strided_slice %298 {offsets = [0], sizes = [16], strides = [1]} : vector<128xf32> to vector<16xf32>
    %300 = vector.shape_cast %299 : vector<16xf32> to vector<1x16xf32>
    %301 = vector.broadcast %300 : vector<1x16xf32> to vector<16x16xf32>
    %302 = arith.addf %296, %301 : vector<16x16xf32>
    %303 = vector.extract_strided_slice %2 {offsets = [3, 0, 0], sizes = [1, 16, 16], strides = [1, 1, 1]} : vector<5x16x16xf32> to vector<1x16x16xf32>
    %304 = vector.shape_cast %303 : vector<1x16x16xf32> to vector<16x16xf32>
    %305 = arith.mulf %302, %304 : vector<16x16xf32>
    %306 = arith.addf %294, %305 : vector<16x16xf32>
    %307 = vector.extract_strided_slice %10 {offsets = [0, 248], sizes = [16, 8], strides = [1, 1]} : vector<16x256xf32> to vector<16x8xf32>
    %cst_99 = arith.constant dense<0.000000e+00> : vector<16x16xf32>
    %308 = tpu.matmul %307, %256, %cst_99 {dimension_numbers = #tpu.dot_dimension_numbers<[1], [1], [0], [0], [0, 0, 1, 0], [], []>} : vector<16x8xf32>, vector<16x8xf32>, vector<16x16xf32> -> vector<16x16xf32>
    %c0_100 = arith.constant 0 : index
    %c27 = arith.constant 27 : index
    %c0_101 = arith.constant 0 : index
    %309 = vector.load %arg9[%c0_100, %c27, %c0_101] : memref<2x28x128xf32, #tpu.memory_space<vmem>>, vector<1x1x128xf32>
    %310 = vector.shape_cast %309 : vector<1x1x128xf32> to vector<128xf32>
    %311 = vector.extract_strided_slice %310 {offsets = [0], sizes = [16], strides = [1]} : vector<128xf32> to vector<16xf32>
    %312 = vector.shape_cast %311 : vector<16xf32> to vector<1x16xf32>
    %313 = vector.broadcast %312 : vector<1x16xf32> to vector<16x16xf32>
    %314 = arith.addf %308, %313 : vector<16x16xf32>
    %315 = vector.extract_strided_slice %2 {offsets = [4, 0, 0], sizes = [1, 16, 16], strides = [1, 1, 1]} : vector<5x16x16xf32> to vector<1x16x16xf32>
    %316 = vector.shape_cast %315 : vector<1x16x16xf32> to vector<16x16xf32>
    %317 = arith.mulf %314, %316 : vector<16x16xf32>
    %318 = arith.addf %306, %317 : vector<16x16xf32>
    %cst_102 = arith.constant 0.353553385 : f32
    %319 = vector.broadcast %cst_102 : f32 to vector<16x16xf32>
    %320 = arith.mulf %318, %319 : vector<16x16xf32>
    %321 = arith.addf %320, %1 : vector<16x16xf32>
    %cst_103 = arith.constant dense<0xFF800000> : vector<16xf32>
    %322 = vector.multi_reduction <maximumf>, %321, %cst_103 [1] : vector<16x16xf32> to vector<16xf32>
    %323 = vector.shape_cast %322 : vector<16xf32> to vector<16x1xf32>
    %324 = vector.broadcast %323 : vector<16x1xf32> to vector<16x16xf32>
    %325 = arith.subf %321, %324 : vector<16x16xf32>
    %326 = math.exp %325 : vector<16x16xf32>
    %cst_104 = arith.constant dense<0.000000e+00> : vector<16xf32>
    %327 = vector.multi_reduction <add>, %326, %cst_104 [1] : vector<16x16xf32> to vector<16xf32>
    %328 = vector.shape_cast %327 : vector<16xf32> to vector<16x1xf32>
    %329 = vector.broadcast %328 : vector<16x1xf32> to vector<16x16xf32>
    %330 = arith.divf %326, %329 : vector<16x16xf32>
    %cst_105 = arith.constant dense<0.000000e+00> : vector<16x8xf32>
    %331 = tpu.matmul %330, %257, %cst_105 {dimension_numbers = #tpu.dot_dimension_numbers<[1], [0], [0], [1], [0, 0, 1, 1], [], []>} : vector<16x16xf32>, vector<16x8xf32>, vector<16x8xf32> -> vector<16x8xf32>
    %c0_106 = arith.constant 0 : index
    %c3 = arith.constant 3 : index
    %c0_107 = arith.constant 0 : index
    %c0_108 = arith.constant 0 : index
    %332 = vector.load %arg6[%c0_106, %c3, %c0_107, %c0_108] : memref<2x4x8x32xf32, #tpu.memory_space<vmem>>, vector<1x1x8x32xf32>
    %333 = vector.shape_cast %332 : vector<1x1x8x32xf32> to vector<8x32xf32>
    %cst_109 = arith.constant dense<0.000000e+00> : vector<16x32xf32>
    %334 = tpu.matmul %331, %333, %cst_109 {dimension_numbers = #tpu.dot_dimension_numbers<[1], [0], [0], [1], [0, 0, 1, 1], [], []>} : vector<16x8xf32>, vector<8x32xf32>, vector<16x32xf32> -> vector<16x32xf32>
    %335 = arith.addf %254, %334 : vector<16x32xf32>
    %c0_110 = arith.constant 0 : index
    %c0_111 = arith.constant 0 : index
    %c0_112 = arith.constant 0 : index
    %336 = vector.load %arg9[%c0_110, %c0_111, %c0_112] : memref<2x28x128xf32, #tpu.memory_space<vmem>>, vector<1x1x128xf32>
    %337 = vector.shape_cast %336 : vector<1x1x128xf32> to vector<128xf32>
    %338 = vector.extract_strided_slice %337 {offsets = [0], sizes = [32], strides = [1]} : vector<128xf32> to vector<32xf32>
    %c0_113 = arith.constant 0 : index
    %c1_114 = arith.constant 1 : index
    %c0_115 = arith.constant 0 : index
    %339 = vector.load %arg9[%c0_113, %c1_114, %c0_115] : memref<2x28x128xf32, #tpu.memory_space<vmem>>, vector<1x1x128xf32>
    %340 = vector.shape_cast %339 : vector<1x1x128xf32> to vector<128xf32>
    %341 = vector.extract_strided_slice %340 {offsets = [0], sizes = [32], strides = [1]} : vector<128xf32> to vector<32xf32>
    %c0_116 = arith.constant 0 : index
    %c2_117 = arith.constant 2 : index
    %c0_118 = arith.constant 0 : index
    %342 = vector.load %arg9[%c0_116, %c2_117, %c0_118] : memref<2x28x128xf32, #tpu.memory_space<vmem>>, vector<1x1x128xf32>
    %343 = vector.shape_cast %342 : vector<1x1x128xf32> to vector<128xf32>
    %344 = vector.extract_strided_slice %343 {offsets = [0], sizes = [32], strides = [1]} : vector<128xf32> to vector<32xf32>
    %345 = vector.shape_cast %338 : vector<32xf32> to vector<1x32xf32>
    %346 = vector.broadcast %345 : vector<1x32xf32> to vector<16x32xf32>
    %347 = arith.addf %335, %346 : vector<16x32xf32>
    %348 = arith.addf %347, %0 : vector<16x32xf32>
    %cst_119 = arith.constant dense<0.000000e+00> : vector<16xf32>
    %349 = vector.multi_reduction <add>, %348, %cst_119 [1] : vector<16x32xf32> to vector<16xf32>
    %350 = vector.shape_cast %349 : vector<16xf32> to vector<16x1xf32>
    %cst_120 = arith.constant 3.200000e+01 : f32
    %351 = vector.broadcast %cst_120 : f32 to vector<16x1xf32>
    %352 = arith.divf %350, %351 : vector<16x1xf32>
    %353 = vector.broadcast %352 : vector<16x1xf32> to vector<16x32xf32>
    %354 = arith.subf %348, %353 : vector<16x32xf32>
    %355 = arith.mulf %354, %354 : vector<16x32xf32>
    %cst_121 = arith.constant dense<0.000000e+00> : vector<16xf32>
    %356 = vector.multi_reduction <add>, %355, %cst_121 [1] : vector<16x32xf32> to vector<16xf32>
    %357 = vector.shape_cast %356 : vector<16xf32> to vector<16x1xf32>
    %cst_122 = arith.constant 3.200000e+01 : f32
    %358 = vector.broadcast %cst_122 : f32 to vector<16x1xf32>
    %359 = arith.divf %357, %358 : vector<16x1xf32>
    %360 = vector.broadcast %352 : vector<16x1xf32> to vector<16x32xf32>
    %361 = arith.subf %348, %360 : vector<16x32xf32>
    %cst_123 = arith.constant 9.99999996E-13 : f32
    %362 = vector.broadcast %cst_123 : f32 to vector<16x1xf32>
    %363 = arith.addf %359, %362 : vector<16x1xf32>
    %364 = math.sqrt %363 : vector<16x1xf32>
    %365 = vector.broadcast %364 : vector<16x1xf32> to vector<16x32xf32>
    %366 = arith.divf %361, %365 : vector<16x32xf32>
    %367 = vector.shape_cast %341 : vector<32xf32> to vector<1x32xf32>
    %368 = vector.broadcast %367 : vector<1x32xf32> to vector<16x32xf32>
    %369 = arith.mulf %366, %368 : vector<16x32xf32>
    %370 = vector.shape_cast %344 : vector<32xf32> to vector<1x32xf32>
    %371 = vector.broadcast %370 : vector<1x32xf32> to vector<16x32xf32>
    %372 = arith.addf %369, %371 : vector<16x32xf32>
    %c0_124 = arith.constant 0 : index
    %c3_125 = arith.constant 3 : index
    %c0_126 = arith.constant 0 : index
    %373 = vector.load %arg9[%c0_124, %c3_125, %c0_126] : memref<2x28x128xf32, #tpu.memory_space<vmem>>, vector<1x1x128xf32>
    %374 = vector.shape_cast %373 : vector<1x1x128xf32> to vector<128xf32>
    %375 = vector.extract_strided_slice %374 {offsets = [0], sizes = [64], strides = [1]} : vector<128xf32> to vector<64xf32>
    %c0_127 = arith.constant 0 : index
    %c0_128 = arith.constant 0 : index
    %c0_129 = arith.constant 0 : index
    %376 = vector.load %arg7[%c0_127, %c0_128, %c0_129] : memref<2x32x64xf32, #tpu.memory_space<vmem>>, vector<1x32x64xf32>
    %377 = vector.shape_cast %376 : vector<1x32x64xf32> to vector<32x64xf32>
    %cst_130 = arith.constant dense<0.000000e+00> : vector<16x64xf32>
    %378 = tpu.matmul %372, %377, %cst_130 {dimension_numbers = #tpu.dot_dimension_numbers<[1], [0], [0], [1], [0, 0, 1, 1], [], []>} : vector<16x32xf32>, vector<32x64xf32>, vector<16x64xf32> -> vector<16x64xf32>
    %379 = vector.shape_cast %375 : vector<64xf32> to vector<1x64xf32>
    %380 = vector.broadcast %379 : vector<1x64xf32> to vector<16x64xf32>
    %381 = arith.addf %378, %380 : vector<16x64xf32>
    %cst_131 = arith.constant 5.000000e-01 : f32
    %382 = vector.broadcast %cst_131 : f32 to vector<16x64xf32>
    %383 = arith.mulf %382, %381 : vector<16x64xf32>
    %cst_132 = arith.constant 4.471500e-02 : f32
    %384 = vector.broadcast %cst_132 : f32 to vector<16x64xf32>
    %385 = arith.mulf %384, %381 : vector<16x64xf32>
    %386 = arith.mulf %385, %381 : vector<16x64xf32>
    %387 = arith.mulf %386, %381 : vector<16x64xf32>
    %388 = arith.addf %381, %387 : vector<16x64xf32>
    %cst_133 = arith.constant 0.797884583 : f32
    %389 = vector.broadcast %cst_133 : f32 to vector<16x64xf32>
    %390 = arith.mulf %389, %388 : vector<16x64xf32>
    %391 = math.tanh %390 : vector<16x64xf32>
    %cst_134 = arith.constant 1.000000e+00 : f32
    %392 = vector.broadcast %cst_134 : f32 to vector<16x64xf32>
    %393 = arith.addf %392, %391 : vector<16x64xf32>
    %394 = arith.mulf %383, %393 : vector<16x64xf32>
    %c0_135 = arith.constant 0 : index
    %c4 = arith.constant 4 : index
    %c0_136 = arith.constant 0 : index
    %395 = vector.load %arg9[%c0_135, %c4, %c0_136] : memref<2x28x128xf32, #tpu.memory_space<vmem>>, vector<1x1x128xf32>
    %396 = vector.shape_cast %395 : vector<1x1x128xf32> to vector<128xf32>
    %397 = vector.extract_strided_slice %396 {offsets = [0], sizes = [32], strides = [1]} : vector<128xf32> to vector<32xf32>
    %c0_137 = arith.constant 0 : index
    %c5 = arith.constant 5 : index
    %c0_138 = arith.constant 0 : index
    %398 = vector.load %arg9[%c0_137, %c5, %c0_138] : memref<2x28x128xf32, #tpu.memory_space<vmem>>, vector<1x1x128xf32>
    %399 = vector.shape_cast %398 : vector<1x1x128xf32> to vector<128xf32>
    %400 = vector.extract_strided_slice %399 {offsets = [0], sizes = [32], strides = [1]} : vector<128xf32> to vector<32xf32>
    %c0_139 = arith.constant 0 : index
    %c6 = arith.constant 6 : index
    %c0_140 = arith.constant 0 : index
    %401 = vector.load %arg9[%c0_139, %c6, %c0_140] : memref<2x28x128xf32, #tpu.memory_space<vmem>>, vector<1x1x128xf32>
    %402 = vector.shape_cast %401 : vector<1x1x128xf32> to vector<128xf32>
    %403 = vector.extract_strided_slice %402 {offsets = [0], sizes = [32], strides = [1]} : vector<128xf32> to vector<32xf32>
    %c0_141 = arith.constant 0 : index
    %c0_142 = arith.constant 0 : index
    %c0_143 = arith.constant 0 : index
    %404 = vector.load %arg8[%c0_141, %c0_142, %c0_143] : memref<2x64x32xf32, #tpu.memory_space<vmem>>, vector<1x64x32xf32>
    %405 = vector.shape_cast %404 : vector<1x64x32xf32> to vector<64x32xf32>
    %cst_144 = arith.constant dense<0.000000e+00> : vector<16x32xf32>
    %406 = tpu.matmul %394, %405, %cst_144 {dimension_numbers = #tpu.dot_dimension_numbers<[1], [0], [0], [1], [0, 0, 1, 1], [], []>} : vector<16x64xf32>, vector<64x32xf32>, vector<16x32xf32> -> vector<16x32xf32>
    %407 = vector.shape_cast %397 : vector<32xf32> to vector<1x32xf32>
    %408 = vector.broadcast %407 : vector<1x32xf32> to vector<16x32xf32>
    %409 = arith.addf %406, %408 : vector<16x32xf32>
    %410 = arith.addf %409, %372 : vector<16x32xf32>
    %cst_145 = arith.constant dense<0.000000e+00> : vector<16xf32>
    %411 = vector.multi_reduction <add>, %410, %cst_145 [1] : vector<16x32xf32> to vector<16xf32>
    %412 = vector.shape_cast %411 : vector<16xf32> to vector<16x1xf32>
    %cst_146 = arith.constant 3.200000e+01 : f32
    %413 = vector.broadcast %cst_146 : f32 to vector<16x1xf32>
    %414 = arith.divf %412, %413 : vector<16x1xf32>
    %415 = vector.broadcast %414 : vector<16x1xf32> to vector<16x32xf32>
    %416 = arith.subf %410, %415 : vector<16x32xf32>
    %417 = arith.mulf %416, %416 : vector<16x32xf32>
    %cst_147 = arith.constant dense<0.000000e+00> : vector<16xf32>
    %418 = vector.multi_reduction <add>, %417, %cst_147 [1] : vector<16x32xf32> to vector<16xf32>
    %419 = vector.shape_cast %418 : vector<16xf32> to vector<16x1xf32>
    %cst_148 = arith.constant 3.200000e+01 : f32
    %420 = vector.broadcast %cst_148 : f32 to vector<16x1xf32>
    %421 = arith.divf %419, %420 : vector<16x1xf32>
    %422 = vector.broadcast %414 : vector<16x1xf32> to vector<16x32xf32>
    %423 = arith.subf %410, %422 : vector<16x32xf32>
    %cst_149 = arith.constant 9.99999996E-13 : f32
    %424 = vector.broadcast %cst_149 : f32 to vector<16x1xf32>
    %425 = arith.addf %421, %424 : vector<16x1xf32>
    %426 = math.sqrt %425 : vector<16x1xf32>
    %427 = vector.broadcast %426 : vector<16x1xf32> to vector<16x32xf32>
    %428 = arith.divf %423, %427 : vector<16x32xf32>
    %429 = vector.shape_cast %400 : vector<32xf32> to vector<1x32xf32>
    %430 = vector.broadcast %429 : vector<1x32xf32> to vector<16x32xf32>
    %431 = arith.mulf %428, %430 : vector<16x32xf32>
    %432 = vector.shape_cast %403 : vector<32xf32> to vector<1x32xf32>
    %433 = vector.broadcast %432 : vector<1x32xf32> to vector<16x32xf32>
    %434 = arith.addf %431, %433 : vector<16x32xf32>
    %c1_150 = arith.constant 1 : index
    %c0_151 = arith.constant 0 : index
    %c0_152 = arith.constant 0 : index
    %435 = vector.load %arg4[%c1_150, %c0_151, %c0_152] : memref<2x32x256xf32, #tpu.memory_space<vmem>>, vector<1x32x256xf32>
    %436 = vector.shape_cast %435 : vector<1x32x256xf32> to vector<32x256xf32>
    %cst_153 = arith.constant dense<0.000000e+00> : vector<16x256xf32>
    %437 = tpu.matmul %434, %436, %cst_153 {dimension_numbers = #tpu.dot_dimension_numbers<[1], [0], [0], [1], [0, 0, 1, 1], [], []>} : vector<16x32xf32>, vector<32x256xf32>, vector<16x256xf32> -> vector<16x256xf32>
    %c1_154 = arith.constant 1 : index
    %c0_155 = arith.constant 0 : index
    %c0_156 = arith.constant 0 : index
    %438 = vector.load %arg5[%c1_154, %c0_155, %c0_156] : memref<2x1x256xf32, #tpu.memory_space<vmem>>, vector<1x1x256xf32>
    %439 = vector.shape_cast %438 : vector<1x1x256xf32> to vector<256xf32>
    %440 = vector.shape_cast %439 : vector<256xf32> to vector<1x256xf32>
    %441 = vector.broadcast %440 : vector<1x256xf32> to vector<16x256xf32>
    %442 = arith.addf %437, %441 : vector<16x256xf32>
    %cst_157 = arith.constant 0.000000e+00 : f32
    %443 = vector.broadcast %cst_157 : f32 to vector<16x32xf32>
    %444 = vector.extract_strided_slice %442 {offsets = [0, 0], sizes = [16, 8], strides = [1, 1]} : vector<16x256xf32> to vector<16x8xf32>
    %445 = vector.extract_strided_slice %442 {offsets = [0, 8], sizes = [16, 8], strides = [1, 1]} : vector<16x256xf32> to vector<16x8xf32>
    %446 = vector.extract_strided_slice %442 {offsets = [0, 16], sizes = [16, 8], strides = [1, 1]} : vector<16x256xf32> to vector<16x8xf32>
    %cst_158 = arith.constant dense<0.000000e+00> : vector<16x16xf32>
    %447 = tpu.matmul %444, %445, %cst_158 {dimension_numbers = #tpu.dot_dimension_numbers<[1], [1], [0], [0], [0, 0, 1, 0], [], []>} : vector<16x8xf32>, vector<16x8xf32>, vector<16x16xf32> -> vector<16x16xf32>
    %448 = vector.extract_strided_slice %442 {offsets = [0, 24], sizes = [16, 8], strides = [1, 1]} : vector<16x256xf32> to vector<16x8xf32>
    %cst_159 = arith.constant dense<0.000000e+00> : vector<16x16xf32>
    %449 = tpu.matmul %448, %445, %cst_159 {dimension_numbers = #tpu.dot_dimension_numbers<[1], [1], [0], [0], [0, 0, 1, 0], [], []>} : vector<16x8xf32>, vector<16x8xf32>, vector<16x16xf32> -> vector<16x16xf32>
    %c1_160 = arith.constant 1 : index
    %c8_161 = arith.constant 8 : index
    %c0_162 = arith.constant 0 : index
    %450 = vector.load %arg9[%c1_160, %c8_161, %c0_162] : memref<2x28x128xf32, #tpu.memory_space<vmem>>, vector<1x1x128xf32>
    %451 = vector.shape_cast %450 : vector<1x1x128xf32> to vector<128xf32>
    %452 = vector.extract_strided_slice %451 {offsets = [0], sizes = [16], strides = [1]} : vector<128xf32> to vector<16xf32>
    %453 = vector.shape_cast %452 : vector<16xf32> to vector<1x16xf32>
    %454 = vector.broadcast %453 : vector<1x16xf32> to vector<16x16xf32>
    %455 = arith.addf %449, %454 : vector<16x16xf32>
    %456 = vector.extract_strided_slice %2 {offsets = [0, 0, 0], sizes = [1, 16, 16], strides = [1, 1, 1]} : vector<5x16x16xf32> to vector<1x16x16xf32>
    %457 = vector.shape_cast %456 : vector<1x16x16xf32> to vector<16x16xf32>
    %458 = arith.mulf %455, %457 : vector<16x16xf32>
    %459 = arith.addf %447, %458 : vector<16x16xf32>
    %460 = vector.extract_strided_slice %442 {offsets = [0, 32], sizes = [16, 8], strides = [1, 1]} : vector<16x256xf32> to vector<16x8xf32>
    %cst_163 = arith.constant dense<0.000000e+00> : vector<16x16xf32>
    %461 = tpu.matmul %460, %445, %cst_163 {dimension_numbers = #tpu.dot_dimension_numbers<[1], [1], [0], [0], [0, 0, 1, 0], [], []>} : vector<16x8xf32>, vector<16x8xf32>, vector<16x16xf32> -> vector<16x16xf32>
    %c1_164 = arith.constant 1 : index
    %c9_165 = arith.constant 9 : index
    %c0_166 = arith.constant 0 : index
    %462 = vector.load %arg9[%c1_164, %c9_165, %c0_166] : memref<2x28x128xf32, #tpu.memory_space<vmem>>, vector<1x1x128xf32>
    %463 = vector.shape_cast %462 : vector<1x1x128xf32> to vector<128xf32>
    %464 = vector.extract_strided_slice %463 {offsets = [0], sizes = [16], strides = [1]} : vector<128xf32> to vector<16xf32>
    %465 = vector.shape_cast %464 : vector<16xf32> to vector<1x16xf32>
    %466 = vector.broadcast %465 : vector<1x16xf32> to vector<16x16xf32>
    %467 = arith.addf %461, %466 : vector<16x16xf32>
    %468 = vector.extract_strided_slice %2 {offsets = [1, 0, 0], sizes = [1, 16, 16], strides = [1, 1, 1]} : vector<5x16x16xf32> to vector<1x16x16xf32>
    %469 = vector.shape_cast %468 : vector<1x16x16xf32> to vector<16x16xf32>
    %470 = arith.mulf %467, %469 : vector<16x16xf32>
    %471 = arith.addf %459, %470 : vector<16x16xf32>
    %472 = vector.extract_strided_slice %442 {offsets = [0, 40], sizes = [16, 8], strides = [1, 1]} : vector<16x256xf32> to vector<16x8xf32>
    %cst_167 = arith.constant dense<0.000000e+00> : vector<16x16xf32>
    %473 = tpu.matmul %472, %445, %cst_167 {dimension_numbers = #tpu.dot_dimension_numbers<[1], [1], [0], [0], [0, 0, 1, 0], [], []>} : vector<16x8xf32>, vector<16x8xf32>, vector<16x16xf32> -> vector<16x16xf32>
    %c1_168 = arith.constant 1 : index
    %c10_169 = arith.constant 10 : index
    %c0_170 = arith.constant 0 : index
    %474 = vector.load %arg9[%c1_168, %c10_169, %c0_170] : memref<2x28x128xf32, #tpu.memory_space<vmem>>, vector<1x1x128xf32>
    %475 = vector.shape_cast %474 : vector<1x1x128xf32> to vector<128xf32>
    %476 = vector.extract_strided_slice %475 {offsets = [0], sizes = [16], strides = [1]} : vector<128xf32> to vector<16xf32>
    %477 = vector.shape_cast %476 : vector<16xf32> to vector<1x16xf32>
    %478 = vector.broadcast %477 : vector<1x16xf32> to vector<16x16xf32>
    %479 = arith.addf %473, %478 : vector<16x16xf32>
    %480 = vector.extract_strided_slice %2 {offsets = [2, 0, 0], sizes = [1, 16, 16], strides = [1, 1, 1]} : vector<5x16x16xf32> to vector<1x16x16xf32>
    %481 = vector.shape_cast %480 : vector<1x16x16xf32> to vector<16x16xf32>
    %482 = arith.mulf %479, %481 : vector<16x16xf32>
    %483 = arith.addf %471, %482 : vector<16x16xf32>
    %484 = vector.extract_strided_slice %442 {offsets = [0, 48], sizes = [16, 8], strides = [1, 1]} : vector<16x256xf32> to vector<16x8xf32>
    %cst_171 = arith.constant dense<0.000000e+00> : vector<16x16xf32>
    %485 = tpu.matmul %484, %445, %cst_171 {dimension_numbers = #tpu.dot_dimension_numbers<[1], [1], [0], [0], [0, 0, 1, 0], [], []>} : vector<16x8xf32>, vector<16x8xf32>, vector<16x16xf32> -> vector<16x16xf32>
    %c1_172 = arith.constant 1 : index
    %c11_173 = arith.constant 11 : index
    %c0_174 = arith.constant 0 : index
    %486 = vector.load %arg9[%c1_172, %c11_173, %c0_174] : memref<2x28x128xf32, #tpu.memory_space<vmem>>, vector<1x1x128xf32>
    %487 = vector.shape_cast %486 : vector<1x1x128xf32> to vector<128xf32>
    %488 = vector.extract_strided_slice %487 {offsets = [0], sizes = [16], strides = [1]} : vector<128xf32> to vector<16xf32>
    %489 = vector.shape_cast %488 : vector<16xf32> to vector<1x16xf32>
    %490 = vector.broadcast %489 : vector<1x16xf32> to vector<16x16xf32>
    %491 = arith.addf %485, %490 : vector<16x16xf32>
    %492 = vector.extract_strided_slice %2 {offsets = [3, 0, 0], sizes = [1, 16, 16], strides = [1, 1, 1]} : vector<5x16x16xf32> to vector<1x16x16xf32>
    %493 = vector.shape_cast %492 : vector<1x16x16xf32> to vector<16x16xf32>
    %494 = arith.mulf %491, %493 : vector<16x16xf32>
    %495 = arith.addf %483, %494 : vector<16x16xf32>
    %496 = vector.extract_strided_slice %442 {offsets = [0, 56], sizes = [16, 8], strides = [1, 1]} : vector<16x256xf32> to vector<16x8xf32>
    %cst_175 = arith.constant dense<0.000000e+00> : vector<16x16xf32>
    %497 = tpu.matmul %496, %445, %cst_175 {dimension_numbers = #tpu.dot_dimension_numbers<[1], [1], [0], [0], [0, 0, 1, 0], [], []>} : vector<16x8xf32>, vector<16x8xf32>, vector<16x16xf32> -> vector<16x16xf32>
    %c1_176 = arith.constant 1 : index
    %c12_177 = arith.constant 12 : index
    %c0_178 = arith.constant 0 : index
    %498 = vector.load %arg9[%c1_176, %c12_177, %c0_178] : memref<2x28x128xf32, #tpu.memory_space<vmem>>, vector<1x1x128xf32>
    %499 = vector.shape_cast %498 : vector<1x1x128xf32> to vector<128xf32>
    %500 = vector.extract_strided_slice %499 {offsets = [0], sizes = [16], strides = [1]} : vector<128xf32> to vector<16xf32>
    %501 = vector.shape_cast %500 : vector<16xf32> to vector<1x16xf32>
    %502 = vector.broadcast %501 : vector<1x16xf32> to vector<16x16xf32>
    %503 = arith.addf %497, %502 : vector<16x16xf32>
    %504 = vector.extract_strided_slice %2 {offsets = [4, 0, 0], sizes = [1, 16, 16], strides = [1, 1, 1]} : vector<5x16x16xf32> to vector<1x16x16xf32>
    %505 = vector.shape_cast %504 : vector<1x16x16xf32> to vector<16x16xf32>
    %506 = arith.mulf %503, %505 : vector<16x16xf32>
    %507 = arith.addf %495, %506 : vector<16x16xf32>
    %cst_179 = arith.constant 0.353553385 : f32
    %508 = vector.broadcast %cst_179 : f32 to vector<16x16xf32>
    %509 = arith.mulf %507, %508 : vector<16x16xf32>
    %510 = arith.addf %509, %1 : vector<16x16xf32>
    %cst_180 = arith.constant dense<0xFF800000> : vector<16xf32>
    %511 = vector.multi_reduction <maximumf>, %510, %cst_180 [1] : vector<16x16xf32> to vector<16xf32>
    %512 = vector.shape_cast %511 : vector<16xf32> to vector<16x1xf32>
    %513 = vector.broadcast %512 : vector<16x1xf32> to vector<16x16xf32>
    %514 = arith.subf %510, %513 : vector<16x16xf32>
    %515 = math.exp %514 : vector<16x16xf32>
    %cst_181 = arith.constant dense<0.000000e+00> : vector<16xf32>
    %516 = vector.multi_reduction <add>, %515, %cst_181 [1] : vector<16x16xf32> to vector<16xf32>
    %517 = vector.shape_cast %516 : vector<16xf32> to vector<16x1xf32>
    %518 = vector.broadcast %517 : vector<16x1xf32> to vector<16x16xf32>
    %519 = arith.divf %515, %518 : vector<16x16xf32>
    %cst_182 = arith.constant dense<0.000000e+00> : vector<16x8xf32>
    %520 = tpu.matmul %519, %446, %cst_182 {dimension_numbers = #tpu.dot_dimension_numbers<[1], [0], [0], [1], [0, 0, 1, 1], [], []>} : vector<16x16xf32>, vector<16x8xf32>, vector<16x8xf32> -> vector<16x8xf32>
    %c1_183 = arith.constant 1 : index
    %c0_184 = arith.constant 0 : index
    %c0_185 = arith.constant 0 : index
    %c0_186 = arith.constant 0 : index
    %521 = vector.load %arg6[%c1_183, %c0_184, %c0_185, %c0_186] : memref<2x4x8x32xf32, #tpu.memory_space<vmem>>, vector<1x1x8x32xf32>
    %522 = vector.shape_cast %521 : vector<1x1x8x32xf32> to vector<8x32xf32>
    %cst_187 = arith.constant dense<0.000000e+00> : vector<16x32xf32>
    %523 = tpu.matmul %520, %522, %cst_187 {dimension_numbers = #tpu.dot_dimension_numbers<[1], [0], [0], [1], [0, 0, 1, 1], [], []>} : vector<16x8xf32>, vector<8x32xf32>, vector<16x32xf32> -> vector<16x32xf32>
    %524 = arith.addf %443, %523 : vector<16x32xf32>
    %525 = vector.extract_strided_slice %442 {offsets = [0, 64], sizes = [16, 8], strides = [1, 1]} : vector<16x256xf32> to vector<16x8xf32>
    %526 = vector.extract_strided_slice %442 {offsets = [0, 72], sizes = [16, 8], strides = [1, 1]} : vector<16x256xf32> to vector<16x8xf32>
    %527 = vector.extract_strided_slice %442 {offsets = [0, 80], sizes = [16, 8], strides = [1, 1]} : vector<16x256xf32> to vector<16x8xf32>
    %cst_188 = arith.constant dense<0.000000e+00> : vector<16x16xf32>
    %528 = tpu.matmul %525, %526, %cst_188 {dimension_numbers = #tpu.dot_dimension_numbers<[1], [1], [0], [0], [0, 0, 1, 0], [], []>} : vector<16x8xf32>, vector<16x8xf32>, vector<16x16xf32> -> vector<16x16xf32>
    %529 = vector.extract_strided_slice %442 {offsets = [0, 88], sizes = [16, 8], strides = [1, 1]} : vector<16x256xf32> to vector<16x8xf32>
    %cst_189 = arith.constant dense<0.000000e+00> : vector<16x16xf32>
    %530 = tpu.matmul %529, %526, %cst_189 {dimension_numbers = #tpu.dot_dimension_numbers<[1], [1], [0], [0], [0, 0, 1, 0], [], []>} : vector<16x8xf32>, vector<16x8xf32>, vector<16x16xf32> -> vector<16x16xf32>
    %c1_190 = arith.constant 1 : index
    %c13_191 = arith.constant 13 : index
    %c0_192 = arith.constant 0 : index
    %531 = vector.load %arg9[%c1_190, %c13_191, %c0_192] : memref<2x28x128xf32, #tpu.memory_space<vmem>>, vector<1x1x128xf32>
    %532 = vector.shape_cast %531 : vector<1x1x128xf32> to vector<128xf32>
    %533 = vector.extract_strided_slice %532 {offsets = [0], sizes = [16], strides = [1]} : vector<128xf32> to vector<16xf32>
    %534 = vector.shape_cast %533 : vector<16xf32> to vector<1x16xf32>
    %535 = vector.broadcast %534 : vector<1x16xf32> to vector<16x16xf32>
    %536 = arith.addf %530, %535 : vector<16x16xf32>
    %537 = vector.extract_strided_slice %2 {offsets = [0, 0, 0], sizes = [1, 16, 16], strides = [1, 1, 1]} : vector<5x16x16xf32> to vector<1x16x16xf32>
    %538 = vector.shape_cast %537 : vector<1x16x16xf32> to vector<16x16xf32>
    %539 = arith.mulf %536, %538 : vector<16x16xf32>
    %540 = arith.addf %528, %539 : vector<16x16xf32>
    %541 = vector.extract_strided_slice %442 {offsets = [0, 96], sizes = [16, 8], strides = [1, 1]} : vector<16x256xf32> to vector<16x8xf32>
    %cst_193 = arith.constant dense<0.000000e+00> : vector<16x16xf32>
    %542 = tpu.matmul %541, %526, %cst_193 {dimension_numbers = #tpu.dot_dimension_numbers<[1], [1], [0], [0], [0, 0, 1, 0], [], []>} : vector<16x8xf32>, vector<16x8xf32>, vector<16x16xf32> -> vector<16x16xf32>
    %c1_194 = arith.constant 1 : index
    %c14_195 = arith.constant 14 : index
    %c0_196 = arith.constant 0 : index
    %543 = vector.load %arg9[%c1_194, %c14_195, %c0_196] : memref<2x28x128xf32, #tpu.memory_space<vmem>>, vector<1x1x128xf32>
    %544 = vector.shape_cast %543 : vector<1x1x128xf32> to vector<128xf32>
    %545 = vector.extract_strided_slice %544 {offsets = [0], sizes = [16], strides = [1]} : vector<128xf32> to vector<16xf32>
    %546 = vector.shape_cast %545 : vector<16xf32> to vector<1x16xf32>
    %547 = vector.broadcast %546 : vector<1x16xf32> to vector<16x16xf32>
    %548 = arith.addf %542, %547 : vector<16x16xf32>
    %549 = vector.extract_strided_slice %2 {offsets = [1, 0, 0], sizes = [1, 16, 16], strides = [1, 1, 1]} : vector<5x16x16xf32> to vector<1x16x16xf32>
    %550 = vector.shape_cast %549 : vector<1x16x16xf32> to vector<16x16xf32>
    %551 = arith.mulf %548, %550 : vector<16x16xf32>
    %552 = arith.addf %540, %551 : vector<16x16xf32>
    %553 = vector.extract_strided_slice %442 {offsets = [0, 104], sizes = [16, 8], strides = [1, 1]} : vector<16x256xf32> to vector<16x8xf32>
    %cst_197 = arith.constant dense<0.000000e+00> : vector<16x16xf32>
    %554 = tpu.matmul %553, %526, %cst_197 {dimension_numbers = #tpu.dot_dimension_numbers<[1], [1], [0], [0], [0, 0, 1, 0], [], []>} : vector<16x8xf32>, vector<16x8xf32>, vector<16x16xf32> -> vector<16x16xf32>
    %c1_198 = arith.constant 1 : index
    %c15_199 = arith.constant 15 : index
    %c0_200 = arith.constant 0 : index
    %555 = vector.load %arg9[%c1_198, %c15_199, %c0_200] : memref<2x28x128xf32, #tpu.memory_space<vmem>>, vector<1x1x128xf32>
    %556 = vector.shape_cast %555 : vector<1x1x128xf32> to vector<128xf32>
    %557 = vector.extract_strided_slice %556 {offsets = [0], sizes = [16], strides = [1]} : vector<128xf32> to vector<16xf32>
    %558 = vector.shape_cast %557 : vector<16xf32> to vector<1x16xf32>
    %559 = vector.broadcast %558 : vector<1x16xf32> to vector<16x16xf32>
    %560 = arith.addf %554, %559 : vector<16x16xf32>
    %561 = vector.extract_strided_slice %2 {offsets = [2, 0, 0], sizes = [1, 16, 16], strides = [1, 1, 1]} : vector<5x16x16xf32> to vector<1x16x16xf32>
    %562 = vector.shape_cast %561 : vector<1x16x16xf32> to vector<16x16xf32>
    %563 = arith.mulf %560, %562 : vector<16x16xf32>
    %564 = arith.addf %552, %563 : vector<16x16xf32>
    %565 = vector.extract_strided_slice %442 {offsets = [0, 112], sizes = [16, 8], strides = [1, 1]} : vector<16x256xf32> to vector<16x8xf32>
    %cst_201 = arith.constant dense<0.000000e+00> : vector<16x16xf32>
    %566 = tpu.matmul %565, %526, %cst_201 {dimension_numbers = #tpu.dot_dimension_numbers<[1], [1], [0], [0], [0, 0, 1, 0], [], []>} : vector<16x8xf32>, vector<16x8xf32>, vector<16x16xf32> -> vector<16x16xf32>
    %c1_202 = arith.constant 1 : index
    %c16_203 = arith.constant 16 : index
    %c0_204 = arith.constant 0 : index
    %567 = vector.load %arg9[%c1_202, %c16_203, %c0_204] : memref<2x28x128xf32, #tpu.memory_space<vmem>>, vector<1x1x128xf32>
    %568 = vector.shape_cast %567 : vector<1x1x128xf32> to vector<128xf32>
    %569 = vector.extract_strided_slice %568 {offsets = [0], sizes = [16], strides = [1]} : vector<128xf32> to vector<16xf32>
    %570 = vector.shape_cast %569 : vector<16xf32> to vector<1x16xf32>
    %571 = vector.broadcast %570 : vector<1x16xf32> to vector<16x16xf32>
    %572 = arith.addf %566, %571 : vector<16x16xf32>
    %573 = vector.extract_strided_slice %2 {offsets = [3, 0, 0], sizes = [1, 16, 16], strides = [1, 1, 1]} : vector<5x16x16xf32> to vector<1x16x16xf32>
    %574 = vector.shape_cast %573 : vector<1x16x16xf32> to vector<16x16xf32>
    %575 = arith.mulf %572, %574 : vector<16x16xf32>
    %576 = arith.addf %564, %575 : vector<16x16xf32>
    %577 = vector.extract_strided_slice %442 {offsets = [0, 120], sizes = [16, 8], strides = [1, 1]} : vector<16x256xf32> to vector<16x8xf32>
    %cst_205 = arith.constant dense<0.000000e+00> : vector<16x16xf32>
    %578 = tpu.matmul %577, %526, %cst_205 {dimension_numbers = #tpu.dot_dimension_numbers<[1], [1], [0], [0], [0, 0, 1, 0], [], []>} : vector<16x8xf32>, vector<16x8xf32>, vector<16x16xf32> -> vector<16x16xf32>
    %c1_206 = arith.constant 1 : index
    %c17_207 = arith.constant 17 : index
    %c0_208 = arith.constant 0 : index
    %579 = vector.load %arg9[%c1_206, %c17_207, %c0_208] : memref<2x28x128xf32, #tpu.memory_space<vmem>>, vector<1x1x128xf32>
    %580 = vector.shape_cast %579 : vector<1x1x128xf32> to vector<128xf32>
    %581 = vector.extract_strided_slice %580 {offsets = [0], sizes = [16], strides = [1]} : vector<128xf32> to vector<16xf32>
    %582 = vector.shape_cast %581 : vector<16xf32> to vector<1x16xf32>
    %583 = vector.broadcast %582 : vector<1x16xf32> to vector<16x16xf32>
    %584 = arith.addf %578, %583 : vector<16x16xf32>
    %585 = vector.extract_strided_slice %2 {offsets = [4, 0, 0], sizes = [1, 16, 16], strides = [1, 1, 1]} : vector<5x16x16xf32> to vector<1x16x16xf32>
    %586 = vector.shape_cast %585 : vector<1x16x16xf32> to vector<16x16xf32>
    %587 = arith.mulf %584, %586 : vector<16x16xf32>
    %588 = arith.addf %576, %587 : vector<16x16xf32>
    %cst_209 = arith.constant 0.353553385 : f32
    %589 = vector.broadcast %cst_209 : f32 to vector<16x16xf32>
    %590 = arith.mulf %588, %589 : vector<16x16xf32>
    %591 = arith.addf %590, %1 : vector<16x16xf32>
    %cst_210 = arith.constant dense<0xFF800000> : vector<16xf32>
    %592 = vector.multi_reduction <maximumf>, %591, %cst_210 [1] : vector<16x16xf32> to vector<16xf32>
    %593 = vector.shape_cast %592 : vector<16xf32> to vector<16x1xf32>
    %594 = vector.broadcast %593 : vector<16x1xf32> to vector<16x16xf32>
    %595 = arith.subf %591, %594 : vector<16x16xf32>
    %596 = math.exp %595 : vector<16x16xf32>
    %cst_211 = arith.constant dense<0.000000e+00> : vector<16xf32>
    %597 = vector.multi_reduction <add>, %596, %cst_211 [1] : vector<16x16xf32> to vector<16xf32>
    %598 = vector.shape_cast %597 : vector<16xf32> to vector<16x1xf32>
    %599 = vector.broadcast %598 : vector<16x1xf32> to vector<16x16xf32>
    %600 = arith.divf %596, %599 : vector<16x16xf32>
    %cst_212 = arith.constant dense<0.000000e+00> : vector<16x8xf32>
    %601 = tpu.matmul %600, %527, %cst_212 {dimension_numbers = #tpu.dot_dimension_numbers<[1], [0], [0], [1], [0, 0, 1, 1], [], []>} : vector<16x16xf32>, vector<16x8xf32>, vector<16x8xf32> -> vector<16x8xf32>
    %c1_213 = arith.constant 1 : index
    %c1_214 = arith.constant 1 : index
    %c0_215 = arith.constant 0 : index
    %c0_216 = arith.constant 0 : index
    %602 = vector.load %arg6[%c1_213, %c1_214, %c0_215, %c0_216] : memref<2x4x8x32xf32, #tpu.memory_space<vmem>>, vector<1x1x8x32xf32>
    %603 = vector.shape_cast %602 : vector<1x1x8x32xf32> to vector<8x32xf32>
    %cst_217 = arith.constant dense<0.000000e+00> : vector<16x32xf32>
    %604 = tpu.matmul %601, %603, %cst_217 {dimension_numbers = #tpu.dot_dimension_numbers<[1], [0], [0], [1], [0, 0, 1, 1], [], []>} : vector<16x8xf32>, vector<8x32xf32>, vector<16x32xf32> -> vector<16x32xf32>
    %605 = arith.addf %524, %604 : vector<16x32xf32>
    %606 = vector.extract_strided_slice %442 {offsets = [0, 128], sizes = [16, 8], strides = [1, 1]} : vector<16x256xf32> to vector<16x8xf32>
    %607 = vector.extract_strided_slice %442 {offsets = [0, 136], sizes = [16, 8], strides = [1, 1]} : vector<16x256xf32> to vector<16x8xf32>
    %608 = vector.extract_strided_slice %442 {offsets = [0, 144], sizes = [16, 8], strides = [1, 1]} : vector<16x256xf32> to vector<16x8xf32>
    %cst_218 = arith.constant dense<0.000000e+00> : vector<16x16xf32>
    %609 = tpu.matmul %606, %607, %cst_218 {dimension_numbers = #tpu.dot_dimension_numbers<[1], [1], [0], [0], [0, 0, 1, 0], [], []>} : vector<16x8xf32>, vector<16x8xf32>, vector<16x16xf32> -> vector<16x16xf32>
    %610 = vector.extract_strided_slice %442 {offsets = [0, 152], sizes = [16, 8], strides = [1, 1]} : vector<16x256xf32> to vector<16x8xf32>
    %cst_219 = arith.constant dense<0.000000e+00> : vector<16x16xf32>
    %611 = tpu.matmul %610, %607, %cst_219 {dimension_numbers = #tpu.dot_dimension_numbers<[1], [1], [0], [0], [0, 0, 1, 0], [], []>} : vector<16x8xf32>, vector<16x8xf32>, vector<16x16xf32> -> vector<16x16xf32>
    %c1_220 = arith.constant 1 : index
    %c18_221 = arith.constant 18 : index
    %c0_222 = arith.constant 0 : index
    %612 = vector.load %arg9[%c1_220, %c18_221, %c0_222] : memref<2x28x128xf32, #tpu.memory_space<vmem>>, vector<1x1x128xf32>
    %613 = vector.shape_cast %612 : vector<1x1x128xf32> to vector<128xf32>
    %614 = vector.extract_strided_slice %613 {offsets = [0], sizes = [16], strides = [1]} : vector<128xf32> to vector<16xf32>
    %615 = vector.shape_cast %614 : vector<16xf32> to vector<1x16xf32>
    %616 = vector.broadcast %615 : vector<1x16xf32> to vector<16x16xf32>
    %617 = arith.addf %611, %616 : vector<16x16xf32>
    %618 = vector.extract_strided_slice %2 {offsets = [0, 0, 0], sizes = [1, 16, 16], strides = [1, 1, 1]} : vector<5x16x16xf32> to vector<1x16x16xf32>
    %619 = vector.shape_cast %618 : vector<1x16x16xf32> to vector<16x16xf32>
    %620 = arith.mulf %617, %619 : vector<16x16xf32>
    %621 = arith.addf %609, %620 : vector<16x16xf32>
    %622 = vector.extract_strided_slice %442 {offsets = [0, 160], sizes = [16, 8], strides = [1, 1]} : vector<16x256xf32> to vector<16x8xf32>
    %cst_223 = arith.constant dense<0.000000e+00> : vector<16x16xf32>
    %623 = tpu.matmul %622, %607, %cst_223 {dimension_numbers = #tpu.dot_dimension_numbers<[1], [1], [0], [0], [0, 0, 1, 0], [], []>} : vector<16x8xf32>, vector<16x8xf32>, vector<16x16xf32> -> vector<16x16xf32>
    %c1_224 = arith.constant 1 : index
    %c19_225 = arith.constant 19 : index
    %c0_226 = arith.constant 0 : index
    %624 = vector.load %arg9[%c1_224, %c19_225, %c0_226] : memref<2x28x128xf32, #tpu.memory_space<vmem>>, vector<1x1x128xf32>
    %625 = vector.shape_cast %624 : vector<1x1x128xf32> to vector<128xf32>
    %626 = vector.extract_strided_slice %625 {offsets = [0], sizes = [16], strides = [1]} : vector<128xf32> to vector<16xf32>
    %627 = vector.shape_cast %626 : vector<16xf32> to vector<1x16xf32>
    %628 = vector.broadcast %627 : vector<1x16xf32> to vector<16x16xf32>
    %629 = arith.addf %623, %628 : vector<16x16xf32>
    %630 = vector.extract_strided_slice %2 {offsets = [1, 0, 0], sizes = [1, 16, 16], strides = [1, 1, 1]} : vector<5x16x16xf32> to vector<1x16x16xf32>
    %631 = vector.shape_cast %630 : vector<1x16x16xf32> to vector<16x16xf32>
    %632 = arith.mulf %629, %631 : vector<16x16xf32>
    %633 = arith.addf %621, %632 : vector<16x16xf32>
    %634 = vector.extract_strided_slice %442 {offsets = [0, 168], sizes = [16, 8], strides = [1, 1]} : vector<16x256xf32> to vector<16x8xf32>
    %cst_227 = arith.constant dense<0.000000e+00> : vector<16x16xf32>
    %635 = tpu.matmul %634, %607, %cst_227 {dimension_numbers = #tpu.dot_dimension_numbers<[1], [1], [0], [0], [0, 0, 1, 0], [], []>} : vector<16x8xf32>, vector<16x8xf32>, vector<16x16xf32> -> vector<16x16xf32>
    %c1_228 = arith.constant 1 : index
    %c20_229 = arith.constant 20 : index
    %c0_230 = arith.constant 0 : index
    %636 = vector.load %arg9[%c1_228, %c20_229, %c0_230] : memref<2x28x128xf32, #tpu.memory_space<vmem>>, vector<1x1x128xf32>
    %637 = vector.shape_cast %636 : vector<1x1x128xf32> to vector<128xf32>
    %638 = vector.extract_strided_slice %637 {offsets = [0], sizes = [16], strides = [1]} : vector<128xf32> to vector<16xf32>
    %639 = vector.shape_cast %638 : vector<16xf32> to vector<1x16xf32>
    %640 = vector.broadcast %639 : vector<1x16xf32> to vector<16x16xf32>
    %641 = arith.addf %635, %640 : vector<16x16xf32>
    %642 = vector.extract_strided_slice %2 {offsets = [2, 0, 0], sizes = [1, 16, 16], strides = [1, 1, 1]} : vector<5x16x16xf32> to vector<1x16x16xf32>
    %643 = vector.shape_cast %642 : vector<1x16x16xf32> to vector<16x16xf32>
    %644 = arith.mulf %641, %643 : vector<16x16xf32>
    %645 = arith.addf %633, %644 : vector<16x16xf32>
    %646 = vector.extract_strided_slice %442 {offsets = [0, 176], sizes = [16, 8], strides = [1, 1]} : vector<16x256xf32> to vector<16x8xf32>
    %cst_231 = arith.constant dense<0.000000e+00> : vector<16x16xf32>
    %647 = tpu.matmul %646, %607, %cst_231 {dimension_numbers = #tpu.dot_dimension_numbers<[1], [1], [0], [0], [0, 0, 1, 0], [], []>} : vector<16x8xf32>, vector<16x8xf32>, vector<16x16xf32> -> vector<16x16xf32>
    %c1_232 = arith.constant 1 : index
    %c21_233 = arith.constant 21 : index
    %c0_234 = arith.constant 0 : index
    %648 = vector.load %arg9[%c1_232, %c21_233, %c0_234] : memref<2x28x128xf32, #tpu.memory_space<vmem>>, vector<1x1x128xf32>
    %649 = vector.shape_cast %648 : vector<1x1x128xf32> to vector<128xf32>
    %650 = vector.extract_strided_slice %649 {offsets = [0], sizes = [16], strides = [1]} : vector<128xf32> to vector<16xf32>
    %651 = vector.shape_cast %650 : vector<16xf32> to vector<1x16xf32>
    %652 = vector.broadcast %651 : vector<1x16xf32> to vector<16x16xf32>
    %653 = arith.addf %647, %652 : vector<16x16xf32>
    %654 = vector.extract_strided_slice %2 {offsets = [3, 0, 0], sizes = [1, 16, 16], strides = [1, 1, 1]} : vector<5x16x16xf32> to vector<1x16x16xf32>
    %655 = vector.shape_cast %654 : vector<1x16x16xf32> to vector<16x16xf32>
    %656 = arith.mulf %653, %655 : vector<16x16xf32>
    %657 = arith.addf %645, %656 : vector<16x16xf32>
    %658 = vector.extract_strided_slice %442 {offsets = [0, 184], sizes = [16, 8], strides = [1, 1]} : vector<16x256xf32> to vector<16x8xf32>
    %cst_235 = arith.constant dense<0.000000e+00> : vector<16x16xf32>
    %659 = tpu.matmul %658, %607, %cst_235 {dimension_numbers = #tpu.dot_dimension_numbers<[1], [1], [0], [0], [0, 0, 1, 0], [], []>} : vector<16x8xf32>, vector<16x8xf32>, vector<16x16xf32> -> vector<16x16xf32>
    %c1_236 = arith.constant 1 : index
    %c22_237 = arith.constant 22 : index
    %c0_238 = arith.constant 0 : index
    %660 = vector.load %arg9[%c1_236, %c22_237, %c0_238] : memref<2x28x128xf32, #tpu.memory_space<vmem>>, vector<1x1x128xf32>
    %661 = vector.shape_cast %660 : vector<1x1x128xf32> to vector<128xf32>
    %662 = vector.extract_strided_slice %661 {offsets = [0], sizes = [16], strides = [1]} : vector<128xf32> to vector<16xf32>
    %663 = vector.shape_cast %662 : vector<16xf32> to vector<1x16xf32>
    %664 = vector.broadcast %663 : vector<1x16xf32> to vector<16x16xf32>
    %665 = arith.addf %659, %664 : vector<16x16xf32>
    %666 = vector.extract_strided_slice %2 {offsets = [4, 0, 0], sizes = [1, 16, 16], strides = [1, 1, 1]} : vector<5x16x16xf32> to vector<1x16x16xf32>
    %667 = vector.shape_cast %666 : vector<1x16x16xf32> to vector<16x16xf32>
    %668 = arith.mulf %665, %667 : vector<16x16xf32>
    %669 = arith.addf %657, %668 : vector<16x16xf32>
    %cst_239 = arith.constant 0.353553385 : f32
    %670 = vector.broadcast %cst_239 : f32 to vector<16x16xf32>
    %671 = arith.mulf %669, %670 : vector<16x16xf32>
    %672 = arith.addf %671, %1 : vector<16x16xf32>
    %cst_240 = arith.constant dense<0xFF800000> : vector<16xf32>
    %673 = vector.multi_reduction <maximumf>, %672, %cst_240 [1] : vector<16x16xf32> to vector<16xf32>
    %674 = vector.shape_cast %673 : vector<16xf32> to vector<16x1xf32>
    %675 = vector.broadcast %674 : vector<16x1xf32> to vector<16x16xf32>
    %676 = arith.subf %672, %675 : vector<16x16xf32>
    %677 = math.exp %676 : vector<16x16xf32>
    %cst_241 = arith.constant dense<0.000000e+00> : vector<16xf32>
    %678 = vector.multi_reduction <add>, %677, %cst_241 [1] : vector<16x16xf32> to vector<16xf32>
    %679 = vector.shape_cast %678 : vector<16xf32> to vector<16x1xf32>
    %680 = vector.broadcast %679 : vector<16x1xf32> to vector<16x16xf32>
    %681 = arith.divf %677, %680 : vector<16x16xf32>
    %cst_242 = arith.constant dense<0.000000e+00> : vector<16x8xf32>
    %682 = tpu.matmul %681, %608, %cst_242 {dimension_numbers = #tpu.dot_dimension_numbers<[1], [0], [0], [1], [0, 0, 1, 1], [], []>} : vector<16x16xf32>, vector<16x8xf32>, vector<16x8xf32> -> vector<16x8xf32>
    %c1_243 = arith.constant 1 : index
    %c2_244 = arith.constant 2 : index
    %c0_245 = arith.constant 0 : index
    %c0_246 = arith.constant 0 : index
    %683 = vector.load %arg6[%c1_243, %c2_244, %c0_245, %c0_246] : memref<2x4x8x32xf32, #tpu.memory_space<vmem>>, vector<1x1x8x32xf32>
    %684 = vector.shape_cast %683 : vector<1x1x8x32xf32> to vector<8x32xf32>
    %cst_247 = arith.constant dense<0.000000e+00> : vector<16x32xf32>
    %685 = tpu.matmul %682, %684, %cst_247 {dimension_numbers = #tpu.dot_dimension_numbers<[1], [0], [0], [1], [0, 0, 1, 1], [], []>} : vector<16x8xf32>, vector<8x32xf32>, vector<16x32xf32> -> vector<16x32xf32>
    %686 = arith.addf %605, %685 : vector<16x32xf32>
    %687 = vector.extract_strided_slice %442 {offsets = [0, 192], sizes = [16, 8], strides = [1, 1]} : vector<16x256xf32> to vector<16x8xf32>
    %688 = vector.extract_strided_slice %442 {offsets = [0, 200], sizes = [16, 8], strides = [1, 1]} : vector<16x256xf32> to vector<16x8xf32>
    %689 = vector.extract_strided_slice %442 {offsets = [0, 208], sizes = [16, 8], strides = [1, 1]} : vector<16x256xf32> to vector<16x8xf32>
    %cst_248 = arith.constant dense<0.000000e+00> : vector<16x16xf32>
    %690 = tpu.matmul %687, %688, %cst_248 {dimension_numbers = #tpu.dot_dimension_numbers<[1], [1], [0], [0], [0, 0, 1, 0], [], []>} : vector<16x8xf32>, vector<16x8xf32>, vector<16x16xf32> -> vector<16x16xf32>
    %691 = vector.extract_strided_slice %442 {offsets = [0, 216], sizes = [16, 8], strides = [1, 1]} : vector<16x256xf32> to vector<16x8xf32>
    %cst_249 = arith.constant dense<0.000000e+00> : vector<16x16xf32>
    %692 = tpu.matmul %691, %688, %cst_249 {dimension_numbers = #tpu.dot_dimension_numbers<[1], [1], [0], [0], [0, 0, 1, 0], [], []>} : vector<16x8xf32>, vector<16x8xf32>, vector<16x16xf32> -> vector<16x16xf32>
    %c1_250 = arith.constant 1 : index
    %c23_251 = arith.constant 23 : index
    %c0_252 = arith.constant 0 : index
    %693 = vector.load %arg9[%c1_250, %c23_251, %c0_252] : memref<2x28x128xf32, #tpu.memory_space<vmem>>, vector<1x1x128xf32>
    %694 = vector.shape_cast %693 : vector<1x1x128xf32> to vector<128xf32>
    %695 = vector.extract_strided_slice %694 {offsets = [0], sizes = [16], strides = [1]} : vector<128xf32> to vector<16xf32>
    %696 = vector.shape_cast %695 : vector<16xf32> to vector<1x16xf32>
    %697 = vector.broadcast %696 : vector<1x16xf32> to vector<16x16xf32>
    %698 = arith.addf %692, %697 : vector<16x16xf32>
    %699 = vector.extract_strided_slice %2 {offsets = [0, 0, 0], sizes = [1, 16, 16], strides = [1, 1, 1]} : vector<5x16x16xf32> to vector<1x16x16xf32>
    %700 = vector.shape_cast %699 : vector<1x16x16xf32> to vector<16x16xf32>
    %701 = arith.mulf %698, %700 : vector<16x16xf32>
    %702 = arith.addf %690, %701 : vector<16x16xf32>
    %703 = vector.extract_strided_slice %442 {offsets = [0, 224], sizes = [16, 8], strides = [1, 1]} : vector<16x256xf32> to vector<16x8xf32>
    %cst_253 = arith.constant dense<0.000000e+00> : vector<16x16xf32>
    %704 = tpu.matmul %703, %688, %cst_253 {dimension_numbers = #tpu.dot_dimension_numbers<[1], [1], [0], [0], [0, 0, 1, 0], [], []>} : vector<16x8xf32>, vector<16x8xf32>, vector<16x16xf32> -> vector<16x16xf32>
    %c1_254 = arith.constant 1 : index
    %c24_255 = arith.constant 24 : index
    %c0_256 = arith.constant 0 : index
    %705 = vector.load %arg9[%c1_254, %c24_255, %c0_256] : memref<2x28x128xf32, #tpu.memory_space<vmem>>, vector<1x1x128xf32>
    %706 = vector.shape_cast %705 : vector<1x1x128xf32> to vector<128xf32>
    %707 = vector.extract_strided_slice %706 {offsets = [0], sizes = [16], strides = [1]} : vector<128xf32> to vector<16xf32>
    %708 = vector.shape_cast %707 : vector<16xf32> to vector<1x16xf32>
    %709 = vector.broadcast %708 : vector<1x16xf32> to vector<16x16xf32>
    %710 = arith.addf %704, %709 : vector<16x16xf32>
    %711 = vector.extract_strided_slice %2 {offsets = [1, 0, 0], sizes = [1, 16, 16], strides = [1, 1, 1]} : vector<5x16x16xf32> to vector<1x16x16xf32>
    %712 = vector.shape_cast %711 : vector<1x16x16xf32> to vector<16x16xf32>
    %713 = arith.mulf %710, %712 : vector<16x16xf32>
    %714 = arith.addf %702, %713 : vector<16x16xf32>
    %715 = vector.extract_strided_slice %442 {offsets = [0, 232], sizes = [16, 8], strides = [1, 1]} : vector<16x256xf32> to vector<16x8xf32>
    %cst_257 = arith.constant dense<0.000000e+00> : vector<16x16xf32>
    %716 = tpu.matmul %715, %688, %cst_257 {dimension_numbers = #tpu.dot_dimension_numbers<[1], [1], [0], [0], [0, 0, 1, 0], [], []>} : vector<16x8xf32>, vector<16x8xf32>, vector<16x16xf32> -> vector<16x16xf32>
    %c1_258 = arith.constant 1 : index
    %c25_259 = arith.constant 25 : index
    %c0_260 = arith.constant 0 : index
    %717 = vector.load %arg9[%c1_258, %c25_259, %c0_260] : memref<2x28x128xf32, #tpu.memory_space<vmem>>, vector<1x1x128xf32>
    %718 = vector.shape_cast %717 : vector<1x1x128xf32> to vector<128xf32>
    %719 = vector.extract_strided_slice %718 {offsets = [0], sizes = [16], strides = [1]} : vector<128xf32> to vector<16xf32>
    %720 = vector.shape_cast %719 : vector<16xf32> to vector<1x16xf32>
    %721 = vector.broadcast %720 : vector<1x16xf32> to vector<16x16xf32>
    %722 = arith.addf %716, %721 : vector<16x16xf32>
    %723 = vector.extract_strided_slice %2 {offsets = [2, 0, 0], sizes = [1, 16, 16], strides = [1, 1, 1]} : vector<5x16x16xf32> to vector<1x16x16xf32>
    %724 = vector.shape_cast %723 : vector<1x16x16xf32> to vector<16x16xf32>
    %725 = arith.mulf %722, %724 : vector<16x16xf32>
    %726 = arith.addf %714, %725 : vector<16x16xf32>
    %727 = vector.extract_strided_slice %442 {offsets = [0, 240], sizes = [16, 8], strides = [1, 1]} : vector<16x256xf32> to vector<16x8xf32>
    %cst_261 = arith.constant dense<0.000000e+00> : vector<16x16xf32>
    %728 = tpu.matmul %727, %688, %cst_261 {dimension_numbers = #tpu.dot_dimension_numbers<[1], [1], [0], [0], [0, 0, 1, 0], [], []>} : vector<16x8xf32>, vector<16x8xf32>, vector<16x16xf32> -> vector<16x16xf32>
    %c1_262 = arith.constant 1 : index
    %c26_263 = arith.constant 26 : index
    %c0_264 = arith.constant 0 : index
    %729 = vector.load %arg9[%c1_262, %c26_263, %c0_264] : memref<2x28x128xf32, #tpu.memory_space<vmem>>, vector<1x1x128xf32>
    %730 = vector.shape_cast %729 : vector<1x1x128xf32> to vector<128xf32>
    %731 = vector.extract_strided_slice %730 {offsets = [0], sizes = [16], strides = [1]} : vector<128xf32> to vector<16xf32>
    %732 = vector.shape_cast %731 : vector<16xf32> to vector<1x16xf32>
    %733 = vector.broadcast %732 : vector<1x16xf32> to vector<16x16xf32>
    %734 = arith.addf %728, %733 : vector<16x16xf32>
    %735 = vector.extract_strided_slice %2 {offsets = [3, 0, 0], sizes = [1, 16, 16], strides = [1, 1, 1]} : vector<5x16x16xf32> to vector<1x16x16xf32>
    %736 = vector.shape_cast %735 : vector<1x16x16xf32> to vector<16x16xf32>
    %737 = arith.mulf %734, %736 : vector<16x16xf32>
    %738 = arith.addf %726, %737 : vector<16x16xf32>
    %739 = vector.extract_strided_slice %442 {offsets = [0, 248], sizes = [16, 8], strides = [1, 1]} : vector<16x256xf32> to vector<16x8xf32>
    %cst_265 = arith.constant dense<0.000000e+00> : vector<16x16xf32>
    %740 = tpu.matmul %739, %688, %cst_265 {dimension_numbers = #tpu.dot_dimension_numbers<[1], [1], [0], [0], [0, 0, 1, 0], [], []>} : vector<16x8xf32>, vector<16x8xf32>, vector<16x16xf32> -> vector<16x16xf32>
    %c1_266 = arith.constant 1 : index
    %c27_267 = arith.constant 27 : index
    %c0_268 = arith.constant 0 : index
    %741 = vector.load %arg9[%c1_266, %c27_267, %c0_268] : memref<2x28x128xf32, #tpu.memory_space<vmem>>, vector<1x1x128xf32>
    %742 = vector.shape_cast %741 : vector<1x1x128xf32> to vector<128xf32>
    %743 = vector.extract_strided_slice %742 {offsets = [0], sizes = [16], strides = [1]} : vector<128xf32> to vector<16xf32>
    %744 = vector.shape_cast %743 : vector<16xf32> to vector<1x16xf32>
    %745 = vector.broadcast %744 : vector<1x16xf32> to vector<16x16xf32>
    %746 = arith.addf %740, %745 : vector<16x16xf32>
    %747 = vector.extract_strided_slice %2 {offsets = [4, 0, 0], sizes = [1, 16, 16], strides = [1, 1, 1]} : vector<5x16x16xf32> to vector<1x16x16xf32>
    %748 = vector.shape_cast %747 : vector<1x16x16xf32> to vector<16x16xf32>
    %749 = arith.mulf %746, %748 : vector<16x16xf32>
    %750 = arith.addf %738, %749 : vector<16x16xf32>
    %cst_269 = arith.constant 0.353553385 : f32
    %751 = vector.broadcast %cst_269 : f32 to vector<16x16xf32>
    %752 = arith.mulf %750, %751 : vector<16x16xf32>
    %753 = arith.addf %752, %1 : vector<16x16xf32>
    %cst_270 = arith.constant dense<0xFF800000> : vector<16xf32>
    %754 = vector.multi_reduction <maximumf>, %753, %cst_270 [1] : vector<16x16xf32> to vector<16xf32>
    %755 = vector.shape_cast %754 : vector<16xf32> to vector<16x1xf32>
    %756 = vector.broadcast %755 : vector<16x1xf32> to vector<16x16xf32>
    %757 = arith.subf %753, %756 : vector<16x16xf32>
    %758 = math.exp %757 : vector<16x16xf32>
    %cst_271 = arith.constant dense<0.000000e+00> : vector<16xf32>
    %759 = vector.multi_reduction <add>, %758, %cst_271 [1] : vector<16x16xf32> to vector<16xf32>
    %760 = vector.shape_cast %759 : vector<16xf32> to vector<16x1xf32>
    %761 = vector.broadcast %760 : vector<16x1xf32> to vector<16x16xf32>
    %762 = arith.divf %758, %761 : vector<16x16xf32>
    %cst_272 = arith.constant dense<0.000000e+00> : vector<16x8xf32>
    %763 = tpu.matmul %762, %689, %cst_272 {dimension_numbers = #tpu.dot_dimension_numbers<[1], [0], [0], [1], [0, 0, 1, 1], [], []>} : vector<16x16xf32>, vector<16x8xf32>, vector<16x8xf32> -> vector<16x8xf32>
    %c1_273 = arith.constant 1 : index
    %c3_274 = arith.constant 3 : index
    %c0_275 = arith.constant 0 : index
    %c0_276 = arith.constant 0 : index
    %764 = vector.load %arg6[%c1_273, %c3_274, %c0_275, %c0_276] : memref<2x4x8x32xf32, #tpu.memory_space<vmem>>, vector<1x1x8x32xf32>
    %765 = vector.shape_cast %764 : vector<1x1x8x32xf32> to vector<8x32xf32>
    %cst_277 = arith.constant dense<0.000000e+00> : vector<16x32xf32>
    %766 = tpu.matmul %763, %765, %cst_277 {dimension_numbers = #tpu.dot_dimension_numbers<[1], [0], [0], [1], [0, 0, 1, 1], [], []>} : vector<16x8xf32>, vector<8x32xf32>, vector<16x32xf32> -> vector<16x32xf32>
    %767 = arith.addf %686, %766 : vector<16x32xf32>
    %c1_278 = arith.constant 1 : index
    %c0_279 = arith.constant 0 : index
    %c0_280 = arith.constant 0 : index
    %768 = vector.load %arg9[%c1_278, %c0_279, %c0_280] : memref<2x28x128xf32, #tpu.memory_space<vmem>>, vector<1x1x128xf32>
    %769 = vector.shape_cast %768 : vector<1x1x128xf32> to vector<128xf32>
    %770 = vector.extract_strided_slice %769 {offsets = [0], sizes = [32], strides = [1]} : vector<128xf32> to vector<32xf32>
    %c1_281 = arith.constant 1 : index
    %c1_282 = arith.constant 1 : index
    %c0_283 = arith.constant 0 : index
    %771 = vector.load %arg9[%c1_281, %c1_282, %c0_283] : memref<2x28x128xf32, #tpu.memory_space<vmem>>, vector<1x1x128xf32>
    %772 = vector.shape_cast %771 : vector<1x1x128xf32> to vector<128xf32>
    %773 = vector.extract_strided_slice %772 {offsets = [0], sizes = [32], strides = [1]} : vector<128xf32> to vector<32xf32>
    %c1_284 = arith.constant 1 : index
    %c2_285 = arith.constant 2 : index
    %c0_286 = arith.constant 0 : index
    %774 = vector.load %arg9[%c1_284, %c2_285, %c0_286] : memref<2x28x128xf32, #tpu.memory_space<vmem>>, vector<1x1x128xf32>
    %775 = vector.shape_cast %774 : vector<1x1x128xf32> to vector<128xf32>
    %776 = vector.extract_strided_slice %775 {offsets = [0], sizes = [32], strides = [1]} : vector<128xf32> to vector<32xf32>
    %777 = vector.shape_cast %770 : vector<32xf32> to vector<1x32xf32>
    %778 = vector.broadcast %777 : vector<1x32xf32> to vector<16x32xf32>
    %779 = arith.addf %767, %778 : vector<16x32xf32>
    %780 = arith.addf %779, %434 : vector<16x32xf32>
    %cst_287 = arith.constant dense<0.000000e+00> : vector<16xf32>
    %781 = vector.multi_reduction <add>, %780, %cst_287 [1] : vector<16x32xf32> to vector<16xf32>
    %782 = vector.shape_cast %781 : vector<16xf32> to vector<16x1xf32>
    %cst_288 = arith.constant 3.200000e+01 : f32
    %783 = vector.broadcast %cst_288 : f32 to vector<16x1xf32>
    %784 = arith.divf %782, %783 : vector<16x1xf32>
    %785 = vector.broadcast %784 : vector<16x1xf32> to vector<16x32xf32>
    %786 = arith.subf %780, %785 : vector<16x32xf32>
    %787 = arith.mulf %786, %786 : vector<16x32xf32>
    %cst_289 = arith.constant dense<0.000000e+00> : vector<16xf32>
    %788 = vector.multi_reduction <add>, %787, %cst_289 [1] : vector<16x32xf32> to vector<16xf32>
    %789 = vector.shape_cast %788 : vector<16xf32> to vector<16x1xf32>
    %cst_290 = arith.constant 3.200000e+01 : f32
    %790 = vector.broadcast %cst_290 : f32 to vector<16x1xf32>
    %791 = arith.divf %789, %790 : vector<16x1xf32>
    %792 = vector.broadcast %784 : vector<16x1xf32> to vector<16x32xf32>
    %793 = arith.subf %780, %792 : vector<16x32xf32>
    %cst_291 = arith.constant 9.99999996E-13 : f32
    %794 = vector.broadcast %cst_291 : f32 to vector<16x1xf32>
    %795 = arith.addf %791, %794 : vector<16x1xf32>
    %796 = math.sqrt %795 : vector<16x1xf32>
    %797 = vector.broadcast %796 : vector<16x1xf32> to vector<16x32xf32>
    %798 = arith.divf %793, %797 : vector<16x32xf32>
    %799 = vector.shape_cast %773 : vector<32xf32> to vector<1x32xf32>
    %800 = vector.broadcast %799 : vector<1x32xf32> to vector<16x32xf32>
    %801 = arith.mulf %798, %800 : vector<16x32xf32>
    %802 = vector.shape_cast %776 : vector<32xf32> to vector<1x32xf32>
    %803 = vector.broadcast %802 : vector<1x32xf32> to vector<16x32xf32>
    %804 = arith.addf %801, %803 : vector<16x32xf32>
    %c1_292 = arith.constant 1 : index
    %c3_293 = arith.constant 3 : index
    %c0_294 = arith.constant 0 : index
    %805 = vector.load %arg9[%c1_292, %c3_293, %c0_294] : memref<2x28x128xf32, #tpu.memory_space<vmem>>, vector<1x1x128xf32>
    %806 = vector.shape_cast %805 : vector<1x1x128xf32> to vector<128xf32>
    %807 = vector.extract_strided_slice %806 {offsets = [0], sizes = [64], strides = [1]} : vector<128xf32> to vector<64xf32>
    %c1_295 = arith.constant 1 : index
    %c0_296 = arith.constant 0 : index
    %c0_297 = arith.constant 0 : index
    %808 = vector.load %arg7[%c1_295, %c0_296, %c0_297] : memref<2x32x64xf32, #tpu.memory_space<vmem>>, vector<1x32x64xf32>
    %809 = vector.shape_cast %808 : vector<1x32x64xf32> to vector<32x64xf32>
    %cst_298 = arith.constant dense<0.000000e+00> : vector<16x64xf32>
    %810 = tpu.matmul %804, %809, %cst_298 {dimension_numbers = #tpu.dot_dimension_numbers<[1], [0], [0], [1], [0, 0, 1, 1], [], []>} : vector<16x32xf32>, vector<32x64xf32>, vector<16x64xf32> -> vector<16x64xf32>
    %811 = vector.shape_cast %807 : vector<64xf32> to vector<1x64xf32>
    %812 = vector.broadcast %811 : vector<1x64xf32> to vector<16x64xf32>
    %813 = arith.addf %810, %812 : vector<16x64xf32>
    %cst_299 = arith.constant 5.000000e-01 : f32
    %814 = vector.broadcast %cst_299 : f32 to vector<16x64xf32>
    %815 = arith.mulf %814, %813 : vector<16x64xf32>
    %cst_300 = arith.constant 4.471500e-02 : f32
    %816 = vector.broadcast %cst_300 : f32 to vector<16x64xf32>
    %817 = arith.mulf %816, %813 : vector<16x64xf32>
    %818 = arith.mulf %817, %813 : vector<16x64xf32>
    %819 = arith.mulf %818, %813 : vector<16x64xf32>
    %820 = arith.addf %813, %819 : vector<16x64xf32>
    %cst_301 = arith.constant 0.797884583 : f32
    %821 = vector.broadcast %cst_301 : f32 to vector<16x64xf32>
    %822 = arith.mulf %821, %820 : vector<16x64xf32>
    %823 = math.tanh %822 : vector<16x64xf32>
    %cst_302 = arith.constant 1.000000e+00 : f32
    %824 = vector.broadcast %cst_302 : f32 to vector<16x64xf32>
    %825 = arith.addf %824, %823 : vector<16x64xf32>
    %826 = arith.mulf %815, %825 : vector<16x64xf32>
    %c1_303 = arith.constant 1 : index
    %c4_304 = arith.constant 4 : index
    %c0_305 = arith.constant 0 : index
    %827 = vector.load %arg9[%c1_303, %c4_304, %c0_305] : memref<2x28x128xf32, #tpu.memory_space<vmem>>, vector<1x1x128xf32>
    %828 = vector.shape_cast %827 : vector<1x1x128xf32> to vector<128xf32>
    %829 = vector.extract_strided_slice %828 {offsets = [0], sizes = [32], strides = [1]} : vector<128xf32> to vector<32xf32>
    %c1_306 = arith.constant 1 : index
    %c5_307 = arith.constant 5 : index
    %c0_308 = arith.constant 0 : index
    %830 = vector.load %arg9[%c1_306, %c5_307, %c0_308] : memref<2x28x128xf32, #tpu.memory_space<vmem>>, vector<1x1x128xf32>
    %831 = vector.shape_cast %830 : vector<1x1x128xf32> to vector<128xf32>
    %832 = vector.extract_strided_slice %831 {offsets = [0], sizes = [32], strides = [1]} : vector<128xf32> to vector<32xf32>
    %c1_309 = arith.constant 1 : index
    %c6_310 = arith.constant 6 : index
    %c0_311 = arith.constant 0 : index
    %833 = vector.load %arg9[%c1_309, %c6_310, %c0_311] : memref<2x28x128xf32, #tpu.memory_space<vmem>>, vector<1x1x128xf32>
    %834 = vector.shape_cast %833 : vector<1x1x128xf32> to vector<128xf32>
    %835 = vector.extract_strided_slice %834 {offsets = [0], sizes = [32], strides = [1]} : vector<128xf32> to vector<32xf32>
    %c1_312 = arith.constant 1 : index
    %c0_313 = arith.constant 0 : index
    %c0_314 = arith.constant 0 : index
    %836 = vector.load %arg8[%c1_312, %c0_313, %c0_314] : memref<2x64x32xf32, #tpu.memory_space<vmem>>, vector<1x64x32xf32>
    %837 = vector.shape_cast %836 : vector<1x64x32xf32> to vector<64x32xf32>
    %cst_315 = arith.constant dense<0.000000e+00> : vector<16x32xf32>
    %838 = tpu.matmul %826, %837, %cst_315 {dimension_numbers = #tpu.dot_dimension_numbers<[1], [0], [0], [1], [0, 0, 1, 1], [], []>} : vector<16x64xf32>, vector<64x32xf32>, vector<16x32xf32> -> vector<16x32xf32>
    %839 = vector.shape_cast %829 : vector<32xf32> to vector<1x32xf32>
    %840 = vector.broadcast %839 : vector<1x32xf32> to vector<16x32xf32>
    %841 = arith.addf %838, %840 : vector<16x32xf32>
    %842 = arith.addf %841, %804 : vector<16x32xf32>
    %cst_316 = arith.constant dense<0.000000e+00> : vector<16xf32>
    %843 = vector.multi_reduction <add>, %842, %cst_316 [1] : vector<16x32xf32> to vector<16xf32>
    %844 = vector.shape_cast %843 : vector<16xf32> to vector<16x1xf32>
    %cst_317 = arith.constant 3.200000e+01 : f32
    %845 = vector.broadcast %cst_317 : f32 to vector<16x1xf32>
    %846 = arith.divf %844, %845 : vector<16x1xf32>
    %847 = vector.broadcast %846 : vector<16x1xf32> to vector<16x32xf32>
    %848 = arith.subf %842, %847 : vector<16x32xf32>
    %849 = arith.mulf %848, %848 : vector<16x32xf32>
    %cst_318 = arith.constant dense<0.000000e+00> : vector<16xf32>
    %850 = vector.multi_reduction <add>, %849, %cst_318 [1] : vector<16x32xf32> to vector<16xf32>
    %851 = vector.shape_cast %850 : vector<16xf32> to vector<16x1xf32>
    %cst_319 = arith.constant 3.200000e+01 : f32
    %852 = vector.broadcast %cst_319 : f32 to vector<16x1xf32>
    %853 = arith.divf %851, %852 : vector<16x1xf32>
    %854 = vector.broadcast %846 : vector<16x1xf32> to vector<16x32xf32>
    %855 = arith.subf %842, %854 : vector<16x32xf32>
    %cst_320 = arith.constant 9.99999996E-13 : f32
    %856 = vector.broadcast %cst_320 : f32 to vector<16x1xf32>
    %857 = arith.addf %853, %856 : vector<16x1xf32>
    %858 = math.sqrt %857 : vector<16x1xf32>
    %859 = vector.broadcast %858 : vector<16x1xf32> to vector<16x32xf32>
    %860 = arith.divf %855, %859 : vector<16x32xf32>
    %861 = vector.shape_cast %832 : vector<32xf32> to vector<1x32xf32>
    %862 = vector.broadcast %861 : vector<1x32xf32> to vector<16x32xf32>
    %863 = arith.mulf %860, %862 : vector<16x32xf32>
    %864 = vector.shape_cast %835 : vector<32xf32> to vector<1x32xf32>
    %865 = vector.broadcast %864 : vector<1x32xf32> to vector<16x32xf32>
    %866 = arith.addf %863, %865 : vector<16x32xf32>
    %c0_321 = arith.constant 0 : index
    %c0_322 = arith.constant 0 : index
    %867 = vector.load %arg10[%c0_321, %c0_322] : memref<16x32xf32, #tpu.memory_space<vmem>>, vector<16x32xf32>
    tpu.vector_store %arg10[%c0_321, %c0_322], %866 {strides = array<i32>} : memref<16x32xf32, #tpu.memory_space<vmem>>, vector<16x32xf32>,
    return
  }
  func.func @transform_0(%arg0: i32) -> (i32, i32) {
    %c0_i32 = arith.constant 0 : i32
    %c0_i32_0 = arith.constant 0 : i32
    %c0_i32_1 = arith.constant 0 : i32
    return %c0_i32, %c0_i32_0 : i32, i32
  }
  func.func @transform_1(%arg0: i32) -> (i32, i32) {
    %c0_i32 = arith.constant 0 : i32
    %c0_i32_0 = arith.constant 0 : i32
    %c0_i32_1 = arith.constant 0 : i32
    return %c0_i32, %c0_i32_0 : i32, i32
  }
  func.func @transform_2(%arg0: i32) -> (i32, i32, i32) {
    %c0_i32 = arith.constant 0 : i32
    %c0_i32_0 = arith.constant 0 : i32
    %c0_i32_1 = arith.constant 0 : i32
    %c0_i32_2 = arith.constant 0 : i32
    return %c0_i32, %c0_i32_0, %c0_i32_1 : i32, i32, i32
  }
  func.func @transform_3(%arg0: i32) -> (i32, i32, i32) {
    %c0_i32 = arith.constant 0 : i32
    %c0_i32_0 = arith.constant 0 : i32
    %c0_i32_1 = arith.constant 0 : i32
    %c0_i32_2 = arith.constant 0 : i32
    return %c0_i32, %c0_i32_0, %c0_i32_1 : i32, i32, i32
  }
  func.func @transform_4(%arg0: i32) -> (i32, i32, i32) {
    %c0_i32 = arith.constant 0 : i32
    %c0_i32_0 = arith.constant 0 : i32
    %c0_i32_1 = arith.constant 0 : i32
    %c0_i32_2 = arith.constant 0 : i32
    return %c0_i32, %c0_i32_0, %c0_i32_1 : i32, i32, i32
  }
  func.func @transform_5(%arg0: i32) -> (i32, i32, i32, i32) {
    %c0_i32 = arith.constant 0 : i32
    %c0_i32_0 = arith.constant 0 : i32
    %c0_i32_1 = arith.constant 0 : i32
    %c0_i32_2 = arith.constant 0 : i32
    %c0_i32_3 = arith.constant 0 : i32
    return %c0_i32, %c0_i32_0, %c0_i32_1, %c0_i32_2 : i32, i32, i32, i32
  }
  func.func @transform_6(%arg0: i32) -> (i32, i32, i32) {
    %c0_i32 = arith.constant 0 : i32
    %c0_i32_0 = arith.constant 0 : i32
    %c0_i32_1 = arith.constant 0 : i32
    %c0_i32_2 = arith.constant 0 : i32
    return %c0_i32, %c0_i32_0, %c0_i32_1 : i32, i32, i32
  }
  func.func @transform_7(%arg0: i32) -> (i32, i32, i32) {
    %c0_i32 = arith.constant 0 : i32
    %c0_i32_0 = arith.constant 0 : i32
    %c0_i32_1 = arith.constant 0 : i32
    %c0_i32_2 = arith.constant 0 : i32
    return %c0_i32, %c0_i32_0, %c0_i32_1 : i32, i32, i32
  }
  func.func @transform_8(%arg0: i32) -> (i32, i32, i32) {
    %c0_i32 = arith.constant 0 : i32
    %c0_i32_0 = arith.constant 0 : i32
    %c0_i32_1 = arith.constant 0 : i32
    %c0_i32_2 = arith.constant 0 : i32
    return %c0_i32, %c0_i32_0, %c0_i32_1 : i32, i32, i32
  }
  func.func @transform_9(%arg0: i32) -> (i32, i32) {
    %c0_i32 = arith.constant 0 : i32
    %c0_i32_0 = arith.constant 0 : i32
    %c0_i32_1 = arith.constant 0 : i32
    return %c0_i32, %c0_i32_0 : i32, i32
  }
}

</mosaic_0001>

<llo_original>
// kernel: bert_encoder_pallas.1
$region0: #{bert_encoder_pallas.1}
  #allocation0 [shape = 'u32[]', space=smem, size = 0x4, offset = 0x4, fixed_abs, tag = 'smem constant byte address 0x4 - core index']
  #allocation1 [shape = 'u32[144,128]{1,0:T(1,128)}', space=vmem, size = 0x12000, scoped, tag = 'internal scratch']
  %s0 = inlined_call_operand.vmem [shape: f32[16,32], index: 0, kind: input, shape index: {}]
  %s1 = inlined_call_operand.vmem [shape: f32[16,16], index: 1, kind: input, shape index: {}]
  %s2 = inlined_call_operand.vmem [shape: f32[5,16,16], index: 2, kind: input, shape index: {}]
  %s3 = inlined_call_operand.vmem [shape: f32[2,32,256], index: 3, kind: input, shape index: {}]
  %s4 = inlined_call_operand.vmem [shape: f32[2,1,256], index: 4, kind: input, shape index: {}]
  %s5 = inlined_call_operand.vmem [shape: f32[2,4,8,32], index: 5, kind: input, shape index: {}]
  %s6 = inlined_call_operand.vmem [shape: f32[2,32,64], index: 6, kind: input, shape index: {}]
  %s7 = inlined_call_operand.vmem [shape: f32[2,64,32], index: 7, kind: input, shape index: {}]
  %s8 = inlined_call_operand.vmem [shape: f32[2,28,128], index: 8, kind: input, shape index: {}]
  %s9 = inlined_call_operand.hbm [shape: f32[16,32], index: 9, kind: output, shape index: {}]
  %s10 = sld [smem:[#allocation0]]
  $region46: #{bert_encoder_pallas.1} parent=0
    _
  %s12 = ssub.s32 1, %s10
  %s13 = scalar_select 0, %s12, %s10
  $region1: #{bert_encoder_pallas.1} parent=0
    #allocation2 [shape = 'u8[8192]{0}', space=vmem, size = 0x2000, scoped, tag = 'output window, operand 0, single buffered']
    #allocation3 [shape = 's32[1]{0}', space=sflag, size = 0x4, scoped, tag = 'scoped memory for bert_encoder_pallas.1']
    %14 = vsyncpa [#allocation3], 0
    // Predicated region
    $region2: #{bert_encoder_pallas.1} parent=1 // pred_check
      _
    $region3: #{bert_encoder_pallas.1} parent=1 // pred_check_branch
      %16 = sbr.rel (0) target = $region5
    $region4: #{bert_encoder_pallas.1} parent=1 // pred_region
      _
    $region5: #{bert_encoder_pallas.1} parent=1 // pred_fallthru
      _
    // Predicated region
    $region6: #{bert_encoder_pallas.1} parent=1 // pred_check
      _
    $region7: #{bert_encoder_pallas.1} parent=1 // pred_check_branch
      %18 = sbr.rel (0) target = $region9
    $region8: #{bert_encoder_pallas.1} parent=1 // pred_region
      _
    $region9: #{bert_encoder_pallas.1} parent=1 // pred_fallthru
      _
    // Predicated region
    $region10: #{bert_encoder_pallas.1} parent=1 // pred_check
      _
    $region11: #{bert_encoder_pallas.1} parent=1 // pred_check_branch
      %20 = sbr.rel (0) target = $region13
    $region12: #{bert_encoder_pallas.1} parent=1 // pred_region
      _
    $region13: #{bert_encoder_pallas.1} parent=1 // pred_fallthru
      _
    // Predicated region
    $region14: #{bert_encoder_pallas.1} parent=1 // pred_check
      _
    $region15: #{bert_encoder_pallas.1} parent=1 // pred_check_branch
      %22 = sbr.rel (0) target = $region17
    $region16: #{bert_encoder_pallas.1} parent=1 // pred_region
      _
    $region17: #{bert_encoder_pallas.1} parent=1 // pred_fallthru
      _
    // Predicated region
    $region18: #{bert_encoder_pallas.1} parent=1 // pred_check
      _
    $region19: #{bert_encoder_pallas.1} parent=1 // pred_check_branch
      %24 = sbr.rel (0) target = $region21
    $region20: #{bert_encoder_pallas.1} parent=1 // pred_region
      _
    $region21: #{bert_encoder_pallas.1} parent=1 // pred_fallthru
      _
    // Predicated region
    $region22: #{bert_encoder_pallas.1} parent=1 // pred_check
      _
    $region23: #{bert_encoder_pallas.1} parent=1 // pred_check_branch
      %26 = sbr.rel (0) target = $region25
    $region24: #{bert_encoder_pallas.1} parent=1 // pred_region
      _
    $region25: #{bert_encoder_pallas.1} parent=1 // pred_fallthru
      _
    // Predicated region
    $region26: #{bert_encoder_pallas.1} parent=1 // pred_check
      _
    $region27: #{bert_encoder_pallas.1} parent=1 // pred_check_branch
      %28 = sbr.rel (0) target = $region29
    $region28: #{bert_encoder_pallas.1} parent=1 // pred_region
      _
    $region29: #{bert_encoder_pallas.1} parent=1 // pred_fallthru
      _
    // Predicated region
    $region30: #{bert_encoder_pallas.1} parent=1 // pred_check
      _
    $region31: #{bert_encoder_pallas.1} parent=1 // pred_check_branch
      %30 = sbr.rel (0) target = $region33
    $region32: #{bert_encoder_pallas.1} parent=1 // pred_region
      _
    $region33: #{bert_encoder_pallas.1} parent=1 // pred_fallthru
      _
    // Predicated region
    $region34: #{bert_encoder_pallas.1} parent=1 // pred_check
      _
    $region35: #{bert_encoder_pallas.1} parent=1 // pred_check_branch
      %32 = sbr.rel (0) target = $region37
    $region36: #{bert_encoder_pallas.1} parent=1 // pred_region
      _
    $region37: #{bert_encoder_pallas.1} parent=1 // pred_fallthru
      _
    %v33 = vld [vmem:[%s0] sm:$0xff]
    %v34 = vld [vmem:[%s0 + $0x8] sm:$0xff]
    %v35 = vld [vmem:[%s1] sm:$0xff]
    %v36 = vld [vmem:[%s1 + $0x8] sm:$0xff]
    %v37 = vld [vmem:[%s2] sm:$0xff]
    %v38 = vld [vmem:[%s2 + $0x8] sm:$0xff]
    %v39 = vld [vmem:[%s2 + $0x10] sm:$0xff]
    %v40 = vld [vmem:[%s2 + $0x18] sm:$0xff]
    %v41 = vld [vmem:[%s2 + $0x20] sm:$0xff]
    %v42 = vld [vmem:[%s2 + $0x28] sm:$0xff]
    %v43 = vld [vmem:[%s2 + $0x30] sm:$0xff]
    %v44 = vld [vmem:[%s2 + $0x38] sm:$0xff]
    %v45 = vld [vmem:[%s2 + $0x40] sm:$0xff]
    %v46 = vld [vmem:[%s2 + $0x48] sm:$0xff]
    %v47 = vld [vmem:[%s3] sm:$0xff]
    %v48 = vld [vmem:[%s3 + $0x8] sm:$0xff]
    %v49 = vld [vmem:[%s3 + $0x10] sm:$0xff]
    %v50 = vld [vmem:[%s3 + $0x18] sm:$0xff]
    %v51 = vld [vmem:[%s3 + $0x20] sm:$0xff]
    %v52 = vld [vmem:[%s3 + $0x28] sm:$0xff]
    %v53 = vld [vmem:[%s3 + $0x30] sm:$0xff]
    %v54 = vld [vmem:[%s3 + $0x38] sm:$0xff]
    %v55 = vld [vmem:[%s4] sm:$0x3]
    %v57 = vlaneseq
    %v58 = vshrl.u32 %v57, 7
    %v59 = vsub.s32 0, %v58
    %v60 = vrot.slane %v55, %v59
    %v61 = vlaneseq
    %v62 = vshrl.u32 %v61, 7
    %v63 = vsub.s32 1, %v62
    %v64 = vrot.slane %v55, %v63
    %vm67 = vcmask 261120
    %v69 = vsel %vm67, %v33, 0
    %v72 = vsel %vm67, %v34, 0
    %74 = vmatprep.subr.mxu0 0.0
    %75 = vmatpush1.msra.mxu0 0.0
    %76 = vmatprep.subr.mxu0 0.0
    %77 = vmatpush1.msra.mxu0 0.0
    %78 = vmatprep.subr.mxu0 0.0
    %79 = vmatpush1.msra.mxu0 0.0
    %80 = vmatprep.subr.mxu0 0.0
    %81 = vmatpush1.msra.mxu0 0.0
    %82 = vmatprep.subr.mxu0 0.0
    %83 = vmatpush1.msra.mxu0 0.0
    %84 = vmatprep.subr.mxu0 0.0
    %85 = vmatpush1.msra.mxu0 0.0
    %86 = vmatprep.subr.mxu0 0.0
    %87 = vmatpush1.msra.mxu0 0.0
    %88 = vmatprep.subr.mxu0 0.0
    %89 = vmatpush1.msra.mxu0 0.0
    %90 = vmatprep.subr.mxu0 0.0
    %91 = vmatpush1.msra.mxu0 0.0
    %92 = vmatprep.subr.mxu0 0.0
    %93 = vmatpush1.msra.mxu0 0.0
    %94 = vmatprep.subr.mxu0 0.0
    %95 = vmatpush1.msra.mxu0 0.0
    %96 = vmatprep.subr.mxu0 0.0
    %97 = vmatpush1.msra.mxu0 0.0
    %98 = vmatprep.subr.mxu0 %v54
    %99 = vmatpush1.msra.mxu0 %v53
    %100 = vmatprep.subr.mxu0 %v52
    %101 = vmatpush1.msra.mxu0 %v51
    %102 = vmatprep.subr.mxu0 %v50
    %103 = vmatpush1.msra.mxu0 %v49
    %104 = vmatprep.subr.mxu0 %v48
    %105 = vmatpush1.msra.mxu0 %v47
    %106 = vmatprep.subr.mxu0 0.0
    %107 = vmatpush2.msra.mxu0 0.0
    %108 = vmatprep.subr.mxu0 0.0
    %109 = vmatpush2.msra.mxu0 0.0
    %110 = vmatprep.subr.mxu0 0.0
    %111 = vmatpush2.msra.mxu0 0.0
    %112 = vmatprep.subr.mxu0 0.0
    %113 = vmatpush2.msra.mxu0 0.0
    %114 = vmatprep.subr.mxu0 0.0
    %115 = vmatpush2.msra.mxu0 0.0
    %116 = vmatprep.subr.mxu0 0.0
    %117 = vmatpush2.msra.mxu0 0.0
    %118 = vmatprep.subr.mxu0 0.0
    %119 = vmatpush2.msra.mxu0 0.0
    %120 = vmatprep.subr.mxu0 0.0
    %121 = vmatpush2.msra.mxu0 0.0
    %122 = vmatprep.subr.mxu0 0.0
    %123 = vmatpush2.msra.mxu0 0.0
    %124 = vmatprep.subr.mxu0 0.0
    %125 = vmatpush2.msra.mxu0 0.0
    %126 = vmatprep.subr.mxu0 0.0
    %127 = vmatpush2.msra.mxu0 0.0
    %128 = vmatprep.subr.mxu0 0.0
    %129 = vmatpush2.msra.mxu0 0.0
    %130 = vmatprep.subr.mxu0 0.0
    %131 = vmatpush2.msra.mxu0 0.0
    %132 = vmatprep.subr.mxu0 0.0
    %133 = vmatpush2.msra.mxu0 0.0
    %134 = vmatprep.subr.mxu0 0.0
    %135 = vmatpush2.msra.mxu0 0.0
    %136 = vmatprep.subr.mxu0 0.0
    %137 = vmatpush2.msra.mxu0 0.0
    %138 = vmatprep.mubr.f32.mxu0 0.0
    %139 = vmatmul.mubr.f32.gmra.mxu0 %v69
    %v140 = vpop.f32.mrf.mxu0
    %v141 = vadd.f32 %v60, %v140
    %v142 = vpop.f32.mrf.mxu0
    %v143 = vadd.f32 %v64, %v142
    %144 = vmatprep.mubr.f32.mxu0 0.0
    %145 = vmatmul.mubr.f32.gmra.mxu0 %v72
    %v146 = vpop.f32.mrf.mxu0
    %v147 = vadd.f32 %v60, %v146
    %v148 = vpop.f32.mrf.mxu0
    %v149 = vadd.f32 %v64, %v148
    %150 = vdwg.mxu0
    %v151 = vld [vmem:[%s8 + $0x8] sm:$0x1]
    %v152 = vlaneseq
    %v153 = vshrl.u32 %v152, 7
    %v154 = vsub.s32 0, %v153
    %v155 = vrot.slane %v151, %v154
    %158 = vrot.lane.b32.xlu0 %v141, 104
    %v159 = vpop.permute.xlu0 %158
    %160 = vrot.lane.b32.xlu0 %v147, 104
    %v161 = vpop.permute.xlu0 %160
    %162 = vrot.lane.b32.xlu0 %v141, 120
    %v163 = vpop.permute.xlu0 %162
    %164 = vrot.lane.b32.xlu0 %v147, 120
    %v165 = vpop.permute.xlu0 %164
    %vm166 = vcmask 64512
    %v167 = vsel %vm166, %v159, 0
    %v169 = vsel %vm166, %v161, 0
    %v171 = vsel %vm166, %v163, 0
    %v173 = vsel %vm166, %v165, 0
    %175 = vmatprep.subr.mxu0 0.0
    %176 = vmatpush1.xpose.msra.mxu0 0.0
    %177 = vmatprep.subr.mxu0 0.0
    %178 = vmatpush1.xpose.msra.mxu0 0.0
    %179 = vmatprep.subr.mxu0 0.0
    %180 = vmatpush1.xpose.msra.mxu0 0.0
    %181 = vmatprep.subr.mxu0 0.0
    %182 = vmatpush1.xpose.msra.mxu0 0.0
    %183 = vmatprep.subr.mxu0 0.0
    %184 = vmatpush1.xpose.msra.mxu0 0.0
    %185 = vmatprep.subr.mxu0 0.0
    %186 = vmatpush1.xpose.msra.mxu0 0.0
    %187 = vmatprep.subr.mxu0 0.0
    %188 = vmatpush1.xpose.msra.mxu0 0.0
    %189 = vmatprep.subr.mxu0 0.0
    %190 = vmatpush1.xpose.msra.mxu0 0.0
    %191 = vmatprep.subr.mxu0 0.0
    %192 = vmatpush1.xpose.msra.mxu0 0.0
    %193 = vmatprep.subr.mxu0 0.0
    %194 = vmatpush1.xpose.msra.mxu0 0.0
    %195 = vmatprep.subr.mxu0 0.0
    %196 = vmatpush1.xpose.msra.mxu0 0.0
    %197 = vmatprep.subr.mxu0 0.0
    %198 = vmatpush1.xpose.msra.mxu0 0.0
    %199 = vmatprep.subr.mxu0 0.0
    %200 = vmatpush1.xpose.msra.mxu0 0.0
    %201 = vmatprep.subr.mxu0 0.0
    %202 = vmatpush1.xpose.msra.mxu0 0.0
    %203 = vmatprep.subr.mxu0 0.0
    %204 = vmatpush1.xpose.msra.mxu0 %v173
    %205 = vmatprep.subr.mxu0 0.0
    %206 = vmatpush1.xpose.msra.mxu0 %v171
    %207 = vmatprep.subr.mxu0 0.0
    %208 = vmatpush2.xpose.msra.mxu0 0.0
    %209 = vmatprep.subr.mxu0 0.0
    %210 = vmatpush2.xpose.msra.mxu0 0.0
    %211 = vmatprep.subr.mxu0 0.0
    %212 = vmatpush2.xpose.msra.mxu0 0.0
    %213 = vmatprep.subr.mxu0 0.0
    %214 = vmatpush2.xpose.msra.mxu0 0.0
    %215 = vmatprep.subr.mxu0 0.0
    %216 = vmatpush2.xpose.msra.mxu0 0.0
    %217 = vmatprep.subr.mxu0 0.0
    %218 = vmatpush2.xpose.msra.mxu0 0.0
    %219 = vmatprep.subr.mxu0 0.0
    %220 = vmatpush2.xpose.msra.mxu0 0.0
    %221 = vmatprep.subr.mxu0 0.0
    %222 = vmatpush2.xpose.msra.mxu0 0.0
    %223 = vmatprep.subr.mxu0 0.0
    %224 = vmatpush2.xpose.msra.mxu0 0.0
    %225 = vmatprep.subr.mxu0 0.0
    %226 = vmatpush2.xpose.msra.mxu0 0.0
    %227 = vmatprep.subr.mxu0 0.0
    %228 = vmatpush2.xpose.msra.mxu0 0.0
    %229 = vmatprep.subr.mxu0 0.0
    %230 = vmatpush2.xpose.msra.mxu0 0.0
    %231 = vmatprep.subr.mxu0 0.0
    %232 = vmatpush2.xpose.msra.mxu0 0.0
    %233 = vmatprep.subr.mxu0 0.0
    %234 = vmatpush2.xpose.msra.mxu0 0.0
    %235 = vmatprep.subr.mxu0 0.0
    %236 = vmatpush2.xpose.msra.mxu0 0.0
    %237 = vmatprep.subr.mxu0 0.0
    %238 = vmatpush2.xpose.msra.mxu0 0.0
    %239 = vmatprep.mubr.f32.mxu0 0.0
    %240 = vmatmul.mubr.f32.gmra.mxu0 %v167
    %v241 = vpop.f32.mrf.mxu0
    %v242 = vadd.f32 %v155, %v241
    %v243 = vpop.f32.mrf.mxu0
    %244 = vmatprep.mubr.f32.mxu0 0.0
    %245 = vmatmul.mubr.f32.gmra.mxu0 %v169
    %v246 = vpop.f32.mrf.mxu0
    %v247 = vadd.f32 %v155, %v246
    %v248 = vpop.f32.mrf.mxu0
    %249 = vdwg.mxu0
    %v250 = vmul.f32 %v242, %v37
    %v251 = vmul.f32 %v247, %v38
    %v252 = vsel %vm166, %v141, 0
    %v254 = vsel %vm166, %v147, 0
    %256 = vmatprep.subr.mxu0 0.0
    %257 = vmatpush1.xpose.msra.mxu0 0.0
    %258 = vmatprep.subr.mxu0 0.0
    %259 = vmatpush1.xpose.msra.mxu0 0.0
    %260 = vmatprep.subr.mxu0 0.0
    %261 = vmatpush1.xpose.msra.mxu0 0.0
    %262 = vmatprep.subr.mxu0 0.0
    %263 = vmatpush1.xpose.msra.mxu0 0.0
    %264 = vmatprep.subr.mxu0 0.0
    %265 = vmatpush1.xpose.msra.mxu0 0.0
    %266 = vmatprep.subr.mxu0 0.0
    %267 = vmatpush1.xpose.msra.mxu0 0.0
    %268 = vmatprep.subr.mxu0 0.0
    %269 = vmatpush1.xpose.msra.mxu0 0.0
    %270 = vmatprep.subr.mxu0 0.0
    %271 = vmatpush1.xpose.msra.mxu0 0.0
    %272 = vmatprep.subr.mxu0 0.0
    %273 = vmatpush1.xpose.msra.mxu0 0.0
    %274 = vmatprep.subr.mxu0 0.0
    %275 = vmatpush1.xpose.msra.mxu0 0.0
    %276 = vmatprep.subr.mxu0 0.0
    %277 = vmatpush1.xpose.msra.mxu0 0.0
    %278 = vmatprep.subr.mxu0 0.0
    %279 = vmatpush1.xpose.msra.mxu0 0.0
    %280 = vmatprep.subr.mxu0 0.0
    %281 = vmatpush1.xpose.msra.mxu0 0.0
    %282 = vmatprep.subr.mxu0 0.0
    %283 = vmatpush1.xpose.msra.mxu0 0.0
    %284 = vmatprep.subr.mxu0 0.0
    %285 = vmatpush1.xpose.msra.mxu0 %v173
    %286 = vmatprep.subr.mxu0 0.0
    %287 = vmatpush1.xpose.msra.mxu0 %v171
    %288 = vmatprep.subr.mxu0 0.0
    %289 = vmatpush2.xpose.msra.mxu0 0.0
    %290 = vmatprep.subr.mxu0 0.0
    %291 = vmatpush2.xpose.msra.mxu0 0.0
    %292 = vmatprep.subr.mxu0 0.0
    %293 = vmatpush2.xpose.msra.mxu0 0.0
    %294 = vmatprep.subr.mxu0 0.0
    %295 = vmatpush2.xpose.msra.mxu0 0.0
    %296 = vmatprep.subr.mxu0 0.0
    %297 = vmatpush2.xpose.msra.mxu0 0.0
    %298 = vmatprep.subr.mxu0 0.0
    %299 = vmatpush2.xpose.msra.mxu0 0.0
    %300 = vmatprep.subr.mxu0 0.0
    %301 = vmatpush2.xpose.msra.mxu0 0.0
    %302 = vmatprep.subr.mxu0 0.0
    %303 = vmatpush2.xpose.msra.mxu0 0.0
    %304 = vmatprep.subr.mxu0 0.0
    %305 = vmatpush2.xpose.msra.mxu0 0.0
    %306 = vmatprep.subr.mxu0 0.0
    %307 = vmatpush2.xpose.msra.mxu0 0.0
    %308 = vmatprep.subr.mxu0 0.0
    %309 = vmatpush2.xpose.msra.mxu0 0.0
    %310 = vmatprep.subr.mxu0 0.0
    %311 = vmatpush2.xpose.msra.mxu0 0.0
    %312 = vmatprep.subr.mxu0 0.0
    %313 = vmatpush2.xpose.msra.mxu0 0.0
    %314 = vmatprep.subr.mxu0 0.0
    %315 = vmatpush2.xpose.msra.mxu0 0.0
    %316 = vmatprep.subr.mxu0 0.0
    %317 = vmatpush2.xpose.msra.mxu0 0.0
    %318 = vmatprep.subr.mxu0 0.0
    %319 = vmatpush2.xpose.msra.mxu0 0.0
    %320 = vmatprep.mubr.f32.mxu0 0.0
    %321 = vmatmul.mubr.f32.gmra.mxu0 %v252
    %v322 = vpop.f32.mrf.mxu0
    %v323 = vadd.f32 %v250, %v322
    %v324 = vpop.f32.mrf.mxu0
    %325 = vmatprep.mubr.f32.mxu0 0.0
    %326 = vmatmul.mubr.f32.gmra.mxu0 %v254
    %v327 = vpop.f32.mrf.mxu0
    %v328 = vadd.f32 %v251, %v327
    %v329 = vpop.f32.mrf.mxu0
    %330 = vdwg.mxu0
    %v331 = vld [vmem:[%s8 + $0x9] sm:$0x1]
    %v332 = vlaneseq
    %v333 = vshrl.u32 %v332, 7
    %v334 = vsub.s32 0, %v333
    %v335 = vrot.slane %v331, %v334
    %336 = vrot.lane.b32.xlu0 %v141, 96
    %v337 = vpop.permute.xlu0 %336
    %338 = vrot.lane.b32.xlu0 %v147, 96
    %v339 = vpop.permute.xlu0 %338
    %v340 = vsel %vm166, %v337, 0
    %v342 = vsel %vm166, %v339, 0
    %344 = vmatprep.subr.mxu0 0.0
    %345 = vmatpush1.xpose.msra.mxu0 0.0
    %346 = vmatprep.subr.mxu0 0.0
    %347 = vmatpush1.xpose.msra.mxu0 0.0
    %348 = vmatprep.subr.mxu0 0.0
    %349 = vmatpush1.xpose.msra.mxu0 0.0
    %350 = vmatprep.subr.mxu0 0.0
    %351 = vmatpush1.xpose.msra.mxu0 0.0
    %352 = vmatprep.subr.mxu0 0.0
    %353 = vmatpush1.xpose.msra.mxu0 0.0
    %354 = vmatprep.subr.mxu0 0.0
    %355 = vmatpush1.xpose.msra.mxu0 0.0
    %356 = vmatprep.subr.mxu0 0.0
    %357 = vmatpush1.xpose.msra.mxu0 0.0
    %358 = vmatprep.subr.mxu0 0.0
    %359 = vmatpush1.xpose.msra.mxu0 0.0
    %360 = vmatprep.subr.mxu0 0.0
    %361 = vmatpush1.xpose.msra.mxu0 0.0
    %362 = vmatprep.subr.mxu0 0.0
    %363 = vmatpush1.xpose.msra.mxu0 0.0
    %364 = vmatprep.subr.mxu0 0.0
    %365 = vmatpush1.xpose.msra.mxu0 0.0
    %366 = vmatprep.subr.mxu0 0.0
    %367 = vmatpush1.xpose.msra.mxu0 0.0
    %368 = vmatprep.subr.mxu0 0.0
    %369 = vmatpush1.xpose.msra.mxu0 0.0
    %370 = vmatprep.subr.mxu0 0.0
    %371 = vmatpush1.xpose.msra.mxu0 0.0
    %372 = vmatprep.subr.mxu0 0.0
    %373 = vmatpush1.xpose.msra.mxu0 %v173
    %374 = vmatprep.subr.mxu0 0.0
    %375 = vmatpush1.xpose.msra.mxu0 %v171
    %376 = vmatprep.subr.mxu0 0.0
    %377 = vmatpush2.xpose.msra.mxu0 0.0
    %378 = vmatprep.subr.mxu0 0.0
    %379 = vmatpush2.xpose.msra.mxu0 0.0
    %380 = vmatprep.subr.mxu0 0.0
    %381 = vmatpush2.xpose.msra.mxu0 0.0
    %382 = vmatprep.subr.mxu0 0.0
    %383 = vmatpush2.xpose.msra.mxu0 0.0
    %384 = vmatprep.subr.mxu0 0.0
    %385 = vmatpush2.xpose.msra.mxu0 0.0
    %386 = vmatprep.subr.mxu0 0.0
    %387 = vmatpush2.xpose.msra.mxu0 0.0
    %388 = vmatprep.subr.mxu0 0.0
    %389 = vmatpush2.xpose.msra.mxu0 0.0
    %390 = vmatprep.subr.mxu0 0.0
    %391 = vmatpush2.xpose.msra.mxu0 0.0
    %392 = vmatprep.subr.mxu0 0.0
    %393 = vmatpush2.xpose.msra.mxu0 0.0
    %394 = vmatprep.subr.mxu0 0.0
    %395 = vmatpush2.xpose.msra.mxu0 0.0
    %396 = vmatprep.subr.mxu0 0.0
    %397 = vmatpush2.xpose.msra.mxu0 0.0
    %398 = vmatprep.subr.mxu0 0.0
    %399 = vmatpush2.xpose.msra.mxu0 0.0
    %400 = vmatprep.subr.mxu0 0.0
    %401 = vmatpush2.xpose.msra.mxu0 0.0
    %402 = vmatprep.subr.mxu0 0.0
    %403 = vmatpush2.xpose.msra.mxu0 0.0
    %404 = vmatprep.subr.mxu0 0.0
    %405 = vmatpush2.xpose.msra.mxu0 0.0
    %406 = vmatprep.subr.mxu0 0.0
    %407 = vmatpush2.xpose.msra.mxu0 0.0
    %408 = vmatprep.mubr.f32.mxu0 0.0
    %409 = vmatmul.mubr.f32.gmra.mxu0 %v340
    %v410 = vpop.f32.mrf.mxu0
    %v411 = vadd.f32 %v335, %v410
    %v412 = vpop.f32.mrf.mxu0
    %413 = vmatprep.mubr.f32.mxu0 0.0
    %414 = vmatmul.mubr.f32.gmra.mxu0 %v342
    %v415 = vpop.f32.mrf.mxu0
    %v416 = vadd.f32 %v335, %v415
    %v417 = vpop.f32.mrf.mxu0
    %418 = vdwg.mxu0
    %v419 = vmul.f32 %v411, %v39
    %v420 = vmul.f32 %v416, %v40
    %v421 = vadd.f32 %v323, %v419
    %v422 = vadd.f32 %v328, %v420
    %v423 = vld [vmem:[%s8 + $0xa] sm:$0x1]
    %v424 = vlaneseq
    %v425 = vshrl.u32 %v424, 7
    %v426 = vsub.s32 0, %v425
    %v427 = vrot.slane %v423, %v426
    %428 = vrot.lane.b32.xlu0 %v141, 88
    %v429 = vpop.permute.xlu0 %428
    %430 = vrot.lane.b32.xlu0 %v147, 88
    %v431 = vpop.permute.xlu0 %430
    %v432 = vsel %vm166, %v429, 0
    %v434 = vsel %vm166, %v431, 0
    %436 = vmatprep.subr.mxu0 0.0
    %437 = vmatpush1.xpose.msra.mxu0 0.0
    %438 = vmatprep.subr.mxu0 0.0
    %439 = vmatpush1.xpose.msra.mxu0 0.0
    %440 = vmatprep.subr.mxu0 0.0
    %441 = vmatpush1.xpose.msra.mxu0 0.0
    %442 = vmatprep.subr.mxu0 0.0
    %443 = vmatpush1.xpose.msra.mxu0 0.0
    %444 = vmatprep.subr.mxu0 0.0
    %445 = vmatpush1.xpose.msra.mxu0 0.0
    %446 = vmatprep.subr.mxu0 0.0
    %447 = vmatpush1.xpose.msra.mxu0 0.0
    %448 = vmatprep.subr.mxu0 0.0
    %449 = vmatpush1.xpose.msra.mxu0 0.0
    %450 = vmatprep.subr.mxu0 0.0
    %451 = vmatpush1.xpose.msra.mxu0 0.0
    %452 = vmatprep.subr.mxu0 0.0
    %453 = vmatpush1.xpose.msra.mxu0 0.0
    %454 = vmatprep.subr.mxu0 0.0
    %455 = vmatpush1.xpose.msra.mxu0 0.0
    %456 = vmatprep.subr.mxu0 0.0
    %457 = vmatpush1.xpose.msra.mxu0 0.0
    %458 = vmatprep.subr.mxu0 0.0
    %459 = vmatpush1.xpose.msra.mxu0 0.0
    %460 = vmatprep.subr.mxu0 0.0
    %461 = vmatpush1.xpose.msra.mxu0 0.0
    %462 = vmatprep.subr.mxu0 0.0
    %463 = vmatpush1.xpose.msra.mxu0 0.0
    %464 = vmatprep.subr.mxu0 0.0
    %465 = vmatpush1.xpose.msra.mxu0 %v173
    %466 = vmatprep.subr.mxu0 0.0
    %467 = vmatpush1.xpose.msra.mxu0 %v171
    %468 = vmatprep.subr.mxu0 0.0
    %469 = vmatpush2.xpose.msra.mxu0 0.0
    %470 = vmatprep.subr.mxu0 0.0
    %471 = vmatpush2.xpose.msra.mxu0 0.0
    %472 = vmatprep.subr.mxu0 0.0
    %473 = vmatpush2.xpose.msra.mxu0 0.0
    %474 = vmatprep.subr.mxu0 0.0
    %475 = vmatpush2.xpose.msra.mxu0 0.0
    %476 = vmatprep.subr.mxu0 0.0
    %477 = vmatpush2.xpose.msra.mxu0 0.0
    %478 = vmatprep.subr.mxu0 0.0
    %479 = vmatpush2.xpose.msra.mxu0 0.0
    %480 = vmatprep.subr.mxu0 0.0
    %481 = vmatpush2.xpose.msra.mxu0 0.0
    %482 = vmatprep.subr.mxu0 0.0
    %483 = vmatpush2.xpose.msra.mxu0 0.0
    %484 = vmatprep.subr.mxu0 0.0
    %485 = vmatpush2.xpose.msra.mxu0 0.0
    %486 = vmatprep.subr.mxu0 0.0
    %487 = vmatpush2.xpose.msra.mxu0 0.0
    %488 = vmatprep.subr.mxu0 0.0
    %489 = vmatpush2.xpose.msra.mxu0 0.0
    %490 = vmatprep.subr.mxu0 0.0
    %491 = vmatpush2.xpose.msra.mxu0 0.0
    %492 = vmatprep.subr.mxu0 0.0
    %493 = vmatpush2.xpose.msra.mxu0 0.0
    %494 = vmatprep.subr.mxu0 0.0
    %495 = vmatpush2.xpose.msra.mxu0 0.0
    %496 = vmatprep.subr.mxu0 0.0
    %497 = vmatpush2.xpose.msra.mxu0 0.0
    %498 = vmatprep.subr.mxu0 0.0
    %499 = vmatpush2.xpose.msra.mxu0 0.0
    %500 = vmatprep.mubr.f32.mxu0 0.0
    %501 = vmatmul.mubr.f32.gmra.mxu0 %v432
    %v502 = vpop.f32.mrf.mxu0
    %v503 = vadd.f32 %v427, %v502
    %v504 = vpop.f32.mrf.mxu0
    %505 = vmatprep.mubr.f32.mxu0 0.0
    %506 = vmatmul.mubr.f32.gmra.mxu0 %v434
    %v507 = vpop.f32.mrf.mxu0
    %v508 = vadd.f32 %v427, %v507
    %v509 = vpop.f32.mrf.mxu0
    %510 = vdwg.mxu0
    %v511 = vmul.f32 %v503, %v41
    %v512 = vmul.f32 %v508, %v42
    %v513 = vadd.f32 %v421, %v511
    %v514 = vadd.f32 %v422, %v512
    %v515 = vld [vmem:[%s8 + $0xb] sm:$0x1]
    %v516 = vlaneseq
    %v517 = vshrl.u32 %v516, 7
    %v518 = vsub.s32 0, %v517
    %v519 = vrot.slane %v515, %v518
    %520 = vrot.lane.b32.xlu0 %v141, 80
    %v521 = vpop.permute.xlu0 %520
    %522 = vrot.lane.b32.xlu0 %v147, 80
    %v523 = vpop.permute.xlu0 %522
    %v524 = vsel %vm166, %v521, 0
    %v526 = vsel %vm166, %v523, 0
    %528 = vmatprep.subr.mxu0 0.0
    %529 = vmatpush1.xpose.msra.mxu0 0.0
    %530 = vmatprep.subr.mxu0 0.0
    %531 = vmatpush1.xpose.msra.mxu0 0.0
    %532 = vmatprep.subr.mxu0 0.0
    %533 = vmatpush1.xpose.msra.mxu0 0.0
    %534 = vmatprep.subr.mxu0 0.0
    %535 = vmatpush1.xpose.msra.mxu0 0.0
    %536 = vmatprep.subr.mxu0 0.0
    %537 = vmatpush1.xpose.msra.mxu0 0.0
    %538 = vmatprep.subr.mxu0 0.0
    %539 = vmatpush1.xpose.msra.mxu0 0.0
    %540 = vmatprep.subr.mxu0 0.0
    %541 = vmatpush1.xpose.msra.mxu0 0.0
    %542 = vmatprep.subr.mxu0 0.0
    %543 = vmatpush1.xpose.msra.mxu0 0.0
    %544 = vmatprep.subr.mxu0 0.0
    %545 = vmatpush1.xpose.msra.mxu0 0.0
    %546 = vmatprep.subr.mxu0 0.0
    %547 = vmatpush1.xpose.msra.mxu0 0.0
    %548 = vmatprep.subr.mxu0 0.0
    %549 = vmatpush1.xpose.msra.mxu0 0.0
    %550 = vmatprep.subr.mxu0 0.0
    %551 = vmatpush1.xpose.msra.mxu0 0.0
    %552 = vmatprep.subr.mxu0 0.0
    %553 = vmatpush1.xpose.msra.mxu0 0.0
    %554 = vmatprep.subr.mxu0 0.0
    %555 = vmatpush1.xpose.msra.mxu0 0.0
    %556 = vmatprep.subr.mxu0 0.0
    %557 = vmatpush1.xpose.msra.mxu0 %v173
    %558 = vmatprep.subr.mxu0 0.0
    %559 = vmatpush1.xpose.msra.mxu0 %v171
    %560 = vmatprep.subr.mxu0 0.0
    %561 = vmatpush2.xpose.msra.mxu0 0.0
    %562 = vmatprep.subr.mxu0 0.0
    %563 = vmatpush2.xpose.msra.mxu0 0.0
    %564 = vmatprep.subr.mxu0 0.0
    %565 = vmatpush2.xpose.msra.mxu0 0.0
    %566 = vmatprep.subr.mxu0 0.0
    %567 = vmatpush2.xpose.msra.mxu0 0.0
    %568 = vmatprep.subr.mxu0 0.0
    %569 = vmatpush2.xpose.msra.mxu0 0.0
    %570 = vmatprep.subr.mxu0 0.0
    %571 = vmatpush2.xpose.msra.mxu0 0.0
    %572 = vmatprep.subr.mxu0 0.0
    %573 = vmatpush2.xpose.msra.mxu0 0.0
    %574 = vmatprep.subr.mxu0 0.0
    %575 = vmatpush2.xpose.msra.mxu0 0.0
    %576 = vmatprep.subr.mxu0 0.0
    %577 = vmatpush2.xpose.msra.mxu0 0.0
    %578 = vmatprep.subr.mxu0 0.0
    %579 = vmatpush2.xpose.msra.mxu0 0.0
    %580 = vmatprep.subr.mxu0 0.0
    %581 = vmatpush2.xpose.msra.mxu0 0.0
    %582 = vmatprep.subr.mxu0 0.0
    %583 = vmatpush2.xpose.msra.mxu0 0.0
    %584 = vmatprep.subr.mxu0 0.0
    %585 = vmatpush2.xpose.msra.mxu0 0.0
    %586 = vmatprep.subr.mxu0 0.0
    %587 = vmatpush2.xpose.msra.mxu0 0.0
    %588 = vmatprep.subr.mxu0 0.0
    %589 = vmatpush2.xpose.msra.mxu0 0.0
    %590 = vmatprep.subr.mxu0 0.0
    %591 = vmatpush2.xpose.msra.mxu0 0.0
    %592 = vmatprep.mubr.f32.mxu0 0.0
    %593 = vmatmul.mubr.f32.gmra.mxu0 %v524
    %v594 = vpop.f32.mrf.mxu0
    %v595 = vadd.f32 %v519, %v594
    %v596 = vpop.f32.mrf.mxu0
    %597 = vmatprep.mubr.f32.mxu0 0.0
    %598 = vmatmul.mubr.f32.gmra.mxu0 %v526
    %v599 = vpop.f32.mrf.mxu0
    %v600 = vadd.f32 %v519, %v599
    %v601 = vpop.f32.mrf.mxu0
    %602 = vdwg.mxu0
    %v603 = vmul.f32 %v595, %v43
    %v604 = vmul.f32 %v600, %v44
    %v605 = vadd.f32 %v513, %v603
    %v606 = vadd.f32 %v514, %v604
    %v607 = vld [vmem:[%s8 + $0xc] sm:$0x1]
    %v608 = vlaneseq
    %v609 = vshrl.u32 %v608, 7
    %v610 = vsub.s32 0, %v609
    %v611 = vrot.slane %v607, %v610
    %612 = vrot.lane.b32.xlu0 %v141, 72
    %v613 = vpop.permute.xlu0 %612
    %614 = vrot.lane.b32.xlu0 %v147, 72
    %v615 = vpop.permute.xlu0 %614
    %v616 = vsel %vm166, %v613, 0
    %v618 = vsel %vm166, %v615, 0
    %620 = vmatprep.subr.mxu0 0.0
    %621 = vmatpush1.xpose.msra.mxu0 0.0
    %622 = vmatprep.subr.mxu0 0.0
    %623 = vmatpush1.xpose.msra.mxu0 0.0
    %624 = vmatprep.subr.mxu0 0.0
    %625 = vmatpush1.xpose.msra.mxu0 0.0
    %626 = vmatprep.subr.mxu0 0.0
    %627 = vmatpush1.xpose.msra.mxu0 0.0
    %628 = vmatprep.subr.mxu0 0.0
    %629 = vmatpush1.xpose.msra.mxu0 0.0
    %630 = vmatprep.subr.mxu0 0.0
    %631 = vmatpush1.xpose.msra.mxu0 0.0
    %632 = vmatprep.subr.mxu0 0.0
    %633 = vmatpush1.xpose.msra.mxu0 0.0
    %634 = vmatprep.subr.mxu0 0.0
    %635 = vmatpush1.xpose.msra.mxu0 0.0
    %636 = vmatprep.subr.mxu0 0.0
    %637 = vmatpush1.xpose.msra.mxu0 0.0
    %638 = vmatprep.subr.mxu0 0.0
    %639 = vmatpush1.xpose.msra.mxu0 0.0
    %640 = vmatprep.subr.mxu0 0.0
    %641 = vmatpush1.xpose.msra.mxu0 0.0
    %642 = vmatprep.subr.mxu0 0.0
    %643 = vmatpush1.xpose.msra.mxu0 0.0
    %644 = vmatprep.subr.mxu0 0.0
    %645 = vmatpush1.xpose.msra.mxu0 0.0
    %646 = vmatprep.subr.mxu0 0.0
    %647 = vmatpush1.xpose.msra.mxu0 0.0
    %648 = vmatprep.subr.mxu0 0.0
    %649 = vmatpush1.xpose.msra.mxu0 %v173
    %650 = vmatprep.subr.mxu0 0.0
    %651 = vmatpush1.xpose.msra.mxu0 %v171
    %652 = vmatprep.subr.mxu0 0.0
    %653 = vmatpush2.xpose.msra.mxu0 0.0
    %654 = vmatprep.subr.mxu0 0.0
    %655 = vmatpush2.xpose.msra.mxu0 0.0
    %656 = vmatprep.subr.mxu0 0.0
    %657 = vmatpush2.xpose.msra.mxu0 0.0
    %658 = vmatprep.subr.mxu0 0.0
    %659 = vmatpush2.xpose.msra.mxu0 0.0
    %660 = vmatprep.subr.mxu0 0.0
    %661 = vmatpush2.xpose.msra.mxu0 0.0
    %662 = vmatprep.subr.mxu0 0.0
    %663 = vmatpush2.xpose.msra.mxu0 0.0
    %664 = vmatprep.subr.mxu0 0.0
    %665 = vmatpush2.xpose.msra.mxu0 0.0
    %666 = vmatprep.subr.mxu0 0.0
    %667 = vmatpush2.xpose.msra.mxu0 0.0
    %668 = vmatprep.subr.mxu0 0.0
    %669 = vmatpush2.xpose.msra.mxu0 0.0
    %670 = vmatprep.subr.mxu0 0.0
    %671 = vmatpush2.xpose.msra.mxu0 0.0
    %672 = vmatprep.subr.mxu0 0.0
    %673 = vmatpush2.xpose.msra.mxu0 0.0
    %674 = vmatprep.subr.mxu0 0.0
    %675 = vmatpush2.xpose.msra.mxu0 0.0
    %676 = vmatprep.subr.mxu0 0.0
    %677 = vmatpush2.xpose.msra.mxu0 0.0
    %678 = vmatprep.subr.mxu0 0.0
    %679 = vmatpush2.xpose.msra.mxu0 0.0
    %680 = vmatprep.subr.mxu0 0.0
    %681 = vmatpush2.xpose.msra.mxu0 0.0
    %682 = vmatprep.subr.mxu0 0.0
    %683 = vmatpush2.xpose.msra.mxu0 0.0
    %684 = vmatprep.mubr.f32.mxu0 0.0
    %685 = vmatmul.mubr.f32.gmra.mxu0 %v616
    %v686 = vpop.f32.mrf.mxu0
    %v687 = vadd.f32 %v611, %v686
    %v688 = vpop.f32.mrf.mxu0
    %689 = vmatprep.mubr.f32.mxu0 0.0
    %690 = vmatmul.mubr.f32.gmra.mxu0 %v618
    %v691 = vpop.f32.mrf.mxu0
    %v692 = vadd.f32 %v611, %v691
    %v693 = vpop.f32.mrf.mxu0
    %694 = vdwg.mxu0
    %v695 = vmul.f32 %v687, %v45
    %v696 = vmul.f32 %v692, %v46
    %v697 = vadd.f32 %v605, %v695
    %v698 = vadd.f32 %v606, %v696
    %v699 = vmul.f32 %v697, 0.35355338
    %v700 = vmul.f32 %v698, 0.35355338
    %v701 = vadd.f32 %v699, %v35
    %v702 = vadd.f32 %v700, %v36
    %vm703 = vcmask 130048
    %v704 = vsel %vm703, %v701, -inf
    %705 = vmax.xlane.f32.xlu0 %v704
    %v706 = vpop.xlane.xlu0 %705
    %v707 = vsel %vm703, %v702, -inf
    %708 = vmax.xlane.f32.xlu0 %v707
    %v709 = vpop.xlane.xlu0 %708
    %v710 = vsub.f32 %v701, %v706
    %v711 = vsub.f32 %v702, %v709
    %v712 = vmul.f32 %v710, 1.442695
    %v713 = vpow.pop %v712
    %v714 = vmul.f32 %v711, 1.442695
    %v715 = vpow.pop %v714
    %v716 = vsel %vm703, %v713, 0.0
    %717 = vadd.xlane.f32.xlu0 %v716
    %v718 = vpop.xlane.xlu0 %717
    %v719 = vsel %vm703, %v715, 0.0
    %720 = vadd.xlane.f32.xlu0 %v719
    %v721 = vpop.xlane.xlu0 %720
    %v722 = vrcp.pop %v718
    %v723 = vmul.f32 %v713, %v722
    %v724 = vrcp.pop %v721
    %v725 = vmul.f32 %v715, %v724
    %726 = vrot.lane.b32.xlu0 %v141, 112
    %v727 = vpop.permute.xlu0 %726
    %728 = vrot.lane.b32.xlu0 %v147, 112
    %v729 = vpop.permute.xlu0 %728
    %v733 = vsel %vm703, %v723, 0
    %v736 = vsel %vm703, %v725, 0
    %738 = vmatprep.subr.mxu0 0.0
    %739 = vmatpush1.msra.mxu0 0.0
    %740 = vmatprep.subr.mxu0 0.0
    %741 = vmatpush1.msra.mxu0 0.0
    %742 = vmatprep.subr.mxu0 0.0
    %743 = vmatpush1.msra.mxu0 0.0
    %744 = vmatprep.subr.mxu0 0.0
    %745 = vmatpush1.msra.mxu0 0.0
    %746 = vmatprep.subr.mxu0 0.0
    %747 = vmatpush1.msra.mxu0 0.0
    %748 = vmatprep.subr.mxu0 0.0
    %749 = vmatpush1.msra.mxu0 0.0
    %750 = vmatprep.subr.mxu0 0.0
    %751 = vmatpush1.msra.mxu0 0.0
    %752 = vmatprep.subr.mxu0 0.0
    %753 = vmatpush1.msra.mxu0 0.0
    %754 = vmatprep.subr.mxu0 0.0
    %755 = vmatpush1.msra.mxu0 0.0
    %756 = vmatprep.subr.mxu0 0.0
    %757 = vmatpush1.msra.mxu0 0.0
    %758 = vmatprep.subr.mxu0 0.0
    %759 = vmatpush1.msra.mxu0 0.0
    %760 = vmatprep.subr.mxu0 0.0
    %761 = vmatpush1.msra.mxu0 0.0
    %762 = vmatprep.subr.mxu0 0.0
    %763 = vmatpush1.msra.mxu0 0.0
    %764 = vmatprep.subr.mxu0 0.0
    %765 = vmatpush1.msra.mxu0 0.0
    %766 = vmatprep.subr.mxu0 0.0
    %767 = vmatpush1.msra.mxu0 %v729
    %768 = vmatprep.subr.mxu0 0.0
    %769 = vmatpush1.msra.mxu0 %v727
    %770 = vmatprep.subr.mxu0 0.0
    %771 = vmatpush2.msra.mxu0 0.0
    %772 = vmatprep.subr.mxu0 0.0
    %773 = vmatpush2.msra.mxu0 0.0
    %774 = vmatprep.subr.mxu0 0.0
    %775 = vmatpush2.msra.mxu0 0.0
    %776 = vmatprep.subr.mxu0 0.0
    %777 = vmatpush2.msra.mxu0 0.0
    %778 = vmatprep.subr.mxu0 0.0
    %779 = vmatpush2.msra.mxu0 0.0
    %780 = vmatprep.subr.mxu0 0.0
    %781 = vmatpush2.msra.mxu0 0.0
    %782 = vmatprep.subr.mxu0 0.0
    %783 = vmatpush2.msra.mxu0 0.0
    %784 = vmatprep.subr.mxu0 0.0
    %785 = vmatpush2.msra.mxu0 0.0
    %786 = vmatprep.subr.mxu0 0.0
    %787 = vmatpush2.msra.mxu0 0.0
    %788 = vmatprep.subr.mxu0 0.0
    %789 = vmatpush2.msra.mxu0 0.0
    %790 = vmatprep.subr.mxu0 0.0
    %791 = vmatpush2.msra.mxu0 0.0
    %792 = vmatprep.subr.mxu0 0.0
    %793 = vmatpush2.msra.mxu0 0.0
    %794 = vmatprep.subr.mxu0 0.0
    %795 = vmatpush2.msra.mxu0 0.0
    %796 = vmatprep.subr.mxu0 0.0
    %797 = vmatpush2.msra.mxu0 0.0
    %798 = vmatprep.subr.mxu0 0.0
    %799 = vmatpush2.msra.mxu0 0.0
    %800 = vmatprep.subr.mxu0 0.0
    %801 = vmatpush2.msra.mxu0 0.0
    %802 = vmatprep.mubr.f32.mxu0 0.0
    %803 = vmatmul.mubr.f32.gmra.mxu0 %v733
    %v804 = vpop.f32.mrf.mxu0
    %v805 = vadd.f32 0.0, %v804
    %v806 = vpop.f32.mrf.mxu0
    %807 = vmatprep.mubr.f32.mxu0 0.0
    %808 = vmatmul.mubr.f32.gmra.mxu0 %v736
    %v809 = vpop.f32.mrf.mxu0
    %v810 = vadd.f32 0.0, %v809
    %v811 = vpop.f32.mrf.mxu0
    %812 = vdwg.mxu0
    %v813 = vld [vmem:[%s5] sm:$0xff]
    %v814 = vld [vmem:[%s8 + $0xd] sm:$0x1]
    %v815 = vlaneseq
    %v816 = vshrl.u32 %v815, 7
    %v817 = vsub.s32 0, %v816
    %v818 = vrot.slane %v814, %v817
    %819 = vrot.lane.b32.xlu0 %v141, 40
    %v820 = vpop.permute.xlu0 %819
    %821 = vrot.lane.b32.xlu0 %v147, 40
    %v822 = vpop.permute.xlu0 %821
    %823 = vrot.lane.b32.xlu0 %v141, 56
    %v824 = vpop.permute.xlu0 %823
    %825 = vrot.lane.b32.xlu0 %v147, 56
    %v826 = vpop.permute.xlu0 %825
    %v827 = vsel %vm166, %v820, 0
    %v829 = vsel %vm166, %v822, 0
    %v831 = vsel %vm166, %v824, 0
    %v833 = vsel %vm166, %v826, 0
    %835 = vmatprep.subr.mxu0 0.0
    %836 = vmatpush1.xpose.msra.mxu0 0.0
    %837 = vmatprep.subr.mxu0 0.0
    %838 = vmatpush1.xpose.msra.mxu0 0.0
    %839 = vmatprep.subr.mxu0 0.0
    %840 = vmatpush1.xpose.msra.mxu0 0.0
    %841 = vmatprep.subr.mxu0 0.0
    %842 = vmatpush1.xpose.msra.mxu0 0.0
    %843 = vmatprep.subr.mxu0 0.0
    %844 = vmatpush1.xpose.msra.mxu0 0.0
    %845 = vmatprep.subr.mxu0 0.0
    %846 = vmatpush1.xpose.msra.mxu0 0.0
    %847 = vmatprep.subr.mxu0 0.0
    %848 = vmatpush1.xpose.msra.mxu0 0.0
    %849 = vmatprep.subr.mxu0 0.0
    %850 = vmatpush1.xpose.msra.mxu0 0.0
    %851 = vmatprep.subr.mxu0 0.0
    %852 = vmatpush1.xpose.msra.mxu0 0.0
    %853 = vmatprep.subr.mxu0 0.0
    %854 = vmatpush1.xpose.msra.mxu0 0.0
    %855 = vmatprep.subr.mxu0 0.0
    %856 = vmatpush1.xpose.msra.mxu0 0.0
    %857 = vmatprep.subr.mxu0 0.0
    %858 = vmatpush1.xpose.msra.mxu0 0.0
    %859 = vmatprep.subr.mxu0 0.0
    %860 = vmatpush1.xpose.msra.mxu0 0.0
    %861 = vmatprep.subr.mxu0 0.0
    %862 = vmatpush1.xpose.msra.mxu0 0.0
    %863 = vmatprep.subr.mxu0 0.0
    %864 = vmatpush1.xpose.msra.mxu0 %v833
    %865 = vmatprep.subr.mxu0 0.0
    %866 = vmatpush1.xpose.msra.mxu0 %v831
    %867 = vmatprep.subr.mxu0 0.0
    %868 = vmatpush2.xpose.msra.mxu0 0.0
    %869 = vmatprep.subr.mxu0 0.0
    %870 = vmatpush2.xpose.msra.mxu0 0.0
    %871 = vmatprep.subr.mxu0 0.0
    %872 = vmatpush2.xpose.msra.mxu0 0.0
    %873 = vmatprep.subr.mxu0 0.0
    %874 = vmatpush2.xpose.msra.mxu0 0.0
    %875 = vmatprep.subr.mxu0 0.0
    %876 = vmatpush2.xpose.msra.mxu0 0.0
    %877 = vmatprep.subr.mxu0 0.0
    %878 = vmatpush2.xpose.msra.mxu0 0.0
    %879 = vmatprep.subr.mxu0 0.0
    %880 = vmatpush2.xpose.msra.mxu0 0.0
    %881 = vmatprep.subr.mxu0 0.0
    %882 = vmatpush2.xpose.msra.mxu0 0.0
    %883 = vmatprep.subr.mxu0 0.0
    %884 = vmatpush2.xpose.msra.mxu0 0.0
    %885 = vmatprep.subr.mxu0 0.0
    %886 = vmatpush2.xpose.msra.mxu0 0.0
    %887 = vmatprep.subr.mxu0 0.0
    %888 = vmatpush2.xpose.msra.mxu0 0.0
    %889 = vmatprep.subr.mxu0 0.0
    %890 = vmatpush2.xpose.msra.mxu0 0.0
    %891 = vmatprep.subr.mxu0 0.0
    %892 = vmatpush2.xpose.msra.mxu0 0.0
    %893 = vmatprep.subr.mxu0 0.0
    %894 = vmatpush2.xpose.msra.mxu0 0.0
    %895 = vmatprep.subr.mxu0 0.0
    %896 = vmatpush2.xpose.msra.mxu0 0.0
    %897 = vmatprep.subr.mxu0 0.0
    %898 = vmatpush2.xpose.msra.mxu0 0.0
    %899 = vmatprep.mubr.f32.mxu0 0.0
    %900 = vmatmul.mubr.f32.gmra.mxu0 %v827
    %v901 = vpop.f32.mrf.mxu0
    %v902 = vadd.f32 %v818, %v901
    %v903 = vpop.f32.mrf.mxu0
    %904 = vmatprep.mubr.f32.mxu0 0.0
    %905 = vmatmul.mubr.f32.gmra.mxu0 %v829
    %v906 = vpop.f32.mrf.mxu0
    %v907 = vadd.f32 %v818, %v906
    %v908 = vpop.f32.mrf.mxu0
    %909 = vdwg.mxu0
    %v910 = vmul.f32 %v902, %v37
    %v911 = vmul.f32 %v907, %v38
    %912 = vrot.lane.b32.xlu0 %v141, 64
    %v913 = vpop.permute.xlu0 %912
    %914 = vrot.lane.b32.xlu0 %v147, 64
    %v915 = vpop.permute.xlu0 %914
    %v916 = vsel %vm166, %v913, 0
    %v918 = vsel %vm166, %v915, 0
    %920 = vmatprep.subr.mxu0 0.0
    %921 = vmatpush1.xpose.msra.mxu0 0.0
    %922 = vmatprep.subr.mxu0 0.0
    %923 = vmatpush1.xpose.msra.mxu0 0.0
    %924 = vmatprep.subr.mxu0 0.0
    %925 = vmatpush1.xpose.msra.mxu0 0.0
    %926 = vmatprep.subr.mxu0 0.0
    %927 = vmatpush1.xpose.msra.mxu0 0.0
    %928 = vmatprep.subr.mxu0 0.0
    %929 = vmatpush1.xpose.msra.mxu0 0.0
    %930 = vmatprep.subr.mxu0 0.0
    %931 = vmatpush1.xpose.msra.mxu0 0.0
    %932 = vmatprep.subr.mxu0 0.0
    %933 = vmatpush1.xpose.msra.mxu0 0.0
    %934 = vmatprep.subr.mxu0 0.0
    %935 = vmatpush1.xpose.msra.mxu0 0.0
    %936 = vmatprep.subr.mxu0 0.0
    %937 = vmatpush1.xpose.msra.mxu0 0.0
    %938 = vmatprep.subr.mxu0 0.0
    %939 = vmatpush1.xpose.msra.mxu0 0.0
    %940 = vmatprep.subr.mxu0 0.0
    %941 = vmatpush1.xpose.msra.mxu0 0.0
    %942 = vmatprep.subr.mxu0 0.0
    %943 = vmatpush1.xpose.msra.mxu0 0.0
    %944 = vmatprep.subr.mxu0 0.0
    %945 = vmatpush1.xpose.msra.mxu0 0.0
    %946 = vmatprep.subr.mxu0 0.0
    %947 = vmatpush1.xpose.msra.mxu0 0.0
    %948 = vmatprep.subr.mxu0 0.0
    %949 = vmatpush1.xpose.msra.mxu0 %v833
    %950 = vmatprep.subr.mxu0 0.0
    %951 = vmatpush1.xpose.msra.mxu0 %v831
    %952 = vmatprep.subr.mxu0 0.0
    %953 = vmatpush2.xpose.msra.mxu0 0.0
    %954 = vmatprep.subr.mxu0 0.0
    %955 = vmatpush2.xpose.msra.mxu0 0.0
    %956 = vmatprep.subr.mxu0 0.0
    %957 = vmatpush2.xpose.msra.mxu0 0.0
    %958 = vmatprep.subr.mxu0 0.0
    %959 = vmatpush2.xpose.msra.mxu0 0.0
    %960 = vmatprep.subr.mxu0 0.0
    %961 = vmatpush2.xpose.msra.mxu0 0.0
    %962 = vmatprep.subr.mxu0 0.0
    %963 = vmatpush2.xpose.msra.mxu0 0.0
    %964 = vmatprep.subr.mxu0 0.0
    %965 = vmatpush2.xpose.msra.mxu0 0.0
    %966 = vmatprep.subr.mxu0 0.0
    %967 = vmatpush2.xpose.msra.mxu0 0.0
    %968 = vmatprep.subr.mxu0 0.0
    %969 = vmatpush2.xpose.msra.mxu0 0.0
    %970 = vmatprep.subr.mxu0 0.0
    %971 = vmatpush2.xpose.msra.mxu0 0.0
    %972 = vmatprep.subr.mxu0 0.0
    %973 = vmatpush2.xpose.msra.mxu0 0.0
    %974 = vmatprep.subr.mxu0 0.0
    %975 = vmatpush2.xpose.msra.mxu0 0.0
    %976 = vmatprep.subr.mxu0 0.0
    %977 = vmatpush2.xpose.msra.mxu0 0.0
    %978 = vmatprep.subr.mxu0 0.0
    %979 = vmatpush2.xpose.msra.mxu0 0.0
    %980 = vmatprep.subr.mxu0 0.0
    %981 = vmatpush2.xpose.msra.mxu0 0.0
    %982 = vmatprep.subr.mxu0 0.0
    %983 = vmatpush2.xpose.msra.mxu0 0.0
    %984 = vmatprep.mubr.f32.mxu0 0.0
    %985 = vmatmul.mubr.f32.gmra.mxu0 %v916
    %v986 = vpop.f32.mrf.mxu0
    %v987 = vadd.f32 %v910, %v986
    %v988 = vpop.f32.mrf.mxu0
    %989 = vmatprep.mubr.f32.mxu0 0.0
    %990 = vmatmul.mubr.f32.gmra.mxu0 %v918
    %v991 = vpop.f32.mrf.mxu0
    %v992 = vadd.f32 %v911, %v991
    %v993 = vpop.f32.mrf.mxu0
    %994 = vdwg.mxu0
    %v995 = vld [vmem:[%s8 + $0xe] sm:$0x1]
    %v996 = vlaneseq
    %v997 = vshrl.u32 %v996, 7
    %v998 = vsub.s32 0, %v997
    %v999 = vrot.slane %v995, %v998
    %1000 = vrot.lane.b32.xlu0 %v141, 32
    %v1001 = vpop.permute.xlu0 %1000
    %1002 = vrot.lane.b32.xlu0 %v147, 32
    %v1003 = vpop.permute.xlu0 %1002
    %v1004 = vsel %vm166, %v1001, 0
    %v1006 = vsel %vm166, %v1003, 0
    %1008 = vmatprep.subr.mxu0 0.0
    %1009 = vmatpush1.xpose.msra.mxu0 0.0
    %1010 = vmatprep.subr.mxu0 0.0
    %1011 = vmatpush1.xpose.msra.mxu0 0.0
    %1012 = vmatprep.subr.mxu0 0.0
    %1013 = vmatpush1.xpose.msra.mxu0 0.0
    %1014 = vmatprep.subr.mxu0 0.0
    %1015 = vmatpush1.xpose.msra.mxu0 0.0
    %1016 = vmatprep.subr.mxu0 0.0
    %1017 = vmatpush1.xpose.msra.mxu0 0.0
    %1018 = vmatprep.subr.mxu0 0.0
    %1019 = vmatpush1.xpose.msra.mxu0 0.0
    %1020 = vmatprep.subr.mxu0 0.0
    %1021 = vmatpush1.xpose.msra.mxu0 0.0
    %1022 = vmatprep.subr.mxu0 0.0
    %1023 = vmatpush1.xpose.msra.mxu0 0.0
    %1024 = vmatprep.subr.mxu0 0.0
    %1025 = vmatpush1.xpose.msra.mxu0 0.0
    %1026 = vmatprep.subr.mxu0 0.0
    %1027 = vmatpush1.xpose.msra.mxu0 0.0
    %1028 = vmatprep.subr.mxu0 0.0
    %1029 = vmatpush1.xpose.msra.mxu0 0.0
    %1030 = vmatprep.subr.mxu0 0.0
    %1031 = vmatpush1.xpose.msra.mxu0 0.0
    %1032 = vmatprep.subr.mxu0 0.0
    %1033 = vmatpush1.xpose.msra.mxu0 0.0
    %1034 = vmatprep.subr.mxu0 0.0
    %1035 = vmatpush1.xpose.msra.mxu0 0.0
    %1036 = vmatprep.subr.mxu0 0.0
    %1037 = vmatpush1.xpose.msra.mxu0 %v833
    %1038 = vmatprep.subr.mxu0 0.0
    %1039 = vmatpush1.xpose.msra.mxu0 %v831
    %1040 = vmatprep.subr.mxu0 0.0
    %1041 = vmatpush2.xpose.msra.mxu0 0.0
    %1042 = vmatprep.subr.mxu0 0.0
    %1043 = vmatpush2.xpose.msra.mxu0 0.0
    %1044 = vmatprep.subr.mxu0 0.0
    %1045 = vmatpush2.xpose.msra.mxu0 0.0
    %1046 = vmatprep.subr.mxu0 0.0
    %1047 = vmatpush2.xpose.msra.mxu0 0.0
    %1048 = vmatprep.subr.mxu0 0.0
    %1049 = vmatpush2.xpose.msra.mxu0 0.0
    %1050 = vmatprep.subr.mxu0 0.0
    %1051 = vmatpush2.xpose.msra.mxu0 0.0
    %1052 = vmatprep.subr.mxu0 0.0
    %1053 = vmatpush2.xpose.msra.mxu0 0.0
    %1054 = vmatprep.subr.mxu0 0.0
    %1055 = vmatpush2.xpose.msra.mxu0 0.0
    %1056 = vmatprep.subr.mxu0 0.0
    %1057 = vmatpush2.xpose.msra.mxu0 0.0
    %1058 = vmatprep.subr.mxu0 0.0
    %1059 = vmatpush2.xpose.msra.mxu0 0.0
    %1060 = vmatprep.subr.mxu0 0.0
    %1061 = vmatpush2.xpose.msra.mxu0 0.0
    %1062 = vmatprep.subr.mxu0 0.0
    %1063 = vmatpush2.xpose.msra.mxu0 0.0
    %1064 = vmatprep.subr.mxu0 0.0
    %1065 = vmatpush2.xpose.msra.mxu0 0.0
    %1066 = vmatprep.subr.mxu0 0.0
    %1067 = vmatpush2.xpose.msra.mxu0 0.0
    %1068 = vmatprep.subr.mxu0 0.0
    %1069 = vmatpush2.xpose.msra.mxu0 0.0
    %1070 = vmatprep.subr.mxu0 0.0
    %1071 = vmatpush2.xpose.msra.mxu0 0.0
    %1072 = vmatprep.mubr.f32.mxu0 0.0
    %1073 = vmatmul.mubr.f32.gmra.mxu0 %v1004
    %v1074 = vpop.f32.mrf.mxu0
    %v1075 = vadd.f32 %v999, %v1074
    %v1076 = vpop.f32.mrf.mxu0
    %1077 = vmatprep.mubr.f32.mxu0 0.0
    %1078 = vmatmul.mubr.f32.gmra.mxu0 %v1006
    %v1079 = vpop.f32.mrf.mxu0
    %v1080 = vadd.f32 %v999, %v1079
    %v1081 = vpop.f32.mrf.mxu0
    %1082 = vdwg.mxu0
    %v1083 = vmul.f32 %v1075, %v39
    %v1084 = vmul.f32 %v1080, %v40
    %v1085 = vadd.f32 %v987, %v1083
    %v1086 = vadd.f32 %v992, %v1084
    %v1087 = vld [vmem:[%s8 + $0xf] sm:$0x1]
    %v1088 = vlaneseq
    %v1089 = vshrl.u32 %v1088, 7
    %v1090 = vsub.s32 0, %v1089
    %v1091 = vrot.slane %v1087, %v1090
    %1092 = vrot.lane.b32.xlu0 %v141, 24
    %v1093 = vpop.permute.xlu0 %1092
    %1094 = vrot.lane.b32.xlu0 %v147, 24
    %v1095 = vpop.permute.xlu0 %1094
    %v1096 = vsel %vm166, %v1093, 0
    %v1098 = vsel %vm166, %v1095, 0
    %1100 = vmatprep.subr.mxu0 0.0
    %1101 = vmatpush1.xpose.msra.mxu0 0.0
    %1102 = vmatprep.subr.mxu0 0.0
    %1103 = vmatpush1.xpose.msra.mxu0 0.0
    %1104 = vmatprep.subr.mxu0 0.0
    %1105 = vmatpush1.xpose.msra.mxu0 0.0
    %1106 = vmatprep.subr.mxu0 0.0
    %1107 = vmatpush1.xpose.msra.mxu0 0.0
    %1108 = vmatprep.subr.mxu0 0.0
    %1109 = vmatpush1.xpose.msra.mxu0 0.0
    %1110 = vmatprep.subr.mxu0 0.0
    %1111 = vmatpush1.xpose.msra.mxu0 0.0
    %1112 = vmatprep.subr.mxu0 0.0
    %1113 = vmatpush1.xpose.msra.mxu0 0.0
    %1114 = vmatprep.subr.mxu0 0.0
    %1115 = vmatpush1.xpose.msra.mxu0 0.0
    %1116 = vmatprep.subr.mxu0 0.0
    %1117 = vmatpush1.xpose.msra.mxu0 0.0
    %1118 = vmatprep.subr.mxu0 0.0
    %1119 = vmatpush1.xpose.msra.mxu0 0.0
    %1120 = vmatprep.subr.mxu0 0.0
    %1121 = vmatpush1.xpose.msra.mxu0 0.0
    %1122 = vmatprep.subr.mxu0 0.0
    %1123 = vmatpush1.xpose.msra.mxu0 0.0
    %1124 = vmatprep.subr.mxu0 0.0
    %1125 = vmatpush1.xpose.msra.mxu0 0.0
    %1126 = vmatprep.subr.mxu0 0.0
    %1127 = vmatpush1.xpose.msra.mxu0 0.0
    %1128 = vmatprep.subr.mxu0 0.0
    %1129 = vmatpush1.xpose.msra.mxu0 %v833
    %1130 = vmatprep.subr.mxu0 0.0
    %1131 = vmatpush1.xpose.msra.mxu0 %v831
    %1132 = vmatprep.subr.mxu0 0.0
    %1133 = vmatpush2.xpose.msra.mxu0 0.0
    %1134 = vmatprep.subr.mxu0 0.0
    %1135 = vmatpush2.xpose.msra.mxu0 0.0
    %1136 = vmatprep.subr.mxu0 0.0
    %1137 = vmatpush2.xpose.msra.mxu0 0.0
    %1138 = vmatprep.subr.mxu0 0.0
    %1139 = vmatpush2.xpose.msra.mxu0 0.0
    %1140 = vmatprep.subr.mxu0 0.0
    %1141 = vmatpush2.xpose.msra.mxu0 0.0
    %1142 = vmatprep.subr.mxu0 0.0
    %1143 = vmatpush2.xpose.msra.mxu0 0.0
    %1144 = vmatprep.subr.mxu0 0.0
    %1145 = vmatpush2.xpose.msra.mxu0 0.0
    %1146 = vmatprep.subr.mxu0 0.0
    %1147 = vmatpush2.xpose.msra.mxu0 0.0
    %1148 = vmatprep.subr.mxu0 0.0
    %1149 = vmatpush2.xpose.msra.mxu0 0.0
    %1150 = vmatprep.subr.mxu0 0.0
    %1151 = vmatpush2.xpose.msra.mxu0 0.0
    %1152 = vmatprep.subr.mxu0 0.0
    %1153 = vmatpush2.xpose.msra.mxu0 0.0
    %1154 = vmatprep.subr.mxu0 0.0
    %1155 = vmatpush2.xpose.msra.mxu0 0.0
    %1156 = vmatprep.subr.mxu0 0.0
    %1157 = vmatpush2.xpose.msra.mxu0 0.0
    %1158 = vmatprep.subr.mxu0 0.0
    %1159 = vmatpush2.xpose.msra.mxu0 0.0
    %1160 = vmatprep.subr.mxu0 0.0
    %1161 = vmatpush2.xpose.msra.mxu0 0.0
    %1162 = vmatprep.subr.mxu0 0.0
    %1163 = vmatpush2.xpose.msra.mxu0 0.0
    %1164 = vmatprep.mubr.f32.mxu0 0.0
    %1165 = vmatmul.mubr.f32.gmra.mxu0 %v1096
    %v1166 = vpop.f32.mrf.mxu0
    %v1167 = vadd.f32 %v1091, %v1166
    %v1168 = vpop.f32.mrf.mxu0
    %1169 = vmatprep.mubr.f32.mxu0 0.0
    %1170 = vmatmul.mubr.f32.gmra.mxu0 %v1098
    %v1171 = vpop.f32.mrf.mxu0
    %v1172 = vadd.f32 %v1091, %v1171
    %v1173 = vpop.f32.mrf.mxu0
    %1174 = vdwg.mxu0
    %v1175 = vmul.f32 %v1167, %v41
    %v1176 = vmul.f32 %v1172, %v42
    %v1177 = vadd.f32 %v1085, %v1175
    %v1178 = vadd.f32 %v1086, %v1176
    %v1179 = vld [vmem:[%s8 + $0x10] sm:$0x1]
    %v1180 = vlaneseq
    %v1181 = vshrl.u32 %v1180, 7
    %v1182 = vsub.s32 0, %v1181
    %v1183 = vrot.slane %v1179, %v1182
    %1184 = vrot.lane.b32.xlu0 %v141, 16
    %v1185 = vpop.permute.xlu0 %1184
    %1186 = vrot.lane.b32.xlu0 %v147, 16
    %v1187 = vpop.permute.xlu0 %1186
    %v1188 = vsel %vm166, %v1185, 0
    %v1190 = vsel %vm166, %v1187, 0
    %1192 = vmatprep.subr.mxu0 0.0
    %1193 = vmatpush1.xpose.msra.mxu0 0.0
    %1194 = vmatprep.subr.mxu0 0.0
    %1195 = vmatpush1.xpose.msra.mxu0 0.0
    %1196 = vmatprep.subr.mxu0 0.0
    %1197 = vmatpush1.xpose.msra.mxu0 0.0
    %1198 = vmatprep.subr.mxu0 0.0
    %1199 = vmatpush1.xpose.msra.mxu0 0.0
    %1200 = vmatprep.subr.mxu0 0.0
    %1201 = vmatpush1.xpose.msra.mxu0 0.0
    %1202 = vmatprep.subr.mxu0 0.0
    %1203 = vmatpush1.xpose.msra.mxu0 0.0
    %1204 = vmatprep.subr.mxu0 0.0
    %1205 = vmatpush1.xpose.msra.mxu0 0.0
    %1206 = vmatprep.subr.mxu0 0.0
    %1207 = vmatpush1.xpose.msra.mxu0 0.0
    %1208 = vmatprep.subr.mxu0 0.0
    %1209 = vmatpush1.xpose.msra.mxu0 0.0
    %1210 = vmatprep.subr.mxu0 0.0
    %1211 = vmatpush1.xpose.msra.mxu0 0.0
    %1212 = vmatprep.subr.mxu0 0.0
    %1213 = vmatpush1.xpose.msra.mxu0 0.0
    %1214 = vmatprep.subr.mxu0 0.0
    %1215 = vmatpush1.xpose.msra.mxu0 0.0
    %1216 = vmatprep.subr.mxu0 0.0
    %1217 = vmatpush1.xpose.msra.mxu0 0.0
    %1218 = vmatprep.subr.mxu0 0.0
    %1219 = vmatpush1.xpose.msra.mxu0 0.0
    %1220 = vmatprep.subr.mxu0 0.0
    %1221 = vmatpush1.xpose.msra.mxu0 %v833
    %1222 = vmatprep.subr.mxu0 0.0
    %1223 = vmatpush1.xpose.msra.mxu0 %v831
    %1224 = vmatprep.subr.mxu0 0.0
    %1225 = vmatpush2.xpose.msra.mxu0 0.0
    %1226 = vmatprep.subr.mxu0 0.0
    %1227 = vmatpush2.xpose.msra.mxu0 0.0
    %1228 = vmatprep.subr.mxu0 0.0
    %1229 = vmatpush2.xpose.msra.mxu0 0.0
    %1230 = vmatprep.subr.mxu0 0.0
    %1231 = vmatpush2.xpose.msra.mxu0 0.0
    %1232 = vmatprep.subr.mxu0 0.0
    %1233 = vmatpush2.xpose.msra.mxu0 0.0
    %1234 = vmatprep.subr.mxu0 0.0
    %1235 = vmatpush2.xpose.msra.mxu0 0.0
    %1236 = vmatprep.subr.mxu0 0.0
    %1237 = vmatpush2.xpose.msra.mxu0 0.0
    %1238 = vmatprep.subr.mxu0 0.0
    %1239 = vmatpush2.xpose.msra.mxu0 0.0
    %1240 = vmatprep.subr.mxu0 0.0
    %1241 = vmatpush2.xpose.msra.mxu0 0.0
    %1242 = vmatprep.subr.mxu0 0.0
    %1243 = vmatpush2.xpose.msra.mxu0 0.0
    %1244 = vmatprep.subr.mxu0 0.0
    %1245 = vmatpush2.xpose.msra.mxu0 0.0
    %1246 = vmatprep.subr.mxu0 0.0
    %1247 = vmatpush2.xpose.msra.mxu0 0.0
    %1248 = vmatprep.subr.mxu0 0.0
    %1249 = vmatpush2.xpose.msra.mxu0 0.0
    %1250 = vmatprep.subr.mxu0 0.0
    %1251 = vmatpush2.xpose.msra.mxu0 0.0
    %1252 = vmatprep.subr.mxu0 0.0
    %1253 = vmatpush2.xpose.msra.mxu0 0.0
    %1254 = vmatprep.subr.mxu0 0.0
    %1255 = vmatpush2.xpose.msra.mxu0 0.0
    %1256 = vmatprep.mubr.f32.mxu0 0.0
    %1257 = vmatmul.mubr.f32.gmra.mxu0 %v1188
    %v1258 = vpop.f32.mrf.mxu0
    %v1259 = vadd.f32 %v1183, %v1258
    %v1260 = vpop.f32.mrf.mxu0
    %1261 = vmatprep.mubr.f32.mxu0 0.0
    %1262 = vmatmul.mubr.f32.gmra.mxu0 %v1190
    %v1263 = vpop.f32.mrf.mxu0
    %v1264 = vadd.f32 %v1183, %v1263
    %v1265 = vpop.f32.mrf.mxu0
    %1266 = vdwg.mxu0
    %v1267 = vmul.f32 %v1259, %v43
    %v1268 = vmul.f32 %v1264, %v44
    %v1269 = vadd.f32 %v1177, %v1267
    %v1270 = vadd.f32 %v1178, %v1268
    %v1271 = vld [vmem:[%s8 + $0x11] sm:$0x1]
    %v1272 = vlaneseq
    %v1273 = vshrl.u32 %v1272, 7
    %v1274 = vsub.s32 0, %v1273
    %v1275 = vrot.slane %v1271, %v1274
    %1276 = vrot.lane.b32.xlu0 %v141, 8
    %v1277 = vpop.permute.xlu0 %1276
    %1278 = vrot.lane.b32.xlu0 %v147, 8
    %v1279 = vpop.permute.xlu0 %1278
    %v1280 = vsel %vm166, %v1277, 0
    %v1282 = vsel %vm166, %v1279, 0
    %1284 = vmatprep.subr.mxu0 0.0
    %1285 = vmatpush1.xpose.msra.mxu0 0.0
    %1286 = vmatprep.subr.mxu0 0.0
    %1287 = vmatpush1.xpose.msra.mxu0 0.0
    %1288 = vmatprep.subr.mxu0 0.0
    %1289 = vmatpush1.xpose.msra.mxu0 0.0
    %1290 = vmatprep.subr.mxu0 0.0
    %1291 = vmatpush1.xpose.msra.mxu0 0.0
    %1292 = vmatprep.subr.mxu0 0.0
    %1293 = vmatpush1.xpose.msra.mxu0 0.0
    %1294 = vmatprep.subr.mxu0 0.0
    %1295 = vmatpush1.xpose.msra.mxu0 0.0
    %1296 = vmatprep.subr.mxu0 0.0
    %1297 = vmatpush1.xpose.msra.mxu0 0.0
    %1298 = vmatprep.subr.mxu0 0.0
    %1299 = vmatpush1.xpose.msra.mxu0 0.0
    %1300 = vmatprep.subr.mxu0 0.0
    %1301 = vmatpush1.xpose.msra.mxu0 0.0
    %1302 = vmatprep.subr.mxu0 0.0
    %1303 = vmatpush1.xpose.msra.mxu0 0.0
    %1304 = vmatprep.subr.mxu0 0.0
    %1305 = vmatpush1.xpose.msra.mxu0 0.0
    %1306 = vmatprep.subr.mxu0 0.0
    %1307 = vmatpush1.xpose.msra.mxu0 0.0
    %1308 = vmatprep.subr.mxu0 0.0
    %1309 = vmatpush1.xpose.msra.mxu0 0.0
    %1310 = vmatprep.subr.mxu0 0.0
    %1311 = vmatpush1.xpose.msra.mxu0 0.0
    %1312 = vmatprep.subr.mxu0 0.0
    %1313 = vmatpush1.xpose.msra.mxu0 %v833
    %1314 = vmatprep.subr.mxu0 0.0
    %1315 = vmatpush1.xpose.msra.mxu0 %v831
    %1316 = vmatprep.subr.mxu0 0.0
    %1317 = vmatpush2.xpose.msra.mxu0 0.0
    %1318 = vmatprep.subr.mxu0 0.0
    %1319 = vmatpush2.xpose.msra.mxu0 0.0
    %1320 = vmatprep.subr.mxu0 0.0
    %1321 = vmatpush2.xpose.msra.mxu0 0.0
    %1322 = vmatprep.subr.mxu0 0.0
    %1323 = vmatpush2.xpose.msra.mxu0 0.0
    %1324 = vmatprep.subr.mxu0 0.0
    %1325 = vmatpush2.xpose.msra.mxu0 0.0
    %1326 = vmatprep.subr.mxu0 0.0
    %1327 = vmatpush2.xpose.msra.mxu0 0.0
    %1328 = vmatprep.subr.mxu0 0.0
    %1329 = vmatpush2.xpose.msra.mxu0 0.0
    %1330 = vmatprep.subr.mxu0 0.0
    %1331 = vmatpush2.xpose.msra.mxu0 0.0
    %1332 = vmatprep.subr.mxu0 0.0
    %1333 = vmatpush2.xpose.msra.mxu0 0.0
    %1334 = vmatprep.subr.mxu0 0.0
    %1335 = vmatpush2.xpose.msra.mxu0 0.0
    %1336 = vmatprep.subr.mxu0 0.0
    %1337 = vmatpush2.xpose.msra.mxu0 0.0
    %1338 = vmatprep.subr.mxu0 0.0
    %1339 = vmatpush2.xpose.msra.mxu0 0.0
    %1340 = vmatprep.subr.mxu0 0.0
    %1341 = vmatpush2.xpose.msra.mxu0 0.0
    %1342 = vmatprep.subr.mxu0 0.0
    %1343 = vmatpush2.xpose.msra.mxu0 0.0
    %1344 = vmatprep.subr.mxu0 0.0
    %1345 = vmatpush2.xpose.msra.mxu0 0.0
    %1346 = vmatprep.subr.mxu0 0.0
    %1347 = vmatpush2.xpose.msra.mxu0 0.0
    %1348 = vmatprep.mubr.f32.mxu0 0.0
    %1349 = vmatmul.mubr.f32.gmra.mxu0 %v1280
    %v1350 = vpop.f32.mrf.mxu0
    %v1351 = vadd.f32 %v1275, %v1350
    %v1352 = vpop.f32.mrf.mxu0
    %1353 = vmatprep.mubr.f32.mxu0 0.0
    %1354 = vmatmul.mubr.f32.gmra.mxu0 %v1282
    %v1355 = vpop.f32.mrf.mxu0
    %v1356 = vadd.f32 %v1275, %v1355
    %v1357 = vpop.f32.mrf.mxu0
    %1358 = vdwg.mxu0
    %v1359 = vmul.f32 %v1351, %v45
    %v1360 = vmul.f32 %v1356, %v46
    %v1361 = vadd.f32 %v1269, %v1359
    %v1362 = vadd.f32 %v1270, %v1360
    %v1363 = vmul.f32 %v1361, 0.35355338
    %v1364 = vmul.f32 %v1362, 0.35355338
    %v1365 = vadd.f32 %v1363, %v35
    %v1366 = vadd.f32 %v1364, %v36
    %v1367 = vsel %vm703, %v1365, -inf
    %1368 = vmax.xlane.f32.xlu0 %v1367
    %v1369 = vpop.xlane.xlu0 %1368
    %v1370 = vsel %vm703, %v1366, -inf
    %1371 = vmax.xlane.f32.xlu0 %v1370
    %v1372 = vpop.xlane.xlu0 %1371
    %v1373 = vsub.f32 %v1365, %v1369
    %v1374 = vsub.f32 %v1366, %v1372
    %v1375 = vmul.f32 %v1373, 1.442695
    %v1376 = vpow.pop %v1375
    %v1377 = vmul.f32 %v1374, 1.442695
    %v1378 = vpow.pop %v1377
    %v1379 = vsel %vm703, %v1376, 0.0
    %1380 = vadd.xlane.f32.xlu0 %v1379
    %v1381 = vpop.xlane.xlu0 %1380
    %v1382 = vsel %vm703, %v1378, 0.0
    %1383 = vadd.xlane.f32.xlu0 %v1382
    %v1384 = vpop.xlane.xlu0 %1383
    %v1385 = vrcp.pop %v1381
    %v1386 = vmul.f32 %v1376, %v1385
    %v1387 = vrcp.pop %v1384
    %v1388 = vmul.f32 %v1378, %v1387
    %1389 = vrot.lane.b32.xlu0 %v141, 48
    %v1390 = vpop.permute.xlu0 %1389
    %1391 = vrot.lane.b32.xlu0 %v147, 48
    %v1392 = vpop.permute.xlu0 %1391
    %v1396 = vsel %vm703, %v1386, 0
    %v1399 = vsel %vm703, %v1388, 0
    %1401 = vmatprep.subr.mxu0 0.0
    %1402 = vmatpush1.msra.mxu0 0.0
    %1403 = vmatprep.subr.mxu0 0.0
    %1404 = vmatpush1.msra.mxu0 0.0
    %1405 = vmatprep.subr.mxu0 0.0
    %1406 = vmatpush1.msra.mxu0 0.0
    %1407 = vmatprep.subr.mxu0 0.0
    %1408 = vmatpush1.msra.mxu0 0.0
    %1409 = vmatprep.subr.mxu0 0.0
    %1410 = vmatpush1.msra.mxu0 0.0
    %1411 = vmatprep.subr.mxu0 0.0
    %1412 = vmatpush1.msra.mxu0 0.0
    %1413 = vmatprep.subr.mxu0 0.0
    %1414 = vmatpush1.msra.mxu0 0.0
    %1415 = vmatprep.subr.mxu0 0.0
    %1416 = vmatpush1.msra.mxu0 0.0
    %1417 = vmatprep.subr.mxu0 0.0
    %1418 = vmatpush1.msra.mxu0 0.0
    %1419 = vmatprep.subr.mxu0 0.0
    %1420 = vmatpush1.msra.mxu0 0.0
    %1421 = vmatprep.subr.mxu0 0.0
    %1422 = vmatpush1.msra.mxu0 0.0
    %1423 = vmatprep.subr.mxu0 0.0
    %1424 = vmatpush1.msra.mxu0 0.0
    %1425 = vmatprep.subr.mxu0 0.0
    %1426 = vmatpush1.msra.mxu0 0.0
    %1427 = vmatprep.subr.mxu0 0.0
    %1428 = vmatpush1.msra.mxu0 0.0
    %1429 = vmatprep.subr.mxu0 0.0
    %1430 = vmatpush1.msra.mxu0 %v1392
    %1431 = vmatprep.subr.mxu0 0.0
    %1432 = vmatpush1.msra.mxu0 %v1390
    %1433 = vmatprep.subr.mxu0 0.0
    %1434 = vmatpush2.msra.mxu0 0.0
    %1435 = vmatprep.subr.mxu0 0.0
    %1436 = vmatpush2.msra.mxu0 0.0
    %1437 = vmatprep.subr.mxu0 0.0
    %1438 = vmatpush2.msra.mxu0 0.0
    %1439 = vmatprep.subr.mxu0 0.0
    %1440 = vmatpush2.msra.mxu0 0.0
    %1441 = vmatprep.subr.mxu0 0.0
    %1442 = vmatpush2.msra.mxu0 0.0
    %1443 = vmatprep.subr.mxu0 0.0
    %1444 = vmatpush2.msra.mxu0 0.0
    %1445 = vmatprep.subr.mxu0 0.0
    %1446 = vmatpush2.msra.mxu0 0.0
    %1447 = vmatprep.subr.mxu0 0.0
    %1448 = vmatpush2.msra.mxu0 0.0
    %1449 = vmatprep.subr.mxu0 0.0
    %1450 = vmatpush2.msra.mxu0 0.0
    %1451 = vmatprep.subr.mxu0 0.0
    %1452 = vmatpush2.msra.mxu0 0.0
    %1453 = vmatprep.subr.mxu0 0.0
    %1454 = vmatpush2.msra.mxu0 0.0
    %1455 = vmatprep.subr.mxu0 0.0
    %1456 = vmatpush2.msra.mxu0 0.0
    %1457 = vmatprep.subr.mxu0 0.0
    %1458 = vmatpush2.msra.mxu0 0.0
    %1459 = vmatprep.subr.mxu0 0.0
    %1460 = vmatpush2.msra.mxu0 0.0
    %1461 = vmatprep.subr.mxu0 0.0
    %1462 = vmatpush2.msra.mxu0 0.0
    %1463 = vmatprep.subr.mxu0 0.0
    %1464 = vmatpush2.msra.mxu0 0.0
    %1465 = vmatprep.mubr.f32.mxu0 0.0
    %1466 = vmatmul.mubr.f32.gmra.mxu0 %v1396
    %v1467 = vpop.f32.mrf.mxu0
    %v1468 = vadd.f32 0.0, %v1467
    %v1469 = vpop.f32.mrf.mxu0
    %1470 = vmatprep.mubr.f32.mxu0 0.0
    %1471 = vmatmul.mubr.f32.gmra.mxu0 %v1399
    %v1472 = vpop.f32.mrf.mxu0
    %v1473 = vadd.f32 0.0, %v1472
    %v1474 = vpop.f32.mrf.mxu0
    %1475 = vdwg.mxu0
    %s1476 = scalar_lea.vmem %s5, 8
    %v1477 = vld [vmem:[%s1476] sm:$0xff]
    %v1479 = vsel %vm166, %v1468, 0
    %v1482 = vsel %vm166, %v1473, 0
    %1484 = vmatprep.subr.mxu0 0.0
    %1485 = vmatpush1.msra.mxu0 0.0
    %1486 = vmatprep.subr.mxu0 0.0
    %1487 = vmatpush1.msra.mxu0 0.0
    %1488 = vmatprep.subr.mxu0 0.0
    %1489 = vmatpush1.msra.mxu0 0.0
    %1490 = vmatprep.subr.mxu0 0.0
    %1491 = vmatpush1.msra.mxu0 0.0
    %1492 = vmatprep.subr.mxu0 0.0
    %1493 = vmatpush1.msra.mxu0 0.0
    %1494 = vmatprep.subr.mxu0 0.0
    %1495 = vmatpush1.msra.mxu0 0.0
    %1496 = vmatprep.subr.mxu0 0.0
    %1497 = vmatpush1.msra.mxu0 0.0
    %1498 = vmatprep.subr.mxu0 0.0
    %1499 = vmatpush1.msra.mxu0 0.0
    %1500 = vmatprep.subr.mxu0 0.0
    %1501 = vmatpush1.msra.mxu0 0.0
    %1502 = vmatprep.subr.mxu0 0.0
    %1503 = vmatpush1.msra.mxu0 0.0
    %1504 = vmatprep.subr.mxu0 0.0
    %1505 = vmatpush1.msra.mxu0 0.0
    %1506 = vmatprep.subr.mxu0 0.0
    %1507 = vmatpush1.msra.mxu0 0.0
    %1508 = vmatprep.subr.mxu0 0.0
    %1509 = vmatpush1.msra.mxu0 0.0
    %1510 = vmatprep.subr.mxu0 0.0
    %1511 = vmatpush1.msra.mxu0 0.0
    %1512 = vmatprep.subr.mxu0 0.0
    %1513 = vmatpush1.msra.mxu0 0.0
    %1514 = vmatprep.subr.mxu0 0.0
    %1515 = vmatpush1.msra.mxu0 %v1477
    %1516 = vmatprep.subr.mxu0 0.0
    %1517 = vmatpush2.msra.mxu0 0.0
    %1518 = vmatprep.subr.mxu0 0.0
    %1519 = vmatpush2.msra.mxu0 0.0
    %1520 = vmatprep.subr.mxu0 0.0
    %1521 = vmatpush2.msra.mxu0 0.0
    %1522 = vmatprep.subr.mxu0 0.0
    %1523 = vmatpush2.msra.mxu0 0.0
    %1524 = vmatprep.subr.mxu0 0.0
    %1525 = vmatpush2.msra.mxu0 0.0
    %1526 = vmatprep.subr.mxu0 0.0
    %1527 = vmatpush2.msra.mxu0 0.0
    %1528 = vmatprep.subr.mxu0 0.0
    %1529 = vmatpush2.msra.mxu0 0.0
    %1530 = vmatprep.subr.mxu0 0.0
    %1531 = vmatpush2.msra.mxu0 0.0
    %1532 = vmatprep.subr.mxu0 0.0
    %1533 = vmatpush2.msra.mxu0 0.0
    %1534 = vmatprep.subr.mxu0 0.0
    %1535 = vmatpush2.msra.mxu0 0.0
    %1536 = vmatprep.subr.mxu0 0.0
    %1537 = vmatpush2.msra.mxu0 0.0
    %1538 = vmatprep.subr.mxu0 0.0
    %1539 = vmatpush2.msra.mxu0 0.0
    %1540 = vmatprep.subr.mxu0 0.0
    %1541 = vmatpush2.msra.mxu0 0.0
    %1542 = vmatprep.subr.mxu0 0.0
    %1543 = vmatpush2.msra.mxu0 0.0
    %1544 = vmatprep.subr.mxu0 0.0
    %1545 = vmatpush2.msra.mxu0 0.0
    %1546 = vmatprep.subr.mxu0 0.0
    %1547 = vmatpush2.msra.mxu0 0.0
    %1548 = vmatprep.mubr.f32.mxu0 0.0
    %1549 = vmatmul.mubr.f32.gmra.mxu0 %v1479
    %v1550 = vpop.f32.mrf.mxu0
    %v1551 = vadd.f32 0.0, %v1550
    %v1552 = vpop.f32.mrf.mxu0
    %1553 = vmatprep.mubr.f32.mxu0 0.0
    %1554 = vmatmul.mubr.f32.gmra.mxu0 %v1482
    %v1555 = vpop.f32.mrf.mxu0
    %v1556 = vadd.f32 0.0, %v1555
    %v1557 = vpop.f32.mrf.mxu0
    %1558 = vdwg.mxu0
    %v1560 = vsel %vm166, %v805, 0
    %v1563 = vsel %vm166, %v810, 0
    %1565 = vmatprep.subr.mxu0 0.0
    %1566 = vmatpush1.msra.mxu0 0.0
    %1567 = vmatprep.subr.mxu0 0.0
    %1568 = vmatpush1.msra.mxu0 0.0
    %1569 = vmatprep.subr.mxu0 0.0
    %1570 = vmatpush1.msra.mxu0 0.0
    %1571 = vmatprep.subr.mxu0 0.0
    %1572 = vmatpush1.msra.mxu0 0.0
    %1573 = vmatprep.subr.mxu0 0.0
    %1574 = vmatpush1.msra.mxu0 0.0
    %1575 = vmatprep.subr.mxu0 0.0
    %1576 = vmatpush1.msra.mxu0 0.0
    %1577 = vmatprep.subr.mxu0 0.0
    %1578 = vmatpush1.msra.mxu0 0.0
    %1579 = vmatprep.subr.mxu0 0.0
    %1580 = vmatpush1.msra.mxu0 0.0
    %1581 = vmatprep.subr.mxu0 0.0
    %1582 = vmatpush1.msra.mxu0 0.0
    %1583 = vmatprep.subr.mxu0 0.0
    %1584 = vmatpush1.msra.mxu0 0.0
    %1585 = vmatprep.subr.mxu0 0.0
    %1586 = vmatpush1.msra.mxu0 0.0
    %1587 = vmatprep.subr.mxu0 0.0
    %1588 = vmatpush1.msra.mxu0 0.0
    %1589 = vmatprep.subr.mxu0 0.0
    %1590 = vmatpush1.msra.mxu0 0.0
    %1591 = vmatprep.subr.mxu0 0.0
    %1592 = vmatpush1.msra.mxu0 0.0
    %1593 = vmatprep.subr.mxu0 0.0
    %1594 = vmatpush1.msra.mxu0 0.0
    %1595 = vmatprep.subr.mxu0 0.0
    %1596 = vmatpush1.msra.mxu0 %v813
    %1597 = vmatprep.subr.mxu0 0.0
    %1598 = vmatpush2.msra.mxu0 0.0
    %1599 = vmatprep.subr.mxu0 0.0
    %1600 = vmatpush2.msra.mxu0 0.0
    %1601 = vmatprep.subr.mxu0 0.0
    %1602 = vmatpush2.msra.mxu0 0.0
    %1603 = vmatprep.subr.mxu0 0.0
    %1604 = vmatpush2.msra.mxu0 0.0
    %1605 = vmatprep.subr.mxu0 0.0
    %1606 = vmatpush2.msra.mxu0 0.0
    %1607 = vmatprep.subr.mxu0 0.0
    %1608 = vmatpush2.msra.mxu0 0.0
    %1609 = vmatprep.subr.mxu0 0.0
    %1610 = vmatpush2.msra.mxu0 0.0
    %1611 = vmatprep.subr.mxu0 0.0
    %1612 = vmatpush2.msra.mxu0 0.0
    %1613 = vmatprep.subr.mxu0 0.0
    %1614 = vmatpush2.msra.mxu0 0.0
    %1615 = vmatprep.subr.mxu0 0.0
    %1616 = vmatpush2.msra.mxu0 0.0
    %1617 = vmatprep.subr.mxu0 0.0
    %1618 = vmatpush2.msra.mxu0 0.0
    %1619 = vmatprep.subr.mxu0 0.0
    %1620 = vmatpush2.msra.mxu0 0.0
    %1621 = vmatprep.subr.mxu0 0.0
    %1622 = vmatpush2.msra.mxu0 0.0
    %1623 = vmatprep.subr.mxu0 0.0
    %1624 = vmatpush2.msra.mxu0 0.0
    %1625 = vmatprep.subr.mxu0 0.0
    %1626 = vmatpush2.msra.mxu0 0.0
    %1627 = vmatprep.subr.mxu0 0.0
    %1628 = vmatpush2.msra.mxu0 0.0
    %1629 = vmatprep.mubr.f32.mxu0 0.0
    %1630 = vmatmul.mubr.f32.gmra.mxu0 %v1560
    %v1631 = vpop.f32.mrf.mxu0
    %v1632 = vadd.f32 %v1551, %v1631
    %v1633 = vpop.f32.mrf.mxu0
    %1634 = vmatprep.mubr.f32.mxu0 0.0
    %1635 = vmatmul.mubr.f32.gmra.mxu0 %v1563
    %v1636 = vpop.f32.mrf.mxu0
    %v1637 = vadd.f32 %v1556, %v1636
    %v1638 = vpop.f32.mrf.mxu0
    %1639 = vdwg.mxu0
    %v1640 = vld [vmem:[%s8 + $0x12] sm:$0x1]
    %v1641 = vlaneseq
    %v1642 = vshrl.u32 %v1641, 7
    %v1643 = vsub.s32 0, %v1642
    %v1644 = vrot.slane %v1640, %v1643
    %1647 = vrot.lane.b32.xlu0 %v143, 104
    %v1648 = vpop.permute.xlu0 %1647
    %1649 = vrot.lane.b32.xlu0 %v149, 104
    %v1650 = vpop.permute.xlu0 %1649
    %1651 = vrot.lane.b32.xlu0 %v143, 120
    %v1652 = vpop.permute.xlu0 %1651
    %1653 = vrot.lane.b32.xlu0 %v149, 120
    %v1654 = vpop.permute.xlu0 %1653
    %v1655 = vsel %vm166, %v1648, 0
    %v1657 = vsel %vm166, %v1650, 0
    %v1659 = vsel %vm166, %v1652, 0
    %v1661 = vsel %vm166, %v1654, 0
    %1663 = vmatprep.subr.mxu0 0.0
    %1664 = vmatpush1.xpose.msra.mxu0 0.0
    %1665 = vmatprep.subr.mxu0 0.0
    %1666 = vmatpush1.xpose.msra.mxu0 0.0
    %1667 = vmatprep.subr.mxu0 0.0
    %1668 = vmatpush1.xpose.msra.mxu0 0.0
    %1669 = vmatprep.subr.mxu0 0.0
    %1670 = vmatpush1.xpose.msra.mxu0 0.0
    %1671 = vmatprep.subr.mxu0 0.0
    %1672 = vmatpush1.xpose.msra.mxu0 0.0
    %1673 = vmatprep.subr.mxu0 0.0
    %1674 = vmatpush1.xpose.msra.mxu0 0.0
    %1675 = vmatprep.subr.mxu0 0.0
    %1676 = vmatpush1.xpose.msra.mxu0 0.0
    %1677 = vmatprep.subr.mxu0 0.0
    %1678 = vmatpush1.xpose.msra.mxu0 0.0
    %1679 = vmatprep.subr.mxu0 0.0
    %1680 = vmatpush1.xpose.msra.mxu0 0.0
    %1681 = vmatprep.subr.mxu0 0.0
    %1682 = vmatpush1.xpose.msra.mxu0 0.0
    %1683 = vmatprep.subr.mxu0 0.0
    %1684 = vmatpush1.xpose.msra.mxu0 0.0
    %1685 = vmatprep.subr.mxu0 0.0
    %1686 = vmatpush1.xpose.msra.mxu0 0.0
    %1687 = vmatprep.subr.mxu0 0.0
    %1688 = vmatpush1.xpose.msra.mxu0 0.0
    %1689 = vmatprep.subr.mxu0 0.0
    %1690 = vmatpush1.xpose.msra.mxu0 0.0
    %1691 = vmatprep.subr.mxu0 0.0
    %1692 = vmatpush1.xpose.msra.mxu0 %v1661
    %1693 = vmatprep.subr.mxu0 0.0
    %1694 = vmatpush1.xpose.msra.mxu0 %v1659
    %1695 = vmatprep.subr.mxu0 0.0
    %1696 = vmatpush2.xpose.msra.mxu0 0.0
    %1697 = vmatprep.subr.mxu0 0.0
    %1698 = vmatpush2.xpose.msra.mxu0 0.0
    %1699 = vmatprep.subr.mxu0 0.0
    %1700 = vmatpush2.xpose.msra.mxu0 0.0
    %1701 = vmatprep.subr.mxu0 0.0
    %1702 = vmatpush2.xpose.msra.mxu0 0.0
    %1703 = vmatprep.subr.mxu0 0.0
    %1704 = vmatpush2.xpose.msra.mxu0 0.0
    %1705 = vmatprep.subr.mxu0 0.0
    %1706 = vmatpush2.xpose.msra.mxu0 0.0
    %1707 = vmatprep.subr.mxu0 0.0
    %1708 = vmatpush2.xpose.msra.mxu0 0.0
    %1709 = vmatprep.subr.mxu0 0.0
    %1710 = vmatpush2.xpose.msra.mxu0 0.0
    %1711 = vmatprep.subr.mxu0 0.0
    %1712 = vmatpush2.xpose.msra.mxu0 0.0
    %1713 = vmatprep.subr.mxu0 0.0
    %1714 = vmatpush2.xpose.msra.mxu0 0.0
    %1715 = vmatprep.subr.mxu0 0.0
    %1716 = vmatpush2.xpose.msra.mxu0 0.0
    %1717 = vmatprep.subr.mxu0 0.0
    %1718 = vmatpush2.xpose.msra.mxu0 0.0
    %1719 = vmatprep.subr.mxu0 0.0
    %1720 = vmatpush2.xpose.msra.mxu0 0.0
    %1721 = vmatprep.subr.mxu0 0.0
    %1722 = vmatpush2.xpose.msra.mxu0 0.0
    %1723 = vmatprep.subr.mxu0 0.0
    %1724 = vmatpush2.xpose.msra.mxu0 0.0
    %1725 = vmatprep.subr.mxu0 0.0
    %1726 = vmatpush2.xpose.msra.mxu0 0.0
    %1727 = vmatprep.mubr.f32.mxu0 0.0
    %1728 = vmatmul.mubr.f32.gmra.mxu0 %v1655
    %v1729 = vpop.f32.mrf.mxu0
    %v1730 = vadd.f32 %v1644, %v1729
    %v1731 = vpop.f32.mrf.mxu0
    %1732 = vmatprep.mubr.f32.mxu0 0.0
    %1733 = vmatmul.mubr.f32.gmra.mxu0 %v1657
    %v1734 = vpop.f32.mrf.mxu0
    %v1735 = vadd.f32 %v1644, %v1734
    %v1736 = vpop.f32.mrf.mxu0
    %1737 = vdwg.mxu0
    %v1738 = vmul.f32 %v1730, %v37
    %v1739 = vmul.f32 %v1735, %v38
    %v1740 = vsel %vm166, %v143, 0
    %v1742 = vsel %vm166, %v149, 0
    %1744 = vmatprep.subr.mxu0 0.0
    %1745 = vmatpush1.xpose.msra.mxu0 0.0
    %1746 = vmatprep.subr.mxu0 0.0
    %1747 = vmatpush1.xpose.msra.mxu0 0.0
    %1748 = vmatprep.subr.mxu0 0.0
    %1749 = vmatpush1.xpose.msra.mxu0 0.0
    %1750 = vmatprep.subr.mxu0 0.0
    %1751 = vmatpush1.xpose.msra.mxu0 0.0
    %1752 = vmatprep.subr.mxu0 0.0
    %1753 = vmatpush1.xpose.msra.mxu0 0.0
    %1754 = vmatprep.subr.mxu0 0.0
    %1755 = vmatpush1.xpose.msra.mxu0 0.0
    %1756 = vmatprep.subr.mxu0 0.0
    %1757 = vmatpush1.xpose.msra.mxu0 0.0
    %1758 = vmatprep.subr.mxu0 0.0
    %1759 = vmatpush1.xpose.msra.mxu0 0.0
    %1760 = vmatprep.subr.mxu0 0.0
    %1761 = vmatpush1.xpose.msra.mxu0 0.0
    %1762 = vmatprep.subr.mxu0 0.0
    %1763 = vmatpush1.xpose.msra.mxu0 0.0
    %1764 = vmatprep.subr.mxu0 0.0
    %1765 = vmatpush1.xpose.msra.mxu0 0.0
    %1766 = vmatprep.subr.mxu0 0.0
    %1767 = vmatpush1.xpose.msra.mxu0 0.0
    %1768 = vmatprep.subr.mxu0 0.0
    %1769 = vmatpush1.xpose.msra.mxu0 0.0
    %1770 = vmatprep.subr.mxu0 0.0
    %1771 = vmatpush1.xpose.msra.mxu0 0.0
    %1772 = vmatprep.subr.mxu0 0.0
    %1773 = vmatpush1.xpose.msra.mxu0 %v1661
    %1774 = vmatprep.subr.mxu0 0.0
    %1775 = vmatpush1.xpose.msra.mxu0 %v1659
    %1776 = vmatprep.subr.mxu0 0.0
    %1777 = vmatpush2.xpose.msra.mxu0 0.0
    %1778 = vmatprep.subr.mxu0 0.0
    %1779 = vmatpush2.xpose.msra.mxu0 0.0
    %1780 = vmatprep.subr.mxu0 0.0
    %1781 = vmatpush2.xpose.msra.mxu0 0.0
    %1782 = vmatprep.subr.mxu0 0.0
    %1783 = vmatpush2.xpose.msra.mxu0 0.0
    %1784 = vmatprep.subr.mxu0 0.0
    %1785 = vmatpush2.xpose.msra.mxu0 0.0
    %1786 = vmatprep.subr.mxu0 0.0
    %1787 = vmatpush2.xpose.msra.mxu0 0.0
    %1788 = vmatprep.subr.mxu0 0.0
    %1789 = vmatpush2.xpose.msra.mxu0 0.0
    %1790 = vmatprep.subr.mxu0 0.0
    %1791 = vmatpush2.xpose.msra.mxu0 0.0
    %1792 = vmatprep.subr.mxu0 0.0
    %1793 = vmatpush2.xpose.msra.mxu0 0.0
    %1794 = vmatprep.subr.mxu0 0.0
    %1795 = vmatpush2.xpose.msra.mxu0 0.0
    %1796 = vmatprep.subr.mxu0 0.0
    %1797 = vmatpush2.xpose.msra.mxu0 0.0
    %1798 = vmatprep.subr.mxu0 0.0
    %1799 = vmatpush2.xpose.msra.mxu0 0.0
    %1800 = vmatprep.subr.mxu0 0.0
    %1801 = vmatpush2.xpose.msra.mxu0 0.0
    %1802 = vmatprep.subr.mxu0 0.0
    %1803 = vmatpush2.xpose.msra.mxu0 0.0
    %1804 = vmatprep.subr.mxu0 0.0
    %1805 = vmatpush2.xpose.msra.mxu0 0.0
    %1806 = vmatprep.subr.mxu0 0.0
    %1807 = vmatpush2.xpose.msra.mxu0 0.0
    %1808 = vmatprep.mubr.f32.mxu0 0.0
    %1809 = vmatmul.mubr.f32.gmra.mxu0 %v1740
    %v1810 = vpop.f32.mrf.mxu0
    %v1811 = vadd.f32 %v1738, %v1810
    %v1812 = vpop.f32.mrf.mxu0
    %1813 = vmatprep.mubr.f32.mxu0 0.0
    %1814 = vmatmul.mubr.f32.gmra.mxu0 %v1742
    %v1815 = vpop.f32.mrf.mxu0
    %v1816 = vadd.f32 %v1739, %v1815
    %v1817 = vpop.f32.mrf.mxu0
    %1818 = vdwg.mxu0
    %v1819 = vld [vmem:[%s8 + $0x13] sm:$0x1]
    %v1820 = vlaneseq
    %v1821 = vshrl.u32 %v1820, 7
    %v1822 = vsub.s32 0, %v1821
    %v1823 = vrot.slane %v1819, %v1822
    %1824 = vrot.lane.b32.xlu0 %v143, 96
    %v1825 = vpop.permute.xlu0 %1824
    %1826 = vrot.lane.b32.xlu0 %v149, 96
    %v1827 = vpop.permute.xlu0 %1826
    %v1828 = vsel %vm166, %v1825, 0
    %v1830 = vsel %vm166, %v1827, 0
    %1832 = vmatprep.subr.mxu0 0.0
    %1833 = vmatpush1.xpose.msra.mxu0 0.0
    %1834 = vmatprep.subr.mxu0 0.0
    %1835 = vmatpush1.xpose.msra.mxu0 0.0
    %1836 = vmatprep.subr.mxu0 0.0
    %1837 = vmatpush1.xpose.msra.mxu0 0.0
    %1838 = vmatprep.subr.mxu0 0.0
    %1839 = vmatpush1.xpose.msra.mxu0 0.0
    %1840 = vmatprep.subr.mxu0 0.0
    %1841 = vmatpush1.xpose.msra.mxu0 0.0
    %1842 = vmatprep.subr.mxu0 0.0
    %1843 = vmatpush1.xpose.msra.mxu0 0.0
    %1844 = vmatprep.subr.mxu0 0.0
    %1845 = vmatpush1.xpose.msra.mxu0 0.0
    %1846 = vmatprep.subr.mxu0 0.0
    %1847 = vmatpush1.xpose.msra.mxu0 0.0
    %1848 = vmatprep.subr.mxu0 0.0
    %1849 = vmatpush1.xpose.msra.mxu0 0.0
    %1850 = vmatprep.subr.mxu0 0.0
    %1851 = vmatpush1.xpose.msra.mxu0 0.0
    %1852 = vmatprep.subr.mxu0 0.0
    %1853 = vmatpush1.xpose.msra.mxu0 0.0
    %1854 = vmatprep.subr.mxu0 0.0
    %1855 = vmatpush1.xpose.msra.mxu0 0.0
    %1856 = vmatprep.subr.mxu0 0.0
    %1857 = vmatpush1.xpose.msra.mxu0 0.0
    %1858 = vmatprep.subr.mxu0 0.0
    %1859 = vmatpush1.xpose.msra.mxu0 0.0
    %1860 = vmatprep.subr.mxu0 0.0
    %1861 = vmatpush1.xpose.msra.mxu0 %v1661
    %1862 = vmatprep.subr.mxu0 0.0
    %1863 = vmatpush1.xpose.msra.mxu0 %v1659
    %1864 = vmatprep.subr.mxu0 0.0
    %1865 = vmatpush2.xpose.msra.mxu0 0.0
    %1866 = vmatprep.subr.mxu0 0.0
    %1867 = vmatpush2.xpose.msra.mxu0 0.0
    %1868 = vmatprep.subr.mxu0 0.0
    %1869 = vmatpush2.xpose.msra.mxu0 0.0
    %1870 = vmatprep.subr.mxu0 0.0
    %1871 = vmatpush2.xpose.msra.mxu0 0.0
    %1872 = vmatprep.subr.mxu0 0.0
    %1873 = vmatpush2.xpose.msra.mxu0 0.0
    %1874 = vmatprep.subr.mxu0 0.0
    %1875 = vmatpush2.xpose.msra.mxu0 0.0
    %1876 = vmatprep.subr.mxu0 0.0
    %1877 = vmatpush2.xpose.msra.mxu0 0.0
    %1878 = vmatprep.subr.mxu0 0.0
    %1879 = vmatpush2.xpose.msra.mxu0 0.0
    %1880 = vmatprep.subr.mxu0 0.0
    %1881 = vmatpush2.xpose.msra.mxu0 0.0
    %1882 = vmatprep.subr.mxu0 0.0
    %1883 = vmatpush2.xpose.msra.mxu0 0.0
    %1884 = vmatprep.subr.mxu0 0.0
    %1885 = vmatpush2.xpose.msra.mxu0 0.0
    %1886 = vmatprep.subr.mxu0 0.0
    %1887 = vmatpush2.xpose.msra.mxu0 0.0
    %1888 = vmatprep.subr.mxu0 0.0
    %1889 = vmatpush2.xpose.msra.mxu0 0.0
    %1890 = vmatprep.subr.mxu0 0.0
    %1891 = vmatpush2.xpose.msra.mxu0 0.0
    %1892 = vmatprep.subr.mxu0 0.0
    %1893 = vmatpush2.xpose.msra.mxu0 0.0
    %1894 = vmatprep.subr.mxu0 0.0
    %1895 = vmatpush2.xpose.msra.mxu0 0.0
    %1896 = vmatprep.mubr.f32.mxu0 0.0
    %1897 = vmatmul.mubr.f32.gmra.mxu0 %v1828
    %v1898 = vpop.f32.mrf.mxu0
    %v1899 = vadd.f32 %v1823, %v1898
    %v1900 = vpop.f32.mrf.mxu0
    %1901 = vmatprep.mubr.f32.mxu0 0.0
    %1902 = vmatmul.mubr.f32.gmra.mxu0 %v1830
    %v1903 = vpop.f32.mrf.mxu0
    %v1904 = vadd.f32 %v1823, %v1903
    %v1905 = vpop.f32.mrf.mxu0
    %1906 = vdwg.mxu0
    %v1907 = vmul.f32 %v1899, %v39
    %v1908 = vmul.f32 %v1904, %v40
    %v1909 = vadd.f32 %v1811, %v1907
    %v1910 = vadd.f32 %v1816, %v1908
    %v1911 = vld [vmem:[%s8 + $0x14] sm:$0x1]
    %v1912 = vlaneseq
    %v1913 = vshrl.u32 %v1912, 7
    %v1914 = vsub.s32 0, %v1913
    %v1915 = vrot.slane %v1911, %v1914
    %1916 = vrot.lane.b32.xlu0 %v143, 88
    %v1917 = vpop.permute.xlu0 %1916
    %1918 = vrot.lane.b32.xlu0 %v149, 88
    %v1919 = vpop.permute.xlu0 %1918
    %v1920 = vsel %vm166, %v1917, 0
    %v1922 = vsel %vm166, %v1919, 0
    %1924 = vmatprep.subr.mxu0 0.0
    %1925 = vmatpush1.xpose.msra.mxu0 0.0
    %1926 = vmatprep.subr.mxu0 0.0
    %1927 = vmatpush1.xpose.msra.mxu0 0.0
    %1928 = vmatprep.subr.mxu0 0.0
    %1929 = vmatpush1.xpose.msra.mxu0 0.0
    %1930 = vmatprep.subr.mxu0 0.0
    %1931 = vmatpush1.xpose.msra.mxu0 0.0
    %1932 = vmatprep.subr.mxu0 0.0
    %1933 = vmatpush1.xpose.msra.mxu0 0.0
    %1934 = vmatprep.subr.mxu0 0.0
    %1935 = vmatpush1.xpose.msra.mxu0 0.0
    %1936 = vmatprep.subr.mxu0 0.0
    %1937 = vmatpush1.xpose.msra.mxu0 0.0
    %1938 = vmatprep.subr.mxu0 0.0
    %1939 = vmatpush1.xpose.msra.mxu0 0.0
    %1940 = vmatprep.subr.mxu0 0.0
    %1941 = vmatpush1.xpose.msra.mxu0 0.0
    %1942 = vmatprep.subr.mxu0 0.0
    %1943 = vmatpush1.xpose.msra.mxu0 0.0
    %1944 = vmatprep.subr.mxu0 0.0
    %1945 = vmatpush1.xpose.msra.mxu0 0.0
    %1946 = vmatprep.subr.mxu0 0.0
    %1947 = vmatpush1.xpose.msra.mxu0 0.0
    %1948 = vmatprep.subr.mxu0 0.0
    %1949 = vmatpush1.xpose.msra.mxu0 0.0
    %1950 = vmatprep.subr.mxu0 0.0
    %1951 = vmatpush1.xpose.msra.mxu0 0.0
    %1952 = vmatprep.subr.mxu0 0.0
    %1953 = vmatpush1.xpose.msra.mxu0 %v1661
    %1954 = vmatprep.subr.mxu0 0.0
    %1955 = vmatpush1.xpose.msra.mxu0 %v1659
    %1956 = vmatprep.subr.mxu0 0.0
    %1957 = vmatpush2.xpose.msra.mxu0 0.0
    %1958 = vmatprep.subr.mxu0 0.0
    %1959 = vmatpush2.xpose.msra.mxu0 0.0
    %1960 = vmatprep.subr.mxu0 0.0
    %1961 = vmatpush2.xpose.msra.mxu0 0.0
    %1962 = vmatprep.subr.mxu0 0.0
    %1963 = vmatpush2.xpose.msra.mxu0 0.0
    %1964 = vmatprep.subr.mxu0 0.0
    %1965 = vmatpush2.xpose.msra.mxu0 0.0
    %1966 = vmatprep.subr.mxu0 0.0
    %1967 = vmatpush2.xpose.msra.mxu0 0.0
    %1968 = vmatprep.subr.mxu0 0.0
    %1969 = vmatpush2.xpose.msra.mxu0 0.0
    %1970 = vmatprep.subr.mxu0 0.0
    %1971 = vmatpush2.xpose.msra.mxu0 0.0
    %1972 = vmatprep.subr.mxu0 0.0
    %1973 = vmatpush2.xpose.msra.mxu0 0.0
    %1974 = vmatprep.subr.mxu0 0.0
    %1975 = vmatpush2.xpose.msra.mxu0 0.0
    %1976 = vmatprep.subr.mxu0 0.0
    %1977 = vmatpush2.xpose.msra.mxu0 0.0
    %1978 = vmatprep.subr.mxu0 0.0
    %1979 = vmatpush2.xpose.msra.mxu0 0.0
    %1980 = vmatprep.subr.mxu0 0.0
    %1981 = vmatpush2.xpose.msra.mxu0 0.0
    %1982 = vmatprep.subr.mxu0 0.0
    %1983 = vmatpush2.xpose.msra.mxu0 0.0
    %1984 = vmatprep.subr.mxu0 0.0
    %1985 = vmatpush2.xpose.msra.mxu0 0.0
    %1986 = vmatprep.subr.mxu0 0.0
    %1987 = vmatpush2.xpose.msra.mxu0 0.0
    %1988 = vmatprep.mubr.f32.mxu0 0.0
    %1989 = vmatmul.mubr.f32.gmra.mxu0 %v1920
    %v1990 = vpop.f32.mrf.mxu0
    %v1991 = vadd.f32 %v1915, %v1990
    %v1992 = vpop.f32.mrf.mxu0
    %1993 = vmatprep.mubr.f32.mxu0 0.0
    %1994 = vmatmul.mubr.f32.gmra.mxu0 %v1922
    %v1995 = vpop.f32.mrf.mxu0
    %v1996 = vadd.f32 %v1915, %v1995
    %v1997 = vpop.f32.mrf.mxu0
    %1998 = vdwg.mxu0
    %v1999 = vmul.f32 %v1991, %v41
    %v2000 = vmul.f32 %v1996, %v42
    %v2001 = vadd.f32 %v1909, %v1999
    %v2002 = vadd.f32 %v1910, %v2000
    %v2003 = vld [vmem:[%s8 + $0x15] sm:$0x1]
    %v2004 = vlaneseq
    %v2005 = vshrl.u32 %v2004, 7
    %v2006 = vsub.s32 0, %v2005
    %v2007 = vrot.slane %v2003, %v2006
    %2008 = vrot.lane.b32.xlu0 %v143, 80
    %v2009 = vpop.permute.xlu0 %2008
    %2010 = vrot.lane.b32.xlu0 %v149, 80
    %v2011 = vpop.permute.xlu0 %2010
    %v2012 = vsel %vm166, %v2009, 0
    %v2014 = vsel %vm166, %v2011, 0
    %2016 = vmatprep.subr.mxu0 0.0
    %2017 = vmatpush1.xpose.msra.mxu0 0.0
    %2018 = vmatprep.subr.mxu0 0.0
    %2019 = vmatpush1.xpose.msra.mxu0 0.0
    %2020 = vmatprep.subr.mxu0 0.0
    %2021 = vmatpush1.xpose.msra.mxu0 0.0
    %2022 = vmatprep.subr.mxu0 0.0
    %2023 = vmatpush1.xpose.msra.mxu0 0.0
    %2024 = vmatprep.subr.mxu0 0.0
    %2025 = vmatpush1.xpose.msra.mxu0 0.0
    %2026 = vmatprep.subr.mxu0 0.0
    %2027 = vmatpush1.xpose.msra.mxu0 0.0
    %2028 = vmatprep.subr.mxu0 0.0
    %2029 = vmatpush1.xpose.msra.mxu0 0.0
    %2030 = vmatprep.subr.mxu0 0.0
    %2031 = vmatpush1.xpose.msra.mxu0 0.0
    %2032 = vmatprep.subr.mxu0 0.0
    %2033 = vmatpush1.xpose.msra.mxu0 0.0
    %2034 = vmatprep.subr.mxu0 0.0
    %2035 = vmatpush1.xpose.msra.mxu0 0.0
    %2036 = vmatprep.subr.mxu0 0.0
    %2037 = vmatpush1.xpose.msra.mxu0 0.0
    %2038 = vmatprep.subr.mxu0 0.0
    %2039 = vmatpush1.xpose.msra.mxu0 0.0
    %2040 = vmatprep.subr.mxu0 0.0
    %2041 = vmatpush1.xpose.msra.mxu0 0.0
    %2042 = vmatprep.subr.mxu0 0.0
    %2043 = vmatpush1.xpose.msra.mxu0 0.0
    %2044 = vmatprep.subr.mxu0 0.0
    %2045 = vmatpush1.xpose.msra.mxu0 %v1661
    %2046 = vmatprep.subr.mxu0 0.0
    %2047 = vmatpush1.xpose.msra.mxu0 %v1659
    %2048 = vmatprep.subr.mxu0 0.0
    %2049 = vmatpush2.xpose.msra.mxu0 0.0
    %2050 = vmatprep.subr.mxu0 0.0
    %2051 = vmatpush2.xpose.msra.mxu0 0.0
    %2052 = vmatprep.subr.mxu0 0.0
    %2053 = vmatpush2.xpose.msra.mxu0 0.0
    %2054 = vmatprep.subr.mxu0 0.0
    %2055 = vmatpush2.xpose.msra.mxu0 0.0
    %2056 = vmatprep.subr.mxu0 0.0
    %2057 = vmatpush2.xpose.msra.mxu0 0.0
    %2058 = vmatprep.subr.mxu0 0.0
    %2059 = vmatpush2.xpose.msra.mxu0 0.0
    %2060 = vmatprep.subr.mxu0 0.0
    %2061 = vmatpush2.xpose.msra.mxu0 0.0
    %2062 = vmatprep.subr.mxu0 0.0
    %2063 = vmatpush2.xpose.msra.mxu0 0.0
    %2064 = vmatprep.subr.mxu0 0.0
    %2065 = vmatpush2.xpose.msra.mxu0 0.0
    %2066 = vmatprep.subr.mxu0 0.0
    %2067 = vmatpush2.xpose.msra.mxu0 0.0
    %2068 = vmatprep.subr.mxu0 0.0
    %2069 = vmatpush2.xpose.msra.mxu0 0.0
    %2070 = vmatprep.subr.mxu0 0.0
    %2071 = vmatpush2.xpose.msra.mxu0 0.0
    %2072 = vmatprep.subr.mxu0 0.0
    %2073 = vmatpush2.xpose.msra.mxu0 0.0
    %2074 = vmatprep.subr.mxu0 0.0
    %2075 = vmatpush2.xpose.msra.mxu0 0.0
    %2076 = vmatprep.subr.mxu0 0.0
    %2077 = vmatpush2.xpose.msra.mxu0 0.0
    %2078 = vmatprep.subr.mxu0 0.0
    %2079 = vmatpush2.xpose.msra.mxu0 0.0
    %2080 = vmatprep.mubr.f32.mxu0 0.0
    %2081 = vmatmul.mubr.f32.gmra.mxu0 %v2012
    %v2082 = vpop.f32.mrf.mxu0
    %v2083 = vadd.f32 %v2007, %v2082
    %v2084 = vpop.f32.mrf.mxu0
    %2085 = vmatprep.mubr.f32.mxu0 0.0
    %2086 = vmatmul.mubr.f32.gmra.mxu0 %v2014
    %v2087 = vpop.f32.mrf.mxu0
    %v2088 = vadd.f32 %v2007, %v2087
    %v2089 = vpop.f32.mrf.mxu0
    %2090 = vdwg.mxu0
    %v2091 = vmul.f32 %v2083, %v43
    %v2092 = vmul.f32 %v2088, %v44
    %v2093 = vadd.f32 %v2001, %v2091
    %v2094 = vadd.f32 %v2002, %v2092
    %v2095 = vld [vmem:[%s8 + $0x16] sm:$0x1]
    %v2096 = vlaneseq
    %v2097 = vshrl.u32 %v2096, 7
    %v2098 = vsub.s32 0, %v2097
    %v2099 = vrot.slane %v2095, %v2098
    %2100 = vrot.lane.b32.xlu0 %v143, 72
    %v2101 = vpop.permute.xlu0 %2100
    %2102 = vrot.lane.b32.xlu0 %v149, 72
    %v2103 = vpop.permute.xlu0 %2102
    %v2104 = vsel %vm166, %v2101, 0
    %v2106 = vsel %vm166, %v2103, 0
    %2108 = vmatprep.subr.mxu0 0.0
    %2109 = vmatpush1.xpose.msra.mxu0 0.0
    %2110 = vmatprep.subr.mxu0 0.0
    %2111 = vmatpush1.xpose.msra.mxu0 0.0
    %2112 = vmatprep.subr.mxu0 0.0
    %2113 = vmatpush1.xpose.msra.mxu0 0.0
    %2114 = vmatprep.subr.mxu0 0.0
    %2115 = vmatpush1.xpose.msra.mxu0 0.0
    %2116 = vmatprep.subr.mxu0 0.0
    %2117 = vmatpush1.xpose.msra.mxu0 0.0
    %2118 = vmatprep.subr.mxu0 0.0
    %2119 = vmatpush1.xpose.msra.mxu0 0.0
    %2120 = vmatprep.subr.mxu0 0.0
    %2121 = vmatpush1.xpose.msra.mxu0 0.0
    %2122 = vmatprep.subr.mxu0 0.0
    %2123 = vmatpush1.xpose.msra.mxu0 0.0
    %2124 = vmatprep.subr.mxu0 0.0
    %2125 = vmatpush1.xpose.msra.mxu0 0.0
    %2126 = vmatprep.subr.mxu0 0.0
    %2127 = vmatpush1.xpose.msra.mxu0 0.0
    %2128 = vmatprep.subr.mxu0 0.0
    %2129 = vmatpush1.xpose.msra.mxu0 0.0
    %2130 = vmatprep.subr.mxu0 0.0
    %2131 = vmatpush1.xpose.msra.mxu0 0.0
    %2132 = vmatprep.subr.mxu0 0.0
    %2133 = vmatpush1.xpose.msra.mxu0 0.0
    %2134 = vmatprep.subr.mxu0 0.0
    %2135 = vmatpush1.xpose.msra.mxu0 0.0
    %2136 = vmatprep.subr.mxu0 0.0
    %2137 = vmatpush1.xpose.msra.mxu0 %v1661
    %2138 = vmatprep.subr.mxu0 0.0
    %2139 = vmatpush1.xpose.msra.mxu0 %v1659
    %2140 = vmatprep.subr.mxu0 0.0
    %2141 = vmatpush2.xpose.msra.mxu0 0.0
    %2142 = vmatprep.subr.mxu0 0.0
    %2143 = vmatpush2.xpose.msra.mxu0 0.0
    %2144 = vmatprep.subr.mxu0 0.0
    %2145 = vmatpush2.xpose.msra.mxu0 0.0
    %2146 = vmatprep.subr.mxu0 0.0
    %2147 = vmatpush2.xpose.msra.mxu0 0.0
    %2148 = vmatprep.subr.mxu0 0.0
    %2149 = vmatpush2.xpose.msra.mxu0 0.0
    %2150 = vmatprep.subr.mxu0 0.0
    %2151 = vmatpush2.xpose.msra.mxu0 0.0
    %2152 = vmatprep.subr.mxu0 0.0
    %2153 = vmatpush2.xpose.msra.mxu0 0.0
    %2154 = vmatprep.subr.mxu0 0.0
    %2155 = vmatpush2.xpose.msra.mxu0 0.0
    %2156 = vmatprep.subr.mxu0 0.0
    %2157 = vmatpush2.xpose.msra.mxu0 0.0
    %2158 = vmatprep.subr.mxu0 0.0
    %2159 = vmatpush2.xpose.msra.mxu0 0.0
    %2160 = vmatprep.subr.mxu0 0.0
    %2161 = vmatpush2.xpose.msra.mxu0 0.0
    %2162 = vmatprep.subr.mxu0 0.0
    %2163 = vmatpush2.xpose.msra.mxu0 0.0
    %2164 = vmatprep.subr.mxu0 0.0
    %2165 = vmatpush2.xpose.msra.mxu0 0.0
    %2166 = vmatprep.subr.mxu0 0.0
    %2167 = vmatpush2.xpose.msra.mxu0 0.0
    %2168 = vmatprep.subr.mxu0 0.0
    %2169 = vmatpush2.xpose.msra.mxu0 0.0
    %2170 = vmatprep.subr.mxu0 0.0
    %2171 = vmatpush2.xpose.msra.mxu0 0.0
    %2172 = vmatprep.mubr.f32.mxu0 0.0
    %2173 = vmatmul.mubr.f32.gmra.mxu0 %v2104
    %v2174 = vpop.f32.mrf.mxu0
    %v2175 = vadd.f32 %v2099, %v2174
    %v2176 = vpop.f32.mrf.mxu0
    %2177 = vmatprep.mubr.f32.mxu0 0.0
    %2178 = vmatmul.mubr.f32.gmra.mxu0 %v2106
    %v2179 = vpop.f32.mrf.mxu0
    %v2180 = vadd.f32 %v2099, %v2179
    %v2181 = vpop.f32.mrf.mxu0
    %2182 = vdwg.mxu0
    %v2183 = vmul.f32 %v2175, %v45
    %v2184 = vmul.f32 %v2180, %v46
    %v2185 = vadd.f32 %v2093, %v2183
    %v2186 = vadd.f32 %v2094, %v2184
    %v2187 = vmul.f32 %v2185, 0.35355338
    %v2188 = vmul.f32 %v2186, 0.35355338
    %v2189 = vadd.f32 %v2187, %v35
    %v2190 = vadd.f32 %v2188, %v36
    %v2191 = vsel %vm703, %v2189, -inf
    %2192 = vmax.xlane.f32.xlu0 %v2191
    %v2193 = vpop.xlane.xlu0 %2192
    %v2194 = vsel %vm703, %v2190, -inf
    %2195 = vmax.xlane.f32.xlu0 %v2194
    %v2196 = vpop.xlane.xlu0 %2195
    %v2197 = vsub.f32 %v2189, %v2193
    %v2198 = vsub.f32 %v2190, %v2196
    %v2199 = vmul.f32 %v2197, 1.442695
    %v2200 = vpow.pop %v2199
    %v2201 = vmul.f32 %v2198, 1.442695
    %v2202 = vpow.pop %v2201
    %v2203 = vsel %vm703, %v2200, 0.0
    %2204 = vadd.xlane.f32.xlu0 %v2203
    %v2205 = vpop.xlane.xlu0 %2204
    %v2206 = vsel %vm703, %v2202, 0.0
    %2207 = vadd.xlane.f32.xlu0 %v2206
    %v2208 = vpop.xlane.xlu0 %2207
    %v2209 = vrcp.pop %v2205
    %v2210 = vmul.f32 %v2200, %v2209
    %v2211 = vrcp.pop %v2208
    %v2212 = vmul.f32 %v2202, %v2211
    %2213 = vrot.lane.b32.xlu0 %v143, 112
    %v2214 = vpop.permute.xlu0 %2213
    %2215 = vrot.lane.b32.xlu0 %v149, 112
    %v2216 = vpop.permute.xlu0 %2215
    %v2220 = vsel %vm703, %v2210, 0
    %v2223 = vsel %vm703, %v2212, 0
    %2225 = vmatprep.subr.mxu0 0.0
    %2226 = vmatpush1.msra.mxu0 0.0
    %2227 = vmatprep.subr.mxu0 0.0
    %2228 = vmatpush1.msra.mxu0 0.0
    %2229 = vmatprep.subr.mxu0 0.0
    %2230 = vmatpush1.msra.mxu0 0.0
    %2231 = vmatprep.subr.mxu0 0.0
    %2232 = vmatpush1.msra.mxu0 0.0
    %2233 = vmatprep.subr.mxu0 0.0
    %2234 = vmatpush1.msra.mxu0 0.0
    %2235 = vmatprep.subr.mxu0 0.0
    %2236 = vmatpush1.msra.mxu0 0.0
    %2237 = vmatprep.subr.mxu0 0.0
    %2238 = vmatpush1.msra.mxu0 0.0
    %2239 = vmatprep.subr.mxu0 0.0
    %2240 = vmatpush1.msra.mxu0 0.0
    %2241 = vmatprep.subr.mxu0 0.0
    %2242 = vmatpush1.msra.mxu0 0.0
    %2243 = vmatprep.subr.mxu0 0.0
    %2244 = vmatpush1.msra.mxu0 0.0
    %2245 = vmatprep.subr.mxu0 0.0
    %2246 = vmatpush1.msra.mxu0 0.0
    %2247 = vmatprep.subr.mxu0 0.0
    %2248 = vmatpush1.msra.mxu0 0.0
    %2249 = vmatprep.subr.mxu0 0.0
    %2250 = vmatpush1.msra.mxu0 0.0
    %2251 = vmatprep.subr.mxu0 0.0
    %2252 = vmatpush1.msra.mxu0 0.0
    %2253 = vmatprep.subr.mxu0 0.0
    %2254 = vmatpush1.msra.mxu0 %v2216
    %2255 = vmatprep.subr.mxu0 0.0
    %2256 = vmatpush1.msra.mxu0 %v2214
    %2257 = vmatprep.subr.mxu0 0.0
    %2258 = vmatpush2.msra.mxu0 0.0
    %2259 = vmatprep.subr.mxu0 0.0
    %2260 = vmatpush2.msra.mxu0 0.0
    %2261 = vmatprep.subr.mxu0 0.0
    %2262 = vmatpush2.msra.mxu0 0.0
    %2263 = vmatprep.subr.mxu0 0.0
    %2264 = vmatpush2.msra.mxu0 0.0
    %2265 = vmatprep.subr.mxu0 0.0
    %2266 = vmatpush2.msra.mxu0 0.0
    %2267 = vmatprep.subr.mxu0 0.0
    %2268 = vmatpush2.msra.mxu0 0.0
    %2269 = vmatprep.subr.mxu0 0.0
    %2270 = vmatpush2.msra.mxu0 0.0
    %2271 = vmatprep.subr.mxu0 0.0
    %2272 = vmatpush2.msra.mxu0 0.0
    %2273 = vmatprep.subr.mxu0 0.0
    %2274 = vmatpush2.msra.mxu0 0.0
    %2275 = vmatprep.subr.mxu0 0.0
    %2276 = vmatpush2.msra.mxu0 0.0
    %2277 = vmatprep.subr.mxu0 0.0
    %2278 = vmatpush2.msra.mxu0 0.0
    %2279 = vmatprep.subr.mxu0 0.0
    %2280 = vmatpush2.msra.mxu0 0.0
    %2281 = vmatprep.subr.mxu0 0.0
    %2282 = vmatpush2.msra.mxu0 0.0
    %2283 = vmatprep.subr.mxu0 0.0
    %2284 = vmatpush2.msra.mxu0 0.0
    %2285 = vmatprep.subr.mxu0 0.0
    %2286 = vmatpush2.msra.mxu0 0.0
    %2287 = vmatprep.subr.mxu0 0.0
    %2288 = vmatpush2.msra.mxu0 0.0
    %2289 = vmatprep.mubr.f32.mxu0 0.0
    %2290 = vmatmul.mubr.f32.gmra.mxu0 %v2220
    %v2291 = vpop.f32.mrf.mxu0
    %v2292 = vadd.f32 0.0, %v2291
    %v2293 = vpop.f32.mrf.mxu0
    %2294 = vmatprep.mubr.f32.mxu0 0.0
    %2295 = vmatmul.mubr.f32.gmra.mxu0 %v2223
    %v2296 = vpop.f32.mrf.mxu0
    %v2297 = vadd.f32 0.0, %v2296
    %v2298 = vpop.f32.mrf.mxu0
    %2299 = vdwg.mxu0
    %s2300 = scalar_lea.vmem %s5, 16
    %v2301 = vld [vmem:[%s2300] sm:$0xff]
    %v2303 = vsel %vm166, %v2292, 0
    %v2306 = vsel %vm166, %v2297, 0
    %2308 = vmatprep.subr.mxu0 0.0
    %2309 = vmatpush1.msra.mxu0 0.0
    %2310 = vmatprep.subr.mxu0 0.0
    %2311 = vmatpush1.msra.mxu0 0.0
    %2312 = vmatprep.subr.mxu0 0.0
    %2313 = vmatpush1.msra.mxu0 0.0
    %2314 = vmatprep.subr.mxu0 0.0
    %2315 = vmatpush1.msra.mxu0 0.0
    %2316 = vmatprep.subr.mxu0 0.0
    %2317 = vmatpush1.msra.mxu0 0.0
    %2318 = vmatprep.subr.mxu0 0.0
    %2319 = vmatpush1.msra.mxu0 0.0
    %2320 = vmatprep.subr.mxu0 0.0
    %2321 = vmatpush1.msra.mxu0 0.0
    %2322 = vmatprep.subr.mxu0 0.0
    %2323 = vmatpush1.msra.mxu0 0.0
    %2324 = vmatprep.subr.mxu0 0.0
    %2325 = vmatpush1.msra.mxu0 0.0
    %2326 = vmatprep.subr.mxu0 0.0
    %2327 = vmatpush1.msra.mxu0 0.0
    %2328 = vmatprep.subr.mxu0 0.0
    %2329 = vmatpush1.msra.mxu0 0.0
    %2330 = vmatprep.subr.mxu0 0.0
    %2331 = vmatpush1.msra.mxu0 0.0
    %2332 = vmatprep.subr.mxu0 0.0
    %2333 = vmatpush1.msra.mxu0 0.0
    %2334 = vmatprep.subr.mxu0 0.0
    %2335 = vmatpush1.msra.mxu0 0.0
    %2336 = vmatprep.subr.mxu0 0.0
    %2337 = vmatpush1.msra.mxu0 0.0
    %2338 = vmatprep.subr.mxu0 0.0
    %2339 = vmatpush1.msra.mxu0 %v2301
    %2340 = vmatprep.subr.mxu0 0.0
    %2341 = vmatpush2.msra.mxu0 0.0
    %2342 = vmatprep.subr.mxu0 0.0
    %2343 = vmatpush2.msra.mxu0 0.0
    %2344 = vmatprep.subr.mxu0 0.0
    %2345 = vmatpush2.msra.mxu0 0.0
    %2346 = vmatprep.subr.mxu0 0.0
    %2347 = vmatpush2.msra.mxu0 0.0
    %2348 = vmatprep.subr.mxu0 0.0
    %2349 = vmatpush2.msra.mxu0 0.0
    %2350 = vmatprep.subr.mxu0 0.0
    %2351 = vmatpush2.msra.mxu0 0.0
    %2352 = vmatprep.subr.mxu0 0.0
    %2353 = vmatpush2.msra.mxu0 0.0
    %2354 = vmatprep.subr.mxu0 0.0
    %2355 = vmatpush2.msra.mxu0 0.0
    %2356 = vmatprep.subr.mxu0 0.0
    %2357 = vmatpush2.msra.mxu0 0.0
    %2358 = vmatprep.subr.mxu0 0.0
    %2359 = vmatpush2.msra.mxu0 0.0
    %2360 = vmatprep.subr.mxu0 0.0
    %2361 = vmatpush2.msra.mxu0 0.0
    %2362 = vmatprep.subr.mxu0 0.0
    %2363 = vmatpush2.msra.mxu0 0.0
    %2364 = vmatprep.subr.mxu0 0.0
    %2365 = vmatpush2.msra.mxu0 0.0
    %2366 = vmatprep.subr.mxu0 0.0
    %2367 = vmatpush2.msra.mxu0 0.0
    %2368 = vmatprep.subr.mxu0 0.0
    %2369 = vmatpush2.msra.mxu0 0.0
    %2370 = vmatprep.subr.mxu0 0.0
    %2371 = vmatpush2.msra.mxu0 0.0
    %2372 = vmatprep.mubr.f32.mxu0 0.0
    %2373 = vmatmul.mubr.f32.gmra.mxu0 %v2303
    %v2374 = vpop.f32.mrf.mxu0
    %v2375 = vadd.f32 0.0, %v2374
    %v2376 = vpop.f32.mrf.mxu0
    %2377 = vmatprep.mubr.f32.mxu0 0.0
    %2378 = vmatmul.mubr.f32.gmra.mxu0 %v2306
    %v2379 = vpop.f32.mrf.mxu0
    %v2380 = vadd.f32 0.0, %v2379
    %v2381 = vpop.f32.mrf.mxu0
    %2382 = vdwg.mxu0
    %v2383 = vadd.f32 %v1632, %v2375
    %v2384 = vadd.f32 %v1637, %v2380
    %v2385 = vld [vmem:[%s8 + $0x17] sm:$0x1]
    %v2386 = vlaneseq
    %v2387 = vshrl.u32 %v2386, 7
    %v2388 = vsub.s32 0, %v2387
    %v2389 = vrot.slane %v2385, %v2388
    %2390 = vrot.lane.b32.xlu0 %v143, 40
    %v2391 = vpop.permute.xlu0 %2390
    %2392 = vrot.lane.b32.xlu0 %v149, 40
    %v2393 = vpop.permute.xlu0 %2392
    %2394 = vrot.lane.b32.xlu0 %v143, 56
    %v2395 = vpop.permute.xlu0 %2394
    %2396 = vrot.lane.b32.xlu0 %v149, 56
    %v2397 = vpop.permute.xlu0 %2396
    %v2398 = vsel %vm166, %v2391, 0
    %v2400 = vsel %vm166, %v2393, 0
    %v2402 = vsel %vm166, %v2395, 0
    %v2404 = vsel %vm166, %v2397, 0
    %2406 = vmatprep.subr.mxu0 0.0
    %2407 = vmatpush1.xpose.msra.mxu0 0.0
    %2408 = vmatprep.subr.mxu0 0.0
    %2409 = vmatpush1.xpose.msra.mxu0 0.0
    %2410 = vmatprep.subr.mxu0 0.0
    %2411 = vmatpush1.xpose.msra.mxu0 0.0
    %2412 = vmatprep.subr.mxu0 0.0
    %2413 = vmatpush1.xpose.msra.mxu0 0.0
    %2414 = vmatprep.subr.mxu0 0.0
    %2415 = vmatpush1.xpose.msra.mxu0 0.0
    %2416 = vmatprep.subr.mxu0 0.0
    %2417 = vmatpush1.xpose.msra.mxu0 0.0
    %2418 = vmatprep.subr.mxu0 0.0
    %2419 = vmatpush1.xpose.msra.mxu0 0.0
    %2420 = vmatprep.subr.mxu0 0.0
    %2421 = vmatpush1.xpose.msra.mxu0 0.0
    %2422 = vmatprep.subr.mxu0 0.0
    %2423 = vmatpush1.xpose.msra.mxu0 0.0
    %2424 = vmatprep.subr.mxu0 0.0
    %2425 = vmatpush1.xpose.msra.mxu0 0.0
    %2426 = vmatprep.subr.mxu0 0.0
    %2427 = vmatpush1.xpose.msra.mxu0 0.0
    %2428 = vmatprep.subr.mxu0 0.0
    %2429 = vmatpush1.xpose.msra.mxu0 0.0
    %2430 = vmatprep.subr.mxu0 0.0
    %2431 = vmatpush1.xpose.msra.mxu0 0.0
    %2432 = vmatprep.subr.mxu0 0.0
    %2433 = vmatpush1.xpose.msra.mxu0 0.0
    %2434 = vmatprep.subr.mxu0 0.0
    %2435 = vmatpush1.xpose.msra.mxu0 %v2404
    %2436 = vmatprep.subr.mxu0 0.0
    %2437 = vmatpush1.xpose.msra.mxu0 %v2402
    %2438 = vmatprep.subr.mxu0 0.0
    %2439 = vmatpush2.xpose.msra.mxu0 0.0
    %2440 = vmatprep.subr.mxu0 0.0
    %2441 = vmatpush2.xpose.msra.mxu0 0.0
    %2442 = vmatprep.subr.mxu0 0.0
    %2443 = vmatpush2.xpose.msra.mxu0 0.0
    %2444 = vmatprep.subr.mxu0 0.0
    %2445 = vmatpush2.xpose.msra.mxu0 0.0
    %2446 = vmatprep.subr.mxu0 0.0
    %2447 = vmatpush2.xpose.msra.mxu0 0.0
    %2448 = vmatprep.subr.mxu0 0.0
    %2449 = vmatpush2.xpose.msra.mxu0 0.0
    %2450 = vmatprep.subr.mxu0 0.0
    %2451 = vmatpush2.xpose.msra.mxu0 0.0
    %2452 = vmatprep.subr.mxu0 0.0
    %2453 = vmatpush2.xpose.msra.mxu0 0.0
    %2454 = vmatprep.subr.mxu0 0.0
    %2455 = vmatpush2.xpose.msra.mxu0 0.0
    %2456 = vmatprep.subr.mxu0 0.0
    %2457 = vmatpush2.xpose.msra.mxu0 0.0
    %2458 = vmatprep.subr.mxu0 0.0
    %2459 = vmatpush2.xpose.msra.mxu0 0.0
    %2460 = vmatprep.subr.mxu0 0.0
    %2461 = vmatpush2.xpose.msra.mxu0 0.0
    %2462 = vmatprep.subr.mxu0 0.0
    %2463 = vmatpush2.xpose.msra.mxu0 0.0
    %2464 = vmatprep.subr.mxu0 0.0
    %2465 = vmatpush2.xpose.msra.mxu0 0.0
    %2466 = vmatprep.subr.mxu0 0.0
    %2467 = vmatpush2.xpose.msra.mxu0 0.0
    %2468 = vmatprep.subr.mxu0 0.0
    %2469 = vmatpush2.xpose.msra.mxu0 0.0
    %2470 = vmatprep.mubr.f32.mxu0 0.0
    %2471 = vmatmul.mubr.f32.gmra.mxu0 %v2398
    %v2472 = vpop.f32.mrf.mxu0
    %v2473 = vadd.f32 %v2389, %v2472
    %v2474 = vpop.f32.mrf.mxu0
    %2475 = vmatprep.mubr.f32.mxu0 0.0
    %2476 = vmatmul.mubr.f32.gmra.mxu0 %v2400
    %v2477 = vpop.f32.mrf.mxu0
    %v2478 = vadd.f32 %v2389, %v2477
    %v2479 = vpop.f32.mrf.mxu0
    %2480 = vdwg.mxu0
    %v2481 = vmul.f32 %v2473, %v37
    %v2482 = vmul.f32 %v2478, %v38
    %2483 = vrot.lane.b32.xlu0 %v143, 64
    %v2484 = vpop.permute.xlu0 %2483
    %2485 = vrot.lane.b32.xlu0 %v149, 64
    %v2486 = vpop.permute.xlu0 %2485
    %v2487 = vsel %vm166, %v2484, 0
    %v2489 = vsel %vm166, %v2486, 0
    %2491 = vmatprep.subr.mxu0 0.0
    %2492 = vmatpush1.xpose.msra.mxu0 0.0
    %2493 = vmatprep.subr.mxu0 0.0
    %2494 = vmatpush1.xpose.msra.mxu0 0.0
    %2495 = vmatprep.subr.mxu0 0.0
    %2496 = vmatpush1.xpose.msra.mxu0 0.0
    %2497 = vmatprep.subr.mxu0 0.0
    %2498 = vmatpush1.xpose.msra.mxu0 0.0
    %2499 = vmatprep.subr.mxu0 0.0
    %2500 = vmatpush1.xpose.msra.mxu0 0.0
    %2501 = vmatprep.subr.mxu0 0.0
    %2502 = vmatpush1.xpose.msra.mxu0 0.0
    %2503 = vmatprep.subr.mxu0 0.0
    %2504 = vmatpush1.xpose.msra.mxu0 0.0
    %2505 = vmatprep.subr.mxu0 0.0
    %2506 = vmatpush1.xpose.msra.mxu0 0.0
    %2507 = vmatprep.subr.mxu0 0.0
    %2508 = vmatpush1.xpose.msra.mxu0 0.0
    %2509 = vmatprep.subr.mxu0 0.0
    %2510 = vmatpush1.xpose.msra.mxu0 0.0
    %2511 = vmatprep.subr.mxu0 0.0
    %2512 = vmatpush1.xpose.msra.mxu0 0.0
    %2513 = vmatprep.subr.mxu0 0.0
    %2514 = vmatpush1.xpose.msra.mxu0 0.0
    %2515 = vmatprep.subr.mxu0 0.0
    %2516 = vmatpush1.xpose.msra.mxu0 0.0
    %2517 = vmatprep.subr.mxu0 0.0
    %2518 = vmatpush1.xpose.msra.mxu0 0.0
    %2519 = vmatprep.subr.mxu0 0.0
    %2520 = vmatpush1.xpose.msra.mxu0 %v2404
    %2521 = vmatprep.subr.mxu0 0.0
    %2522 = vmatpush1.xpose.msra.mxu0 %v2402
    %2523 = vmatprep.subr.mxu0 0.0
    %2524 = vmatpush2.xpose.msra.mxu0 0.0
    %2525 = vmatprep.subr.mxu0 0.0
    %2526 = vmatpush2.xpose.msra.mxu0 0.0
    %2527 = vmatprep.subr.mxu0 0.0
    %2528 = vmatpush2.xpose.msra.mxu0 0.0
    %2529 = vmatprep.subr.mxu0 0.0
    %2530 = vmatpush2.xpose.msra.mxu0 0.0
    %2531 = vmatprep.subr.mxu0 0.0
    %2532 = vmatpush2.xpose.msra.mxu0 0.0
    %2533 = vmatprep.subr.mxu0 0.0
    %2534 = vmatpush2.xpose.msra.mxu0 0.0
    %2535 = vmatprep.subr.mxu0 0.0
    %2536 = vmatpush2.xpose.msra.mxu0 0.0
    %2537 = vmatprep.subr.mxu0 0.0
    %2538 = vmatpush2.xpose.msra.mxu0 0.0
    %2539 = vmatprep.subr.mxu0 0.0
    %2540 = vmatpush2.xpose.msra.mxu0 0.0
    %2541 = vmatprep.subr.mxu0 0.0
    %2542 = vmatpush2.xpose.msra.mxu0 0.0
    %2543 = vmatprep.subr.mxu0 0.0
    %2544 = vmatpush2.xpose.msra.mxu0 0.0
    %2545 = vmatprep.subr.mxu0 0.0
    %2546 = vmatpush2.xpose.msra.mxu0 0.0
    %2547 = vmatprep.subr.mxu0 0.0
    %2548 = vmatpush2.xpose.msra.mxu0 0.0
    %2549 = vmatprep.subr.mxu0 0.0
    %2550 = vmatpush2.xpose.msra.mxu0 0.0
    %2551 = vmatprep.subr.mxu0 0.0
    %2552 = vmatpush2.xpose.msra.mxu0 0.0
    %2553 = vmatprep.subr.mxu0 0.0
    %2554 = vmatpush2.xpose.msra.mxu0 0.0
    %2555 = vmatprep.mubr.f32.mxu0 0.0
    %2556 = vmatmul.mubr.f32.gmra.mxu0 %v2487
    %v2557 = vpop.f32.mrf.mxu0
    %v2558 = vadd.f32 %v2481, %v2557
    %v2559 = vpop.f32.mrf.mxu0
    %2560 = vmatprep.mubr.f32.mxu0 0.0
    %2561 = vmatmul.mubr.f32.gmra.mxu0 %v2489
    %v2562 = vpop.f32.mrf.mxu0
    %v2563 = vadd.f32 %v2482, %v2562
    %v2564 = vpop.f32.mrf.mxu0
    %2565 = vdwg.mxu0
    %v2566 = vld [vmem:[%s8 + $0x18] sm:$0x1]
    %v2567 = vlaneseq
    %v2568 = vshrl.u32 %v2567, 7
    %v2569 = vsub.s32 0, %v2568
    %v2570 = vrot.slane %v2566, %v2569
    %2571 = vrot.lane.b32.xlu0 %v143, 32
    %v2572 = vpop.permute.xlu0 %2571
    %2573 = vrot.lane.b32.xlu0 %v149, 32
    %v2574 = vpop.permute.xlu0 %2573
    %v2575 = vsel %vm166, %v2572, 0
    %v2577 = vsel %vm166, %v2574, 0
    %2579 = vmatprep.subr.mxu0 0.0
    %2580 = vmatpush1.xpose.msra.mxu0 0.0
    %2581 = vmatprep.subr.mxu0 0.0
    %2582 = vmatpush1.xpose.msra.mxu0 0.0
    %2583 = vmatprep.subr.mxu0 0.0
    %2584 = vmatpush1.xpose.msra.mxu0 0.0
    %2585 = vmatprep.subr.mxu0 0.0
    %2586 = vmatpush1.xpose.msra.mxu0 0.0
    %2587 = vmatprep.subr.mxu0 0.0
    %2588 = vmatpush1.xpose.msra.mxu0 0.0
    %2589 = vmatprep.subr.mxu0 0.0
    %2590 = vmatpush1.xpose.msra.mxu0 0.0
    %2591 = vmatprep.subr.mxu0 0.0
    %2592 = vmatpush1.xpose.msra.mxu0 0.0
    %2593 = vmatprep.subr.mxu0 0.0
    %2594 = vmatpush1.xpose.msra.mxu0 0.0
    %2595 = vmatprep.subr.mxu0 0.0
    %2596 = vmatpush1.xpose.msra.mxu0 0.0
    %2597 = vmatprep.subr.mxu0 0.0
    %2598 = vmatpush1.xpose.msra.mxu0 0.0
    %2599 = vmatprep.subr.mxu0 0.0
    %2600 = vmatpush1.xpose.msra.mxu0 0.0
    %2601 = vmatprep.subr.mxu0 0.0
    %2602 = vmatpush1.xpose.msra.mxu0 0.0
    %2603 = vmatprep.subr.mxu0 0.0
    %2604 = vmatpush1.xpose.msra.mxu0 0.0
    %2605 = vmatprep.subr.mxu0 0.0
    %2606 = vmatpush1.xpose.msra.mxu0 0.0
    %2607 = vmatprep.subr.mxu0 0.0
    %2608 = vmatpush1.xpose.msra.mxu0 %v2404
    %2609 = vmatprep.subr.mxu0 0.0
    %2610 = vmatpush1.xpose.msra.mxu0 %v2402
    %2611 = vmatprep.subr.mxu0 0.0
    %2612 = vmatpush2.xpose.msra.mxu0 0.0
    %2613 = vmatprep.subr.mxu0 0.0
    %2614 = vmatpush2.xpose.msra.mxu0 0.0
    %2615 = vmatprep.subr.mxu0 0.0
    %2616 = vmatpush2.xpose.msra.mxu0 0.0
    %2617 = vmatprep.subr.mxu0 0.0
    %2618 = vmatpush2.xpose.msra.mxu0 0.0
    %2619 = vmatprep.subr.mxu0 0.0
    %2620 = vmatpush2.xpose.msra.mxu0 0.0
    %2621 = vmatprep.subr.mxu0 0.0
    %2622 = vmatpush2.xpose.msra.mxu0 0.0
    %2623 = vmatprep.subr.mxu0 0.0
    %2624 = vmatpush2.xpose.msra.mxu0 0.0
    %2625 = vmatprep.subr.mxu0 0.0
    %2626 = vmatpush2.xpose.msra.mxu0 0.0
    %2627 = vmatprep.subr.mxu0 0.0
    %2628 = vmatpush2.xpose.msra.mxu0 0.0
    %2629 = vmatprep.subr.mxu0 0.0
    %2630 = vmatpush2.xpose.msra.mxu0 0.0
    %2631 = vmatprep.subr.mxu0 0.0
    %2632 = vmatpush2.xpose.msra.mxu0 0.0
    %2633 = vmatprep.subr.mxu0 0.0
    %2634 = vmatpush2.xpose.msra.mxu0 0.0
    %2635 = vmatprep.subr.mxu0 0.0
    %2636 = vmatpush2.xpose.msra.mxu0 0.0
    %2637 = vmatprep.subr.mxu0 0.0
    %2638 = vmatpush2.xpose.msra.mxu0 0.0
    %2639 = vmatprep.subr.mxu0 0.0
    %2640 = vmatpush2.xpose.msra.mxu0 0.0
    %2641 = vmatprep.subr.mxu0 0.0
    %2642 = vmatpush2.xpose.msra.mxu0 0.0
    %2643 = vmatprep.mubr.f32.mxu0 0.0
    %2644 = vmatmul.mubr.f32.gmra.mxu0 %v2575
    %v2645 = vpop.f32.mrf.mxu0
    %v2646 = vadd.f32 %v2570, %v2645
    %v2647 = vpop.f32.mrf.mxu0
    %2648 = vmatprep.mubr.f32.mxu0 0.0
    %2649 = vmatmul.mubr.f32.gmra.mxu0 %v2577
    %v2650 = vpop.f32.mrf.mxu0
    %v2651 = vadd.f32 %v2570, %v2650
    %v2652 = vpop.f32.mrf.mxu0
    %2653 = vdwg.mxu0
    %v2654 = vmul.f32 %v2646, %v39
    %v2655 = vmul.f32 %v2651, %v40
    %v2656 = vadd.f32 %v2558, %v2654
    %v2657 = vadd.f32 %v2563, %v2655
    %v2658 = vld [vmem:[%s8 + $0x19] sm:$0x1]
    %v2659 = vlaneseq
    %v2660 = vshrl.u32 %v2659, 7
    %v2661 = vsub.s32 0, %v2660
    %v2662 = vrot.slane %v2658, %v2661
    %2663 = vrot.lane.b32.xlu0 %v143, 24
    %v2664 = vpop.permute.xlu0 %2663
    %2665 = vrot.lane.b32.xlu0 %v149, 24
    %v2666 = vpop.permute.xlu0 %2665
    %v2667 = vsel %vm166, %v2664, 0
    %v2669 = vsel %vm166, %v2666, 0
    %2671 = vmatprep.subr.mxu0 0.0
    %2672 = vmatpush1.xpose.msra.mxu0 0.0
    %2673 = vmatprep.subr.mxu0 0.0
    %2674 = vmatpush1.xpose.msra.mxu0 0.0
    %2675 = vmatprep.subr.mxu0 0.0
    %2676 = vmatpush1.xpose.msra.mxu0 0.0
    %2677 = vmatprep.subr.mxu0 0.0
    %2678 = vmatpush1.xpose.msra.mxu0 0.0
    %2679 = vmatprep.subr.mxu0 0.0
    %2680 = vmatpush1.xpose.msra.mxu0 0.0
    %2681 = vmatprep.subr.mxu0 0.0
    %2682 = vmatpush1.xpose.msra.mxu0 0.0
    %2683 = vmatprep.subr.mxu0 0.0
    %2684 = vmatpush1.xpose.msra.mxu0 0.0
    %2685 = vmatprep.subr.mxu0 0.0
    %2686 = vmatpush1.xpose.msra.mxu0 0.0
    %2687 = vmatprep.subr.mxu0 0.0
    %2688 = vmatpush1.xpose.msra.mxu0 0.0
    %2689 = vmatprep.subr.mxu0 0.0
    %2690 = vmatpush1.xpose.msra.mxu0 0.0
    %2691 = vmatprep.subr.mxu0 0.0
    %2692 = vmatpush1.xpose.msra.mxu0 0.0
    %2693 = vmatprep.subr.mxu0 0.0
    %2694 = vmatpush1.xpose.msra.mxu0 0.0
    %2695 = vmatprep.subr.mxu0 0.0
    %2696 = vmatpush1.xpose.msra.mxu0 0.0
    %2697 = vmatprep.subr.mxu0 0.0
    %2698 = vmatpush1.xpose.msra.mxu0 0.0
    %2699 = vmatprep.subr.mxu0 0.0
    %2700 = vmatpush1.xpose.msra.mxu0 %v2404
    %2701 = vmatprep.subr.mxu0 0.0
    %2702 = vmatpush1.xpose.msra.mxu0 %v2402
    %2703 = vmatprep.subr.mxu0 0.0
    %2704 = vmatpush2.xpose.msra.mxu0 0.0
    %2705 = vmatprep.subr.mxu0 0.0
    %2706 = vmatpush2.xpose.msra.mxu0 0.0
    %2707 = vmatprep.subr.mxu0 0.0
    %2708 = vmatpush2.xpose.msra.mxu0 0.0
    %2709 = vmatprep.subr.mxu0 0.0
    %2710 = vmatpush2.xpose.msra.mxu0 0.0
    %2711 = vmatprep.subr.mxu0 0.0
    %2712 = vmatpush2.xpose.msra.mxu0 0.0
    %2713 = vmatprep.subr.mxu0 0.0
    %2714 = vmatpush2.xpose.msra.mxu0 0.0
    %2715 = vmatprep.subr.mxu0 0.0
    %2716 = vmatpush2.xpose.msra.mxu0 0.0
    %2717 = vmatprep.subr.mxu0 0.0
    %2718 = vmatpush2.xpose.msra.mxu0 0.0
    %2719 = vmatprep.subr.mxu0 0.0
    %2720 = vmatpush2.xpose.msra.mxu0 0.0
    %2721 = vmatprep.subr.mxu0 0.0
    %2722 = vmatpush2.xpose.msra.mxu0 0.0
    %2723 = vmatprep.subr.mxu0 0.0
    %2724 = vmatpush2.xpose.msra.mxu0 0.0
    %2725 = vmatprep.subr.mxu0 0.0
    %2726 = vmatpush2.xpose.msra.mxu0 0.0
    %2727 = vmatprep.subr.mxu0 0.0
    %2728 = vmatpush2.xpose.msra.mxu0 0.0
    %2729 = vmatprep.subr.mxu0 0.0
    %2730 = vmatpush2.xpose.msra.mxu0 0.0
    %2731 = vmatprep.subr.mxu0 0.0
    %2732 = vmatpush2.xpose.msra.mxu0 0.0
    %2733 = vmatprep.subr.mxu0 0.0
    %2734 = vmatpush2.xpose.msra.mxu0 0.0
    %2735 = vmatprep.mubr.f32.mxu0 0.0
    %2736 = vmatmul.mubr.f32.gmra.mxu0 %v2667
    %v2737 = vpop.f32.mrf.mxu0
    %v2738 = vadd.f32 %v2662, %v2737
    %v2739 = vpop.f32.mrf.mxu0
    %2740 = vmatprep.mubr.f32.mxu0 0.0
    %2741 = vmatmul.mubr.f32.gmra.mxu0 %v2669
    %v2742 = vpop.f32.mrf.mxu0
    %v2743 = vadd.f32 %v2662, %v2742
    %v2744 = vpop.f32.mrf.mxu0
    %2745 = vdwg.mxu0
    %v2746 = vmul.f32 %v2738, %v41
    %v2747 = vmul.f32 %v2743, %v42
    %v2748 = vadd.f32 %v2656, %v2746
    %v2749 = vadd.f32 %v2657, %v2747
    %v2750 = vld [vmem:[%s8 + $0x1a] sm:$0x1]
    %v2751 = vlaneseq
    %v2752 = vshrl.u32 %v2751, 7
    %v2753 = vsub.s32 0, %v2752
    %v2754 = vrot.slane %v2750, %v2753
    %2755 = vrot.lane.b32.xlu0 %v143, 16
    %v2756 = vpop.permute.xlu0 %2755
    %2757 = vrot.lane.b32.xlu0 %v149, 16
    %v2758 = vpop.permute.xlu0 %2757
    %v2759 = vsel %vm166, %v2756, 0
    %v2761 = vsel %vm166, %v2758, 0
    %2763 = vmatprep.subr.mxu0 0.0
    %2764 = vmatpush1.xpose.msra.mxu0 0.0
    %2765 = vmatprep.subr.mxu0 0.0
    %2766 = vmatpush1.xpose.msra.mxu0 0.0
    %2767 = vmatprep.subr.mxu0 0.0
    %2768 = vmatpush1.xpose.msra.mxu0 0.0
    %2769 = vmatprep.subr.mxu0 0.0
    %2770 = vmatpush1.xpose.msra.mxu0 0.0
    %2771 = vmatprep.subr.mxu0 0.0
    %2772 = vmatpush1.xpose.msra.mxu0 0.0
    %2773 = vmatprep.subr.mxu0 0.0
    %2774 = vmatpush1.xpose.msra.mxu0 0.0
    %2775 = vmatprep.subr.mxu0 0.0
    %2776 = vmatpush1.xpose.msra.mxu0 0.0
    %2777 = vmatprep.subr.mxu0 0.0
    %2778 = vmatpush1.xpose.msra.mxu0 0.0
    %2779 = vmatprep.subr.mxu0 0.0
    %2780 = vmatpush1.xpose.msra.mxu0 0.0
    %2781 = vmatprep.subr.mxu0 0.0
    %2782 = vmatpush1.xpose.msra.mxu0 0.0
    %2783 = vmatprep.subr.mxu0 0.0
    %2784 = vmatpush1.xpose.msra.mxu0 0.0
    %2785 = vmatprep.subr.mxu0 0.0
    %2786 = vmatpush1.xpose.msra.mxu0 0.0
    %2787 = vmatprep.subr.mxu0 0.0
    %2788 = vmatpush1.xpose.msra.mxu0 0.0
    %2789 = vmatprep.subr.mxu0 0.0
    %2790 = vmatpush1.xpose.msra.mxu0 0.0
    %2791 = vmatprep.subr.mxu0 0.0
    %2792 = vmatpush1.xpose.msra.mxu0 %v2404
    %2793 = vmatprep.subr.mxu0 0.0
    %2794 = vmatpush1.xpose.msra.mxu0 %v2402
    %2795 = vmatprep.subr.mxu0 0.0
    %2796 = vmatpush2.xpose.msra.mxu0 0.0
    %2797 = vmatprep.subr.mxu0 0.0
    %2798 = vmatpush2.xpose.msra.mxu0 0.0
    %2799 = vmatprep.subr.mxu0 0.0
    %2800 = vmatpush2.xpose.msra.mxu0 0.0
    %2801 = vmatprep.subr.mxu0 0.0
    %2802 = vmatpush2.xpose.msra.mxu0 0.0
    %2803 = vmatprep.subr.mxu0 0.0
    %2804 = vmatpush2.xpose.msra.mxu0 0.0
    %2805 = vmatprep.subr.mxu0 0.0
    %2806 = vmatpush2.xpose.msra.mxu0 0.0
    %2807 = vmatprep.subr.mxu0 0.0
    %2808 = vmatpush2.xpose.msra.mxu0 0.0
    %2809 = vmatprep.subr.mxu0 0.0
    %2810 = vmatpush2.xpose.msra.mxu0 0.0
    %2811 = vmatprep.subr.mxu0 0.0
    %2812 = vmatpush2.xpose.msra.mxu0 0.0
    %2813 = vmatprep.subr.mxu0 0.0
    %2814 = vmatpush2.xpose.msra.mxu0 0.0
    %2815 = vmatprep.subr.mxu0 0.0
    %2816 = vmatpush2.xpose.msra.mxu0 0.0
    %2817 = vmatprep.subr.mxu0 0.0
    %2818 = vmatpush2.xpose.msra.mxu0 0.0
    %2819 = vmatprep.subr.mxu0 0.0
    %2820 = vmatpush2.xpose.msra.mxu0 0.0
    %2821 = vmatprep.subr.mxu0 0.0
    %2822 = vmatpush2.xpose.msra.mxu0 0.0
    %2823 = vmatprep.subr.mxu0 0.0
    %2824 = vmatpush2.xpose.msra.mxu0 0.0
    %2825 = vmatprep.subr.mxu0 0.0
    %2826 = vmatpush2.xpose.msra.mxu0 0.0
    %2827 = vmatprep.mubr.f32.mxu0 0.0
    %2828 = vmatmul.mubr.f32.gmra.mxu0 %v2759
    %v2829 = vpop.f32.mrf.mxu0
    %v2830 = vadd.f32 %v2754, %v2829
    %v2831 = vpop.f32.mrf.mxu0
    %2832 = vmatprep.mubr.f32.mxu0 0.0
    %2833 = vmatmul.mubr.f32.gmra.mxu0 %v2761
    %v2834 = vpop.f32.mrf.mxu0
    %v2835 = vadd.f32 %v2754, %v2834
    %v2836 = vpop.f32.mrf.mxu0
    %2837 = vdwg.mxu0
    %v2838 = vmul.f32 %v2830, %v43
    %v2839 = vmul.f32 %v2835, %v44
    %v2840 = vadd.f32 %v2748, %v2838
    %v2841 = vadd.f32 %v2749, %v2839
    %v2842 = vld [vmem:[%s8 + $0x1b] sm:$0x1]
    %v2843 = vlaneseq
    %v2844 = vshrl.u32 %v2843, 7
    %v2845 = vsub.s32 0, %v2844
    %v2846 = vrot.slane %v2842, %v2845
    %2847 = vrot.lane.b32.xlu0 %v143, 8
    %v2848 = vpop.permute.xlu0 %2847
    %2849 = vrot.lane.b32.xlu0 %v149, 8
    %v2850 = vpop.permute.xlu0 %2849
    %v2851 = vsel %vm166, %v2848, 0
    %v2853 = vsel %vm166, %v2850, 0
    %2855 = vmatprep.subr.mxu0 0.0
    %2856 = vmatpush1.xpose.msra.mxu0 0.0
    %2857 = vmatprep.subr.mxu0 0.0
    %2858 = vmatpush1.xpose.msra.mxu0 0.0
    %2859 = vmatprep.subr.mxu0 0.0
    %2860 = vmatpush1.xpose.msra.mxu0 0.0
    %2861 = vmatprep.subr.mxu0 0.0
    %2862 = vmatpush1.xpose.msra.mxu0 0.0
    %2863 = vmatprep.subr.mxu0 0.0
    %2864 = vmatpush1.xpose.msra.mxu0 0.0
    %2865 = vmatprep.subr.mxu0 0.0
    %2866 = vmatpush1.xpose.msra.mxu0 0.0
    %2867 = vmatprep.subr.mxu0 0.0
    %2868 = vmatpush1.xpose.msra.mxu0 0.0
    %2869 = vmatprep.subr.mxu0 0.0
    %2870 = vmatpush1.xpose.msra.mxu0 0.0
    %2871 = vmatprep.subr.mxu0 0.0
    %2872 = vmatpush1.xpose.msra.mxu0 0.0
    %2873 = vmatprep.subr.mxu0 0.0
    %2874 = vmatpush1.xpose.msra.mxu0 0.0
    %2875 = vmatprep.subr.mxu0 0.0
    %2876 = vmatpush1.xpose.msra.mxu0 0.0
    %2877 = vmatprep.subr.mxu0 0.0
    %2878 = vmatpush1.xpose.msra.mxu0 0.0
    %2879 = vmatprep.subr.mxu0 0.0
    %2880 = vmatpush1.xpose.msra.mxu0 0.0
    %2881 = vmatprep.subr.mxu0 0.0
    %2882 = vmatpush1.xpose.msra.mxu0 0.0
    %2883 = vmatprep.subr.mxu0 0.0
    %2884 = vmatpush1.xpose.msra.mxu0 %v2404
    %2885 = vmatprep.subr.mxu0 0.0
    %2886 = vmatpush1.xpose.msra.mxu0 %v2402
    %2887 = vmatprep.subr.mxu0 0.0
    %2888 = vmatpush2.xpose.msra.mxu0 0.0
    %2889 = vmatprep.subr.mxu0 0.0
    %2890 = vmatpush2.xpose.msra.mxu0 0.0
    %2891 = vmatprep.subr.mxu0 0.0
    %2892 = vmatpush2.xpose.msra.mxu0 0.0
    %2893 = vmatprep.subr.mxu0 0.0
    %2894 = vmatpush2.xpose.msra.mxu0 0.0
    %2895 = vmatprep.subr.mxu0 0.0
    %2896 = vmatpush2.xpose.msra.mxu0 0.0
    %2897 = vmatprep.subr.mxu0 0.0
    %2898 = vmatpush2.xpose.msra.mxu0 0.0
    %2899 = vmatprep.subr.mxu0 0.0
    %2900 = vmatpush2.xpose.msra.mxu0 0.0
    %2901 = vmatprep.subr.mxu0 0.0
    %2902 = vmatpush2.xpose.msra.mxu0 0.0
    %2903 = vmatprep.subr.mxu0 0.0
    %2904 = vmatpush2.xpose.msra.mxu0 0.0
    %2905 = vmatprep.subr.mxu0 0.0
    %2906 = vmatpush2.xpose.msra.mxu0 0.0
    %2907 = vmatprep.subr.mxu0 0.0
    %2908 = vmatpush2.xpose.msra.mxu0 0.0
    %2909 = vmatprep.subr.mxu0 0.0
    %2910 = vmatpush2.xpose.msra.mxu0 0.0
    %2911 = vmatprep.subr.mxu0 0.0
    %2912 = vmatpush2.xpose.msra.mxu0 0.0
    %2913 = vmatprep.subr.mxu0 0.0
    %2914 = vmatpush2.xpose.msra.mxu0 0.0
    %2915 = vmatprep.subr.mxu0 0.0
    %2916 = vmatpush2.xpose.msra.mxu0 0.0
    %2917 = vmatprep.subr.mxu0 0.0
    %2918 = vmatpush2.xpose.msra.mxu0 0.0
    %2919 = vmatprep.mubr.f32.mxu0 0.0
    %2920 = vmatmul.mubr.f32.gmra.mxu0 %v2851
    %v2921 = vpop.f32.mrf.mxu0
    %v2922 = vadd.f32 %v2846, %v2921
    %v2923 = vpop.f32.mrf.mxu0
    %2924 = vmatprep.mubr.f32.mxu0 0.0
    %2925 = vmatmul.mubr.f32.gmra.mxu0 %v2853
    %v2926 = vpop.f32.mrf.mxu0
    %v2927 = vadd.f32 %v2846, %v2926
    %v2928 = vpop.f32.mrf.mxu0
    %2929 = vdwg.mxu0
    %v2930 = vmul.f32 %v2922, %v45
    %v2931 = vmul.f32 %v2927, %v46
    %v2932 = vadd.f32 %v2840, %v2930
    %v2933 = vadd.f32 %v2841, %v2931
    %v2934 = vmul.f32 %v2932, 0.35355338
    %v2935 = vmul.f32 %v2933, 0.35355338
    %v2936 = vadd.f32 %v2934, %v35
    %v2937 = vadd.f32 %v2935, %v36
    %v2938 = vsel %vm703, %v2936, -inf
    %2939 = vmax.xlane.f32.xlu0 %v2938
    %v2940 = vpop.xlane.xlu0 %2939
    %v2941 = vsel %vm703, %v2937, -inf
    %2942 = vmax.xlane.f32.xlu0 %v2941
    %v2943 = vpop.xlane.xlu0 %2942
    %v2944 = vsub.f32 %v2936, %v2940
    %v2945 = vsub.f32 %v2937, %v2943
    %v2946 = vmul.f32 %v2944, 1.442695
    %v2947 = vpow.pop %v2946
    %v2948 = vmul.f32 %v2945, 1.442695
    %v2949 = vpow.pop %v2948
    %v2950 = vsel %vm703, %v2947, 0.0
    %2951 = vadd.xlane.f32.xlu0 %v2950
    %v2952 = vpop.xlane.xlu0 %2951
    %v2953 = vsel %vm703, %v2949, 0.0
    %2954 = vadd.xlane.f32.xlu0 %v2953
    %v2955 = vpop.xlane.xlu0 %2954
    %v2956 = vrcp.pop %v2952
    %v2957 = vmul.f32 %v2947, %v2956
    %v2958 = vrcp.pop %v2955
    %v2959 = vmul.f32 %v2949, %v2958
    %2960 = vrot.lane.b32.xlu0 %v143, 48
    %v2961 = vpop.permute.xlu0 %2960
    %2962 = vrot.lane.b32.xlu0 %v149, 48
    %v2963 = vpop.permute.xlu0 %2962
    %v2967 = vsel %vm703, %v2957, 0
    %v2970 = vsel %vm703, %v2959, 0
    %2972 = vmatprep.subr.mxu0 0.0
    %2973 = vmatpush1.msra.mxu0 0.0
    %2974 = vmatprep.subr.mxu0 0.0
    %2975 = vmatpush1.msra.mxu0 0.0
    %2976 = vmatprep.subr.mxu0 0.0
    %2977 = vmatpush1.msra.mxu0 0.0
    %2978 = vmatprep.subr.mxu0 0.0
    %2979 = vmatpush1.msra.mxu0 0.0
    %2980 = vmatprep.subr.mxu0 0.0
    %2981 = vmatpush1.msra.mxu0 0.0
    %2982 = vmatprep.subr.mxu0 0.0
    %2983 = vmatpush1.msra.mxu0 0.0
    %2984 = vmatprep.subr.mxu0 0.0
    %2985 = vmatpush1.msra.mxu0 0.0
    %2986 = vmatprep.subr.mxu0 0.0
    %2987 = vmatpush1.msra.mxu0 0.0
    %2988 = vmatprep.subr.mxu0 0.0
    %2989 = vmatpush1.msra.mxu0 0.0
    %2990 = vmatprep.subr.mxu0 0.0
    %2991 = vmatpush1.msra.mxu0 0.0
    %2992 = vmatprep.subr.mxu0 0.0
    %2993 = vmatpush1.msra.mxu0 0.0
    %2994 = vmatprep.subr.mxu0 0.0
    %2995 = vmatpush1.msra.mxu0 0.0
    %2996 = vmatprep.subr.mxu0 0.0
    %2997 = vmatpush1.msra.mxu0 0.0
    %2998 = vmatprep.subr.mxu0 0.0
    %2999 = vmatpush1.msra.mxu0 0.0
    %3000 = vmatprep.subr.mxu0 0.0
    %3001 = vmatpush1.msra.mxu0 %v2963
    %3002 = vmatprep.subr.mxu0 0.0
    %3003 = vmatpush1.msra.mxu0 %v2961
    %3004 = vmatprep.subr.mxu0 0.0
    %3005 = vmatpush2.msra.mxu0 0.0
    %3006 = vmatprep.subr.mxu0 0.0
    %3007 = vmatpush2.msra.mxu0 0.0
    %3008 = vmatprep.subr.mxu0 0.0
    %3009 = vmatpush2.msra.mxu0 0.0
    %3010 = vmatprep.subr.mxu0 0.0
    %3011 = vmatpush2.msra.mxu0 0.0
    %3012 = vmatprep.subr.mxu0 0.0
    %3013 = vmatpush2.msra.mxu0 0.0
    %3014 = vmatprep.subr.mxu0 0.0
    %3015 = vmatpush2.msra.mxu0 0.0
    %3016 = vmatprep.subr.mxu0 0.0
    %3017 = vmatpush2.msra.mxu0 0.0
    %3018 = vmatprep.subr.mxu0 0.0
    %3019 = vmatpush2.msra.mxu0 0.0
    %3020 = vmatprep.subr.mxu0 0.0
    %3021 = vmatpush2.msra.mxu0 0.0
    %3022 = vmatprep.subr.mxu0 0.0
    %3023 = vmatpush2.msra.mxu0 0.0
    %3024 = vmatprep.subr.mxu0 0.0
    %3025 = vmatpush2.msra.mxu0 0.0
    %3026 = vmatprep.subr.mxu0 0.0
    %3027 = vmatpush2.msra.mxu0 0.0
    %3028 = vmatprep.subr.mxu0 0.0
    %3029 = vmatpush2.msra.mxu0 0.0
    %3030 = vmatprep.subr.mxu0 0.0
    %3031 = vmatpush2.msra.mxu0 0.0
    %3032 = vmatprep.subr.mxu0 0.0
    %3033 = vmatpush2.msra.mxu0 0.0
    %3034 = vmatprep.subr.mxu0 0.0
    %3035 = vmatpush2.msra.mxu0 0.0
    %3036 = vmatprep.mubr.f32.mxu0 0.0
    %3037 = vmatmul.mubr.f32.gmra.mxu0 %v2967
    %v3038 = vpop.f32.mrf.mxu0
    %v3039 = vadd.f32 0.0, %v3038
    %v3040 = vpop.f32.mrf.mxu0
    %3041 = vmatprep.mubr.f32.mxu0 0.0
    %3042 = vmatmul.mubr.f32.gmra.mxu0 %v2970
    %v3043 = vpop.f32.mrf.mxu0
    %v3044 = vadd.f32 0.0, %v3043
    %v3045 = vpop.f32.mrf.mxu0
    %3046 = vdwg.mxu0
    %s3047 = scalar_lea.vmem %s5, 24
    %v3048 = vld [vmem:[%s3047] sm:$0xff]
    %v3050 = vsel %vm166, %v3039, 0
    %v3053 = vsel %vm166, %v3044, 0
    %3055 = vmatprep.subr.mxu0 0.0
    %3056 = vmatpush1.msra.mxu0 0.0
    %3057 = vmatprep.subr.mxu0 0.0
    %3058 = vmatpush1.msra.mxu0 0.0
    %3059 = vmatprep.subr.mxu0 0.0
    %3060 = vmatpush1.msra.mxu0 0.0
    %3061 = vmatprep.subr.mxu0 0.0
    %3062 = vmatpush1.msra.mxu0 0.0
    %3063 = vmatprep.subr.mxu0 0.0
    %3064 = vmatpush1.msra.mxu0 0.0
    %3065 = vmatprep.subr.mxu0 0.0
    %3066 = vmatpush1.msra.mxu0 0.0
    %3067 = vmatprep.subr.mxu0 0.0
    %3068 = vmatpush1.msra.mxu0 0.0
    %3069 = vmatprep.subr.mxu0 0.0
    %3070 = vmatpush1.msra.mxu0 0.0
    %3071 = vmatprep.subr.mxu0 0.0
    %3072 = vmatpush1.msra.mxu0 0.0
    %3073 = vmatprep.subr.mxu0 0.0
    %3074 = vmatpush1.msra.mxu0 0.0
    %3075 = vmatprep.subr.mxu0 0.0
    %3076 = vmatpush1.msra.mxu0 0.0
    %3077 = vmatprep.subr.mxu0 0.0
    %3078 = vmatpush1.msra.mxu0 0.0
    %3079 = vmatprep.subr.mxu0 0.0
    %3080 = vmatpush1.msra.mxu0 0.0
    %3081 = vmatprep.subr.mxu0 0.0
    %3082 = vmatpush1.msra.mxu0 0.0
    %3083 = vmatprep.subr.mxu0 0.0
    %3084 = vmatpush1.msra.mxu0 0.0
    %3085 = vmatprep.subr.mxu0 0.0
    %3086 = vmatpush1.msra.mxu0 %v3048
    %3087 = vmatprep.subr.mxu0 0.0
    %3088 = vmatpush2.msra.mxu0 0.0
    %3089 = vmatprep.subr.mxu0 0.0
    %3090 = vmatpush2.msra.mxu0 0.0
    %3091 = vmatprep.subr.mxu0 0.0
    %3092 = vmatpush2.msra.mxu0 0.0
    %3093 = vmatprep.subr.mxu0 0.0
    %3094 = vmatpush2.msra.mxu0 0.0
    %3095 = vmatprep.subr.mxu0 0.0
    %3096 = vmatpush2.msra.mxu0 0.0
    %3097 = vmatprep.subr.mxu0 0.0
    %3098 = vmatpush2.msra.mxu0 0.0
    %3099 = vmatprep.subr.mxu0 0.0
    %3100 = vmatpush2.msra.mxu0 0.0
    %3101 = vmatprep.subr.mxu0 0.0
    %3102 = vmatpush2.msra.mxu0 0.0
    %3103 = vmatprep.subr.mxu0 0.0
    %3104 = vmatpush2.msra.mxu0 0.0
    %3105 = vmatprep.subr.mxu0 0.0
    %3106 = vmatpush2.msra.mxu0 0.0
    %3107 = vmatprep.subr.mxu0 0.0
    %3108 = vmatpush2.msra.mxu0 0.0
    %3109 = vmatprep.subr.mxu0 0.0
    %3110 = vmatpush2.msra.mxu0 0.0
    %3111 = vmatprep.subr.mxu0 0.0
    %3112 = vmatpush2.msra.mxu0 0.0
    %3113 = vmatprep.subr.mxu0 0.0
    %3114 = vmatpush2.msra.mxu0 0.0
    %3115 = vmatprep.subr.mxu0 0.0
    %3116 = vmatpush2.msra.mxu0 0.0
    %3117 = vmatprep.subr.mxu0 0.0
    %3118 = vmatpush2.msra.mxu0 0.0
    %3119 = vmatprep.mubr.f32.mxu0 0.0
    %3120 = vmatmul.mubr.f32.gmra.mxu0 %v3050
    %v3121 = vpop.f32.mrf.mxu0
    %v3122 = vadd.f32 0.0, %v3121
    %v3123 = vpop.f32.mrf.mxu0
    %3124 = vmatprep.mubr.f32.mxu0 0.0
    %3125 = vmatmul.mubr.f32.gmra.mxu0 %v3053
    %v3126 = vpop.f32.mrf.mxu0
    %v3127 = vadd.f32 0.0, %v3126
    %v3128 = vpop.f32.mrf.mxu0
    %3129 = vdwg.mxu0
    %v3130 = vadd.f32 %v2383, %v3122
    %v3131 = vadd.f32 %v2384, %v3127
    %v3132 = vld [vmem:[%s8] sm:$0x1]
    %v3133 = vld [vmem:[%s8 + $0x1] sm:$0x1]
    %v3134 = vld [vmem:[%s8 + $0x2] sm:$0x1]
    %v3135 = vlaneseq
    %v3136 = vshrl.u32 %v3135, 7
    %v3137 = vsub.s32 0, %v3136
    %v3138 = vrot.slane %v3132, %v3137
    %v3139 = vadd.f32 %v3130, %v3138
    %v3140 = vadd.f32 %v3131, %v3138
    %v3141 = vadd.f32 %v3139, %v33
    %v3142 = vadd.f32 %v3140, %v34
    %v3143 = vsel %vm67, %v3141, 0.0
    %3144 = vadd.xlane.f32.xlu0 %v3143
    %v3145 = vpop.xlane.xlu0 %3144
    %v3146 = vsel %vm67, %v3142, 0.0
    %3147 = vadd.xlane.f32.xlu0 %v3146
    %v3148 = vpop.xlane.xlu0 %3147
    %v3149 = vrcp.pop 32.0
    %v3150 = vmul.f32 %v3145, %v3149
    %v3151 = vmul.f32 %v3148, %v3149
    %v3152 = vsub.f32 %v3141, %v3150
    %v3153 = vsub.f32 %v3142, %v3151
    %v3154 = vmul.f32 %v3152, %v3152
    %v3155 = vmul.f32 %v3153, %v3153
    %v3156 = vsel %vm67, %v3154, 0.0
    %3157 = vadd.xlane.f32.xlu0 %v3156
    %v3158 = vpop.xlane.xlu0 %3157
    %v3159 = vsel %vm67, %v3155, 0.0
    %3160 = vadd.xlane.f32.xlu0 %v3159
    %v3161 = vpop.xlane.xlu0 %3160
    %v3162 = vmul.f32 %v3158, %v3149
    %v3163 = vmul.f32 %v3161, %v3149
    %v3164 = vadd.f32 %v3162, 1e-12
    %v3165 = vadd.f32 %v3163, 1e-12
    %v3166 = vrsqrt.pop %v3164
    %v3167 = vmul.f32 %v3164, %v3166
    %vm3168 = vcmp.eq.f32.partialorder %v3164, inf
    %v3169 = vsel %vm3168, %v3164, %v3167
    %vm3170 = vcmp.eq.f32.partialorder %v3164, 0.0
    %v3171 = vand.u32 %v3164, 2147483648
    %v3172 = vsel %vm3170, %v3171, %v3169
    %v3173 = vrsqrt.pop %v3165
    %v3174 = vmul.f32 %v3165, %v3173
    %vm3175 = vcmp.eq.f32.partialorder %v3165, inf
    %v3176 = vsel %vm3175, %v3165, %v3174
    %vm3177 = vcmp.eq.f32.partialorder %v3165, 0.0
    %v3178 = vand.u32 %v3165, 2147483648
    %v3179 = vsel %vm3177, %v3178, %v3176
    %v3180 = vrcp.pop %v3172
    %v3181 = vmul.f32 %v3152, %v3180
    %v3182 = vrcp.pop %v3179
    %v3183 = vmul.f32 %v3153, %v3182
    %v3184 = vlaneseq
    %v3185 = vshrl.u32 %v3184, 7
    %v3186 = vsub.s32 0, %v3185
    %v3187 = vrot.slane %v3133, %v3186
    %v3188 = vmul.f32 %v3181, %v3187
    %v3189 = vmul.f32 %v3183, %v3187
    %v3190 = vlaneseq
    %v3191 = vshrl.u32 %v3190, 7
    %v3192 = vsub.s32 0, %v3191
    %v3193 = vrot.slane %v3134, %v3192
    %v3194 = vadd.f32 %v3188, %v3193
    %v3195 = vadd.f32 %v3189, %v3193
    %v3196 = vld [vmem:[%s8 + $0x3] sm:$0x1]
    %v3197 = vld [vmem:[%s6] sm:$0xff]
    %v3198 = vld [vmem:[%s6 + $0x8] sm:$0xff]
    %v3199 = vld [vmem:[%s6 + $0x10] sm:$0xff]
    %v3200 = vld [vmem:[%s6 + $0x18] sm:$0xff]
    %v3201 = vlaneseq
    %v3202 = vshrl.u32 %v3201, 7
    %v3203 = vsub.s32 0, %v3202
    %v3204 = vrot.slane %v3196, %v3203
    %v3206 = vsel %vm67, %v3194, 0
    %v3209 = vsel %vm67, %v3195, 0
    %3211 = vmatprep.subr.mxu0 0.0
    %3212 = vmatpush1.msra.mxu0 0.0
    %3213 = vmatprep.subr.mxu0 0.0
    %3214 = vmatpush1.msra.mxu0 0.0
    %3215 = vmatprep.subr.mxu0 0.0
    %3216 = vmatpush1.msra.mxu0 0.0
    %3217 = vmatprep.subr.mxu0 0.0
    %3218 = vmatpush1.msra.mxu0 0.0
    %3219 = vmatprep.subr.mxu0 0.0
    %3220 = vmatpush1.msra.mxu0 0.0
    %3221 = vmatprep.subr.mxu0 0.0
    %3222 = vmatpush1.msra.mxu0 0.0
    %3223 = vmatprep.subr.mxu0 0.0
    %3224 = vmatpush1.msra.mxu0 0.0
    %3225 = vmatprep.subr.mxu0 0.0
    %3226 = vmatpush1.msra.mxu0 0.0
    %3227 = vmatprep.subr.mxu0 0.0
    %3228 = vmatpush1.msra.mxu0 0.0
    %3229 = vmatprep.subr.mxu0 0.0
    %3230 = vmatpush1.msra.mxu0 0.0
    %3231 = vmatprep.subr.mxu0 0.0
    %3232 = vmatpush1.msra.mxu0 0.0
    %3233 = vmatprep.subr.mxu0 0.0
    %3234 = vmatpush1.msra.mxu0 0.0
    %3235 = vmatprep.subr.mxu0 0.0
    %3236 = vmatpush1.msra.mxu0 %v3200
    %3237 = vmatprep.subr.mxu0 0.0
    %3238 = vmatpush1.msra.mxu0 %v3199
    %3239 = vmatprep.subr.mxu0 0.0
    %3240 = vmatpush1.msra.mxu0 %v3198
    %3241 = vmatprep.subr.mxu0 0.0
    %3242 = vmatpush1.msra.mxu0 %v3197
    %3243 = vmatprep.subr.mxu0 0.0
    %3244 = vmatpush2.msra.mxu0 0.0
    %3245 = vmatprep.subr.mxu0 0.0
    %3246 = vmatpush2.msra.mxu0 0.0
    %3247 = vmatprep.subr.mxu0 0.0
    %3248 = vmatpush2.msra.mxu0 0.0
    %3249 = vmatprep.subr.mxu0 0.0
    %3250 = vmatpush2.msra.mxu0 0.0
    %3251 = vmatprep.subr.mxu0 0.0
    %3252 = vmatpush2.msra.mxu0 0.0
    %3253 = vmatprep.subr.mxu0 0.0
    %3254 = vmatpush2.msra.mxu0 0.0
    %3255 = vmatprep.subr.mxu0 0.0
    %3256 = vmatpush2.msra.mxu0 0.0
    %3257 = vmatprep.subr.mxu0 0.0
    %3258 = vmatpush2.msra.mxu0 0.0
    %3259 = vmatprep.subr.mxu0 0.0
    %3260 = vmatpush2.msra.mxu0 0.0
    %3261 = vmatprep.subr.mxu0 0.0
    %3262 = vmatpush2.msra.mxu0 0.0
    %3263 = vmatprep.subr.mxu0 0.0
    %3264 = vmatpush2.msra.mxu0 0.0
    %3265 = vmatprep.subr.mxu0 0.0
    %3266 = vmatpush2.msra.mxu0 0.0
    %3267 = vmatprep.subr.mxu0 0.0
    %3268 = vmatpush2.msra.mxu0 0.0
    %3269 = vmatprep.subr.mxu0 0.0
    %3270 = vmatpush2.msra.mxu0 0.0
    %3271 = vmatprep.subr.mxu0 0.0
    %3272 = vmatpush2.msra.mxu0 0.0
    %3273 = vmatprep.subr.mxu0 0.0
    %3274 = vmatpush2.msra.mxu0 0.0
    %3275 = vmatprep.mubr.f32.mxu0 0.0
    %3276 = vmatmul.mubr.f32.gmra.mxu0 %v3206
    %v3277 = vpop.f32.mrf.mxu0
    %v3278 = vadd.f32 %v3204, %v3277
    %v3279 = vpop.f32.mrf.mxu0
    %3280 = vmatprep.mubr.f32.mxu0 0.0
    %3281 = vmatmul.mubr.f32.gmra.mxu0 %v3209
    %v3282 = vpop.f32.mrf.mxu0
    %v3283 = vadd.f32 %v3204, %v3282
    %v3284 = vpop.f32.mrf.mxu0
    %3285 = vdwg.mxu0
    %v3286 = vmul.f32 %v3278, 0.5
    %v3287 = vmul.f32 %v3283, 0.5
    %v3288 = vmul.f32 %v3278, 0.044715
    %v3289 = vmul.f32 %v3283, 0.044715
    %v3290 = vmul.f32 %v3288, %v3278
    %v3291 = vmul.f32 %v3289, %v3283
    %v3292 = vmul.f32 %v3290, %v3278
    %v3293 = vmul.f32 %v3291, %v3283
    %v3294 = vadd.f32 %v3278, %v3292
    %v3295 = vadd.f32 %v3283, %v3293
    %v3296 = vmul.f32 %v3294, 0.7978846
    %v3297 = vmul.f32 %v3295, 0.7978846
    %v3298 = vtanh.pop %v3296
    %v3299 = vtanh.pop %v3297
    %v3300 = vadd.f32 %v3298, 1.0
    %v3301 = vadd.f32 %v3299, 1.0
    %v3302 = vmul.f32 %v3286, %v3300
    %v3303 = vmul.f32 %v3287, %v3301
    %v3304 = vld [vmem:[%s8 + $0x4] sm:$0x1]
    %v3305 = vld [vmem:[%s8 + $0x5] sm:$0x1]
    %v3306 = vld [vmem:[%s8 + $0x6] sm:$0x1]
    %v3307 = vld [vmem:[%s7] sm:$0xff]
    %v3308 = vld [vmem:[%s7 + $0x8] sm:$0xff]
    %v3309 = vld [vmem:[%s7 + $0x10] sm:$0xff]
    %v3310 = vld [vmem:[%s7 + $0x18] sm:$0xff]
    %v3311 = vld [vmem:[%s7 + $0x20] sm:$0xff]
    %v3312 = vld [vmem:[%s7 + $0x28] sm:$0xff]
    %v3313 = vld [vmem:[%s7 + $0x30] sm:$0xff]
    %v3314 = vld [vmem:[%s7 + $0x38] sm:$0xff]
    %v3315 = vlaneseq
    %v3316 = vshrl.u32 %v3315, 7
    %v3317 = vsub.s32 0, %v3316
    %v3318 = vrot.slane %v3304, %v3317
    %vm3319 = vcmask 523264
    %v3321 = vsel %vm3319, %v3302, 0
    %v3324 = vsel %vm3319, %v3303, 0
    %3326 = vmatprep.subr.mxu0 0.0
    %3327 = vmatpush1.msra.mxu0 0.0
    %3328 = vmatprep.subr.mxu0 0.0
    %3329 = vmatpush1.msra.mxu0 0.0
    %3330 = vmatprep.subr.mxu0 0.0
    %3331 = vmatpush1.msra.mxu0 0.0
    %3332 = vmatprep.subr.mxu0 0.0
    %3333 = vmatpush1.msra.mxu0 0.0
    %3334 = vmatprep.subr.mxu0 0.0
    %3335 = vmatpush1.msra.mxu0 0.0
    %3336 = vmatprep.subr.mxu0 0.0
    %3337 = vmatpush1.msra.mxu0 0.0
    %3338 = vmatprep.subr.mxu0 0.0
    %3339 = vmatpush1.msra.mxu0 0.0
    %3340 = vmatprep.subr.mxu0 0.0
    %3341 = vmatpush1.msra.mxu0 0.0
    %3342 = vmatprep.subr.mxu0 0.0
    %3343 = vmatpush1.msra.mxu0 %v3314
    %3344 = vmatprep.subr.mxu0 0.0
    %3345 = vmatpush1.msra.mxu0 %v3313
    %3346 = vmatprep.subr.mxu0 0.0
    %3347 = vmatpush1.msra.mxu0 %v3312
    %3348 = vmatprep.subr.mxu0 0.0
    %3349 = vmatpush1.msra.mxu0 %v3311
    %3350 = vmatprep.subr.mxu0 0.0
    %3351 = vmatpush1.msra.mxu0 %v3310
    %3352 = vmatprep.subr.mxu0 0.0
    %3353 = vmatpush1.msra.mxu0 %v3309
    %3354 = vmatprep.subr.mxu0 0.0
    %3355 = vmatpush1.msra.mxu0 %v3308
    %3356 = vmatprep.subr.mxu0 0.0
    %3357 = vmatpush1.msra.mxu0 %v3307
    %3358 = vmatprep.subr.mxu0 0.0
    %3359 = vmatpush2.msra.mxu0 0.0
    %3360 = vmatprep.subr.mxu0 0.0
    %3361 = vmatpush2.msra.mxu0 0.0
    %3362 = vmatprep.subr.mxu0 0.0
    %3363 = vmatpush2.msra.mxu0 0.0
    %3364 = vmatprep.subr.mxu0 0.0
    %3365 = vmatpush2.msra.mxu0 0.0
    %3366 = vmatprep.subr.mxu0 0.0
    %3367 = vmatpush2.msra.mxu0 0.0
    %3368 = vmatprep.subr.mxu0 0.0
    %3369 = vmatpush2.msra.mxu0 0.0
    %3370 = vmatprep.subr.mxu0 0.0
    %3371 = vmatpush2.msra.mxu0 0.0
    %3372 = vmatprep.subr.mxu0 0.0
    %3373 = vmatpush2.msra.mxu0 0.0
    %3374 = vmatprep.subr.mxu0 0.0
    %3375 = vmatpush2.msra.mxu0 0.0
    %3376 = vmatprep.subr.mxu0 0.0
    %3377 = vmatpush2.msra.mxu0 0.0
    %3378 = vmatprep.subr.mxu0 0.0
    %3379 = vmatpush2.msra.mxu0 0.0
    %3380 = vmatprep.subr.mxu0 0.0
    %3381 = vmatpush2.msra.mxu0 0.0
    %3382 = vmatprep.subr.mxu0 0.0
    %3383 = vmatpush2.msra.mxu0 0.0
    %3384 = vmatprep.subr.mxu0 0.0
    %3385 = vmatpush2.msra.mxu0 0.0
    %3386 = vmatprep.subr.mxu0 0.0
    %3387 = vmatpush2.msra.mxu0 0.0
    %3388 = vmatprep.subr.mxu0 0.0
    %3389 = vmatpush2.msra.mxu0 0.0
    %3390 = vmatprep.mubr.f32.mxu0 0.0
    %3391 = vmatmul.mubr.f32.gmra.mxu0 %v3321
    %v3392 = vpop.f32.mrf.mxu0
    %v3393 = vadd.f32 %v3318, %v3392
    %v3394 = vpop.f32.mrf.mxu0
    %3395 = vmatprep.mubr.f32.mxu0 0.0
    %3396 = vmatmul.mubr.f32.gmra.mxu0 %v3324
    %v3397 = vpop.f32.mrf.mxu0
    %v3398 = vadd.f32 %v3318, %v3397
    %v3399 = vpop.f32.mrf.mxu0
    %3400 = vdwg.mxu0
    %v3401 = vadd.f32 %v3393, %v3194
    %v3402 = vadd.f32 %v3398, %v3195
    %v3403 = vsel %vm67, %v3401, 0.0
    %3404 = vadd.xlane.f32.xlu0 %v3403
    %v3405 = vpop.xlane.xlu0 %3404
    %v3406 = vsel %vm67, %v3402, 0.0
    %3407 = vadd.xlane.f32.xlu0 %v3406
    %v3408 = vpop.xlane.xlu0 %3407
    %v3409 = vmul.f32 %v3405, %v3149
    %v3410 = vmul.f32 %v3408, %v3149
    %v3411 = vsub.f32 %v3401, %v3409
    %v3412 = vsub.f32 %v3402, %v3410
    %v3413 = vmul.f32 %v3411, %v3411
    %v3414 = vmul.f32 %v3412, %v3412
    %v3415 = vsel %vm67, %v3413, 0.0
    %3416 = vadd.xlane.f32.xlu0 %v3415
    %v3417 = vpop.xlane.xlu0 %3416
    %v3418 = vsel %vm67, %v3414, 0.0
    %3419 = vadd.xlane.f32.xlu0 %v3418
    %v3420 = vpop.xlane.xlu0 %3419
    %v3421 = vmul.f32 %v3417, %v3149
    %v3422 = vmul.f32 %v3420, %v3149
    %v3423 = vadd.f32 %v3421, 1e-12
    %v3424 = vadd.f32 %v3422, 1e-12
    %v3425 = vrsqrt.pop %v3423
    %v3426 = vmul.f32 %v3423, %v3425
    %vm3427 = vcmp.eq.f32.partialorder %v3423, inf
    %v3428 = vsel %vm3427, %v3423, %v3426
    %vm3429 = vcmp.eq.f32.partialorder %v3423, 0.0
    %v3430 = vand.u32 %v3423, 2147483648
    %v3431 = vsel %vm3429, %v3430, %v3428
    %v3432 = vrsqrt.pop %v3424
    %v3433 = vmul.f32 %v3424, %v3432
    %vm3434 = vcmp.eq.f32.partialorder %v3424, inf
    %v3435 = vsel %vm3434, %v3424, %v3433
    %vm3436 = vcmp.eq.f32.partialorder %v3424, 0.0
    %v3437 = vand.u32 %v3424, 2147483648
    %v3438 = vsel %vm3436, %v3437, %v3435
    %v3439 = vrcp.pop %v3431
    %v3440 = vmul.f32 %v3411, %v3439
    %v3441 = vrcp.pop %v3438
    %v3442 = vmul.f32 %v3412, %v3441
    %v3443 = vlaneseq
    %v3444 = vshrl.u32 %v3443, 7
    %v3445 = vsub.s32 0, %v3444
    %v3446 = vrot.slane %v3305, %v3445
    %v3447 = vmul.f32 %v3440, %v3446
    %v3448 = vmul.f32 %v3442, %v3446
    %v3449 = vlaneseq
    %v3450 = vshrl.u32 %v3449, 7
    %v3451 = vsub.s32 0, %v3450
    %v3452 = vrot.slane %v3306, %v3451
    %v3453 = vadd.f32 %v3447, %v3452
    %v3454 = vadd.f32 %v3448, %v3452
    %s3455 = scalar_lea.vmem %s3, 64
    %v3456 = vld [vmem:[%s3455] sm:$0xff]
    %v3457 = vld [vmem:[%s3455 + $0x8] sm:$0xff]
    %v3458 = vld [vmem:[%s3455 + $0x10] sm:$0xff]
    %v3459 = vld [vmem:[%s3455 + $0x18] sm:$0xff]
    %v3460 = vld [vmem:[%s3455 + $0x20] sm:$0xff]
    %v3461 = vld [vmem:[%s3455 + $0x28] sm:$0xff]
    %v3462 = vld [vmem:[%s3455 + $0x30] sm:$0xff]
    %v3463 = vld [vmem:[%s3455 + $0x38] sm:$0xff]
    %s3464 = scalar_lea.vmem %s4, 2
    %v3465 = vld [vmem:[%s3464] sm:$0x3]
    %v3467 = vlaneseq
    %v3468 = vshrl.u32 %v3467, 7
    %v3469 = vsub.s32 0, %v3468
    %v3470 = vrot.slane %v3465, %v3469
    %v3471 = vlaneseq
    %v3472 = vshrl.u32 %v3471, 7
    %v3473 = vsub.s32 1, %v3472
    %v3474 = vrot.slane %v3465, %v3473
    %v3478 = vsel %vm67, %v3453, 0
    %v3481 = vsel %vm67, %v3454, 0
    %3483 = vmatprep.subr.mxu0 0.0
    %3484 = vmatpush1.msra.mxu0 0.0
    %3485 = vmatprep.subr.mxu0 0.0
    %3486 = vmatpush1.msra.mxu0 0.0
    %3487 = vmatprep.subr.mxu0 0.0
    %3488 = vmatpush1.msra.mxu0 0.0
    %3489 = vmatprep.subr.mxu0 0.0
    %3490 = vmatpush1.msra.mxu0 0.0
    %3491 = vmatprep.subr.mxu0 0.0
    %3492 = vmatpush1.msra.mxu0 0.0
    %3493 = vmatprep.subr.mxu0 0.0
    %3494 = vmatpush1.msra.mxu0 0.0
    %3495 = vmatprep.subr.mxu0 0.0
    %3496 = vmatpush1.msra.mxu0 0.0
    %3497 = vmatprep.subr.mxu0 0.0
    %3498 = vmatpush1.msra.mxu0 0.0
    %3499 = vmatprep.subr.mxu0 0.0
    %3500 = vmatpush1.msra.mxu0 0.0
    %3501 = vmatprep.subr.mxu0 0.0
    %3502 = vmatpush1.msra.mxu0 0.0
    %3503 = vmatprep.subr.mxu0 0.0
    %3504 = vmatpush1.msra.mxu0 0.0
    %3505 = vmatprep.subr.mxu0 0.0
    %3506 = vmatpush1.msra.mxu0 0.0
    %3507 = vmatprep.subr.mxu0 %v3463
    %3508 = vmatpush1.msra.mxu0 %v3462
    %3509 = vmatprep.subr.mxu0 %v3461
    %3510 = vmatpush1.msra.mxu0 %v3460
    %3511 = vmatprep.subr.mxu0 %v3459
    %3512 = vmatpush1.msra.mxu0 %v3458
    %3513 = vmatprep.subr.mxu0 %v3457
    %3514 = vmatpush1.msra.mxu0 %v3456
    %3515 = vmatprep.subr.mxu0 0.0
    %3516 = vmatpush2.msra.mxu0 0.0
    %3517 = vmatprep.subr.mxu0 0.0
    %3518 = vmatpush2.msra.mxu0 0.0
    %3519 = vmatprep.subr.mxu0 0.0
    %3520 = vmatpush2.msra.mxu0 0.0
    %3521 = vmatprep.subr.mxu0 0.0
    %3522 = vmatpush2.msra.mxu0 0.0
    %3523 = vmatprep.subr.mxu0 0.0
    %3524 = vmatpush2.msra.mxu0 0.0
    %3525 = vmatprep.subr.mxu0 0.0
    %3526 = vmatpush2.msra.mxu0 0.0
    %3527 = vmatprep.subr.mxu0 0.0
    %3528 = vmatpush2.msra.mxu0 0.0
    %3529 = vmatprep.subr.mxu0 0.0
    %3530 = vmatpush2.msra.mxu0 0.0
    %3531 = vmatprep.subr.mxu0 0.0
    %3532 = vmatpush2.msra.mxu0 0.0
    %3533 = vmatprep.subr.mxu0 0.0
    %3534 = vmatpush2.msra.mxu0 0.0
    %3535 = vmatprep.subr.mxu0 0.0
    %3536 = vmatpush2.msra.mxu0 0.0
    %3537 = vmatprep.subr.mxu0 0.0
    %3538 = vmatpush2.msra.mxu0 0.0
    %3539 = vmatprep.subr.mxu0 0.0
    %3540 = vmatpush2.msra.mxu0 0.0
    %3541 = vmatprep.subr.mxu0 0.0
    %3542 = vmatpush2.msra.mxu0 0.0
    %3543 = vmatprep.subr.mxu0 0.0
    %3544 = vmatpush2.msra.mxu0 0.0
    %3545 = vmatprep.subr.mxu0 0.0
    %3546 = vmatpush2.msra.mxu0 0.0
    %3547 = vmatprep.mubr.f32.mxu0 0.0
    %3548 = vmatmul.mubr.f32.gmra.mxu0 %v3478
    %v3549 = vpop.f32.mrf.mxu0
    %v3550 = vadd.f32 %v3470, %v3549
    %v3551 = vpop.f32.mrf.mxu0
    %v3552 = vadd.f32 %v3474, %v3551
    %3553 = vmatprep.mubr.f32.mxu0 0.0
    %3554 = vmatmul.mubr.f32.gmra.mxu0 %v3481
    %v3555 = vpop.f32.mrf.mxu0
    %v3556 = vadd.f32 %v3470, %v3555
    %v3557 = vpop.f32.mrf.mxu0
    %v3558 = vadd.f32 %v3474, %v3557
    %3559 = vdwg.mxu0
    %s3560 = scalar_lea.vmem %s8, 32
    %v3561 = vld [vmem:[%s3560 + $0x8] sm:$0x1]
    %v3562 = vlaneseq
    %v3563 = vshrl.u32 %v3562, 7
    %v3564 = vsub.s32 0, %v3563
    %v3565 = vrot.slane %v3561, %v3564
    %3568 = vrot.lane.b32.xlu0 %v3550, 104
    %v3569 = vpop.permute.xlu0 %3568
    %3570 = vrot.lane.b32.xlu0 %v3556, 104
    %v3571 = vpop.permute.xlu0 %3570
    %3572 = vrot.lane.b32.xlu0 %v3550, 120
    %v3573 = vpop.permute.xlu0 %3572
    %3574 = vrot.lane.b32.xlu0 %v3556, 120
    %v3575 = vpop.permute.xlu0 %3574
    %v3576 = vsel %vm166, %v3569, 0
    %v3578 = vsel %vm166, %v3571, 0
    %v3580 = vsel %vm166, %v3573, 0
    %v3582 = vsel %vm166, %v3575, 0
    %3584 = vmatprep.subr.mxu0 0.0
    %3585 = vmatpush1.xpose.msra.mxu0 0.0
    %3586 = vmatprep.subr.mxu0 0.0
    %3587 = vmatpush1.xpose.msra.mxu0 0.0
    %3588 = vmatprep.subr.mxu0 0.0
    %3589 = vmatpush1.xpose.msra.mxu0 0.0
    %3590 = vmatprep.subr.mxu0 0.0
    %3591 = vmatpush1.xpose.msra.mxu0 0.0
    %3592 = vmatprep.subr.mxu0 0.0
    %3593 = vmatpush1.xpose.msra.mxu0 0.0
    %3594 = vmatprep.subr.mxu0 0.0
    %3595 = vmatpush1.xpose.msra.mxu0 0.0
    %3596 = vmatprep.subr.mxu0 0.0
    %3597 = vmatpush1.xpose.msra.mxu0 0.0
    %3598 = vmatprep.subr.mxu0 0.0
    %3599 = vmatpush1.xpose.msra.mxu0 0.0
    %3600 = vmatprep.subr.mxu0 0.0
    %3601 = vmatpush1.xpose.msra.mxu0 0.0
    %3602 = vmatprep.subr.mxu0 0.0
    %3603 = vmatpush1.xpose.msra.mxu0 0.0
    %3604 = vmatprep.subr.mxu0 0.0
    %3605 = vmatpush1.xpose.msra.mxu0 0.0
    %3606 = vmatprep.subr.mxu0 0.0
    %3607 = vmatpush1.xpose.msra.mxu0 0.0
    %3608 = vmatprep.subr.mxu0 0.0
    %3609 = vmatpush1.xpose.msra.mxu0 0.0
    %3610 = vmatprep.subr.mxu0 0.0
    %3611 = vmatpush1.xpose.msra.mxu0 0.0
    %3612 = vmatprep.subr.mxu0 0.0
    %3613 = vmatpush1.xpose.msra.mxu0 %v3582
    %3614 = vmatprep.subr.mxu0 0.0
    %3615 = vmatpush1.xpose.msra.mxu0 %v3580
    %3616 = vmatprep.subr.mxu0 0.0
    %3617 = vmatpush2.xpose.msra.mxu0 0.0
    %3618 = vmatprep.subr.mxu0 0.0
    %3619 = vmatpush2.xpose.msra.mxu0 0.0
    %3620 = vmatprep.subr.mxu0 0.0
    %3621 = vmatpush2.xpose.msra.mxu0 0.0
    %3622 = vmatprep.subr.mxu0 0.0
    %3623 = vmatpush2.xpose.msra.mxu0 0.0
    %3624 = vmatprep.subr.mxu0 0.0
    %3625 = vmatpush2.xpose.msra.mxu0 0.0
    %3626 = vmatprep.subr.mxu0 0.0
    %3627 = vmatpush2.xpose.msra.mxu0 0.0
    %3628 = vmatprep.subr.mxu0 0.0
    %3629 = vmatpush2.xpose.msra.mxu0 0.0
    %3630 = vmatprep.subr.mxu0 0.0
    %3631 = vmatpush2.xpose.msra.mxu0 0.0
    %3632 = vmatprep.subr.mxu0 0.0
    %3633 = vmatpush2.xpose.msra.mxu0 0.0
    %3634 = vmatprep.subr.mxu0 0.0
    %3635 = vmatpush2.xpose.msra.mxu0 0.0
    %3636 = vmatprep.subr.mxu0 0.0
    %3637 = vmatpush2.xpose.msra.mxu0 0.0
    %3638 = vmatprep.subr.mxu0 0.0
    %3639 = vmatpush2.xpose.msra.mxu0 0.0
    %3640 = vmatprep.subr.mxu0 0.0
    %3641 = vmatpush2.xpose.msra.mxu0 0.0
    %3642 = vmatprep.subr.mxu0 0.0
    %3643 = vmatpush2.xpose.msra.mxu0 0.0
    %3644 = vmatprep.subr.mxu0 0.0
    %3645 = vmatpush2.xpose.msra.mxu0 0.0
    %3646 = vmatprep.subr.mxu0 0.0
    %3647 = vmatpush2.xpose.msra.mxu0 0.0
    %3648 = vmatprep.mubr.f32.mxu0 0.0
    %3649 = vmatmul.mubr.f32.gmra.mxu0 %v3576
    %v3650 = vpop.f32.mrf.mxu0
    %v3651 = vadd.f32 %v3565, %v3650
    %v3652 = vpop.f32.mrf.mxu0
    %3653 = vmatprep.mubr.f32.mxu0 0.0
    %3654 = vmatmul.mubr.f32.gmra.mxu0 %v3578
    %v3655 = vpop.f32.mrf.mxu0
    %v3656 = vadd.f32 %v3565, %v3655
    %v3657 = vpop.f32.mrf.mxu0
    %3658 = vdwg.mxu0
    %v3659 = vmul.f32 %v3651, %v37
    %v3660 = vmul.f32 %v3656, %v38
    %v3661 = vsel %vm166, %v3550, 0
    %v3663 = vsel %vm166, %v3556, 0
    %3665 = vmatprep.subr.mxu0 0.0
    %3666 = vmatpush1.xpose.msra.mxu0 0.0
    %3667 = vmatprep.subr.mxu0 0.0
    %3668 = vmatpush1.xpose.msra.mxu0 0.0
    %3669 = vmatprep.subr.mxu0 0.0
    %3670 = vmatpush1.xpose.msra.mxu0 0.0
    %3671 = vmatprep.subr.mxu0 0.0
    %3672 = vmatpush1.xpose.msra.mxu0 0.0
    %3673 = vmatprep.subr.mxu0 0.0
    %3674 = vmatpush1.xpose.msra.mxu0 0.0
    %3675 = vmatprep.subr.mxu0 0.0
    %3676 = vmatpush1.xpose.msra.mxu0 0.0
    %3677 = vmatprep.subr.mxu0 0.0
    %3678 = vmatpush1.xpose.msra.mxu0 0.0
    %3679 = vmatprep.subr.mxu0 0.0
    %3680 = vmatpush1.xpose.msra.mxu0 0.0
    %3681 = vmatprep.subr.mxu0 0.0
    %3682 = vmatpush1.xpose.msra.mxu0 0.0
    %3683 = vmatprep.subr.mxu0 0.0
    %3684 = vmatpush1.xpose.msra.mxu0 0.0
    %3685 = vmatprep.subr.mxu0 0.0
    %3686 = vmatpush1.xpose.msra.mxu0 0.0
    %3687 = vmatprep.subr.mxu0 0.0
    %3688 = vmatpush1.xpose.msra.mxu0 0.0
    %3689 = vmatprep.subr.mxu0 0.0
    %3690 = vmatpush1.xpose.msra.mxu0 0.0
    %3691 = vmatprep.subr.mxu0 0.0
    %3692 = vmatpush1.xpose.msra.mxu0 0.0
    %3693 = vmatprep.subr.mxu0 0.0
    %3694 = vmatpush1.xpose.msra.mxu0 %v3582
    %3695 = vmatprep.subr.mxu0 0.0
    %3696 = vmatpush1.xpose.msra.mxu0 %v3580
    %3697 = vmatprep.subr.mxu0 0.0
    %3698 = vmatpush2.xpose.msra.mxu0 0.0
    %3699 = vmatprep.subr.mxu0 0.0
    %3700 = vmatpush2.xpose.msra.mxu0 0.0
    %3701 = vmatprep.subr.mxu0 0.0
    %3702 = vmatpush2.xpose.msra.mxu0 0.0
    %3703 = vmatprep.subr.mxu0 0.0
    %3704 = vmatpush2.xpose.msra.mxu0 0.0
    %3705 = vmatprep.subr.mxu0 0.0
    %3706 = vmatpush2.xpose.msra.mxu0 0.0
    %3707 = vmatprep.subr.mxu0 0.0
    %3708 = vmatpush2.xpose.msra.mxu0 0.0
    %3709 = vmatprep.subr.mxu0 0.0
    %3710 = vmatpush2.xpose.msra.mxu0 0.0
    %3711 = vmatprep.subr.mxu0 0.0
    %3712 = vmatpush2.xpose.msra.mxu0 0.0
    %3713 = vmatprep.subr.mxu0 0.0
    %3714 = vmatpush2.xpose.msra.mxu0 0.0
    %3715 = vmatprep.subr.mxu0 0.0
    %3716 = vmatpush2.xpose.msra.mxu0 0.0
    %3717 = vmatprep.subr.mxu0 0.0
    %3718 = vmatpush2.xpose.msra.mxu0 0.0
    %3719 = vmatprep.subr.mxu0 0.0
    %3720 = vmatpush2.xpose.msra.mxu0 0.0
    %3721 = vmatprep.subr.mxu0 0.0
    %3722 = vmatpush2.xpose.msra.mxu0 0.0
    %3723 = vmatprep.subr.mxu0 0.0
    %3724 = vmatpush2.xpose.msra.mxu0 0.0
    %3725 = vmatprep.subr.mxu0 0.0
    %3726 = vmatpush2.xpose.msra.mxu0 0.0
    %3727 = vmatprep.subr.mxu0 0.0
    %3728 = vmatpush2.xpose.msra.mxu0 0.0
    %3729 = vmatprep.mubr.f32.mxu0 0.0
    %3730 = vmatmul.mubr.f32.gmra.mxu0 %v3661
    %v3731 = vpop.f32.mrf.mxu0
    %v3732 = vadd.f32 %v3659, %v3731
    %v3733 = vpop.f32.mrf.mxu0
    %3734 = vmatprep.mubr.f32.mxu0 0.0
    %3735 = vmatmul.mubr.f32.gmra.mxu0 %v3663
    %v3736 = vpop.f32.mrf.mxu0
    %v3737 = vadd.f32 %v3660, %v3736
    %v3738 = vpop.f32.mrf.mxu0
    %3739 = vdwg.mxu0
    %v3740 = vld [vmem:[%s3560 + $0x9] sm:$0x1]
    %v3741 = vlaneseq
    %v3742 = vshrl.u32 %v3741, 7
    %v3743 = vsub.s32 0, %v3742
    %v3744 = vrot.slane %v3740, %v3743
    %3745 = vrot.lane.b32.xlu0 %v3550, 96
    %v3746 = vpop.permute.xlu0 %3745
    %3747 = vrot.lane.b32.xlu0 %v3556, 96
    %v3748 = vpop.permute.xlu0 %3747
    %v3749 = vsel %vm166, %v3746, 0
    %v3751 = vsel %vm166, %v3748, 0
    %3753 = vmatprep.subr.mxu0 0.0
    %3754 = vmatpush1.xpose.msra.mxu0 0.0
    %3755 = vmatprep.subr.mxu0 0.0
    %3756 = vmatpush1.xpose.msra.mxu0 0.0
    %3757 = vmatprep.subr.mxu0 0.0
    %3758 = vmatpush1.xpose.msra.mxu0 0.0
    %3759 = vmatprep.subr.mxu0 0.0
    %3760 = vmatpush1.xpose.msra.mxu0 0.0
    %3761 = vmatprep.subr.mxu0 0.0
    %3762 = vmatpush1.xpose.msra.mxu0 0.0
    %3763 = vmatprep.subr.mxu0 0.0
    %3764 = vmatpush1.xpose.msra.mxu0 0.0
    %3765 = vmatprep.subr.mxu0 0.0
    %3766 = vmatpush1.xpose.msra.mxu0 0.0
    %3767 = vmatprep.subr.mxu0 0.0
    %3768 = vmatpush1.xpose.msra.mxu0 0.0
    %3769 = vmatprep.subr.mxu0 0.0
    %3770 = vmatpush1.xpose.msra.mxu0 0.0
    %3771 = vmatprep.subr.mxu0 0.0
    %3772 = vmatpush1.xpose.msra.mxu0 0.0
    %3773 = vmatprep.subr.mxu0 0.0
    %3774 = vmatpush1.xpose.msra.mxu0 0.0
    %3775 = vmatprep.subr.mxu0 0.0
    %3776 = vmatpush1.xpose.msra.mxu0 0.0
    %3777 = vmatprep.subr.mxu0 0.0
    %3778 = vmatpush1.xpose.msra.mxu0 0.0
    %3779 = vmatprep.subr.mxu0 0.0
    %3780 = vmatpush1.xpose.msra.mxu0 0.0
    %3781 = vmatprep.subr.mxu0 0.0
    %3782 = vmatpush1.xpose.msra.mxu0 %v3582
    %3783 = vmatprep.subr.mxu0 0.0
    %3784 = vmatpush1.xpose.msra.mxu0 %v3580
    %3785 = vmatprep.subr.mxu0 0.0
    %3786 = vmatpush2.xpose.msra.mxu0 0.0
    %3787 = vmatprep.subr.mxu0 0.0
    %3788 = vmatpush2.xpose.msra.mxu0 0.0
    %3789 = vmatprep.subr.mxu0 0.0
    %3790 = vmatpush2.xpose.msra.mxu0 0.0
    %3791 = vmatprep.subr.mxu0 0.0
    %3792 = vmatpush2.xpose.msra.mxu0 0.0
    %3793 = vmatprep.subr.mxu0 0.0
    %3794 = vmatpush2.xpose.msra.mxu0 0.0
    %3795 = vmatprep.subr.mxu0 0.0
    %3796 = vmatpush2.xpose.msra.mxu0 0.0
    %3797 = vmatprep.subr.mxu0 0.0
    %3798 = vmatpush2.xpose.msra.mxu0 0.0
    %3799 = vmatprep.subr.mxu0 0.0
    %3800 = vmatpush2.xpose.msra.mxu0 0.0
    %3801 = vmatprep.subr.mxu0 0.0
    %3802 = vmatpush2.xpose.msra.mxu0 0.0
    %3803 = vmatprep.subr.mxu0 0.0
    %3804 = vmatpush2.xpose.msra.mxu0 0.0
    %3805 = vmatprep.subr.mxu0 0.0
    %3806 = vmatpush2.xpose.msra.mxu0 0.0
    %3807 = vmatprep.subr.mxu0 0.0
    %3808 = vmatpush2.xpose.msra.mxu0 0.0
    %3809 = vmatprep.subr.mxu0 0.0
    %3810 = vmatpush2.xpose.msra.mxu0 0.0
    %3811 = vmatprep.subr.mxu0 0.0
    %3812 = vmatpush2.xpose.msra.mxu0 0.0
    %3813 = vmatprep.subr.mxu0 0.0
    %3814 = vmatpush2.xpose.msra.mxu0 0.0
    %3815 = vmatprep.subr.mxu0 0.0
    %3816 = vmatpush2.xpose.msra.mxu0 0.0
    %3817 = vmatprep.mubr.f32.mxu0 0.0
    %3818 = vmatmul.mubr.f32.gmra.mxu0 %v3749
    %v3819 = vpop.f32.mrf.mxu0
    %v3820 = vadd.f32 %v3744, %v3819
    %v3821 = vpop.f32.mrf.mxu0
    %3822 = vmatprep.mubr.f32.mxu0 0.0
    %3823 = vmatmul.mubr.f32.gmra.mxu0 %v3751
    %v3824 = vpop.f32.mrf.mxu0
    %v3825 = vadd.f32 %v3744, %v3824
    %v3826 = vpop.f32.mrf.mxu0
    %3827 = vdwg.mxu0
    %v3828 = vmul.f32 %v3820, %v39
    %v3829 = vmul.f32 %v3825, %v40
    %v3830 = vadd.f32 %v3732, %v3828
    %v3831 = vadd.f32 %v3737, %v3829
    %v3832 = vld [vmem:[%s3560 + $0xa] sm:$0x1]
    %v3833 = vlaneseq
    %v3834 = vshrl.u32 %v3833, 7
    %v3835 = vsub.s32 0, %v3834
    %v3836 = vrot.slane %v3832, %v3835
    %3837 = vrot.lane.b32.xlu0 %v3550, 88
    %v3838 = vpop.permute.xlu0 %3837
    %3839 = vrot.lane.b32.xlu0 %v3556, 88
    %v3840 = vpop.permute.xlu0 %3839
    %v3841 = vsel %vm166, %v3838, 0
    %v3843 = vsel %vm166, %v3840, 0
    %3845 = vmatprep.subr.mxu0 0.0
    %3846 = vmatpush1.xpose.msra.mxu0 0.0
    %3847 = vmatprep.subr.mxu0 0.0
    %3848 = vmatpush1.xpose.msra.mxu0 0.0
    %3849 = vmatprep.subr.mxu0 0.0
    %3850 = vmatpush1.xpose.msra.mxu0 0.0
    %3851 = vmatprep.subr.mxu0 0.0
    %3852 = vmatpush1.xpose.msra.mxu0 0.0
    %3853 = vmatprep.subr.mxu0 0.0
    %3854 = vmatpush1.xpose.msra.mxu0 0.0
    %3855 = vmatprep.subr.mxu0 0.0
    %3856 = vmatpush1.xpose.msra.mxu0 0.0
    %3857 = vmatprep.subr.mxu0 0.0
    %3858 = vmatpush1.xpose.msra.mxu0 0.0
    %3859 = vmatprep.subr.mxu0 0.0
    %3860 = vmatpush1.xpose.msra.mxu0 0.0
    %3861 = vmatprep.subr.mxu0 0.0
    %3862 = vmatpush1.xpose.msra.mxu0 0.0
    %3863 = vmatprep.subr.mxu0 0.0
    %3864 = vmatpush1.xpose.msra.mxu0 0.0
    %3865 = vmatprep.subr.mxu0 0.0
    %3866 = vmatpush1.xpose.msra.mxu0 0.0
    %3867 = vmatprep.subr.mxu0 0.0
    %3868 = vmatpush1.xpose.msra.mxu0 0.0
    %3869 = vmatprep.subr.mxu0 0.0
    %3870 = vmatpush1.xpose.msra.mxu0 0.0
    %3871 = vmatprep.subr.mxu0 0.0
    %3872 = vmatpush1.xpose.msra.mxu0 0.0
    %3873 = vmatprep.subr.mxu0 0.0
    %3874 = vmatpush1.xpose.msra.mxu0 %v3582
    %3875 = vmatprep.subr.mxu0 0.0
    %3876 = vmatpush1.xpose.msra.mxu0 %v3580
    %3877 = vmatprep.subr.mxu0 0.0
    %3878 = vmatpush2.xpose.msra.mxu0 0.0
    %3879 = vmatprep.subr.mxu0 0.0
    %3880 = vmatpush2.xpose.msra.mxu0 0.0
    %3881 = vmatprep.subr.mxu0 0.0
    %3882 = vmatpush2.xpose.msra.mxu0 0.0
    %3883 = vmatprep.subr.mxu0 0.0
    %3884 = vmatpush2.xpose.msra.mxu0 0.0
    %3885 = vmatprep.subr.mxu0 0.0
    %3886 = vmatpush2.xpose.msra.mxu0 0.0
    %3887 = vmatprep.subr.mxu0 0.0
    %3888 = vmatpush2.xpose.msra.mxu0 0.0
    %3889 = vmatprep.subr.mxu0 0.0
    %3890 = vmatpush2.xpose.msra.mxu0 0.0
    %3891 = vmatprep.subr.mxu0 0.0
    %3892 = vmatpush2.xpose.msra.mxu0 0.0
    %3893 = vmatprep.subr.mxu0 0.0
    %3894 = vmatpush2.xpose.msra.mxu0 0.0
    %3895 = vmatprep.subr.mxu0 0.0
    %3896 = vmatpush2.xpose.msra.mxu0 0.0
    %3897 = vmatprep.subr.mxu0 0.0
    %3898 = vmatpush2.xpose.msra.mxu0 0.0
    %3899 = vmatprep.subr.mxu0 0.0
    %3900 = vmatpush2.xpose.msra.mxu0 0.0
    %3901 = vmatprep.subr.mxu0 0.0
    %3902 = vmatpush2.xpose.msra.mxu0 0.0
    %3903 = vmatprep.subr.mxu0 0.0
    %3904 = vmatpush2.xpose.msra.mxu0 0.0
    %3905 = vmatprep.subr.mxu0 0.0
    %3906 = vmatpush2.xpose.msra.mxu0 0.0
    %3907 = vmatprep.subr.mxu0 0.0
    %3908 = vmatpush2.xpose.msra.mxu0 0.0
    %3909 = vmatprep.mubr.f32.mxu0 0.0
    %3910 = vmatmul.mubr.f32.gmra.mxu0 %v3841
    %v3911 = vpop.f32.mrf.mxu0
    %v3912 = vadd.f32 %v3836, %v3911
    %v3913 = vpop.f32.mrf.mxu0
    %3914 = vmatprep.mubr.f32.mxu0 0.0
    %3915 = vmatmul.mubr.f32.gmra.mxu0 %v3843
    %v3916 = vpop.f32.mrf.mxu0
    %v3917 = vadd.f32 %v3836, %v3916
    %v3918 = vpop.f32.mrf.mxu0
    %3919 = vdwg.mxu0
    %v3920 = vmul.f32 %v3912, %v41
    %v3921 = vmul.f32 %v3917, %v42
    %v3922 = vadd.f32 %v3830, %v3920
    %v3923 = vadd.f32 %v3831, %v3921
    %v3924 = vld [vmem:[%s3560 + $0xb] sm:$0x1]
    %v3925 = vlaneseq
    %v3926 = vshrl.u32 %v3925, 7
    %v3927 = vsub.s32 0, %v3926
    %v3928 = vrot.slane %v3924, %v3927
    %3929 = vrot.lane.b32.xlu0 %v3550, 80
    %v3930 = vpop.permute.xlu0 %3929
    %3931 = vrot.lane.b32.xlu0 %v3556, 80
    %v3932 = vpop.permute.xlu0 %3931
    %v3933 = vsel %vm166, %v3930, 0
    %v3935 = vsel %vm166, %v3932, 0
    %3937 = vmatprep.subr.mxu0 0.0
    %3938 = vmatpush1.xpose.msra.mxu0 0.0
    %3939 = vmatprep.subr.mxu0 0.0
    %3940 = vmatpush1.xpose.msra.mxu0 0.0
    %3941 = vmatprep.subr.mxu0 0.0
    %3942 = vmatpush1.xpose.msra.mxu0 0.0
    %3943 = vmatprep.subr.mxu0 0.0
    %3944 = vmatpush1.xpose.msra.mxu0 0.0
    %3945 = vmatprep.subr.mxu0 0.0
    %3946 = vmatpush1.xpose.msra.mxu0 0.0
    %3947 = vmatprep.subr.mxu0 0.0
    %3948 = vmatpush1.xpose.msra.mxu0 0.0
    %3949 = vmatprep.subr.mxu0 0.0
    %3950 = vmatpush1.xpose.msra.mxu0 0.0
    %3951 = vmatprep.subr.mxu0 0.0
    %3952 = vmatpush1.xpose.msra.mxu0 0.0
    %3953 = vmatprep.subr.mxu0 0.0
    %3954 = vmatpush1.xpose.msra.mxu0 0.0
    %3955 = vmatprep.subr.mxu0 0.0
    %3956 = vmatpush1.xpose.msra.mxu0 0.0
    %3957 = vmatprep.subr.mxu0 0.0
    %3958 = vmatpush1.xpose.msra.mxu0 0.0
    %3959 = vmatprep.subr.mxu0 0.0
    %3960 = vmatpush1.xpose.msra.mxu0 0.0
    %3961 = vmatprep.subr.mxu0 0.0
    %3962 = vmatpush1.xpose.msra.mxu0 0.0
    %3963 = vmatprep.subr.mxu0 0.0
    %3964 = vmatpush1.xpose.msra.mxu0 0.0
    %3965 = vmatprep.subr.mxu0 0.0
    %3966 = vmatpush1.xpose.msra.mxu0 %v3582
    %3967 = vmatprep.subr.mxu0 0.0
    %3968 = vmatpush1.xpose.msra.mxu0 %v3580
    %3969 = vmatprep.subr.mxu0 0.0
    %3970 = vmatpush2.xpose.msra.mxu0 0.0
    %3971 = vmatprep.subr.mxu0 0.0
    %3972 = vmatpush2.xpose.msra.mxu0 0.0
    %3973 = vmatprep.subr.mxu0 0.0
    %3974 = vmatpush2.xpose.msra.mxu0 0.0
    %3975 = vmatprep.subr.mxu0 0.0
    %3976 = vmatpush2.xpose.msra.mxu0 0.0
    %3977 = vmatprep.subr.mxu0 0.0
    %3978 = vmatpush2.xpose.msra.mxu0 0.0
    %3979 = vmatprep.subr.mxu0 0.0
    %3980 = vmatpush2.xpose.msra.mxu0 0.0
    %3981 = vmatprep.subr.mxu0 0.0
    %3982 = vmatpush2.xpose.msra.mxu0 0.0
    %3983 = vmatprep.subr.mxu0 0.0
    %3984 = vmatpush2.xpose.msra.mxu0 0.0
    %3985 = vmatprep.subr.mxu0 0.0
    %3986 = vmatpush2.xpose.msra.mxu0 0.0
    %3987 = vmatprep.subr.mxu0 0.0
    %3988 = vmatpush2.xpose.msra.mxu0 0.0
    %3989 = vmatprep.subr.mxu0 0.0
    %3990 = vmatpush2.xpose.msra.mxu0 0.0
    %3991 = vmatprep.subr.mxu0 0.0
    %3992 = vmatpush2.xpose.msra.mxu0 0.0
    %3993 = vmatprep.subr.mxu0 0.0
    %3994 = vmatpush2.xpose.msra.mxu0 0.0
    %3995 = vmatprep.subr.mxu0 0.0
    %3996 = vmatpush2.xpose.msra.mxu0 0.0
    %3997 = vmatprep.subr.mxu0 0.0
    %3998 = vmatpush2.xpose.msra.mxu0 0.0
    %3999 = vmatprep.subr.mxu0 0.0
    %4000 = vmatpush2.xpose.msra.mxu0 0.0
    %4001 = vmatprep.mubr.f32.mxu0 0.0
    %4002 = vmatmul.mubr.f32.gmra.mxu0 %v3933
    %v4003 = vpop.f32.mrf.mxu0
    %v4004 = vadd.f32 %v3928, %v4003
    %v4005 = vpop.f32.mrf.mxu0
    %4006 = vmatprep.mubr.f32.mxu0 0.0
    %4007 = vmatmul.mubr.f32.gmra.mxu0 %v3935
    %v4008 = vpop.f32.mrf.mxu0
    %v4009 = vadd.f32 %v3928, %v4008
    %v4010 = vpop.f32.mrf.mxu0
    %4011 = vdwg.mxu0
    %v4012 = vmul.f32 %v4004, %v43
    %v4013 = vmul.f32 %v4009, %v44
    %v4014 = vadd.f32 %v3922, %v4012
    %v4015 = vadd.f32 %v3923, %v4013
    %v4016 = vld [vmem:[%s3560 + $0xc] sm:$0x1]
    %v4017 = vlaneseq
    %v4018 = vshrl.u32 %v4017, 7
    %v4019 = vsub.s32 0, %v4018
    %v4020 = vrot.slane %v4016, %v4019
    %4021 = vrot.lane.b32.xlu0 %v3550, 72
    %v4022 = vpop.permute.xlu0 %4021
    %4023 = vrot.lane.b32.xlu0 %v3556, 72
    %v4024 = vpop.permute.xlu0 %4023
    %v4025 = vsel %vm166, %v4022, 0
    %v4027 = vsel %vm166, %v4024, 0
    %4029 = vmatprep.subr.mxu0 0.0
    %4030 = vmatpush1.xpose.msra.mxu0 0.0
    %4031 = vmatprep.subr.mxu0 0.0
    %4032 = vmatpush1.xpose.msra.mxu0 0.0
    %4033 = vmatprep.subr.mxu0 0.0
    %4034 = vmatpush1.xpose.msra.mxu0 0.0
    %4035 = vmatprep.subr.mxu0 0.0
    %4036 = vmatpush1.xpose.msra.mxu0 0.0
    %4037 = vmatprep.subr.mxu0 0.0
    %4038 = vmatpush1.xpose.msra.mxu0 0.0
    %4039 = vmatprep.subr.mxu0 0.0
    %4040 = vmatpush1.xpose.msra.mxu0 0.0
    %4041 = vmatprep.subr.mxu0 0.0
    %4042 = vmatpush1.xpose.msra.mxu0 0.0
    %4043 = vmatprep.subr.mxu0 0.0
    %4044 = vmatpush1.xpose.msra.mxu0 0.0
    %4045 = vmatprep.subr.mxu0 0.0
    %4046 = vmatpush1.xpose.msra.mxu0 0.0
    %4047 = vmatprep.subr.mxu0 0.0
    %4048 = vmatpush1.xpose.msra.mxu0 0.0
    %4049 = vmatprep.subr.mxu0 0.0
    %4050 = vmatpush1.xpose.msra.mxu0 0.0
    %4051 = vmatprep.subr.mxu0 0.0
    %4052 = vmatpush1.xpose.msra.mxu0 0.0
    %4053 = vmatprep.subr.mxu0 0.0
    %4054 = vmatpush1.xpose.msra.mxu0 0.0
    %4055 = vmatprep.subr.mxu0 0.0
    %4056 = vmatpush1.xpose.msra.mxu0 0.0
    %4057 = vmatprep.subr.mxu0 0.0
    %4058 = vmatpush1.xpose.msra.mxu0 %v3582
    %4059 = vmatprep.subr.mxu0 0.0
    %4060 = vmatpush1.xpose.msra.mxu0 %v3580
    %4061 = vmatprep.subr.mxu0 0.0
    %4062 = vmatpush2.xpose.msra.mxu0 0.0
    %4063 = vmatprep.subr.mxu0 0.0
    %4064 = vmatpush2.xpose.msra.mxu0 0.0
    %4065 = vmatprep.subr.mxu0 0.0
    %4066 = vmatpush2.xpose.msra.mxu0 0.0
    %4067 = vmatprep.subr.mxu0 0.0
    %4068 = vmatpush2.xpose.msra.mxu0 0.0
    %4069 = vmatprep.subr.mxu0 0.0
    %4070 = vmatpush2.xpose.msra.mxu0 0.0
    %4071 = vmatprep.subr.mxu0 0.0
    %4072 = vmatpush2.xpose.msra.mxu0 0.0
    %4073 = vmatprep.subr.mxu0 0.0
    %4074 = vmatpush2.xpose.msra.mxu0 0.0
    %4075 = vmatprep.subr.mxu0 0.0
    %4076 = vmatpush2.xpose.msra.mxu0 0.0
    %4077 = vmatprep.subr.mxu0 0.0
    %4078 = vmatpush2.xpose.msra.mxu0 0.0
    %4079 = vmatprep.subr.mxu0 0.0
    %4080 = vmatpush2.xpose.msra.mxu0 0.0
    %4081 = vmatprep.subr.mxu0 0.0
    %4082 = vmatpush2.xpose.msra.mxu0 0.0
    %4083 = vmatprep.subr.mxu0 0.0
    %4084 = vmatpush2.xpose.msra.mxu0 0.0
    %4085 = vmatprep.subr.mxu0 0.0
    %4086 = vmatpush2.xpose.msra.mxu0 0.0
    %4087 = vmatprep.subr.mxu0 0.0
    %4088 = vmatpush2.xpose.msra.mxu0 0.0
    %4089 = vmatprep.subr.mxu0 0.0
    %4090 = vmatpush2.xpose.msra.mxu0 0.0
    %4091 = vmatprep.subr.mxu0 0.0
    %4092 = vmatpush2.xpose.msra.mxu0 0.0
    %4093 = vmatprep.mubr.f32.mxu0 0.0
    %4094 = vmatmul.mubr.f32.gmra.mxu0 %v4025
    %v4095 = vpop.f32.mrf.mxu0
    %v4096 = vadd.f32 %v4020, %v4095
    %v4097 = vpop.f32.mrf.mxu0
    %4098 = vmatprep.mubr.f32.mxu0 0.0
    %4099 = vmatmul.mubr.f32.gmra.mxu0 %v4027
    %v4100 = vpop.f32.mrf.mxu0
    %v4101 = vadd.f32 %v4020, %v4100
    %v4102 = vpop.f32.mrf.mxu0
    %4103 = vdwg.mxu0
    %v4104 = vmul.f32 %v4096, %v45
    %v4105 = vmul.f32 %v4101, %v46
    %v4106 = vadd.f32 %v4014, %v4104
    %v4107 = vadd.f32 %v4015, %v4105
    %v4108 = vmul.f32 %v4106, 0.35355338
    %v4109 = vmul.f32 %v4107, 0.35355338
    %v4110 = vadd.f32 %v4108, %v35
    %v4111 = vadd.f32 %v4109, %v36
    %v4112 = vsel %vm703, %v4110, -inf
    %4113 = vmax.xlane.f32.xlu0 %v4112
    %v4114 = vpop.xlane.xlu0 %4113
    %v4115 = vsel %vm703, %v4111, -inf
    %4116 = vmax.xlane.f32.xlu0 %v4115
    %v4117 = vpop.xlane.xlu0 %4116
    %v4118 = vsub.f32 %v4110, %v4114
    %v4119 = vsub.f32 %v4111, %v4117
    %v4120 = vmul.f32 %v4118, 1.442695
    %v4121 = vpow.pop %v4120
    %v4122 = vmul.f32 %v4119, 1.442695
    %v4123 = vpow.pop %v4122
    %v4124 = vsel %vm703, %v4121, 0.0
    %4125 = vadd.xlane.f32.xlu0 %v4124
    %v4126 = vpop.xlane.xlu0 %4125
    %v4127 = vsel %vm703, %v4123, 0.0
    %4128 = vadd.xlane.f32.xlu0 %v4127
    %v4129 = vpop.xlane.xlu0 %4128
    %v4130 = vrcp.pop %v4126
    %v4131 = vmul.f32 %v4121, %v4130
    %v4132 = vrcp.pop %v4129
    %v4133 = vmul.f32 %v4123, %v4132
    %4134 = vrot.lane.b32.xlu0 %v3550, 112
    %v4135 = vpop.permute.xlu0 %4134
    %4136 = vrot.lane.b32.xlu0 %v3556, 112
    %v4137 = vpop.permute.xlu0 %4136
    %v4141 = vsel %vm703, %v4131, 0
    %v4144 = vsel %vm703, %v4133, 0
    %4146 = vmatprep.subr.mxu0 0.0
    %4147 = vmatpush1.msra.mxu0 0.0
    %4148 = vmatprep.subr.mxu0 0.0
    %4149 = vmatpush1.msra.mxu0 0.0
    %4150 = vmatprep.subr.mxu0 0.0
    %4151 = vmatpush1.msra.mxu0 0.0
    %4152 = vmatprep.subr.mxu0 0.0
    %4153 = vmatpush1.msra.mxu0 0.0
    %4154 = vmatprep.subr.mxu0 0.0
    %4155 = vmatpush1.msra.mxu0 0.0
    %4156 = vmatprep.subr.mxu0 0.0
    %4157 = vmatpush1.msra.mxu0 0.0
    %4158 = vmatprep.subr.mxu0 0.0
    %4159 = vmatpush1.msra.mxu0 0.0
    %4160 = vmatprep.subr.mxu0 0.0
    %4161 = vmatpush1.msra.mxu0 0.0
    %4162 = vmatprep.subr.mxu0 0.0
    %4163 = vmatpush1.msra.mxu0 0.0
    %4164 = vmatprep.subr.mxu0 0.0
    %4165 = vmatpush1.msra.mxu0 0.0
    %4166 = vmatprep.subr.mxu0 0.0
    %4167 = vmatpush1.msra.mxu0 0.0
    %4168 = vmatprep.subr.mxu0 0.0
    %4169 = vmatpush1.msra.mxu0 0.0
    %4170 = vmatprep.subr.mxu0 0.0
    %4171 = vmatpush1.msra.mxu0 0.0
    %4172 = vmatprep.subr.mxu0 0.0
    %4173 = vmatpush1.msra.mxu0 0.0
    %4174 = vmatprep.subr.mxu0 0.0
    %4175 = vmatpush1.msra.mxu0 %v4137
    %4176 = vmatprep.subr.mxu0 0.0
    %4177 = vmatpush1.msra.mxu0 %v4135
    %4178 = vmatprep.subr.mxu0 0.0
    %4179 = vmatpush2.msra.mxu0 0.0
    %4180 = vmatprep.subr.mxu0 0.0
    %4181 = vmatpush2.msra.mxu0 0.0
    %4182 = vmatprep.subr.mxu0 0.0
    %4183 = vmatpush2.msra.mxu0 0.0
    %4184 = vmatprep.subr.mxu0 0.0
    %4185 = vmatpush2.msra.mxu0 0.0
    %4186 = vmatprep.subr.mxu0 0.0
    %4187 = vmatpush2.msra.mxu0 0.0
    %4188 = vmatprep.subr.mxu0 0.0
    %4189 = vmatpush2.msra.mxu0 0.0
    %4190 = vmatprep.subr.mxu0 0.0
    %4191 = vmatpush2.msra.mxu0 0.0
    %4192 = vmatprep.subr.mxu0 0.0
    %4193 = vmatpush2.msra.mxu0 0.0
    %4194 = vmatprep.subr.mxu0 0.0
    %4195 = vmatpush2.msra.mxu0 0.0
    %4196 = vmatprep.subr.mxu0 0.0
    %4197 = vmatpush2.msra.mxu0 0.0
    %4198 = vmatprep.subr.mxu0 0.0
    %4199 = vmatpush2.msra.mxu0 0.0
    %4200 = vmatprep.subr.mxu0 0.0
    %4201 = vmatpush2.msra.mxu0 0.0
    %4202 = vmatprep.subr.mxu0 0.0
    %4203 = vmatpush2.msra.mxu0 0.0
    %4204 = vmatprep.subr.mxu0 0.0
    %4205 = vmatpush2.msra.mxu0 0.0
    %4206 = vmatprep.subr.mxu0 0.0
    %4207 = vmatpush2.msra.mxu0 0.0
    %4208 = vmatprep.subr.mxu0 0.0
    %4209 = vmatpush2.msra.mxu0 0.0
    %4210 = vmatprep.mubr.f32.mxu0 0.0
    %4211 = vmatmul.mubr.f32.gmra.mxu0 %v4141
    %v4212 = vpop.f32.mrf.mxu0
    %v4213 = vadd.f32 0.0, %v4212
    %v4214 = vpop.f32.mrf.mxu0
    %4215 = vmatprep.mubr.f32.mxu0 0.0
    %4216 = vmatmul.mubr.f32.gmra.mxu0 %v4144
    %v4217 = vpop.f32.mrf.mxu0
    %v4218 = vadd.f32 0.0, %v4217
    %v4219 = vpop.f32.mrf.mxu0
    %4220 = vdwg.mxu0
    %s4221 = scalar_lea.vmem %s5, 32
    %v4222 = vld [vmem:[%s4221] sm:$0xff]
    %v4223 = vld [vmem:[%s3560 + $0xd] sm:$0x1]
    %v4224 = vlaneseq
    %v4225 = vshrl.u32 %v4224, 7
    %v4226 = vsub.s32 0, %v4225
    %v4227 = vrot.slane %v4223, %v4226
    %4228 = vrot.lane.b32.xlu0 %v3550, 40
    %v4229 = vpop.permute.xlu0 %4228
    %4230 = vrot.lane.b32.xlu0 %v3556, 40
    %v4231 = vpop.permute.xlu0 %4230
    %4232 = vrot.lane.b32.xlu0 %v3550, 56
    %v4233 = vpop.permute.xlu0 %4232
    %4234 = vrot.lane.b32.xlu0 %v3556, 56
    %v4235 = vpop.permute.xlu0 %4234
    %v4236 = vsel %vm166, %v4229, 0
    %v4238 = vsel %vm166, %v4231, 0
    %v4240 = vsel %vm166, %v4233, 0
    %v4242 = vsel %vm166, %v4235, 0
    %4244 = vmatprep.subr.mxu0 0.0
    %4245 = vmatpush1.xpose.msra.mxu0 0.0
    %4246 = vmatprep.subr.mxu0 0.0
    %4247 = vmatpush1.xpose.msra.mxu0 0.0
    %4248 = vmatprep.subr.mxu0 0.0
    %4249 = vmatpush1.xpose.msra.mxu0 0.0
    %4250 = vmatprep.subr.mxu0 0.0
    %4251 = vmatpush1.xpose.msra.mxu0 0.0
    %4252 = vmatprep.subr.mxu0 0.0
    %4253 = vmatpush1.xpose.msra.mxu0 0.0
    %4254 = vmatprep.subr.mxu0 0.0
    %4255 = vmatpush1.xpose.msra.mxu0 0.0
    %4256 = vmatprep.subr.mxu0 0.0
    %4257 = vmatpush1.xpose.msra.mxu0 0.0
    %4258 = vmatprep.subr.mxu0 0.0
    %4259 = vmatpush1.xpose.msra.mxu0 0.0
    %4260 = vmatprep.subr.mxu0 0.0
    %4261 = vmatpush1.xpose.msra.mxu0 0.0
    %4262 = vmatprep.subr.mxu0 0.0
    %4263 = vmatpush1.xpose.msra.mxu0 0.0
    %4264 = vmatprep.subr.mxu0 0.0
    %4265 = vmatpush1.xpose.msra.mxu0 0.0
    %4266 = vmatprep.subr.mxu0 0.0
    %4267 = vmatpush1.xpose.msra.mxu0 0.0
    %4268 = vmatprep.subr.mxu0 0.0
    %4269 = vmatpush1.xpose.msra.mxu0 0.0
    %4270 = vmatprep.subr.mxu0 0.0
    %4271 = vmatpush1.xpose.msra.mxu0 0.0
    %4272 = vmatprep.subr.mxu0 0.0
    %4273 = vmatpush1.xpose.msra.mxu0 %v4242
    %4274 = vmatprep.subr.mxu0 0.0
    %4275 = vmatpush1.xpose.msra.mxu0 %v4240
    %4276 = vmatprep.subr.mxu0 0.0
    %4277 = vmatpush2.xpose.msra.mxu0 0.0
    %4278 = vmatprep.subr.mxu0 0.0
    %4279 = vmatpush2.xpose.msra.mxu0 0.0
    %4280 = vmatprep.subr.mxu0 0.0
    %4281 = vmatpush2.xpose.msra.mxu0 0.0
    %4282 = vmatprep.subr.mxu0 0.0
    %4283 = vmatpush2.xpose.msra.mxu0 0.0
    %4284 = vmatprep.subr.mxu0 0.0
    %4285 = vmatpush2.xpose.msra.mxu0 0.0
    %4286 = vmatprep.subr.mxu0 0.0
    %4287 = vmatpush2.xpose.msra.mxu0 0.0
    %4288 = vmatprep.subr.mxu0 0.0
    %4289 = vmatpush2.xpose.msra.mxu0 0.0
    %4290 = vmatprep.subr.mxu0 0.0
    %4291 = vmatpush2.xpose.msra.mxu0 0.0
    %4292 = vmatprep.subr.mxu0 0.0
    %4293 = vmatpush2.xpose.msra.mxu0 0.0
    %4294 = vmatprep.subr.mxu0 0.0
    %4295 = vmatpush2.xpose.msra.mxu0 0.0
    %4296 = vmatprep.subr.mxu0 0.0
    %4297 = vmatpush2.xpose.msra.mxu0 0.0
    %4298 = vmatprep.subr.mxu0 0.0
    %4299 = vmatpush2.xpose.msra.mxu0 0.0
    %4300 = vmatprep.subr.mxu0 0.0
    %4301 = vmatpush2.xpose.msra.mxu0 0.0
    %4302 = vmatprep.subr.mxu0 0.0
    %4303 = vmatpush2.xpose.msra.mxu0 0.0
    %4304 = vmatprep.subr.mxu0 0.0
    %4305 = vmatpush2.xpose.msra.mxu0 0.0
    %4306 = vmatprep.subr.mxu0 0.0
    %4307 = vmatpush2.xpose.msra.mxu0 0.0
    %4308 = vmatprep.mubr.f32.mxu0 0.0
    %4309 = vmatmul.mubr.f32.gmra.mxu0 %v4236
    %v4310 = vpop.f32.mrf.mxu0
    %v4311 = vadd.f32 %v4227, %v4310
    %v4312 = vpop.f32.mrf.mxu0
    %4313 = vmatprep.mubr.f32.mxu0 0.0
    %4314 = vmatmul.mubr.f32.gmra.mxu0 %v4238
    %v4315 = vpop.f32.mrf.mxu0
    %v4316 = vadd.f32 %v4227, %v4315
    %v4317 = vpop.f32.mrf.mxu0
    %4318 = vdwg.mxu0
    %v4319 = vmul.f32 %v4311, %v37
    %v4320 = vmul.f32 %v4316, %v38
    %4321 = vrot.lane.b32.xlu0 %v3550, 64
    %v4322 = vpop.permute.xlu0 %4321
    %4323 = vrot.lane.b32.xlu0 %v3556, 64
    %v4324 = vpop.permute.xlu0 %4323
    %v4325 = vsel %vm166, %v4322, 0
    %v4327 = vsel %vm166, %v4324, 0
    %4329 = vmatprep.subr.mxu0 0.0
    %4330 = vmatpush1.xpose.msra.mxu0 0.0
    %4331 = vmatprep.subr.mxu0 0.0
    %4332 = vmatpush1.xpose.msra.mxu0 0.0
    %4333 = vmatprep.subr.mxu0 0.0
    %4334 = vmatpush1.xpose.msra.mxu0 0.0
    %4335 = vmatprep.subr.mxu0 0.0
    %4336 = vmatpush1.xpose.msra.mxu0 0.0
    %4337 = vmatprep.subr.mxu0 0.0
    %4338 = vmatpush1.xpose.msra.mxu0 0.0
    %4339 = vmatprep.subr.mxu0 0.0
    %4340 = vmatpush1.xpose.msra.mxu0 0.0
    %4341 = vmatprep.subr.mxu0 0.0
    %4342 = vmatpush1.xpose.msra.mxu0 0.0
    %4343 = vmatprep.subr.mxu0 0.0
    %4344 = vmatpush1.xpose.msra.mxu0 0.0
    %4345 = vmatprep.subr.mxu0 0.0
    %4346 = vmatpush1.xpose.msra.mxu0 0.0
    %4347 = vmatprep.subr.mxu0 0.0
    %4348 = vmatpush1.xpose.msra.mxu0 0.0
    %4349 = vmatprep.subr.mxu0 0.0
    %4350 = vmatpush1.xpose.msra.mxu0 0.0
    %4351 = vmatprep.subr.mxu0 0.0
    %4352 = vmatpush1.xpose.msra.mxu0 0.0
    %4353 = vmatprep.subr.mxu0 0.0
    %4354 = vmatpush1.xpose.msra.mxu0 0.0
    %4355 = vmatprep.subr.mxu0 0.0
    %4356 = vmatpush1.xpose.msra.mxu0 0.0
    %4357 = vmatprep.subr.mxu0 0.0
    %4358 = vmatpush1.xpose.msra.mxu0 %v4242
    %4359 = vmatprep.subr.mxu0 0.0
    %4360 = vmatpush1.xpose.msra.mxu0 %v4240
    %4361 = vmatprep.subr.mxu0 0.0
    %4362 = vmatpush2.xpose.msra.mxu0 0.0
    %4363 = vmatprep.subr.mxu0 0.0
    %4364 = vmatpush2.xpose.msra.mxu0 0.0
    %4365 = vmatprep.subr.mxu0 0.0
    %4366 = vmatpush2.xpose.msra.mxu0 0.0
    %4367 = vmatprep.subr.mxu0 0.0
    %4368 = vmatpush2.xpose.msra.mxu0 0.0
    %4369 = vmatprep.subr.mxu0 0.0
    %4370 = vmatpush2.xpose.msra.mxu0 0.0
    %4371 = vmatprep.subr.mxu0 0.0
    %4372 = vmatpush2.xpose.msra.mxu0 0.0
    %4373 = vmatprep.subr.mxu0 0.0
    %4374 = vmatpush2.xpose.msra.mxu0 0.0
    %4375 = vmatprep.subr.mxu0 0.0
    %4376 = vmatpush2.xpose.msra.mxu0 0.0
    %4377 = vmatprep.subr.mxu0 0.0
    %4378 = vmatpush2.xpose.msra.mxu0 0.0
    %4379 = vmatprep.subr.mxu0 0.0
    %4380 = vmatpush2.xpose.msra.mxu0 0.0
    %4381 = vmatprep.subr.mxu0 0.0
    %4382 = vmatpush2.xpose.msra.mxu0 0.0
    %4383 = vmatprep.subr.mxu0 0.0
    %4384 = vmatpush2.xpose.msra.mxu0 0.0
    %4385 = vmatprep.subr.mxu0 0.0
    %4386 = vmatpush2.xpose.msra.mxu0 0.0
    %4387 = vmatprep.subr.mxu0 0.0
    %4388 = vmatpush2.xpose.msra.mxu0 0.0
    %4389 = vmatprep.subr.mxu0 0.0
    %4390 = vmatpush2.xpose.msra.mxu0 0.0
    %4391 = vmatprep.subr.mxu0 0.0
    %4392 = vmatpush2.xpose.msra.mxu0 0.0
    %4393 = vmatprep.mubr.f32.mxu0 0.0
    %4394 = vmatmul.mubr.f32.gmra.mxu0 %v4325
    %v4395 = vpop.f32.mrf.mxu0
    %v4396 = vadd.f32 %v4319, %v4395
    %v4397 = vpop.f32.mrf.mxu0
    %4398 = vmatprep.mubr.f32.mxu0 0.0
    %4399 = vmatmul.mubr.f32.gmra.mxu0 %v4327
    %v4400 = vpop.f32.mrf.mxu0
    %v4401 = vadd.f32 %v4320, %v4400
    %v4402 = vpop.f32.mrf.mxu0
    %4403 = vdwg.mxu0
    %v4404 = vld [vmem:[%s3560 + $0xe] sm:$0x1]
    %v4405 = vlaneseq
    %v4406 = vshrl.u32 %v4405, 7
    %v4407 = vsub.s32 0, %v4406
    %v4408 = vrot.slane %v4404, %v4407
    %4409 = vrot.lane.b32.xlu0 %v3550, 32
    %v4410 = vpop.permute.xlu0 %4409
    %4411 = vrot.lane.b32.xlu0 %v3556, 32
    %v4412 = vpop.permute.xlu0 %4411
    %v4413 = vsel %vm166, %v4410, 0
    %v4415 = vsel %vm166, %v4412, 0
    %4417 = vmatprep.subr.mxu0 0.0
    %4418 = vmatpush1.xpose.msra.mxu0 0.0
    %4419 = vmatprep.subr.mxu0 0.0
    %4420 = vmatpush1.xpose.msra.mxu0 0.0
    %4421 = vmatprep.subr.mxu0 0.0
    %4422 = vmatpush1.xpose.msra.mxu0 0.0
    %4423 = vmatprep.subr.mxu0 0.0
    %4424 = vmatpush1.xpose.msra.mxu0 0.0
    %4425 = vmatprep.subr.mxu0 0.0
    %4426 = vmatpush1.xpose.msra.mxu0 0.0
    %4427 = vmatprep.subr.mxu0 0.0
    %4428 = vmatpush1.xpose.msra.mxu0 0.0
    %4429 = vmatprep.subr.mxu0 0.0
    %4430 = vmatpush1.xpose.msra.mxu0 0.0
    %4431 = vmatprep.subr.mxu0 0.0
    %4432 = vmatpush1.xpose.msra.mxu0 0.0
    %4433 = vmatprep.subr.mxu0 0.0
    %4434 = vmatpush1.xpose.msra.mxu0 0.0
    %4435 = vmatprep.subr.mxu0 0.0
    %4436 = vmatpush1.xpose.msra.mxu0 0.0
    %4437 = vmatprep.subr.mxu0 0.0
    %4438 = vmatpush1.xpose.msra.mxu0 0.0
    %4439 = vmatprep.subr.mxu0 0.0
    %4440 = vmatpush1.xpose.msra.mxu0 0.0
    %4441 = vmatprep.subr.mxu0 0.0
    %4442 = vmatpush1.xpose.msra.mxu0 0.0
    %4443 = vmatprep.subr.mxu0 0.0
    %4444 = vmatpush1.xpose.msra.mxu0 0.0
    %4445 = vmatprep.subr.mxu0 0.0
    %4446 = vmatpush1.xpose.msra.mxu0 %v4242
    %4447 = vmatprep.subr.mxu0 0.0
    %4448 = vmatpush1.xpose.msra.mxu0 %v4240
    %4449 = vmatprep.subr.mxu0 0.0
    %4450 = vmatpush2.xpose.msra.mxu0 0.0
    %4451 = vmatprep.subr.mxu0 0.0
    %4452 = vmatpush2.xpose.msra.mxu0 0.0
    %4453 = vmatprep.subr.mxu0 0.0
    %4454 = vmatpush2.xpose.msra.mxu0 0.0
    %4455 = vmatprep.subr.mxu0 0.0
    %4456 = vmatpush2.xpose.msra.mxu0 0.0
    %4457 = vmatprep.subr.mxu0 0.0
    %4458 = vmatpush2.xpose.msra.mxu0 0.0
    %4459 = vmatprep.subr.mxu0 0.0
    %4460 = vmatpush2.xpose.msra.mxu0 0.0
    %4461 = vmatprep.subr.mxu0 0.0
    %4462 = vmatpush2.xpose.msra.mxu0 0.0
    %4463 = vmatprep.subr.mxu0 0.0
    %4464 = vmatpush2.xpose.msra.mxu0 0.0
    %4465 = vmatprep.subr.mxu0 0.0
    %4466 = vmatpush2.xpose.msra.mxu0 0.0
    %4467 = vmatprep.subr.mxu0 0.0
    %4468 = vmatpush2.xpose.msra.mxu0 0.0
    %4469 = vmatprep.subr.mxu0 0.0
    %4470 = vmatpush2.xpose.msra.mxu0 0.0
    %4471 = vmatprep.subr.mxu0 0.0
    %4472 = vmatpush2.xpose.msra.mxu0 0.0
    %4473 = vmatprep.subr.mxu0 0.0
    %4474 = vmatpush2.xpose.msra.mxu0 0.0
    %4475 = vmatprep.subr.mxu0 0.0
    %4476 = vmatpush2.xpose.msra.mxu0 0.0
    %4477 = vmatprep.subr.mxu0 0.0
    %4478 = vmatpush2.xpose.msra.mxu0 0.0
    %4479 = vmatprep.subr.mxu0 0.0
    %4480 = vmatpush2.xpose.msra.mxu0 0.0
    %4481 = vmatprep.mubr.f32.mxu0 0.0
    %4482 = vmatmul.mubr.f32.gmra.mxu0 %v4413
    %v4483 = vpop.f32.mrf.mxu0
    %v4484 = vadd.f32 %v4408, %v4483
    %v4485 = vpop.f32.mrf.mxu0
    %4486 = vmatprep.mubr.f32.mxu0 0.0
    %4487 = vmatmul.mubr.f32.gmra.mxu0 %v4415
    %v4488 = vpop.f32.mrf.mxu0
    %v4489 = vadd.f32 %v4408, %v4488
    %v4490 = vpop.f32.mrf.mxu0
    %4491 = vdwg.mxu0
    %v4492 = vmul.f32 %v4484, %v39
    %v4493 = vmul.f32 %v4489, %v40
    %v4494 = vadd.f32 %v4396, %v4492
    %v4495 = vadd.f32 %v4401, %v4493
    %v4496 = vld [vmem:[%s3560 + $0xf] sm:$0x1]
    %v4497 = vlaneseq
    %v4498 = vshrl.u32 %v4497, 7
    %v4499 = vsub.s32 0, %v4498
    %v4500 = vrot.slane %v4496, %v4499
    %4501 = vrot.lane.b32.xlu0 %v3550, 24
    %v4502 = vpop.permute.xlu0 %4501
    %4503 = vrot.lane.b32.xlu0 %v3556, 24
    %v4504 = vpop.permute.xlu0 %4503
    %v4505 = vsel %vm166, %v4502, 0
    %v4507 = vsel %vm166, %v4504, 0
    %4509 = vmatprep.subr.mxu0 0.0
    %4510 = vmatpush1.xpose.msra.mxu0 0.0
    %4511 = vmatprep.subr.mxu0 0.0
    %4512 = vmatpush1.xpose.msra.mxu0 0.0
    %4513 = vmatprep.subr.mxu0 0.0
    %4514 = vmatpush1.xpose.msra.mxu0 0.0
    %4515 = vmatprep.subr.mxu0 0.0
    %4516 = vmatpush1.xpose.msra.mxu0 0.0
    %4517 = vmatprep.subr.mxu0 0.0
    %4518 = vmatpush1.xpose.msra.mxu0 0.0
    %4519 = vmatprep.subr.mxu0 0.0
    %4520 = vmatpush1.xpose.msra.mxu0 0.0
    %4521 = vmatprep.subr.mxu0 0.0
    %4522 = vmatpush1.xpose.msra.mxu0 0.0
    %4523 = vmatprep.subr.mxu0 0.0
    %4524 = vmatpush1.xpose.msra.mxu0 0.0
    %4525 = vmatprep.subr.mxu0 0.0
    %4526 = vmatpush1.xpose.msra.mxu0 0.0
    %4527 = vmatprep.subr.mxu0 0.0
    %4528 = vmatpush1.xpose.msra.mxu0 0.0
    %4529 = vmatprep.subr.mxu0 0.0
    %4530 = vmatpush1.xpose.msra.mxu0 0.0
    %4531 = vmatprep.subr.mxu0 0.0
    %4532 = vmatpush1.xpose.msra.mxu0 0.0
    %4533 = vmatprep.subr.mxu0 0.0
    %4534 = vmatpush1.xpose.msra.mxu0 0.0
    %4535 = vmatprep.subr.mxu0 0.0
    %4536 = vmatpush1.xpose.msra.mxu0 0.0
    %4537 = vmatprep.subr.mxu0 0.0
    %4538 = vmatpush1.xpose.msra.mxu0 %v4242
    %4539 = vmatprep.subr.mxu0 0.0
    %4540 = vmatpush1.xpose.msra.mxu0 %v4240
    %4541 = vmatprep.subr.mxu0 0.0
    %4542 = vmatpush2.xpose.msra.mxu0 0.0
    %4543 = vmatprep.subr.mxu0 0.0
    %4544 = vmatpush2.xpose.msra.mxu0 0.0
    %4545 = vmatprep.subr.mxu0 0.0
    %4546 = vmatpush2.xpose.msra.mxu0 0.0
    %4547 = vmatprep.subr.mxu0 0.0
    %4548 = vmatpush2.xpose.msra.mxu0 0.0
    %4549 = vmatprep.subr.mxu0 0.0
    %4550 = vmatpush2.xpose.msra.mxu0 0.0
    %4551 = vmatprep.subr.mxu0 0.0
    %4552 = vmatpush2.xpose.msra.mxu0 0.0
    %4553 = vmatprep.subr.mxu0 0.0
    %4554 = vmatpush2.xpose.msra.mxu0 0.0
    %4555 = vmatprep.subr.mxu0 0.0
    %4556 = vmatpush2.xpose.msra.mxu0 0.0
    %4557 = vmatprep.subr.mxu0 0.0
    %4558 = vmatpush2.xpose.msra.mxu0 0.0
    %4559 = vmatprep.subr.mxu0 0.0
    %4560 = vmatpush2.xpose.msra.mxu0 0.0
    %4561 = vmatprep.subr.mxu0 0.0
    %4562 = vmatpush2.xpose.msra.mxu0 0.0
    %4563 = vmatprep.subr.mxu0 0.0
    %4564 = vmatpush2.xpose.msra.mxu0 0.0
    %4565 = vmatprep.subr.mxu0 0.0
    %4566 = vmatpush2.xpose.msra.mxu0 0.0
    %4567 = vmatprep.subr.mxu0 0.0
    %4568 = vmatpush2.xpose.msra.mxu0 0.0
    %4569 = vmatprep.subr.mxu0 0.0
    %4570 = vmatpush2.xpose.msra.mxu0 0.0
    %4571 = vmatprep.subr.mxu0 0.0
    %4572 = vmatpush2.xpose.msra.mxu0 0.0
    %4573 = vmatprep.mubr.f32.mxu0 0.0
    %4574 = vmatmul.mubr.f32.gmra.mxu0 %v4505
    %v4575 = vpop.f32.mrf.mxu0
    %v4576 = vadd.f32 %v4500, %v4575
    %v4577 = vpop.f32.mrf.mxu0
    %4578 = vmatprep.mubr.f32.mxu0 0.0
    %4579 = vmatmul.mubr.f32.gmra.mxu0 %v4507
    %v4580 = vpop.f32.mrf.mxu0
    %v4581 = vadd.f32 %v4500, %v4580
    %v4582 = vpop.f32.mrf.mxu0
    %4583 = vdwg.mxu0
    %v4584 = vmul.f32 %v4576, %v41
    %v4585 = vmul.f32 %v4581, %v42
    %v4586 = vadd.f32 %v4494, %v4584
    %v4587 = vadd.f32 %v4495, %v4585
    %v4588 = vld [vmem:[%s3560 + $0x10] sm:$0x1]
    %v4589 = vlaneseq
    %v4590 = vshrl.u32 %v4589, 7
    %v4591 = vsub.s32 0, %v4590
    %v4592 = vrot.slane %v4588, %v4591
    %4593 = vrot.lane.b32.xlu0 %v3550, 16
    %v4594 = vpop.permute.xlu0 %4593
    %4595 = vrot.lane.b32.xlu0 %v3556, 16
    %v4596 = vpop.permute.xlu0 %4595
    %v4597 = vsel %vm166, %v4594, 0
    %v4599 = vsel %vm166, %v4596, 0
    %4601 = vmatprep.subr.mxu0 0.0
    %4602 = vmatpush1.xpose.msra.mxu0 0.0
    %4603 = vmatprep.subr.mxu0 0.0
    %4604 = vmatpush1.xpose.msra.mxu0 0.0
    %4605 = vmatprep.subr.mxu0 0.0
    %4606 = vmatpush1.xpose.msra.mxu0 0.0
    %4607 = vmatprep.subr.mxu0 0.0
    %4608 = vmatpush1.xpose.msra.mxu0 0.0
    %4609 = vmatprep.subr.mxu0 0.0
    %4610 = vmatpush1.xpose.msra.mxu0 0.0
    %4611 = vmatprep.subr.mxu0 0.0
    %4612 = vmatpush1.xpose.msra.mxu0 0.0
    %4613 = vmatprep.subr.mxu0 0.0
    %4614 = vmatpush1.xpose.msra.mxu0 0.0
    %4615 = vmatprep.subr.mxu0 0.0
    %4616 = vmatpush1.xpose.msra.mxu0 0.0
    %4617 = vmatprep.subr.mxu0 0.0
    %4618 = vmatpush1.xpose.msra.mxu0 0.0
    %4619 = vmatprep.subr.mxu0 0.0
    %4620 = vmatpush1.xpose.msra.mxu0 0.0
    %4621 = vmatprep.subr.mxu0 0.0
    %4622 = vmatpush1.xpose.msra.mxu0 0.0
    %4623 = vmatprep.subr.mxu0 0.0
    %4624 = vmatpush1.xpose.msra.mxu0 0.0
    %4625 = vmatprep.subr.mxu0 0.0
    %4626 = vmatpush1.xpose.msra.mxu0 0.0
    %4627 = vmatprep.subr.mxu0 0.0
    %4628 = vmatpush1.xpose.msra.mxu0 0.0
    %4629 = vmatprep.subr.mxu0 0.0
    %4630 = vmatpush1.xpose.msra.mxu0 %v4242
    %4631 = vmatprep.subr.mxu0 0.0
    %4632 = vmatpush1.xpose.msra.mxu0 %v4240
    %4633 = vmatprep.subr.mxu0 0.0
    %4634 = vmatpush2.xpose.msra.mxu0 0.0
    %4635 = vmatprep.subr.mxu0 0.0
    %4636 = vmatpush2.xpose.msra.mxu0 0.0
    %4637 = vmatprep.subr.mxu0 0.0
    %4638 = vmatpush2.xpose.msra.mxu0 0.0
    %4639 = vmatprep.subr.mxu0 0.0
    %4640 = vmatpush2.xpose.msra.mxu0 0.0
    %4641 = vmatprep.subr.mxu0 0.0
    %4642 = vmatpush2.xpose.msra.mxu0 0.0
    %4643 = vmatprep.subr.mxu0 0.0
    %4644 = vmatpush2.xpose.msra.mxu0 0.0
    %4645 = vmatprep.subr.mxu0 0.0
    %4646 = vmatpush2.xpose.msra.mxu0 0.0
    %4647 = vmatprep.subr.mxu0 0.0
    %4648 = vmatpush2.xpose.msra.mxu0 0.0
    %4649 = vmatprep.subr.mxu0 0.0
    %4650 = vmatpush2.xpose.msra.mxu0 0.0
    %4651 = vmatprep.subr.mxu0 0.0
    %4652 = vmatpush2.xpose.msra.mxu0 0.0
    %4653 = vmatprep.subr.mxu0 0.0
    %4654 = vmatpush2.xpose.msra.mxu0 0.0
    %4655 = vmatprep.subr.mxu0 0.0
    %4656 = vmatpush2.xpose.msra.mxu0 0.0
    %4657 = vmatprep.subr.mxu0 0.0
    %4658 = vmatpush2.xpose.msra.mxu0 0.0
    %4659 = vmatprep.subr.mxu0 0.0
    %4660 = vmatpush2.xpose.msra.mxu0 0.0
    %4661 = vmatprep.subr.mxu0 0.0
    %4662 = vmatpush2.xpose.msra.mxu0 0.0
    %4663 = vmatprep.subr.mxu0 0.0
    %4664 = vmatpush2.xpose.msra.mxu0 0.0
    %4665 = vmatprep.mubr.f32.mxu0 0.0
    %4666 = vmatmul.mubr.f32.gmra.mxu0 %v4597
    %v4667 = vpop.f32.mrf.mxu0
    %v4668 = vadd.f32 %v4592, %v4667
    %v4669 = vpop.f32.mrf.mxu0
    %4670 = vmatprep.mubr.f32.mxu0 0.0
    %4671 = vmatmul.mubr.f32.gmra.mxu0 %v4599
    %v4672 = vpop.f32.mrf.mxu0
    %v4673 = vadd.f32 %v4592, %v4672
    %v4674 = vpop.f32.mrf.mxu0
    %4675 = vdwg.mxu0
    %v4676 = vmul.f32 %v4668, %v43
    %v4677 = vmul.f32 %v4673, %v44
    %v4678 = vadd.f32 %v4586, %v4676
    %v4679 = vadd.f32 %v4587, %v4677
    %v4680 = vld [vmem:[%s3560 + $0x11] sm:$0x1]
    %v4681 = vlaneseq
    %v4682 = vshrl.u32 %v4681, 7
    %v4683 = vsub.s32 0, %v4682
    %v4684 = vrot.slane %v4680, %v4683
    %4685 = vrot.lane.b32.xlu0 %v3550, 8
    %v4686 = vpop.permute.xlu0 %4685
    %4687 = vrot.lane.b32.xlu0 %v3556, 8
    %v4688 = vpop.permute.xlu0 %4687
    %v4689 = vsel %vm166, %v4686, 0
    %v4691 = vsel %vm166, %v4688, 0
    %4693 = vmatprep.subr.mxu0 0.0
    %4694 = vmatpush1.xpose.msra.mxu0 0.0
    %4695 = vmatprep.subr.mxu0 0.0
    %4696 = vmatpush1.xpose.msra.mxu0 0.0
    %4697 = vmatprep.subr.mxu0 0.0
    %4698 = vmatpush1.xpose.msra.mxu0 0.0
    %4699 = vmatprep.subr.mxu0 0.0
    %4700 = vmatpush1.xpose.msra.mxu0 0.0
    %4701 = vmatprep.subr.mxu0 0.0
    %4702 = vmatpush1.xpose.msra.mxu0 0.0
    %4703 = vmatprep.subr.mxu0 0.0
    %4704 = vmatpush1.xpose.msra.mxu0 0.0
    %4705 = vmatprep.subr.mxu0 0.0
    %4706 = vmatpush1.xpose.msra.mxu0 0.0
    %4707 = vmatprep.subr.mxu0 0.0
    %4708 = vmatpush1.xpose.msra.mxu0 0.0
    %4709 = vmatprep.subr.mxu0 0.0
    %4710 = vmatpush1.xpose.msra.mxu0 0.0
    %4711 = vmatprep.subr.mxu0 0.0
    %4712 = vmatpush1.xpose.msra.mxu0 0.0
    %4713 = vmatprep.subr.mxu0 0.0
    %4714 = vmatpush1.xpose.msra.mxu0 0.0
    %4715 = vmatprep.subr.mxu0 0.0
    %4716 = vmatpush1.xpose.msra.mxu0 0.0
    %4717 = vmatprep.subr.mxu0 0.0
    %4718 = vmatpush1.xpose.msra.mxu0 0.0
    %4719 = vmatprep.subr.mxu0 0.0
    %4720 = vmatpush1.xpose.msra.mxu0 0.0
    %4721 = vmatprep.subr.mxu0 0.0
    %4722 = vmatpush1.xpose.msra.mxu0 %v4242
    %4723 = vmatprep.subr.mxu0 0.0
    %4724 = vmatpush1.xpose.msra.mxu0 %v4240
    %4725 = vmatprep.subr.mxu0 0.0
    %4726 = vmatpush2.xpose.msra.mxu0 0.0
    %4727 = vmatprep.subr.mxu0 0.0
    %4728 = vmatpush2.xpose.msra.mxu0 0.0
    %4729 = vmatprep.subr.mxu0 0.0
    %4730 = vmatpush2.xpose.msra.mxu0 0.0
    %4731 = vmatprep.subr.mxu0 0.0
    %4732 = vmatpush2.xpose.msra.mxu0 0.0
    %4733 = vmatprep.subr.mxu0 0.0
    %4734 = vmatpush2.xpose.msra.mxu0 0.0
    %4735 = vmatprep.subr.mxu0 0.0
    %4736 = vmatpush2.xpose.msra.mxu0 0.0
    %4737 = vmatprep.subr.mxu0 0.0
    %4738 = vmatpush2.xpose.msra.mxu0 0.0
    %4739 = vmatprep.subr.mxu0 0.0
    %4740 = vmatpush2.xpose.msra.mxu0 0.0
    %4741 = vmatprep.subr.mxu0 0.0
    %4742 = vmatpush2.xpose.msra.mxu0 0.0
    %4743 = vmatprep.subr.mxu0 0.0
    %4744 = vmatpush2.xpose.msra.mxu0 0.0
    %4745 = vmatprep.subr.mxu0 0.0
    %4746 = vmatpush2.xpose.msra.mxu0 0.0
    %4747 = vmatprep.subr.mxu0 0.0
    %4748 = vmatpush2.xpose.msra.mxu0 0.0
    %4749 = vmatprep.subr.mxu0 0.0
    %4750 = vmatpush2.xpose.msra.mxu0 0.0
    %4751 = vmatprep.subr.mxu0 0.0
    %4752 = vmatpush2.xpose.msra.mxu0 0.0
    %4753 = vmatprep.subr.mxu0 0.0
    %4754 = vmatpush2.xpose.msra.mxu0 0.0
    %4755 = vmatprep.subr.mxu0 0.0
    %4756 = vmatpush2.xpose.msra.mxu0 0.0
    %4757 = vmatprep.mubr.f32.mxu0 0.0
    %4758 = vmatmul.mubr.f32.gmra.mxu0 %v4689
    %v4759 = vpop.f32.mrf.mxu0
    %v4760 = vadd.f32 %v4684, %v4759
    %v4761 = vpop.f32.mrf.mxu0
    %4762 = vmatprep.mubr.f32.mxu0 0.0
    %4763 = vmatmul.mubr.f32.gmra.mxu0 %v4691
    %v4764 = vpop.f32.mrf.mxu0
    %v4765 = vadd.f32 %v4684, %v4764
    %v4766 = vpop.f32.mrf.mxu0
    %4767 = vdwg.mxu0
    %v4768 = vmul.f32 %v4760, %v45
    %v4769 = vmul.f32 %v4765, %v46
    %v4770 = vadd.f32 %v4678, %v4768
    %v4771 = vadd.f32 %v4679, %v4769
    %v4772 = vmul.f32 %v4770, 0.35355338
    %v4773 = vmul.f32 %v4771, 0.35355338
    %v4774 = vadd.f32 %v4772, %v35
    %v4775 = vadd.f32 %v4773, %v36
    %v4776 = vsel %vm703, %v4774, -inf
    %4777 = vmax.xlane.f32.xlu0 %v4776
    %v4778 = vpop.xlane.xlu0 %4777
    %v4779 = vsel %vm703, %v4775, -inf
    %4780 = vmax.xlane.f32.xlu0 %v4779
    %v4781 = vpop.xlane.xlu0 %4780
    %v4782 = vsub.f32 %v4774, %v4778
    %v4783 = vsub.f32 %v4775, %v4781
    %v4784 = vmul.f32 %v4782, 1.442695
    %v4785 = vpow.pop %v4784
    %v4786 = vmul.f32 %v4783, 1.442695
    %v4787 = vpow.pop %v4786
    %v4788 = vsel %vm703, %v4785, 0.0
    %4789 = vadd.xlane.f32.xlu0 %v4788
    %v4790 = vpop.xlane.xlu0 %4789
    %v4791 = vsel %vm703, %v4787, 0.0
    %4792 = vadd.xlane.f32.xlu0 %v4791
    %v4793 = vpop.xlane.xlu0 %4792
    %v4794 = vrcp.pop %v4790
    %v4795 = vmul.f32 %v4785, %v4794
    %v4796 = vrcp.pop %v4793
    %v4797 = vmul.f32 %v4787, %v4796
    %4798 = vrot.lane.b32.xlu0 %v3550, 48
    %v4799 = vpop.permute.xlu0 %4798
    %4800 = vrot.lane.b32.xlu0 %v3556, 48
    %v4801 = vpop.permute.xlu0 %4800
    %v4805 = vsel %vm703, %v4795, 0
    %v4808 = vsel %vm703, %v4797, 0
    %4810 = vmatprep.subr.mxu0 0.0
    %4811 = vmatpush1.msra.mxu0 0.0
    %4812 = vmatprep.subr.mxu0 0.0
    %4813 = vmatpush1.msra.mxu0 0.0
    %4814 = vmatprep.subr.mxu0 0.0
    %4815 = vmatpush1.msra.mxu0 0.0
    %4816 = vmatprep.subr.mxu0 0.0
    %4817 = vmatpush1.msra.mxu0 0.0
    %4818 = vmatprep.subr.mxu0 0.0
    %4819 = vmatpush1.msra.mxu0 0.0
    %4820 = vmatprep.subr.mxu0 0.0
    %4821 = vmatpush1.msra.mxu0 0.0
    %4822 = vmatprep.subr.mxu0 0.0
    %4823 = vmatpush1.msra.mxu0 0.0
    %4824 = vmatprep.subr.mxu0 0.0
    %4825 = vmatpush1.msra.mxu0 0.0
    %4826 = vmatprep.subr.mxu0 0.0
    %4827 = vmatpush1.msra.mxu0 0.0
    %4828 = vmatprep.subr.mxu0 0.0
    %4829 = vmatpush1.msra.mxu0 0.0
    %4830 = vmatprep.subr.mxu0 0.0
    %4831 = vmatpush1.msra.mxu0 0.0
    %4832 = vmatprep.subr.mxu0 0.0
    %4833 = vmatpush1.msra.mxu0 0.0
    %4834 = vmatprep.subr.mxu0 0.0
    %4835 = vmatpush1.msra.mxu0 0.0
    %4836 = vmatprep.subr.mxu0 0.0
    %4837 = vmatpush1.msra.mxu0 0.0
    %4838 = vmatprep.subr.mxu0 0.0
    %4839 = vmatpush1.msra.mxu0 %v4801
    %4840 = vmatprep.subr.mxu0 0.0
    %4841 = vmatpush1.msra.mxu0 %v4799
    %4842 = vmatprep.subr.mxu0 0.0
    %4843 = vmatpush2.msra.mxu0 0.0
    %4844 = vmatprep.subr.mxu0 0.0
    %4845 = vmatpush2.msra.mxu0 0.0
    %4846 = vmatprep.subr.mxu0 0.0
    %4847 = vmatpush2.msra.mxu0 0.0
    %4848 = vmatprep.subr.mxu0 0.0
    %4849 = vmatpush2.msra.mxu0 0.0
    %4850 = vmatprep.subr.mxu0 0.0
    %4851 = vmatpush2.msra.mxu0 0.0
    %4852 = vmatprep.subr.mxu0 0.0
    %4853 = vmatpush2.msra.mxu0 0.0
    %4854 = vmatprep.subr.mxu0 0.0
    %4855 = vmatpush2.msra.mxu0 0.0
    %4856 = vmatprep.subr.mxu0 0.0
    %4857 = vmatpush2.msra.mxu0 0.0
    %4858 = vmatprep.subr.mxu0 0.0
    %4859 = vmatpush2.msra.mxu0 0.0
    %4860 = vmatprep.subr.mxu0 0.0
    %4861 = vmatpush2.msra.mxu0 0.0
    %4862 = vmatprep.subr.mxu0 0.0
    %4863 = vmatpush2.msra.mxu0 0.0
    %4864 = vmatprep.subr.mxu0 0.0
    %4865 = vmatpush2.msra.mxu0 0.0
    %4866 = vmatprep.subr.mxu0 0.0
    %4867 = vmatpush2.msra.mxu0 0.0
    %4868 = vmatprep.subr.mxu0 0.0
    %4869 = vmatpush2.msra.mxu0 0.0
    %4870 = vmatprep.subr.mxu0 0.0
    %4871 = vmatpush2.msra.mxu0 0.0
    %4872 = vmatprep.subr.mxu0 0.0
    %4873 = vmatpush2.msra.mxu0 0.0
    %4874 = vmatprep.mubr.f32.mxu0 0.0
    %4875 = vmatmul.mubr.f32.gmra.mxu0 %v4805
    %v4876 = vpop.f32.mrf.mxu0
    %v4877 = vadd.f32 0.0, %v4876
    %v4878 = vpop.f32.mrf.mxu0
    %4879 = vmatprep.mubr.f32.mxu0 0.0
    %4880 = vmatmul.mubr.f32.gmra.mxu0 %v4808
    %v4881 = vpop.f32.mrf.mxu0
    %v4882 = vadd.f32 0.0, %v4881
    %v4883 = vpop.f32.mrf.mxu0
    %4884 = vdwg.mxu0
    %s4885 = scalar_lea.vmem %s5, 40
    %v4886 = vld [vmem:[%s4885] sm:$0xff]
    %v4888 = vsel %vm166, %v4877, 0
    %v4891 = vsel %vm166, %v4882, 0
    %4893 = vmatprep.subr.mxu0 0.0
    %4894 = vmatpush1.msra.mxu0 0.0
    %4895 = vmatprep.subr.mxu0 0.0
    %4896 = vmatpush1.msra.mxu0 0.0
    %4897 = vmatprep.subr.mxu0 0.0
    %4898 = vmatpush1.msra.mxu0 0.0
    %4899 = vmatprep.subr.mxu0 0.0
    %4900 = vmatpush1.msra.mxu0 0.0
    %4901 = vmatprep.subr.mxu0 0.0
    %4902 = vmatpush1.msra.mxu0 0.0
    %4903 = vmatprep.subr.mxu0 0.0
    %4904 = vmatpush1.msra.mxu0 0.0
    %4905 = vmatprep.subr.mxu0 0.0
    %4906 = vmatpush1.msra.mxu0 0.0
    %4907 = vmatprep.subr.mxu0 0.0
    %4908 = vmatpush1.msra.mxu0 0.0
    %4909 = vmatprep.subr.mxu0 0.0
    %4910 = vmatpush1.msra.mxu0 0.0
    %4911 = vmatprep.subr.mxu0 0.0
    %4912 = vmatpush1.msra.mxu0 0.0
    %4913 = vmatprep.subr.mxu0 0.0
    %4914 = vmatpush1.msra.mxu0 0.0
    %4915 = vmatprep.subr.mxu0 0.0
    %4916 = vmatpush1.msra.mxu0 0.0
    %4917 = vmatprep.subr.mxu0 0.0
    %4918 = vmatpush1.msra.mxu0 0.0
    %4919 = vmatprep.subr.mxu0 0.0
    %4920 = vmatpush1.msra.mxu0 0.0
    %4921 = vmatprep.subr.mxu0 0.0
    %4922 = vmatpush1.msra.mxu0 0.0
    %4923 = vmatprep.subr.mxu0 0.0
    %4924 = vmatpush1.msra.mxu0 %v4886
    %4925 = vmatprep.subr.mxu0 0.0
    %4926 = vmatpush2.msra.mxu0 0.0
    %4927 = vmatprep.subr.mxu0 0.0
    %4928 = vmatpush2.msra.mxu0 0.0
    %4929 = vmatprep.subr.mxu0 0.0
    %4930 = vmatpush2.msra.mxu0 0.0
    %4931 = vmatprep.subr.mxu0 0.0
    %4932 = vmatpush2.msra.mxu0 0.0
    %4933 = vmatprep.subr.mxu0 0.0
    %4934 = vmatpush2.msra.mxu0 0.0
    %4935 = vmatprep.subr.mxu0 0.0
    %4936 = vmatpush2.msra.mxu0 0.0
    %4937 = vmatprep.subr.mxu0 0.0
    %4938 = vmatpush2.msra.mxu0 0.0
    %4939 = vmatprep.subr.mxu0 0.0
    %4940 = vmatpush2.msra.mxu0 0.0
    %4941 = vmatprep.subr.mxu0 0.0
    %4942 = vmatpush2.msra.mxu0 0.0
    %4943 = vmatprep.subr.mxu0 0.0
    %4944 = vmatpush2.msra.mxu0 0.0
    %4945 = vmatprep.subr.mxu0 0.0
    %4946 = vmatpush2.msra.mxu0 0.0
    %4947 = vmatprep.subr.mxu0 0.0
    %4948 = vmatpush2.msra.mxu0 0.0
    %4949 = vmatprep.subr.mxu0 0.0
    %4950 = vmatpush2.msra.mxu0 0.0
    %4951 = vmatprep.subr.mxu0 0.0
    %4952 = vmatpush2.msra.mxu0 0.0
    %4953 = vmatprep.subr.mxu0 0.0
    %4954 = vmatpush2.msra.mxu0 0.0
    %4955 = vmatprep.subr.mxu0 0.0
    %4956 = vmatpush2.msra.mxu0 0.0
    %4957 = vmatprep.mubr.f32.mxu0 0.0
    %4958 = vmatmul.mubr.f32.gmra.mxu0 %v4888
    %v4959 = vpop.f32.mrf.mxu0
    %v4960 = vadd.f32 0.0, %v4959
    %v4961 = vpop.f32.mrf.mxu0
    %4962 = vmatprep.mubr.f32.mxu0 0.0
    %4963 = vmatmul.mubr.f32.gmra.mxu0 %v4891
    %v4964 = vpop.f32.mrf.mxu0
    %v4965 = vadd.f32 0.0, %v4964
    %v4966 = vpop.f32.mrf.mxu0
    %4967 = vdwg.mxu0
    %v4969 = vsel %vm166, %v4213, 0
    %v4972 = vsel %vm166, %v4218, 0
    %4974 = vmatprep.subr.mxu0 0.0
    %4975 = vmatpush1.msra.mxu0 0.0
    %4976 = vmatprep.subr.mxu0 0.0
    %4977 = vmatpush1.msra.mxu0 0.0
    %4978 = vmatprep.subr.mxu0 0.0
    %4979 = vmatpush1.msra.mxu0 0.0
    %4980 = vmatprep.subr.mxu0 0.0
    %4981 = vmatpush1.msra.mxu0 0.0
    %4982 = vmatprep.subr.mxu0 0.0
    %4983 = vmatpush1.msra.mxu0 0.0
    %4984 = vmatprep.subr.mxu0 0.0
    %4985 = vmatpush1.msra.mxu0 0.0
    %4986 = vmatprep.subr.mxu0 0.0
    %4987 = vmatpush1.msra.mxu0 0.0
    %4988 = vmatprep.subr.mxu0 0.0
    %4989 = vmatpush1.msra.mxu0 0.0
    %4990 = vmatprep.subr.mxu0 0.0
    %4991 = vmatpush1.msra.mxu0 0.0
    %4992 = vmatprep.subr.mxu0 0.0
    %4993 = vmatpush1.msra.mxu0 0.0
    %4994 = vmatprep.subr.mxu0 0.0
    %4995 = vmatpush1.msra.mxu0 0.0
    %4996 = vmatprep.subr.mxu0 0.0
    %4997 = vmatpush1.msra.mxu0 0.0
    %4998 = vmatprep.subr.mxu0 0.0
    %4999 = vmatpush1.msra.mxu0 0.0
    %5000 = vmatprep.subr.mxu0 0.0
    %5001 = vmatpush1.msra.mxu0 0.0
    %5002 = vmatprep.subr.mxu0 0.0
    %5003 = vmatpush1.msra.mxu0 0.0
    %5004 = vmatprep.subr.mxu0 0.0
    %5005 = vmatpush1.msra.mxu0 %v4222
    %5006 = vmatprep.subr.mxu0 0.0
    %5007 = vmatpush2.msra.mxu0 0.0
    %5008 = vmatprep.subr.mxu0 0.0
    %5009 = vmatpush2.msra.mxu0 0.0
    %5010 = vmatprep.subr.mxu0 0.0
    %5011 = vmatpush2.msra.mxu0 0.0
    %5012 = vmatprep.subr.mxu0 0.0
    %5013 = vmatpush2.msra.mxu0 0.0
    %5014 = vmatprep.subr.mxu0 0.0
    %5015 = vmatpush2.msra.mxu0 0.0
    %5016 = vmatprep.subr.mxu0 0.0
    %5017 = vmatpush2.msra.mxu0 0.0
    %5018 = vmatprep.subr.mxu0 0.0
    %5019 = vmatpush2.msra.mxu0 0.0
    %5020 = vmatprep.subr.mxu0 0.0
    %5021 = vmatpush2.msra.mxu0 0.0
    %5022 = vmatprep.subr.mxu0 0.0
    %5023 = vmatpush2.msra.mxu0 0.0
    %5024 = vmatprep.subr.mxu0 0.0
    %5025 = vmatpush2.msra.mxu0 0.0
    %5026 = vmatprep.subr.mxu0 0.0
    %5027 = vmatpush2.msra.mxu0 0.0
    %5028 = vmatprep.subr.mxu0 0.0
    %5029 = vmatpush2.msra.mxu0 0.0
    %5030 = vmatprep.subr.mxu0 0.0
    %5031 = vmatpush2.msra.mxu0 0.0
    %5032 = vmatprep.subr.mxu0 0.0
    %5033 = vmatpush2.msra.mxu0 0.0
    %5034 = vmatprep.subr.mxu0 0.0
    %5035 = vmatpush2.msra.mxu0 0.0
    %5036 = vmatprep.subr.mxu0 0.0
    %5037 = vmatpush2.msra.mxu0 0.0
    %5038 = vmatprep.mubr.f32.mxu0 0.0
    %5039 = vmatmul.mubr.f32.gmra.mxu0 %v4969
    %v5040 = vpop.f32.mrf.mxu0
    %v5041 = vadd.f32 %v4960, %v5040
    %v5042 = vpop.f32.mrf.mxu0
    %5043 = vmatprep.mubr.f32.mxu0 0.0
    %5044 = vmatmul.mubr.f32.gmra.mxu0 %v4972
    %v5045 = vpop.f32.mrf.mxu0
    %v5046 = vadd.f32 %v4965, %v5045
    %v5047 = vpop.f32.mrf.mxu0
    %5048 = vdwg.mxu0
    %v5049 = vld [vmem:[%s3560 + $0x12] sm:$0x1]
    %v5050 = vlaneseq
    %v5051 = vshrl.u32 %v5050, 7
    %v5052 = vsub.s32 0, %v5051
    %v5053 = vrot.slane %v5049, %v5052
    %5056 = vrot.lane.b32.xlu0 %v3552, 104
    %v5057 = vpop.permute.xlu0 %5056
    %5058 = vrot.lane.b32.xlu0 %v3558, 104
    %v5059 = vpop.permute.xlu0 %5058
    %5060 = vrot.lane.b32.xlu0 %v3552, 120
    %v5061 = vpop.permute.xlu0 %5060
    %5062 = vrot.lane.b32.xlu0 %v3558, 120
    %v5063 = vpop.permute.xlu0 %5062
    %v5064 = vsel %vm166, %v5057, 0
    %v5066 = vsel %vm166, %v5059, 0
    %v5068 = vsel %vm166, %v5061, 0
    %v5070 = vsel %vm166, %v5063, 0
    %5072 = vmatprep.subr.mxu0 0.0
    %5073 = vmatpush1.xpose.msra.mxu0 0.0
    %5074 = vmatprep.subr.mxu0 0.0
    %5075 = vmatpush1.xpose.msra.mxu0 0.0
    %5076 = vmatprep.subr.mxu0 0.0
    %5077 = vmatpush1.xpose.msra.mxu0 0.0
    %5078 = vmatprep.subr.mxu0 0.0
    %5079 = vmatpush1.xpose.msra.mxu0 0.0
    %5080 = vmatprep.subr.mxu0 0.0
    %5081 = vmatpush1.xpose.msra.mxu0 0.0
    %5082 = vmatprep.subr.mxu0 0.0
    %5083 = vmatpush1.xpose.msra.mxu0 0.0
    %5084 = vmatprep.subr.mxu0 0.0
    %5085 = vmatpush1.xpose.msra.mxu0 0.0
    %5086 = vmatprep.subr.mxu0 0.0
    %5087 = vmatpush1.xpose.msra.mxu0 0.0
    %5088 = vmatprep.subr.mxu0 0.0
    %5089 = vmatpush1.xpose.msra.mxu0 0.0
    %5090 = vmatprep.subr.mxu0 0.0
    %5091 = vmatpush1.xpose.msra.mxu0 0.0
    %5092 = vmatprep.subr.mxu0 0.0
    %5093 = vmatpush1.xpose.msra.mxu0 0.0
    %5094 = vmatprep.subr.mxu0 0.0
    %5095 = vmatpush1.xpose.msra.mxu0 0.0
    %5096 = vmatprep.subr.mxu0 0.0
    %5097 = vmatpush1.xpose.msra.mxu0 0.0
    %5098 = vmatprep.subr.mxu0 0.0
    %5099 = vmatpush1.xpose.msra.mxu0 0.0
    %5100 = vmatprep.subr.mxu0 0.0
    %5101 = vmatpush1.xpose.msra.mxu0 %v5070
    %5102 = vmatprep.subr.mxu0 0.0
    %5103 = vmatpush1.xpose.msra.mxu0 %v5068
    %5104 = vmatprep.subr.mxu0 0.0
    %5105 = vmatpush2.xpose.msra.mxu0 0.0
    %5106 = vmatprep.subr.mxu0 0.0
    %5107 = vmatpush2.xpose.msra.mxu0 0.0
    %5108 = vmatprep.subr.mxu0 0.0
    %5109 = vmatpush2.xpose.msra.mxu0 0.0
    %5110 = vmatprep.subr.mxu0 0.0
    %5111 = vmatpush2.xpose.msra.mxu0 0.0
    %5112 = vmatprep.subr.mxu0 0.0
    %5113 = vmatpush2.xpose.msra.mxu0 0.0
    %5114 = vmatprep.subr.mxu0 0.0
    %5115 = vmatpush2.xpose.msra.mxu0 0.0
    %5116 = vmatprep.subr.mxu0 0.0
    %5117 = vmatpush2.xpose.msra.mxu0 0.0
    %5118 = vmatprep.subr.mxu0 0.0
    %5119 = vmatpush2.xpose.msra.mxu0 0.0
    %5120 = vmatprep.subr.mxu0 0.0
    %5121 = vmatpush2.xpose.msra.mxu0 0.0
    %5122 = vmatprep.subr.mxu0 0.0
    %5123 = vmatpush2.xpose.msra.mxu0 0.0
    %5124 = vmatprep.subr.mxu0 0.0
    %5125 = vmatpush2.xpose.msra.mxu0 0.0
    %5126 = vmatprep.subr.mxu0 0.0
    %5127 = vmatpush2.xpose.msra.mxu0 0.0
    %5128 = vmatprep.subr.mxu0 0.0
    %5129 = vmatpush2.xpose.msra.mxu0 0.0
    %5130 = vmatprep.subr.mxu0 0.0
    %5131 = vmatpush2.xpose.msra.mxu0 0.0
    %5132 = vmatprep.subr.mxu0 0.0
    %5133 = vmatpush2.xpose.msra.mxu0 0.0
    %5134 = vmatprep.subr.mxu0 0.0
    %5135 = vmatpush2.xpose.msra.mxu0 0.0
    %5136 = vmatprep.mubr.f32.mxu0 0.0
    %5137 = vmatmul.mubr.f32.gmra.mxu0 %v5064
    %v5138 = vpop.f32.mrf.mxu0
    %v5139 = vadd.f32 %v5053, %v5138
    %v5140 = vpop.f32.mrf.mxu0
    %5141 = vmatprep.mubr.f32.mxu0 0.0
    %5142 = vmatmul.mubr.f32.gmra.mxu0 %v5066
    %v5143 = vpop.f32.mrf.mxu0
    %v5144 = vadd.f32 %v5053, %v5143
    %v5145 = vpop.f32.mrf.mxu0
    %5146 = vdwg.mxu0
    %v5147 = vmul.f32 %v5139, %v37
    %v5148 = vmul.f32 %v5144, %v38
    %v5149 = vsel %vm166, %v3552, 0
    %v5151 = vsel %vm166, %v3558, 0
    %5153 = vmatprep.subr.mxu0 0.0
    %5154 = vmatpush1.xpose.msra.mxu0 0.0
    %5155 = vmatprep.subr.mxu0 0.0
    %5156 = vmatpush1.xpose.msra.mxu0 0.0
    %5157 = vmatprep.subr.mxu0 0.0
    %5158 = vmatpush1.xpose.msra.mxu0 0.0
    %5159 = vmatprep.subr.mxu0 0.0
    %5160 = vmatpush1.xpose.msra.mxu0 0.0
    %5161 = vmatprep.subr.mxu0 0.0
    %5162 = vmatpush1.xpose.msra.mxu0 0.0
    %5163 = vmatprep.subr.mxu0 0.0
    %5164 = vmatpush1.xpose.msra.mxu0 0.0
    %5165 = vmatprep.subr.mxu0 0.0
    %5166 = vmatpush1.xpose.msra.mxu0 0.0
    %5167 = vmatprep.subr.mxu0 0.0
    %5168 = vmatpush1.xpose.msra.mxu0 0.0
    %5169 = vmatprep.subr.mxu0 0.0
    %5170 = vmatpush1.xpose.msra.mxu0 0.0
    %5171 = vmatprep.subr.mxu0 0.0
    %5172 = vmatpush1.xpose.msra.mxu0 0.0
    %5173 = vmatprep.subr.mxu0 0.0
    %5174 = vmatpush1.xpose.msra.mxu0 0.0
    %5175 = vmatprep.subr.mxu0 0.0
    %5176 = vmatpush1.xpose.msra.mxu0 0.0
    %5177 = vmatprep.subr.mxu0 0.0
    %5178 = vmatpush1.xpose.msra.mxu0 0.0
    %5179 = vmatprep.subr.mxu0 0.0
    %5180 = vmatpush1.xpose.msra.mxu0 0.0
    %5181 = vmatprep.subr.mxu0 0.0
    %5182 = vmatpush1.xpose.msra.mxu0 %v5070
    %5183 = vmatprep.subr.mxu0 0.0
    %5184 = vmatpush1.xpose.msra.mxu0 %v5068
    %5185 = vmatprep.subr.mxu0 0.0
    %5186 = vmatpush2.xpose.msra.mxu0 0.0
    %5187 = vmatprep.subr.mxu0 0.0
    %5188 = vmatpush2.xpose.msra.mxu0 0.0
    %5189 = vmatprep.subr.mxu0 0.0
    %5190 = vmatpush2.xpose.msra.mxu0 0.0
    %5191 = vmatprep.subr.mxu0 0.0
    %5192 = vmatpush2.xpose.msra.mxu0 0.0
    %5193 = vmatprep.subr.mxu0 0.0
    %5194 = vmatpush2.xpose.msra.mxu0 0.0
    %5195 = vmatprep.subr.mxu0 0.0
    %5196 = vmatpush2.xpose.msra.mxu0 0.0
    %5197 = vmatprep.subr.mxu0 0.0
    %5198 = vmatpush2.xpose.msra.mxu0 0.0
    %5199 = vmatprep.subr.mxu0 0.0
    %5200 = vmatpush2.xpose.msra.mxu0 0.0
    %5201 = vmatprep.subr.mxu0 0.0
    %5202 = vmatpush2.xpose.msra.mxu0 0.0
    %5203 = vmatprep.subr.mxu0 0.0
    %5204 = vmatpush2.xpose.msra.mxu0 0.0
    %5205 = vmatprep.subr.mxu0 0.0
    %5206 = vmatpush2.xpose.msra.mxu0 0.0
    %5207 = vmatprep.subr.mxu0 0.0
    %5208 = vmatpush2.xpose.msra.mxu0 0.0
    %5209 = vmatprep.subr.mxu0 0.0
    %5210 = vmatpush2.xpose.msra.mxu0 0.0
    %5211 = vmatprep.subr.mxu0 0.0
    %5212 = vmatpush2.xpose.msra.mxu0 0.0
    %5213 = vmatprep.subr.mxu0 0.0
    %5214 = vmatpush2.xpose.msra.mxu0 0.0
    %5215 = vmatprep.subr.mxu0 0.0
    %5216 = vmatpush2.xpose.msra.mxu0 0.0
    %5217 = vmatprep.mubr.f32.mxu0 0.0
    %5218 = vmatmul.mubr.f32.gmra.mxu0 %v5149
    %v5219 = vpop.f32.mrf.mxu0
    %v5220 = vadd.f32 %v5147, %v5219
    %v5221 = vpop.f32.mrf.mxu0
    %5222 = vmatprep.mubr.f32.mxu0 0.0
    %5223 = vmatmul.mubr.f32.gmra.mxu0 %v5151
    %v5224 = vpop.f32.mrf.mxu0
    %v5225 = vadd.f32 %v5148, %v5224
    %v5226 = vpop.f32.mrf.mxu0
    %5227 = vdwg.mxu0
    %v5228 = vld [vmem:[%s3560 + $0x13] sm:$0x1]
    %v5229 = vlaneseq
    %v5230 = vshrl.u32 %v5229, 7
    %v5231 = vsub.s32 0, %v5230
    %v5232 = vrot.slane %v5228, %v5231
    %5233 = vrot.lane.b32.xlu0 %v3552, 96
    %v5234 = vpop.permute.xlu0 %5233
    %5235 = vrot.lane.b32.xlu0 %v3558, 96
    %v5236 = vpop.permute.xlu0 %5235
    %v5237 = vsel %vm166, %v5234, 0
    %v5239 = vsel %vm166, %v5236, 0
    %5241 = vmatprep.subr.mxu0 0.0
    %5242 = vmatpush1.xpose.msra.mxu0 0.0
    %5243 = vmatprep.subr.mxu0 0.0
    %5244 = vmatpush1.xpose.msra.mxu0 0.0
    %5245 = vmatprep.subr.mxu0 0.0
    %5246 = vmatpush1.xpose.msra.mxu0 0.0
    %5247 = vmatprep.subr.mxu0 0.0
    %5248 = vmatpush1.xpose.msra.mxu0 0.0
    %5249 = vmatprep.subr.mxu0 0.0
    %5250 = vmatpush1.xpose.msra.mxu0 0.0
    %5251 = vmatprep.subr.mxu0 0.0
    %5252 = vmatpush1.xpose.msra.mxu0 0.0
    %5253 = vmatprep.subr.mxu0 0.0
    %5254 = vmatpush1.xpose.msra.mxu0 0.0
    %5255 = vmatprep.subr.mxu0 0.0
    %5256 = vmatpush1.xpose.msra.mxu0 0.0
    %5257 = vmatprep.subr.mxu0 0.0
    %5258 = vmatpush1.xpose.msra.mxu0 0.0
    %5259 = vmatprep.subr.mxu0 0.0
    %5260 = vmatpush1.xpose.msra.mxu0 0.0
    %5261 = vmatprep.subr.mxu0 0.0
    %5262 = vmatpush1.xpose.msra.mxu0 0.0
    %5263 = vmatprep.subr.mxu0 0.0
    %5264 = vmatpush1.xpose.msra.mxu0 0.0
    %5265 = vmatprep.subr.mxu0 0.0
    %5266 = vmatpush1.xpose.msra.mxu0 0.0
    %5267 = vmatprep.subr.mxu0 0.0
    %5268 = vmatpush1.xpose.msra.mxu0 0.0
    %5269 = vmatprep.subr.mxu0 0.0
    %5270 = vmatpush1.xpose.msra.mxu0 %v5070
    %5271 = vmatprep.subr.mxu0 0.0
    %5272 = vmatpush1.xpose.msra.mxu0 %v5068
    %5273 = vmatprep.subr.mxu0 0.0
    %5274 = vmatpush2.xpose.msra.mxu0 0.0
    %5275 = vmatprep.subr.mxu0 0.0
    %5276 = vmatpush2.xpose.msra.mxu0 0.0
    %5277 = vmatprep.subr.mxu0 0.0
    %5278 = vmatpush2.xpose.msra.mxu0 0.0
    %5279 = vmatprep.subr.mxu0 0.0
    %5280 = vmatpush2.xpose.msra.mxu0 0.0
    %5281 = vmatprep.subr.mxu0 0.0
    %5282 = vmatpush2.xpose.msra.mxu0 0.0
    %5283 = vmatprep.subr.mxu0 0.0
    %5284 = vmatpush2.xpose.msra.mxu0 0.0
    %5285 = vmatprep.subr.mxu0 0.0
    %5286 = vmatpush2.xpose.msra.mxu0 0.0
    %5287 = vmatprep.subr.mxu0 0.0
    %5288 = vmatpush2.xpose.msra.mxu0 0.0
    %5289 = vmatprep.subr.mxu0 0.0
    %5290 = vmatpush2.xpose.msra.mxu0 0.0
    %5291 = vmatprep.subr.mxu0 0.0
    %5292 = vmatpush2.xpose.msra.mxu0 0.0
    %5293 = vmatprep.subr.mxu0 0.0
    %5294 = vmatpush2.xpose.msra.mxu0 0.0
    %5295 = vmatprep.subr.mxu0 0.0
    %5296 = vmatpush2.xpose.msra.mxu0 0.0
    %5297 = vmatprep.subr.mxu0 0.0
    %5298 = vmatpush2.xpose.msra.mxu0 0.0
    %5299 = vmatprep.subr.mxu0 0.0
    %5300 = vmatpush2.xpose.msra.mxu0 0.0
    %5301 = vmatprep.subr.mxu0 0.0
    %5302 = vmatpush2.xpose.msra.mxu0 0.0
    %5303 = vmatprep.subr.mxu0 0.0
    %5304 = vmatpush2.xpose.msra.mxu0 0.0
    %5305 = vmatprep.mubr.f32.mxu0 0.0
    %5306 = vmatmul.mubr.f32.gmra.mxu0 %v5237
    %v5307 = vpop.f32.mrf.mxu0
    %v5308 = vadd.f32 %v5232, %v5307
    %v5309 = vpop.f32.mrf.mxu0
    %5310 = vmatprep.mubr.f32.mxu0 0.0
    %5311 = vmatmul.mubr.f32.gmra.mxu0 %v5239
    %v5312 = vpop.f32.mrf.mxu0
    %v5313 = vadd.f32 %v5232, %v5312
    %v5314 = vpop.f32.mrf.mxu0
    %5315 = vdwg.mxu0
    %v5316 = vmul.f32 %v5308, %v39
    %v5317 = vmul.f32 %v5313, %v40
    %v5318 = vadd.f32 %v5220, %v5316
    %v5319 = vadd.f32 %v5225, %v5317
    %v5320 = vld [vmem:[%s3560 + $0x14] sm:$0x1]
    %v5321 = vlaneseq
    %v5322 = vshrl.u32 %v5321, 7
    %v5323 = vsub.s32 0, %v5322
    %v5324 = vrot.slane %v5320, %v5323
    %5325 = vrot.lane.b32.xlu0 %v3552, 88
    %v5326 = vpop.permute.xlu0 %5325
    %5327 = vrot.lane.b32.xlu0 %v3558, 88
    %v5328 = vpop.permute.xlu0 %5327
    %v5329 = vsel %vm166, %v5326, 0
    %v5331 = vsel %vm166, %v5328, 0
    %5333 = vmatprep.subr.mxu0 0.0
    %5334 = vmatpush1.xpose.msra.mxu0 0.0
    %5335 = vmatprep.subr.mxu0 0.0
    %5336 = vmatpush1.xpose.msra.mxu0 0.0
    %5337 = vmatprep.subr.mxu0 0.0
    %5338 = vmatpush1.xpose.msra.mxu0 0.0
    %5339 = vmatprep.subr.mxu0 0.0
    %5340 = vmatpush1.xpose.msra.mxu0 0.0
    %5341 = vmatprep.subr.mxu0 0.0
    %5342 = vmatpush1.xpose.msra.mxu0 0.0
    %5343 = vmatprep.subr.mxu0 0.0
    %5344 = vmatpush1.xpose.msra.mxu0 0.0
    %5345 = vmatprep.subr.mxu0 0.0
    %5346 = vmatpush1.xpose.msra.mxu0 0.0
    %5347 = vmatprep.subr.mxu0 0.0
    %5348 = vmatpush1.xpose.msra.mxu0 0.0
    %5349 = vmatprep.subr.mxu0 0.0
    %5350 = vmatpush1.xpose.msra.mxu0 0.0
    %5351 = vmatprep.subr.mxu0 0.0
    %5352 = vmatpush1.xpose.msra.mxu0 0.0
    %5353 = vmatprep.subr.mxu0 0.0
    %5354 = vmatpush1.xpose.msra.mxu0 0.0
    %5355 = vmatprep.subr.mxu0 0.0
    %5356 = vmatpush1.xpose.msra.mxu0 0.0
    %5357 = vmatprep.subr.mxu0 0.0
    %5358 = vmatpush1.xpose.msra.mxu0 0.0
    %5359 = vmatprep.subr.mxu0 0.0
    %5360 = vmatpush1.xpose.msra.mxu0 0.0
    %5361 = vmatprep.subr.mxu0 0.0
    %5362 = vmatpush1.xpose.msra.mxu0 %v5070
    %5363 = vmatprep.subr.mxu0 0.0
    %5364 = vmatpush1.xpose.msra.mxu0 %v5068
    %5365 = vmatprep.subr.mxu0 0.0
    %5366 = vmatpush2.xpose.msra.mxu0 0.0
    %5367 = vmatprep.subr.mxu0 0.0
    %5368 = vmatpush2.xpose.msra.mxu0 0.0
    %5369 = vmatprep.subr.mxu0 0.0
    %5370 = vmatpush2.xpose.msra.mxu0 0.0
    %5371 = vmatprep.subr.mxu0 0.0
    %5372 = vmatpush2.xpose.msra.mxu0 0.0
    %5373 = vmatprep.subr.mxu0 0.0
    %5374 = vmatpush2.xpose.msra.mxu0 0.0
    %5375 = vmatprep.subr.mxu0 0.0
    %5376 = vmatpush2.xpose.msra.mxu0 0.0
    %5377 = vmatprep.subr.mxu0 0.0
    %5378 = vmatpush2.xpose.msra.mxu0 0.0
    %5379 = vmatprep.subr.mxu0 0.0
    %5380 = vmatpush2.xpose.msra.mxu0 0.0
    %5381 = vmatprep.subr.mxu0 0.0
    %5382 = vmatpush2.xpose.msra.mxu0 0.0
    %5383 = vmatprep.subr.mxu0 0.0
    %5384 = vmatpush2.xpose.msra.mxu0 0.0
    %5385 = vmatprep.subr.mxu0 0.0
    %5386 = vmatpush2.xpose.msra.mxu0 0.0
    %5387 = vmatprep.subr.mxu0 0.0
    %5388 = vmatpush2.xpose.msra.mxu0 0.0
    %5389 = vmatprep.subr.mxu0 0.0
    %5390 = vmatpush2.xpose.msra.mxu0 0.0
    %5391 = vmatprep.subr.mxu0 0.0
    %5392 = vmatpush2.xpose.msra.mxu0 0.0
    %5393 = vmatprep.subr.mxu0 0.0
    %5394 = vmatpush2.xpose.msra.mxu0 0.0
    %5395 = vmatprep.subr.mxu0 0.0
    %5396 = vmatpush2.xpose.msra.mxu0 0.0
    %5397 = vmatprep.mubr.f32.mxu0 0.0
    %5398 = vmatmul.mubr.f32.gmra.mxu0 %v5329
    %v5399 = vpop.f32.mrf.mxu0
    %v5400 = vadd.f32 %v5324, %v5399
    %v5401 = vpop.f32.mrf.mxu0
    %5402 = vmatprep.mubr.f32.mxu0 0.0
    %5403 = vmatmul.mubr.f32.gmra.mxu0 %v5331
    %v5404 = vpop.f32.mrf.mxu0
    %v5405 = vadd.f32 %v5324, %v5404
    %v5406 = vpop.f32.mrf.mxu0
    %5407 = vdwg.mxu0
    %v5408 = vmul.f32 %v5400, %v41
    %v5409 = vmul.f32 %v5405, %v42
    %v5410 = vadd.f32 %v5318, %v5408
    %v5411 = vadd.f32 %v5319, %v5409
    %v5412 = vld [vmem:[%s3560 + $0x15] sm:$0x1]
    %v5413 = vlaneseq
    %v5414 = vshrl.u32 %v5413, 7
    %v5415 = vsub.s32 0, %v5414
    %v5416 = vrot.slane %v5412, %v5415
    %5417 = vrot.lane.b32.xlu0 %v3552, 80
    %v5418 = vpop.permute.xlu0 %5417
    %5419 = vrot.lane.b32.xlu0 %v3558, 80
    %v5420 = vpop.permute.xlu0 %5419
    %v5421 = vsel %vm166, %v5418, 0
    %v5423 = vsel %vm166, %v5420, 0
    %5425 = vmatprep.subr.mxu0 0.0
    %5426 = vmatpush1.xpose.msra.mxu0 0.0
    %5427 = vmatprep.subr.mxu0 0.0
    %5428 = vmatpush1.xpose.msra.mxu0 0.0
    %5429 = vmatprep.subr.mxu0 0.0
    %5430 = vmatpush1.xpose.msra.mxu0 0.0
    %5431 = vmatprep.subr.mxu0 0.0
    %5432 = vmatpush1.xpose.msra.mxu0 0.0
    %5433 = vmatprep.subr.mxu0 0.0
    %5434 = vmatpush1.xpose.msra.mxu0 0.0
    %5435 = vmatprep.subr.mxu0 0.0
    %5436 = vmatpush1.xpose.msra.mxu0 0.0
    %5437 = vmatprep.subr.mxu0 0.0
    %5438 = vmatpush1.xpose.msra.mxu0 0.0
    %5439 = vmatprep.subr.mxu0 0.0
    %5440 = vmatpush1.xpose.msra.mxu0 0.0
    %5441 = vmatprep.subr.mxu0 0.0
    %5442 = vmatpush1.xpose.msra.mxu0 0.0
    %5443 = vmatprep.subr.mxu0 0.0
    %5444 = vmatpush1.xpose.msra.mxu0 0.0
    %5445 = vmatprep.subr.mxu0 0.0
    %5446 = vmatpush1.xpose.msra.mxu0 0.0
    %5447 = vmatprep.subr.mxu0 0.0
    %5448 = vmatpush1.xpose.msra.mxu0 0.0
    %5449 = vmatprep.subr.mxu0 0.0
    %5450 = vmatpush1.xpose.msra.mxu0 0.0
    %5451 = vmatprep.subr.mxu0 0.0
    %5452 = vmatpush1.xpose.msra.mxu0 0.0
    %5453 = vmatprep.subr.mxu0 0.0
    %5454 = vmatpush1.xpose.msra.mxu0 %v5070
    %5455 = vmatprep.subr.mxu0 0.0
    %5456 = vmatpush1.xpose.msra.mxu0 %v5068
    %5457 = vmatprep.subr.mxu0 0.0
    %5458 = vmatpush2.xpose.msra.mxu0 0.0
    %5459 = vmatprep.subr.mxu0 0.0
    %5460 = vmatpush2.xpose.msra.mxu0 0.0
    %5461 = vmatprep.subr.mxu0 0.0
    %5462 = vmatpush2.xpose.msra.mxu0 0.0
    %5463 = vmatprep.subr.mxu0 0.0
    %5464 = vmatpush2.xpose.msra.mxu0 0.0
    %5465 = vmatprep.subr.mxu0 0.0
    %5466 = vmatpush2.xpose.msra.mxu0 0.0
    %5467 = vmatprep.subr.mxu0 0.0
    %5468 = vmatpush2.xpose.msra.mxu0 0.0
    %5469 = vmatprep.subr.mxu0 0.0
    %5470 = vmatpush2.xpose.msra.mxu0 0.0
    %5471 = vmatprep.subr.mxu0 0.0
    %5472 = vmatpush2.xpose.msra.mxu0 0.0
    %5473 = vmatprep.subr.mxu0 0.0
    %5474 = vmatpush2.xpose.msra.mxu0 0.0
    %5475 = vmatprep.subr.mxu0 0.0
    %5476 = vmatpush2.xpose.msra.mxu0 0.0
    %5477 = vmatprep.subr.mxu0 0.0
    %5478 = vmatpush2.xpose.msra.mxu0 0.0
    %5479 = vmatprep.subr.mxu0 0.0
    %5480 = vmatpush2.xpose.msra.mxu0 0.0
    %5481 = vmatprep.subr.mxu0 0.0
    %5482 = vmatpush2.xpose.msra.mxu0 0.0
    %5483 = vmatprep.subr.mxu0 0.0
    %5484 = vmatpush2.xpose.msra.mxu0 0.0
    %5485 = vmatprep.subr.mxu0 0.0
    %5486 = vmatpush2.xpose.msra.mxu0 0.0
    %5487 = vmatprep.subr.mxu0 0.0
    %5488 = vmatpush2.xpose.msra.mxu0 0.0
    %5489 = vmatprep.mubr.f32.mxu0 0.0
    %5490 = vmatmul.mubr.f32.gmra.mxu0 %v5421
    %v5491 = vpop.f32.mrf.mxu0
    %v5492 = vadd.f32 %v5416, %v5491
    %v5493 = vpop.f32.mrf.mxu0
    %5494 = vmatprep.mubr.f32.mxu0 0.0
    %5495 = vmatmul.mubr.f32.gmra.mxu0 %v5423
    %v5496 = vpop.f32.mrf.mxu0
    %v5497 = vadd.f32 %v5416, %v5496
    %v5498 = vpop.f32.mrf.mxu0
    %5499 = vdwg.mxu0
    %v5500 = vmul.f32 %v5492, %v43
    %v5501 = vmul.f32 %v5497, %v44
    %v5502 = vadd.f32 %v5410, %v5500
    %v5503 = vadd.f32 %v5411, %v5501
    %v5504 = vld [vmem:[%s3560 + $0x16] sm:$0x1]
    %v5505 = vlaneseq
    %v5506 = vshrl.u32 %v5505, 7
    %v5507 = vsub.s32 0, %v5506
    %v5508 = vrot.slane %v5504, %v5507
    %5509 = vrot.lane.b32.xlu0 %v3552, 72
    %v5510 = vpop.permute.xlu0 %5509
    %5511 = vrot.lane.b32.xlu0 %v3558, 72
    %v5512 = vpop.permute.xlu0 %5511
    %v5513 = vsel %vm166, %v5510, 0
    %v5515 = vsel %vm166, %v5512, 0
    %5517 = vmatprep.subr.mxu0 0.0
    %5518 = vmatpush1.xpose.msra.mxu0 0.0
    %5519 = vmatprep.subr.mxu0 0.0
    %5520 = vmatpush1.xpose.msra.mxu0 0.0
    %5521 = vmatprep.subr.mxu0 0.0
    %5522 = vmatpush1.xpose.msra.mxu0 0.0
    %5523 = vmatprep.subr.mxu0 0.0
    %5524 = vmatpush1.xpose.msra.mxu0 0.0
    %5525 = vmatprep.subr.mxu0 0.0
    %5526 = vmatpush1.xpose.msra.mxu0 0.0
    %5527 = vmatprep.subr.mxu0 0.0
    %5528 = vmatpush1.xpose.msra.mxu0 0.0
    %5529 = vmatprep.subr.mxu0 0.0
    %5530 = vmatpush1.xpose.msra.mxu0 0.0
    %5531 = vmatprep.subr.mxu0 0.0
    %5532 = vmatpush1.xpose.msra.mxu0 0.0
    %5533 = vmatprep.subr.mxu0 0.0
    %5534 = vmatpush1.xpose.msra.mxu0 0.0
    %5535 = vmatprep.subr.mxu0 0.0
    %5536 = vmatpush1.xpose.msra.mxu0 0.0
    %5537 = vmatprep.subr.mxu0 0.0
    %5538 = vmatpush1.xpose.msra.mxu0 0.0
    %5539 = vmatprep.subr.mxu0 0.0
    %5540 = vmatpush1.xpose.msra.mxu0 0.0
    %5541 = vmatprep.subr.mxu0 0.0
    %5542 = vmatpush1.xpose.msra.mxu0 0.0
    %5543 = vmatprep.subr.mxu0 0.0
    %5544 = vmatpush1.xpose.msra.mxu0 0.0
    %5545 = vmatprep.subr.mxu0 0.0
    %5546 = vmatpush1.xpose.msra.mxu0 %v5070
    %5547 = vmatprep.subr.mxu0 0.0
    %5548 = vmatpush1.xpose.msra.mxu0 %v5068
    %5549 = vmatprep.subr.mxu0 0.0
    %5550 = vmatpush2.xpose.msra.mxu0 0.0
    %5551 = vmatprep.subr.mxu0 0.0
    %5552 = vmatpush2.xpose.msra.mxu0 0.0
    %5553 = vmatprep.subr.mxu0 0.0
    %5554 = vmatpush2.xpose.msra.mxu0 0.0
    %5555 = vmatprep.subr.mxu0 0.0
    %5556 = vmatpush2.xpose.msra.mxu0 0.0
    %5557 = vmatprep.subr.mxu0 0.0
    %5558 = vmatpush2.xpose.msra.mxu0 0.0
    %5559 = vmatprep.subr.mxu0 0.0
    %5560 = vmatpush2.xpose.msra.mxu0 0.0
    %5561 = vmatprep.subr.mxu0 0.0
    %5562 = vmatpush2.xpose.msra.mxu0 0.0
    %5563 = vmatprep.subr.mxu0 0.0
    %5564 = vmatpush2.xpose.msra.mxu0 0.0
    %5565 = vmatprep.subr.mxu0 0.0
    %5566 = vmatpush2.xpose.msra.mxu0 0.0
    %5567 = vmatprep.subr.mxu0 0.0
    %5568 = vmatpush2.xpose.msra.mxu0 0.0
    %5569 = vmatprep.subr.mxu0 0.0
    %5570 = vmatpush2.xpose.msra.mxu0 0.0
    %5571 = vmatprep.subr.mxu0 0.0
    %5572 = vmatpush2.xpose.msra.mxu0 0.0
    %5573 = vmatprep.subr.mxu0 0.0
    %5574 = vmatpush2.xpose.msra.mxu0 0.0
    %5575 = vmatprep.subr.mxu0 0.0
    %5576 = vmatpush2.xpose.msra.mxu0 0.0
    %5577 = vmatprep.subr.mxu0 0.0
    %5578 = vmatpush2.xpose.msra.mxu0 0.0
    %5579 = vmatprep.subr.mxu0 0.0
    %5580 = vmatpush2.xpose.msra.mxu0 0.0
    %5581 = vmatprep.mubr.f32.mxu0 0.0
    %5582 = vmatmul.mubr.f32.gmra.mxu0 %v5513
    %v5583 = vpop.f32.mrf.mxu0
    %v5584 = vadd.f32 %v5508, %v5583
    %v5585 = vpop.f32.mrf.mxu0
    %5586 = vmatprep.mubr.f32.mxu0 0.0
    %5587 = vmatmul.mubr.f32.gmra.mxu0 %v5515
    %v5588 = vpop.f32.mrf.mxu0
    %v5589 = vadd.f32 %v5508, %v5588
    %v5590 = vpop.f32.mrf.mxu0
    %5591 = vdwg.mxu0
    %v5592 = vmul.f32 %v5584, %v45
    %v5593 = vmul.f32 %v5589, %v46
    %v5594 = vadd.f32 %v5502, %v5592
    %v5595 = vadd.f32 %v5503, %v5593
    %v5596 = vmul.f32 %v5594, 0.35355338
    %v5597 = vmul.f32 %v5595, 0.35355338
    %v5598 = vadd.f32 %v5596, %v35
    %v5599 = vadd.f32 %v5597, %v36
    %v5600 = vsel %vm703, %v5598, -inf
    %5601 = vmax.xlane.f32.xlu0 %v5600
    %v5602 = vpop.xlane.xlu0 %5601
    %v5603 = vsel %vm703, %v5599, -inf
    %5604 = vmax.xlane.f32.xlu0 %v5603
    %v5605 = vpop.xlane.xlu0 %5604
    %v5606 = vsub.f32 %v5598, %v5602
    %v5607 = vsub.f32 %v5599, %v5605
    %v5608 = vmul.f32 %v5606, 1.442695
    %v5609 = vpow.pop %v5608
    %v5610 = vmul.f32 %v5607, 1.442695
    %v5611 = vpow.pop %v5610
    %v5612 = vsel %vm703, %v5609, 0.0
    %5613 = vadd.xlane.f32.xlu0 %v5612
    %v5614 = vpop.xlane.xlu0 %5613
    %v5615 = vsel %vm703, %v5611, 0.0
    %5616 = vadd.xlane.f32.xlu0 %v5615
    %v5617 = vpop.xlane.xlu0 %5616
    %v5618 = vrcp.pop %v5614
    %v5619 = vmul.f32 %v5609, %v5618
    %v5620 = vrcp.pop %v5617
    %v5621 = vmul.f32 %v5611, %v5620
    %5622 = vrot.lane.b32.xlu0 %v3552, 112
    %v5623 = vpop.permute.xlu0 %5622
    %5624 = vrot.lane.b32.xlu0 %v3558, 112
    %v5625 = vpop.permute.xlu0 %5624
    %v5629 = vsel %vm703, %v5619, 0
    %v5632 = vsel %vm703, %v5621, 0
    %5634 = vmatprep.subr.mxu0 0.0
    %5635 = vmatpush1.msra.mxu0 0.0
    %5636 = vmatprep.subr.mxu0 0.0
    %5637 = vmatpush1.msra.mxu0 0.0
    %5638 = vmatprep.subr.mxu0 0.0
    %5639 = vmatpush1.msra.mxu0 0.0
    %5640 = vmatprep.subr.mxu0 0.0
    %5641 = vmatpush1.msra.mxu0 0.0
    %5642 = vmatprep.subr.mxu0 0.0
    %5643 = vmatpush1.msra.mxu0 0.0
    %5644 = vmatprep.subr.mxu0 0.0
    %5645 = vmatpush1.msra.mxu0 0.0
    %5646 = vmatprep.subr.mxu0 0.0
    %5647 = vmatpush1.msra.mxu0 0.0
    %5648 = vmatprep.subr.mxu0 0.0
    %5649 = vmatpush1.msra.mxu0 0.0
    %5650 = vmatprep.subr.mxu0 0.0
    %5651 = vmatpush1.msra.mxu0 0.0
    %5652 = vmatprep.subr.mxu0 0.0
    %5653 = vmatpush1.msra.mxu0 0.0
    %5654 = vmatprep.subr.mxu0 0.0
    %5655 = vmatpush1.msra.mxu0 0.0
    %5656 = vmatprep.subr.mxu0 0.0
    %5657 = vmatpush1.msra.mxu0 0.0
    %5658 = vmatprep.subr.mxu0 0.0
    %5659 = vmatpush1.msra.mxu0 0.0
    %5660 = vmatprep.subr.mxu0 0.0
    %5661 = vmatpush1.msra.mxu0 0.0
    %5662 = vmatprep.subr.mxu0 0.0
    %5663 = vmatpush1.msra.mxu0 %v5625
    %5664 = vmatprep.subr.mxu0 0.0
    %5665 = vmatpush1.msra.mxu0 %v5623
    %5666 = vmatprep.subr.mxu0 0.0
    %5667 = vmatpush2.msra.mxu0 0.0
    %5668 = vmatprep.subr.mxu0 0.0
    %5669 = vmatpush2.msra.mxu0 0.0
    %5670 = vmatprep.subr.mxu0 0.0
    %5671 = vmatpush2.msra.mxu0 0.0
    %5672 = vmatprep.subr.mxu0 0.0
    %5673 = vmatpush2.msra.mxu0 0.0
    %5674 = vmatprep.subr.mxu0 0.0
    %5675 = vmatpush2.msra.mxu0 0.0
    %5676 = vmatprep.subr.mxu0 0.0
    %5677 = vmatpush2.msra.mxu0 0.0
    %5678 = vmatprep.subr.mxu0 0.0
    %5679 = vmatpush2.msra.mxu0 0.0
    %5680 = vmatprep.subr.mxu0 0.0
    %5681 = vmatpush2.msra.mxu0 0.0
    %5682 = vmatprep.subr.mxu0 0.0
    %5683 = vmatpush2.msra.mxu0 0.0
    %5684 = vmatprep.subr.mxu0 0.0
    %5685 = vmatpush2.msra.mxu0 0.0
    %5686 = vmatprep.subr.mxu0 0.0
    %5687 = vmatpush2.msra.mxu0 0.0
    %5688 = vmatprep.subr.mxu0 0.0
    %5689 = vmatpush2.msra.mxu0 0.0
    %5690 = vmatprep.subr.mxu0 0.0
    %5691 = vmatpush2.msra.mxu0 0.0
    %5692 = vmatprep.subr.mxu0 0.0
    %5693 = vmatpush2.msra.mxu0 0.0
    %5694 = vmatprep.subr.mxu0 0.0
    %5695 = vmatpush2.msra.mxu0 0.0
    %5696 = vmatprep.subr.mxu0 0.0
    %5697 = vmatpush2.msra.mxu0 0.0
    %5698 = vmatprep.mubr.f32.mxu0 0.0
    %5699 = vmatmul.mubr.f32.gmra.mxu0 %v5629
    %v5700 = vpop.f32.mrf.mxu0
    %v5701 = vadd.f32 0.0, %v5700
    %v5702 = vpop.f32.mrf.mxu0
    %5703 = vmatprep.mubr.f32.mxu0 0.0
    %5704 = vmatmul.mubr.f32.gmra.mxu0 %v5632
    %v5705 = vpop.f32.mrf.mxu0
    %v5706 = vadd.f32 0.0, %v5705
    %v5707 = vpop.f32.mrf.mxu0
    %5708 = vdwg.mxu0
    %s5709 = scalar_lea.vmem %s5, 48
    %v5710 = vld [vmem:[%s5709] sm:$0xff]
    %v5712 = vsel %vm166, %v5701, 0
    %v5715 = vsel %vm166, %v5706, 0
    %5717 = vmatprep.subr.mxu0 0.0
    %5718 = vmatpush1.msra.mxu0 0.0
    %5719 = vmatprep.subr.mxu0 0.0
    %5720 = vmatpush1.msra.mxu0 0.0
    %5721 = vmatprep.subr.mxu0 0.0
    %5722 = vmatpush1.msra.mxu0 0.0
    %5723 = vmatprep.subr.mxu0 0.0
    %5724 = vmatpush1.msra.mxu0 0.0
    %5725 = vmatprep.subr.mxu0 0.0
    %5726 = vmatpush1.msra.mxu0 0.0
    %5727 = vmatprep.subr.mxu0 0.0
    %5728 = vmatpush1.msra.mxu0 0.0
    %5729 = vmatprep.subr.mxu0 0.0
    %5730 = vmatpush1.msra.mxu0 0.0
    %5731 = vmatprep.subr.mxu0 0.0
    %5732 = vmatpush1.msra.mxu0 0.0
    %5733 = vmatprep.subr.mxu0 0.0
    %5734 = vmatpush1.msra.mxu0 0.0
    %5735 = vmatprep.subr.mxu0 0.0
    %5736 = vmatpush1.msra.mxu0 0.0
    %5737 = vmatprep.subr.mxu0 0.0
    %5738 = vmatpush1.msra.mxu0 0.0
    %5739 = vmatprep.subr.mxu0 0.0
    %5740 = vmatpush1.msra.mxu0 0.0
    %5741 = vmatprep.subr.mxu0 0.0
    %5742 = vmatpush1.msra.mxu0 0.0
    %5743 = vmatprep.subr.mxu0 0.0
    %5744 = vmatpush1.msra.mxu0 0.0
    %5745 = vmatprep.subr.mxu0 0.0
    %5746 = vmatpush1.msra.mxu0 0.0
    %5747 = vmatprep.subr.mxu0 0.0
    %5748 = vmatpush1.msra.mxu0 %v5710
    %5749 = vmatprep.subr.mxu0 0.0
    %5750 = vmatpush2.msra.mxu0 0.0
    %5751 = vmatprep.subr.mxu0 0.0
    %5752 = vmatpush2.msra.mxu0 0.0
    %5753 = vmatprep.subr.mxu0 0.0
    %5754 = vmatpush2.msra.mxu0 0.0
    %5755 = vmatprep.subr.mxu0 0.0
    %5756 = vmatpush2.msra.mxu0 0.0
    %5757 = vmatprep.subr.mxu0 0.0
    %5758 = vmatpush2.msra.mxu0 0.0
    %5759 = vmatprep.subr.mxu0 0.0
    %5760 = vmatpush2.msra.mxu0 0.0
    %5761 = vmatprep.subr.mxu0 0.0
    %5762 = vmatpush2.msra.mxu0 0.0
    %5763 = vmatprep.subr.mxu0 0.0
    %5764 = vmatpush2.msra.mxu0 0.0
    %5765 = vmatprep.subr.mxu0 0.0
    %5766 = vmatpush2.msra.mxu0 0.0
    %5767 = vmatprep.subr.mxu0 0.0
    %5768 = vmatpush2.msra.mxu0 0.0
    %5769 = vmatprep.subr.mxu0 0.0
    %5770 = vmatpush2.msra.mxu0 0.0
    %5771 = vmatprep.subr.mxu0 0.0
    %5772 = vmatpush2.msra.mxu0 0.0
    %5773 = vmatprep.subr.mxu0 0.0
    %5774 = vmatpush2.msra.mxu0 0.0
    %5775 = vmatprep.subr.mxu0 0.0
    %5776 = vmatpush2.msra.mxu0 0.0
    %5777 = vmatprep.subr.mxu0 0.0
    %5778 = vmatpush2.msra.mxu0 0.0
    %5779 = vmatprep.subr.mxu0 0.0
    %5780 = vmatpush2.msra.mxu0 0.0
    %5781 = vmatprep.mubr.f32.mxu0 0.0
    %5782 = vmatmul.mubr.f32.gmra.mxu0 %v5712
    %v5783 = vpop.f32.mrf.mxu0
    %v5784 = vadd.f32 0.0, %v5783
    %v5785 = vpop.f32.mrf.mxu0
    %5786 = vmatprep.mubr.f32.mxu0 0.0
    %5787 = vmatmul.mubr.f32.gmra.mxu0 %v5715
    %v5788 = vpop.f32.mrf.mxu0
    %v5789 = vadd.f32 0.0, %v5788
    %v5790 = vpop.f32.mrf.mxu0
    %5791 = vdwg.mxu0
    %v5792 = vadd.f32 %v5041, %v5784
    %v5793 = vadd.f32 %v5046, %v5789
    %v5794 = vld [vmem:[%s3560 + $0x17] sm:$0x1]
    %v5795 = vlaneseq
    %v5796 = vshrl.u32 %v5795, 7
    %v5797 = vsub.s32 0, %v5796
    %v5798 = vrot.slane %v5794, %v5797
    %5799 = vrot.lane.b32.xlu0 %v3552, 40
    %v5800 = vpop.permute.xlu0 %5799
    %5801 = vrot.lane.b32.xlu0 %v3558, 40
    %v5802 = vpop.permute.xlu0 %5801
    %5803 = vrot.lane.b32.xlu0 %v3552, 56
    %v5804 = vpop.permute.xlu0 %5803
    %5805 = vrot.lane.b32.xlu0 %v3558, 56
    %v5806 = vpop.permute.xlu0 %5805
    %v5807 = vsel %vm166, %v5800, 0
    %v5809 = vsel %vm166, %v5802, 0
    %v5811 = vsel %vm166, %v5804, 0
    %v5813 = vsel %vm166, %v5806, 0
    %5815 = vmatprep.subr.mxu0 0.0
    %5816 = vmatpush1.xpose.msra.mxu0 0.0
    %5817 = vmatprep.subr.mxu0 0.0
    %5818 = vmatpush1.xpose.msra.mxu0 0.0
    %5819 = vmatprep.subr.mxu0 0.0
    %5820 = vmatpush1.xpose.msra.mxu0 0.0
    %5821 = vmatprep.subr.mxu0 0.0
    %5822 = vmatpush1.xpose.msra.mxu0 0.0
    %5823 = vmatprep.subr.mxu0 0.0
    %5824 = vmatpush1.xpose.msra.mxu0 0.0
    %5825 = vmatprep.subr.mxu0 0.0
    %5826 = vmatpush1.xpose.msra.mxu0 0.0
    %5827 = vmatprep.subr.mxu0 0.0
    %5828 = vmatpush1.xpose.msra.mxu0 0.0
    %5829 = vmatprep.subr.mxu0 0.0
    %5830 = vmatpush1.xpose.msra.mxu0 0.0
    %5831 = vmatprep.subr.mxu0 0.0
    %5832 = vmatpush1.xpose.msra.mxu0 0.0
    %5833 = vmatprep.subr.mxu0 0.0
    %5834 = vmatpush1.xpose.msra.mxu0 0.0
    %5835 = vmatprep.subr.mxu0 0.0
    %5836 = vmatpush1.xpose.msra.mxu0 0.0
    %5837 = vmatprep.subr.mxu0 0.0
    %5838 = vmatpush1.xpose.msra.mxu0 0.0
    %5839 = vmatprep.subr.mxu0 0.0
    %5840 = vmatpush1.xpose.msra.mxu0 0.0
    %5841 = vmatprep.subr.mxu0 0.0
    %5842 = vmatpush1.xpose.msra.mxu0 0.0
    %5843 = vmatprep.subr.mxu0 0.0
    %5844 = vmatpush1.xpose.msra.mxu0 %v5813
    %5845 = vmatprep.subr.mxu0 0.0
    %5846 = vmatpush1.xpose.msra.mxu0 %v5811
    %5847 = vmatprep.subr.mxu0 0.0
    %5848 = vmatpush2.xpose.msra.mxu0 0.0
    %5849 = vmatprep.subr.mxu0 0.0
    %5850 = vmatpush2.xpose.msra.mxu0 0.0
    %5851 = vmatprep.subr.mxu0 0.0
    %5852 = vmatpush2.xpose.msra.mxu0 0.0
    %5853 = vmatprep.subr.mxu0 0.0
    %5854 = vmatpush2.xpose.msra.mxu0 0.0
    %5855 = vmatprep.subr.mxu0 0.0
    %5856 = vmatpush2.xpose.msra.mxu0 0.0
    %5857 = vmatprep.subr.mxu0 0.0
    %5858 = vmatpush2.xpose.msra.mxu0 0.0
    %5859 = vmatprep.subr.mxu0 0.0
    %5860 = vmatpush2.xpose.msra.mxu0 0.0
    %5861 = vmatprep.subr.mxu0 0.0
    %5862 = vmatpush2.xpose.msra.mxu0 0.0
    %5863 = vmatprep.subr.mxu0 0.0
    %5864 = vmatpush2.xpose.msra.mxu0 0.0
    %5865 = vmatprep.subr.mxu0 0.0
    %5866 = vmatpush2.xpose.msra.mxu0 0.0
    %5867 = vmatprep.subr.mxu0 0.0
    %5868 = vmatpush2.xpose.msra.mxu0 0.0
    %5869 = vmatprep.subr.mxu0 0.0
    %5870 = vmatpush2.xpose.msra.mxu0 0.0
    %5871 = vmatprep.subr.mxu0 0.0
    %5872 = vmatpush2.xpose.msra.mxu0 0.0
    %5873 = vmatprep.subr.mxu0 0.0
    %5874 = vmatpush2.xpose.msra.mxu0 0.0
    %5875 = vmatprep.subr.mxu0 0.0
    %5876 = vmatpush2.xpose.msra.mxu0 0.0
    %5877 = vmatprep.subr.mxu0 0.0
    %5878 = vmatpush2.xpose.msra.mxu0 0.0
    %5879 = vmatprep.mubr.f32.mxu0 0.0
    %5880 = vmatmul.mubr.f32.gmra.mxu0 %v5807
    %v5881 = vpop.f32.mrf.mxu0
    %v5882 = vadd.f32 %v5798, %v5881
    %v5883 = vpop.f32.mrf.mxu0
    %5884 = vmatprep.mubr.f32.mxu0 0.0
    %5885 = vmatmul.mubr.f32.gmra.mxu0 %v5809
    %v5886 = vpop.f32.mrf.mxu0
    %v5887 = vadd.f32 %v5798, %v5886
    %v5888 = vpop.f32.mrf.mxu0
    %5889 = vdwg.mxu0
    %v5890 = vmul.f32 %v5882, %v37
    %v5891 = vmul.f32 %v5887, %v38
    %5892 = vrot.lane.b32.xlu0 %v3552, 64
    %v5893 = vpop.permute.xlu0 %5892
    %5894 = vrot.lane.b32.xlu0 %v3558, 64
    %v5895 = vpop.permute.xlu0 %5894
    %v5896 = vsel %vm166, %v5893, 0
    %v5898 = vsel %vm166, %v5895, 0
    %5900 = vmatprep.subr.mxu0 0.0
    %5901 = vmatpush1.xpose.msra.mxu0 0.0
    %5902 = vmatprep.subr.mxu0 0.0
    %5903 = vmatpush1.xpose.msra.mxu0 0.0
    %5904 = vmatprep.subr.mxu0 0.0
    %5905 = vmatpush1.xpose.msra.mxu0 0.0
    %5906 = vmatprep.subr.mxu0 0.0
    %5907 = vmatpush1.xpose.msra.mxu0 0.0
    %5908 = vmatprep.subr.mxu0 0.0
    %5909 = vmatpush1.xpose.msra.mxu0 0.0
    %5910 = vmatprep.subr.mxu0 0.0
    %5911 = vmatpush1.xpose.msra.mxu0 0.0
    %5912 = vmatprep.subr.mxu0 0.0
    %5913 = vmatpush1.xpose.msra.mxu0 0.0
    %5914 = vmatprep.subr.mxu0 0.0
    %5915 = vmatpush1.xpose.msra.mxu0 0.0
    %5916 = vmatprep.subr.mxu0 0.0
    %5917 = vmatpush1.xpose.msra.mxu0 0.0
    %5918 = vmatprep.subr.mxu0 0.0
    %5919 = vmatpush1.xpose.msra.mxu0 0.0
    %5920 = vmatprep.subr.mxu0 0.0
    %5921 = vmatpush1.xpose.msra.mxu0 0.0
    %5922 = vmatprep.subr.mxu0 0.0
    %5923 = vmatpush1.xpose.msra.mxu0 0.0
    %5924 = vmatprep.subr.mxu0 0.0
    %5925 = vmatpush1.xpose.msra.mxu0 0.0
    %5926 = vmatprep.subr.mxu0 0.0
    %5927 = vmatpush1.xpose.msra.mxu0 0.0
    %5928 = vmatprep.subr.mxu0 0.0
    %5929 = vmatpush1.xpose.msra.mxu0 %v5813
    %5930 = vmatprep.subr.mxu0 0.0
    %5931 = vmatpush1.xpose.msra.mxu0 %v5811
    %5932 = vmatprep.subr.mxu0 0.0
    %5933 = vmatpush2.xpose.msra.mxu0 0.0
    %5934 = vmatprep.subr.mxu0 0.0
    %5935 = vmatpush2.xpose.msra.mxu0 0.0
    %5936 = vmatprep.subr.mxu0 0.0
    %5937 = vmatpush2.xpose.msra.mxu0 0.0
    %5938 = vmatprep.subr.mxu0 0.0
    %5939 = vmatpush2.xpose.msra.mxu0 0.0
    %5940 = vmatprep.subr.mxu0 0.0
    %5941 = vmatpush2.xpose.msra.mxu0 0.0
    %5942 = vmatprep.subr.mxu0 0.0
    %5943 = vmatpush2.xpose.msra.mxu0 0.0
    %5944 = vmatprep.subr.mxu0 0.0
    %5945 = vmatpush2.xpose.msra.mxu0 0.0
    %5946 = vmatprep.subr.mxu0 0.0
    %5947 = vmatpush2.xpose.msra.mxu0 0.0
    %5948 = vmatprep.subr.mxu0 0.0
    %5949 = vmatpush2.xpose.msra.mxu0 0.0
    %5950 = vmatprep.subr.mxu0 0.0
    %5951 = vmatpush2.xpose.msra.mxu0 0.0
    %5952 = vmatprep.subr.mxu0 0.0
    %5953 = vmatpush2.xpose.msra.mxu0 0.0
    %5954 = vmatprep.subr.mxu0 0.0
    %5955 = vmatpush2.xpose.msra.mxu0 0.0
    %5956 = vmatprep.subr.mxu0 0.0
    %5957 = vmatpush2.xpose.msra.mxu0 0.0
    %5958 = vmatprep.subr.mxu0 0.0
    %5959 = vmatpush2.xpose.msra.mxu0 0.0
    %5960 = vmatprep.subr.mxu0 0.0
    %5961 = vmatpush2.xpose.msra.mxu0 0.0
    %5962 = vmatprep.subr.mxu0 0.0
    %5963 = vmatpush2.xpose.msra.mxu0 0.0
    %5964 = vmatprep.mubr.f32.mxu0 0.0
    %5965 = vmatmul.mubr.f32.gmra.mxu0 %v5896
    %v5966 = vpop.f32.mrf.mxu0
    %v5967 = vadd.f32 %v5890, %v5966
    %v5968 = vpop.f32.mrf.mxu0
    %5969 = vmatprep.mubr.f32.mxu0 0.0
    %5970 = vmatmul.mubr.f32.gmra.mxu0 %v5898
    %v5971 = vpop.f32.mrf.mxu0
    %v5972 = vadd.f32 %v5891, %v5971
    %v5973 = vpop.f32.mrf.mxu0
    %5974 = vdwg.mxu0
    %v5975 = vld [vmem:[%s3560 + $0x18] sm:$0x1]
    %v5976 = vlaneseq
    %v5977 = vshrl.u32 %v5976, 7
    %v5978 = vsub.s32 0, %v5977
    %v5979 = vrot.slane %v5975, %v5978
    %5980 = vrot.lane.b32.xlu0 %v3552, 32
    %v5981 = vpop.permute.xlu0 %5980
    %5982 = vrot.lane.b32.xlu0 %v3558, 32
    %v5983 = vpop.permute.xlu0 %5982
    %v5984 = vsel %vm166, %v5981, 0
    %v5986 = vsel %vm166, %v5983, 0
    %5988 = vmatprep.subr.mxu0 0.0
    %5989 = vmatpush1.xpose.msra.mxu0 0.0
    %5990 = vmatprep.subr.mxu0 0.0
    %5991 = vmatpush1.xpose.msra.mxu0 0.0
    %5992 = vmatprep.subr.mxu0 0.0
    %5993 = vmatpush1.xpose.msra.mxu0 0.0
    %5994 = vmatprep.subr.mxu0 0.0
    %5995 = vmatpush1.xpose.msra.mxu0 0.0
    %5996 = vmatprep.subr.mxu0 0.0
    %5997 = vmatpush1.xpose.msra.mxu0 0.0
    %5998 = vmatprep.subr.mxu0 0.0
    %5999 = vmatpush1.xpose.msra.mxu0 0.0
    %6000 = vmatprep.subr.mxu0 0.0
    %6001 = vmatpush1.xpose.msra.mxu0 0.0
    %6002 = vmatprep.subr.mxu0 0.0
    %6003 = vmatpush1.xpose.msra.mxu0 0.0
    %6004 = vmatprep.subr.mxu0 0.0
    %6005 = vmatpush1.xpose.msra.mxu0 0.0
    %6006 = vmatprep.subr.mxu0 0.0
    %6007 = vmatpush1.xpose.msra.mxu0 0.0
    %6008 = vmatprep.subr.mxu0 0.0
    %6009 = vmatpush1.xpose.msra.mxu0 0.0
    %6010 = vmatprep.subr.mxu0 0.0
    %6011 = vmatpush1.xpose.msra.mxu0 0.0
    %6012 = vmatprep.subr.mxu0 0.0
    %6013 = vmatpush1.xpose.msra.mxu0 0.0
    %6014 = vmatprep.subr.mxu0 0.0
    %6015 = vmatpush1.xpose.msra.mxu0 0.0
    %6016 = vmatprep.subr.mxu0 0.0
    %6017 = vmatpush1.xpose.msra.mxu0 %v5813
    %6018 = vmatprep.subr.mxu0 0.0
    %6019 = vmatpush1.xpose.msra.mxu0 %v5811
    %6020 = vmatprep.subr.mxu0 0.0
    %6021 = vmatpush2.xpose.msra.mxu0 0.0
    %6022 = vmatprep.subr.mxu0 0.0
    %6023 = vmatpush2.xpose.msra.mxu0 0.0
    %6024 = vmatprep.subr.mxu0 0.0
    %6025 = vmatpush2.xpose.msra.mxu0 0.0
    %6026 = vmatprep.subr.mxu0 0.0
    %6027 = vmatpush2.xpose.msra.mxu0 0.0
    %6028 = vmatprep.subr.mxu0 0.0
    %6029 = vmatpush2.xpose.msra.mxu0 0.0
    %6030 = vmatprep.subr.mxu0 0.0
    %6031 = vmatpush2.xpose.msra.mxu0 0.0
    %6032 = vmatprep.subr.mxu0 0.0
    %6033 = vmatpush2.xpose.msra.mxu0 0.0
    %6034 = vmatprep.subr.mxu0 0.0
    %6035 = vmatpush2.xpose.msra.mxu0 0.0
    %6036 = vmatprep.subr.mxu0 0.0
    %6037 = vmatpush2.xpose.msra.mxu0 0.0
    %6038 = vmatprep.subr.mxu0 0.0
    %6039 = vmatpush2.xpose.msra.mxu0 0.0
    %6040 = vmatprep.subr.mxu0 0.0
    %6041 = vmatpush2.xpose.msra.mxu0 0.0
    %6042 = vmatprep.subr.mxu0 0.0
    %6043 = vmatpush2.xpose.msra.mxu0 0.0
    %6044 = vmatprep.subr.mxu0 0.0
    %6045 = vmatpush2.xpose.msra.mxu0 0.0
    %6046 = vmatprep.subr.mxu0 0.0
    %6047 = vmatpush2.xpose.msra.mxu0 0.0
    %6048 = vmatprep.subr.mxu0 0.0
    %6049 = vmatpush2.xpose.msra.mxu0 0.0
    %6050 = vmatprep.subr.mxu0 0.0
    %6051 = vmatpush2.xpose.msra.mxu0 0.0
    %6052 = vmatprep.mubr.f32.mxu0 0.0
    %6053 = vmatmul.mubr.f32.gmra.mxu0 %v5984
    %v6054 = vpop.f32.mrf.mxu0
    %v6055 = vadd.f32 %v5979, %v6054
    %v6056 = vpop.f32.mrf.mxu0
    %6057 = vmatprep.mubr.f32.mxu0 0.0
    %6058 = vmatmul.mubr.f32.gmra.mxu0 %v5986
    %v6059 = vpop.f32.mrf.mxu0
    %v6060 = vadd.f32 %v5979, %v6059
    %v6061 = vpop.f32.mrf.mxu0
    %6062 = vdwg.mxu0
    %v6063 = vmul.f32 %v6055, %v39
    %v6064 = vmul.f32 %v6060, %v40
    %v6065 = vadd.f32 %v5967, %v6063
    %v6066 = vadd.f32 %v5972, %v6064
    %v6067 = vld [vmem:[%s3560 + $0x19] sm:$0x1]
    %v6068 = vlaneseq
    %v6069 = vshrl.u32 %v6068, 7
    %v6070 = vsub.s32 0, %v6069
    %v6071 = vrot.slane %v6067, %v6070
    %6072 = vrot.lane.b32.xlu0 %v3552, 24
    %v6073 = vpop.permute.xlu0 %6072
    %6074 = vrot.lane.b32.xlu0 %v3558, 24
    %v6075 = vpop.permute.xlu0 %6074
    %v6076 = vsel %vm166, %v6073, 0
    %v6078 = vsel %vm166, %v6075, 0
    %6080 = vmatprep.subr.mxu0 0.0
    %6081 = vmatpush1.xpose.msra.mxu0 0.0
    %6082 = vmatprep.subr.mxu0 0.0
    %6083 = vmatpush1.xpose.msra.mxu0 0.0
    %6084 = vmatprep.subr.mxu0 0.0
    %6085 = vmatpush1.xpose.msra.mxu0 0.0
    %6086 = vmatprep.subr.mxu0 0.0
    %6087 = vmatpush1.xpose.msra.mxu0 0.0
    %6088 = vmatprep.subr.mxu0 0.0
    %6089 = vmatpush1.xpose.msra.mxu0 0.0
    %6090 = vmatprep.subr.mxu0 0.0
    %6091 = vmatpush1.xpose.msra.mxu0 0.0
    %6092 = vmatprep.subr.mxu0 0.0
    %6093 = vmatpush1.xpose.msra.mxu0 0.0
    %6094 = vmatprep.subr.mxu0 0.0
    %6095 = vmatpush1.xpose.msra.mxu0 0.0
    %6096 = vmatprep.subr.mxu0 0.0
    %6097 = vmatpush1.xpose.msra.mxu0 0.0
    %6098 = vmatprep.subr.mxu0 0.0
    %6099 = vmatpush1.xpose.msra.mxu0 0.0
    %6100 = vmatprep.subr.mxu0 0.0
    %6101 = vmatpush1.xpose.msra.mxu0 0.0
    %6102 = vmatprep.subr.mxu0 0.0
    %6103 = vmatpush1.xpose.msra.mxu0 0.0
    %6104 = vmatprep.subr.mxu0 0.0
    %6105 = vmatpush1.xpose.msra.mxu0 0.0
    %6106 = vmatprep.subr.mxu0 0.0
    %6107 = vmatpush1.xpose.msra.mxu0 0.0
    %6108 = vmatprep.subr.mxu0 0.0
    %6109 = vmatpush1.xpose.msra.mxu0 %v5813
    %6110 = vmatprep.subr.mxu0 0.0
    %6111 = vmatpush1.xpose.msra.mxu0 %v5811
    %6112 = vmatprep.subr.mxu0 0.0
    %6113 = vmatpush2.xpose.msra.mxu0 0.0
    %6114 = vmatprep.subr.mxu0 0.0
    %6115 = vmatpush2.xpose.msra.mxu0 0.0
    %6116 = vmatprep.subr.mxu0 0.0
    %6117 = vmatpush2.xpose.msra.mxu0 0.0
    %6118 = vmatprep.subr.mxu0 0.0
    %6119 = vmatpush2.xpose.msra.mxu0 0.0
    %6120 = vmatprep.subr.mxu0 0.0
    %6121 = vmatpush2.xpose.msra.mxu0 0.0
    %6122 = vmatprep.subr.mxu0 0.0
    %6123 = vmatpush2.xpose.msra.mxu0 0.0
    %6124 = vmatprep.subr.mxu0 0.0
    %6125 = vmatpush2.xpose.msra.mxu0 0.0
    %6126 = vmatprep.subr.mxu0 0.0
    %6127 = vmatpush2.xpose.msra.mxu0 0.0
    %6128 = vmatprep.subr.mxu0 0.0
    %6129 = vmatpush2.xpose.msra.mxu0 0.0
    %6130 = vmatprep.subr.mxu0 0.0
    %6131 = vmatpush2.xpose.msra.mxu0 0.0
    %6132 = vmatprep.subr.mxu0 0.0
    %6133 = vmatpush2.xpose.msra.mxu0 0.0
    %6134 = vmatprep.subr.mxu0 0.0
    %6135 = vmatpush2.xpose.msra.mxu0 0.0
    %6136 = vmatprep.subr.mxu0 0.0
    %6137 = vmatpush2.xpose.msra.mxu0 0.0
    %6138 = vmatprep.subr.mxu0 0.0
    %6139 = vmatpush2.xpose.msra.mxu0 0.0
    %6140 = vmatprep.subr.mxu0 0.0
    %6141 = vmatpush2.xpose.msra.mxu0 0.0
    %6142 = vmatprep.subr.mxu0 0.0
    %6143 = vmatpush2.xpose.msra.mxu0 0.0
    %6144 = vmatprep.mubr.f32.mxu0 0.0
    %6145 = vmatmul.mubr.f32.gmra.mxu0 %v6076
    %v6146 = vpop.f32.mrf.mxu0
    %v6147 = vadd.f32 %v6071, %v6146
    %v6148 = vpop.f32.mrf.mxu0
    %6149 = vmatprep.mubr.f32.mxu0 0.0
    %6150 = vmatmul.mubr.f32.gmra.mxu0 %v6078
    %v6151 = vpop.f32.mrf.mxu0
    %v6152 = vadd.f32 %v6071, %v6151
    %v6153 = vpop.f32.mrf.mxu0
    %6154 = vdwg.mxu0
    %v6155 = vmul.f32 %v6147, %v41
    %v6156 = vmul.f32 %v6152, %v42
    %v6157 = vadd.f32 %v6065, %v6155
    %v6158 = vadd.f32 %v6066, %v6156
    %v6159 = vld [vmem:[%s3560 + $0x1a] sm:$0x1]
    %v6160 = vlaneseq
    %v6161 = vshrl.u32 %v6160, 7
    %v6162 = vsub.s32 0, %v6161
    %v6163 = vrot.slane %v6159, %v6162
    %6164 = vrot.lane.b32.xlu0 %v3552, 16
    %v6165 = vpop.permute.xlu0 %6164
    %6166 = vrot.lane.b32.xlu0 %v3558, 16
    %v6167 = vpop.permute.xlu0 %6166
    %v6168 = vsel %vm166, %v6165, 0
    %v6170 = vsel %vm166, %v6167, 0
    %6172 = vmatprep.subr.mxu0 0.0
    %6173 = vmatpush1.xpose.msra.mxu0 0.0
    %6174 = vmatprep.subr.mxu0 0.0
    %6175 = vmatpush1.xpose.msra.mxu0 0.0
    %6176 = vmatprep.subr.mxu0 0.0
    %6177 = vmatpush1.xpose.msra.mxu0 0.0
    %6178 = vmatprep.subr.mxu0 0.0
    %6179 = vmatpush1.xpose.msra.mxu0 0.0
    %6180 = vmatprep.subr.mxu0 0.0
    %6181 = vmatpush1.xpose.msra.mxu0 0.0
    %6182 = vmatprep.subr.mxu0 0.0
    %6183 = vmatpush1.xpose.msra.mxu0 0.0
    %6184 = vmatprep.subr.mxu0 0.0
    %6185 = vmatpush1.xpose.msra.mxu0 0.0
    %6186 = vmatprep.subr.mxu0 0.0
    %6187 = vmatpush1.xpose.msra.mxu0 0.0
    %6188 = vmatprep.subr.mxu0 0.0
    %6189 = vmatpush1.xpose.msra.mxu0 0.0
    %6190 = vmatprep.subr.mxu0 0.0
    %6191 = vmatpush1.xpose.msra.mxu0 0.0
    %6192 = vmatprep.subr.mxu0 0.0
    %6193 = vmatpush1.xpose.msra.mxu0 0.0
    %6194 = vmatprep.subr.mxu0 0.0
    %6195 = vmatpush1.xpose.msra.mxu0 0.0
    %6196 = vmatprep.subr.mxu0 0.0
    %6197 = vmatpush1.xpose.msra.mxu0 0.0
    %6198 = vmatprep.subr.mxu0 0.0
    %6199 = vmatpush1.xpose.msra.mxu0 0.0
    %6200 = vmatprep.subr.mxu0 0.0
    %6201 = vmatpush1.xpose.msra.mxu0 %v5813
    %6202 = vmatprep.subr.mxu0 0.0
    %6203 = vmatpush1.xpose.msra.mxu0 %v5811
    %6204 = vmatprep.subr.mxu0 0.0
    %6205 = vmatpush2.xpose.msra.mxu0 0.0
    %6206 = vmatprep.subr.mxu0 0.0
    %6207 = vmatpush2.xpose.msra.mxu0 0.0
    %6208 = vmatprep.subr.mxu0 0.0
    %6209 = vmatpush2.xpose.msra.mxu0 0.0
    %6210 = vmatprep.subr.mxu0 0.0
    %6211 = vmatpush2.xpose.msra.mxu0 0.0
    %6212 = vmatprep.subr.mxu0 0.0
    %6213 = vmatpush2.xpose.msra.mxu0 0.0
    %6214 = vmatprep.subr.mxu0 0.0
    %6215 = vmatpush2.xpose.msra.mxu0 0.0
    %6216 = vmatprep.subr.mxu0 0.0
    %6217 = vmatpush2.xpose.msra.mxu0 0.0
    %6218 = vmatprep.subr.mxu0 0.0
    %6219 = vmatpush2.xpose.msra.mxu0 0.0
    %6220 = vmatprep.subr.mxu0 0.0
    %6221 = vmatpush2.xpose.msra.mxu0 0.0
    %6222 = vmatprep.subr.mxu0 0.0
    %6223 = vmatpush2.xpose.msra.mxu0 0.0
    %6224 = vmatprep.subr.mxu0 0.0
    %6225 = vmatpush2.xpose.msra.mxu0 0.0
    %6226 = vmatprep.subr.mxu0 0.0
    %6227 = vmatpush2.xpose.msra.mxu0 0.0
    %6228 = vmatprep.subr.mxu0 0.0
    %6229 = vmatpush2.xpose.msra.mxu0 0.0
    %6230 = vmatprep.subr.mxu0 0.0
    %6231 = vmatpush2.xpose.msra.mxu0 0.0
    %6232 = vmatprep.subr.mxu0 0.0
    %6233 = vmatpush2.xpose.msra.mxu0 0.0
    %6234 = vmatprep.subr.mxu0 0.0
    %6235 = vmatpush2.xpose.msra.mxu0 0.0
    %6236 = vmatprep.mubr.f32.mxu0 0.0
    %6237 = vmatmul.mubr.f32.gmra.mxu0 %v6168
    %v6238 = vpop.f32.mrf.mxu0
    %v6239 = vadd.f32 %v6163, %v6238
    %v6240 = vpop.f32.mrf.mxu0
    %6241 = vmatprep.mubr.f32.mxu0 0.0
    %6242 = vmatmul.mubr.f32.gmra.mxu0 %v6170
    %v6243 = vpop.f32.mrf.mxu0
    %v6244 = vadd.f32 %v6163, %v6243
    %v6245 = vpop.f32.mrf.mxu0
    %6246 = vdwg.mxu0
    %v6247 = vmul.f32 %v6239, %v43
    %v6248 = vmul.f32 %v6244, %v44
    %v6249 = vadd.f32 %v6157, %v6247
    %v6250 = vadd.f32 %v6158, %v6248
    %v6251 = vld [vmem:[%s3560 + $0x1b] sm:$0x1]
    %v6252 = vlaneseq
    %v6253 = vshrl.u32 %v6252, 7
    %v6254 = vsub.s32 0, %v6253
    %v6255 = vrot.slane %v6251, %v6254
    %6256 = vrot.lane.b32.xlu0 %v3552, 8
    %v6257 = vpop.permute.xlu0 %6256
    %6258 = vrot.lane.b32.xlu0 %v3558, 8
    %v6259 = vpop.permute.xlu0 %6258
    %v6260 = vsel %vm166, %v6257, 0
    %v6262 = vsel %vm166, %v6259, 0
    %6264 = vmatprep.subr.mxu0 0.0
    %6265 = vmatpush1.xpose.msra.mxu0 0.0
    %6266 = vmatprep.subr.mxu0 0.0
    %6267 = vmatpush1.xpose.msra.mxu0 0.0
    %6268 = vmatprep.subr.mxu0 0.0
    %6269 = vmatpush1.xpose.msra.mxu0 0.0
    %6270 = vmatprep.subr.mxu0 0.0
    %6271 = vmatpush1.xpose.msra.mxu0 0.0
    %6272 = vmatprep.subr.mxu0 0.0
    %6273 = vmatpush1.xpose.msra.mxu0 0.0
    %6274 = vmatprep.subr.mxu0 0.0
    %6275 = vmatpush1.xpose.msra.mxu0 0.0
    %6276 = vmatprep.subr.mxu0 0.0
    %6277 = vmatpush1.xpose.msra.mxu0 0.0
    %6278 = vmatprep.subr.mxu0 0.0
    %6279 = vmatpush1.xpose.msra.mxu0 0.0
    %6280 = vmatprep.subr.mxu0 0.0
    %6281 = vmatpush1.xpose.msra.mxu0 0.0
    %6282 = vmatprep.subr.mxu0 0.0
    %6283 = vmatpush1.xpose.msra.mxu0 0.0
    %6284 = vmatprep.subr.mxu0 0.0
    %6285 = vmatpush1.xpose.msra.mxu0 0.0
    %6286 = vmatprep.subr.mxu0 0.0
    %6287 = vmatpush1.xpose.msra.mxu0 0.0
    %6288 = vmatprep.subr.mxu0 0.0
    %6289 = vmatpush1.xpose.msra.mxu0 0.0
    %6290 = vmatprep.subr.mxu0 0.0
    %6291 = vmatpush1.xpose.msra.mxu0 0.0
    %6292 = vmatprep.subr.mxu0 0.0
    %6293 = vmatpush1.xpose.msra.mxu0 %v5813
    %6294 = vmatprep.subr.mxu0 0.0
    %6295 = vmatpush1.xpose.msra.mxu0 %v5811
    %6296 = vmatprep.subr.mxu0 0.0
    %6297 = vmatpush2.xpose.msra.mxu0 0.0
    %6298 = vmatprep.subr.mxu0 0.0
    %6299 = vmatpush2.xpose.msra.mxu0 0.0
    %6300 = vmatprep.subr.mxu0 0.0
    %6301 = vmatpush2.xpose.msra.mxu0 0.0
    %6302 = vmatprep.subr.mxu0 0.0
    %6303 = vmatpush2.xpose.msra.mxu0 0.0
    %6304 = vmatprep.subr.mxu0 0.0
    %6305 = vmatpush2.xpose.msra.mxu0 0.0
    %6306 = vmatprep.subr.mxu0 0.0
    %6307 = vmatpush2.xpose.msra.mxu0 0.0
    %6308 = vmatprep.subr.mxu0 0.0
    %6309 = vmatpush2.xpose.msra.mxu0 0.0
    %6310 = vmatprep.subr.mxu0 0.0
    %6311 = vmatpush2.xpose.msra.mxu0 0.0
    %6312 = vmatprep.subr.mxu0 0.0
    %6313 = vmatpush2.xpose.msra.mxu0 0.0
    %6314 = vmatprep.subr.mxu0 0.0
    %6315 = vmatpush2.xpose.msra.mxu0 0.0
    %6316 = vmatprep.subr.mxu0 0.0
    %6317 = vmatpush2.xpose.msra.mxu0 0.0
    %6318 = vmatprep.subr.mxu0 0.0
    %6319 = vmatpush2.xpose.msra.mxu0 0.0
    %6320 = vmatprep.subr.mxu0 0.0
    %6321 = vmatpush2.xpose.msra.mxu0 0.0
    %6322 = vmatprep.subr.mxu0 0.0
    %6323 = vmatpush2.xpose.msra.mxu0 0.0
    %6324 = vmatprep.subr.mxu0 0.0
    %6325 = vmatpush2.xpose.msra.mxu0 0.0
    %6326 = vmatprep.subr.mxu0 0.0
    %6327 = vmatpush2.xpose.msra.mxu0 0.0
    %6328 = vmatprep.mubr.f32.mxu0 0.0
    %6329 = vmatmul.mubr.f32.gmra.mxu0 %v6260
    %v6330 = vpop.f32.mrf.mxu0
    %v6331 = vadd.f32 %v6255, %v6330
    %v6332 = vpop.f32.mrf.mxu0
    %6333 = vmatprep.mubr.f32.mxu0 0.0
    %6334 = vmatmul.mubr.f32.gmra.mxu0 %v6262
    %v6335 = vpop.f32.mrf.mxu0
    %v6336 = vadd.f32 %v6255, %v6335
    %v6337 = vpop.f32.mrf.mxu0
    %6338 = vdwg.mxu0
    %v6339 = vmul.f32 %v6331, %v45
    %v6340 = vmul.f32 %v6336, %v46
    %v6341 = vadd.f32 %v6249, %v6339
    %v6342 = vadd.f32 %v6250, %v6340
    %v6343 = vmul.f32 %v6341, 0.35355338
    %v6344 = vmul.f32 %v6342, 0.35355338
    %v6345 = vadd.f32 %v6343, %v35
    %v6346 = vadd.f32 %v6344, %v36
    %v6347 = vsel %vm703, %v6345, -inf
    %6348 = vmax.xlane.f32.xlu0 %v6347
    %v6349 = vpop.xlane.xlu0 %6348
    %v6350 = vsel %vm703, %v6346, -inf
    %6351 = vmax.xlane.f32.xlu0 %v6350
    %v6352 = vpop.xlane.xlu0 %6351
    %v6353 = vsub.f32 %v6345, %v6349
    %v6354 = vsub.f32 %v6346, %v6352
    %v6355 = vmul.f32 %v6353, 1.442695
    %v6356 = vpow.pop %v6355
    %v6357 = vmul.f32 %v6354, 1.442695
    %v6358 = vpow.pop %v6357
    %v6359 = vsel %vm703, %v6356, 0.0
    %6360 = vadd.xlane.f32.xlu0 %v6359
    %v6361 = vpop.xlane.xlu0 %6360
    %v6362 = vsel %vm703, %v6358, 0.0
    %6363 = vadd.xlane.f32.xlu0 %v6362
    %v6364 = vpop.xlane.xlu0 %6363
    %v6365 = vrcp.pop %v6361
    %v6366 = vmul.f32 %v6356, %v6365
    %v6367 = vrcp.pop %v6364
    %v6368 = vmul.f32 %v6358, %v6367
    %6369 = vrot.lane.b32.xlu0 %v3552, 48
    %v6370 = vpop.permute.xlu0 %6369
    %6371 = vrot.lane.b32.xlu0 %v3558, 48
    %v6372 = vpop.permute.xlu0 %6371
    %v6376 = vsel %vm703, %v6366, 0
    %v6379 = vsel %vm703, %v6368, 0
    %6381 = vmatprep.subr.mxu0 0.0
    %6382 = vmatpush1.msra.mxu0 0.0
    %6383 = vmatprep.subr.mxu0 0.0
    %6384 = vmatpush1.msra.mxu0 0.0
    %6385 = vmatprep.subr.mxu0 0.0
    %6386 = vmatpush1.msra.mxu0 0.0
    %6387 = vmatprep.subr.mxu0 0.0
    %6388 = vmatpush1.msra.mxu0 0.0
    %6389 = vmatprep.subr.mxu0 0.0
    %6390 = vmatpush1.msra.mxu0 0.0
    %6391 = vmatprep.subr.mxu0 0.0
    %6392 = vmatpush1.msra.mxu0 0.0
    %6393 = vmatprep.subr.mxu0 0.0
    %6394 = vmatpush1.msra.mxu0 0.0
    %6395 = vmatprep.subr.mxu0 0.0
    %6396 = vmatpush1.msra.mxu0 0.0
    %6397 = vmatprep.subr.mxu0 0.0
    %6398 = vmatpush1.msra.mxu0 0.0
    %6399 = vmatprep.subr.mxu0 0.0
    %6400 = vmatpush1.msra.mxu0 0.0
    %6401 = vmatprep.subr.mxu0 0.0
    %6402 = vmatpush1.msra.mxu0 0.0
    %6403 = vmatprep.subr.mxu0 0.0
    %6404 = vmatpush1.msra.mxu0 0.0
    %6405 = vmatprep.subr.mxu0 0.0
    %6406 = vmatpush1.msra.mxu0 0.0
    %6407 = vmatprep.subr.mxu0 0.0
    %6408 = vmatpush1.msra.mxu0 0.0
    %6409 = vmatprep.subr.mxu0 0.0
    %6410 = vmatpush1.msra.mxu0 %v6372
    %6411 = vmatprep.subr.mxu0 0.0
    %6412 = vmatpush1.msra.mxu0 %v6370
    %6413 = vmatprep.subr.mxu0 0.0
    %6414 = vmatpush2.msra.mxu0 0.0
    %6415 = vmatprep.subr.mxu0 0.0
    %6416 = vmatpush2.msra.mxu0 0.0
    %6417 = vmatprep.subr.mxu0 0.0
    %6418 = vmatpush2.msra.mxu0 0.0
    %6419 = vmatprep.subr.mxu0 0.0
    %6420 = vmatpush2.msra.mxu0 0.0
    %6421 = vmatprep.subr.mxu0 0.0
    %6422 = vmatpush2.msra.mxu0 0.0
    %6423 = vmatprep.subr.mxu0 0.0
    %6424 = vmatpush2.msra.mxu0 0.0
    %6425 = vmatprep.subr.mxu0 0.0
    %6426 = vmatpush2.msra.mxu0 0.0
    %6427 = vmatprep.subr.mxu0 0.0
    %6428 = vmatpush2.msra.mxu0 0.0
    %6429 = vmatprep.subr.mxu0 0.0
    %6430 = vmatpush2.msra.mxu0 0.0
    %6431 = vmatprep.subr.mxu0 0.0
    %6432 = vmatpush2.msra.mxu0 0.0
    %6433 = vmatprep.subr.mxu0 0.0
    %6434 = vmatpush2.msra.mxu0 0.0
    %6435 = vmatprep.subr.mxu0 0.0
    %6436 = vmatpush2.msra.mxu0 0.0
    %6437 = vmatprep.subr.mxu0 0.0
    %6438 = vmatpush2.msra.mxu0 0.0
    %6439 = vmatprep.subr.mxu0 0.0
    %6440 = vmatpush2.msra.mxu0 0.0
    %6441 = vmatprep.subr.mxu0 0.0
    %6442 = vmatpush2.msra.mxu0 0.0
    %6443 = vmatprep.subr.mxu0 0.0
    %6444 = vmatpush2.msra.mxu0 0.0
    %6445 = vmatprep.mubr.f32.mxu0 0.0
    %6446 = vmatmul.mubr.f32.gmra.mxu0 %v6376
    %v6447 = vpop.f32.mrf.mxu0
    %v6448 = vadd.f32 0.0, %v6447
    %v6449 = vpop.f32.mrf.mxu0
    %6450 = vmatprep.mubr.f32.mxu0 0.0
    %6451 = vmatmul.mubr.f32.gmra.mxu0 %v6379
    %v6452 = vpop.f32.mrf.mxu0
    %v6453 = vadd.f32 0.0, %v6452
    %v6454 = vpop.f32.mrf.mxu0
    %6455 = vdwg.mxu0
    %s6456 = scalar_lea.vmem %s5, 56
    %v6457 = vld [vmem:[%s6456] sm:$0xff]
    %v6459 = vsel %vm166, %v6448, 0
    %v6462 = vsel %vm166, %v6453, 0
    %6464 = vmatprep.subr.mxu0 0.0
    %6465 = vmatpush1.msra.mxu0 0.0
    %6466 = vmatprep.subr.mxu0 0.0
    %6467 = vmatpush1.msra.mxu0 0.0
    %6468 = vmatprep.subr.mxu0 0.0
    %6469 = vmatpush1.msra.mxu0 0.0
    %6470 = vmatprep.subr.mxu0 0.0
    %6471 = vmatpush1.msra.mxu0 0.0
    %6472 = vmatprep.subr.mxu0 0.0
    %6473 = vmatpush1.msra.mxu0 0.0
    %6474 = vmatprep.subr.mxu0 0.0
    %6475 = vmatpush1.msra.mxu0 0.0
    %6476 = vmatprep.subr.mxu0 0.0
    %6477 = vmatpush1.msra.mxu0 0.0
    %6478 = vmatprep.subr.mxu0 0.0
    %6479 = vmatpush1.msra.mxu0 0.0
    %6480 = vmatprep.subr.mxu0 0.0
    %6481 = vmatpush1.msra.mxu0 0.0
    %6482 = vmatprep.subr.mxu0 0.0
    %6483 = vmatpush1.msra.mxu0 0.0
    %6484 = vmatprep.subr.mxu0 0.0
    %6485 = vmatpush1.msra.mxu0 0.0
    %6486 = vmatprep.subr.mxu0 0.0
    %6487 = vmatpush1.msra.mxu0 0.0
    %6488 = vmatprep.subr.mxu0 0.0
    %6489 = vmatpush1.msra.mxu0 0.0
    %6490 = vmatprep.subr.mxu0 0.0
    %6491 = vmatpush1.msra.mxu0 0.0
    %6492 = vmatprep.subr.mxu0 0.0
    %6493 = vmatpush1.msra.mxu0 0.0
    %6494 = vmatprep.subr.mxu0 0.0
    %6495 = vmatpush1.msra.mxu0 %v6457
    %6496 = vmatprep.subr.mxu0 0.0
    %6497 = vmatpush2.msra.mxu0 0.0
    %6498 = vmatprep.subr.mxu0 0.0
    %6499 = vmatpush2.msra.mxu0 0.0
    %6500 = vmatprep.subr.mxu0 0.0
    %6501 = vmatpush2.msra.mxu0 0.0
    %6502 = vmatprep.subr.mxu0 0.0
    %6503 = vmatpush2.msra.mxu0 0.0
    %6504 = vmatprep.subr.mxu0 0.0
    %6505 = vmatpush2.msra.mxu0 0.0
    %6506 = vmatprep.subr.mxu0 0.0
    %6507 = vmatpush2.msra.mxu0 0.0
    %6508 = vmatprep.subr.mxu0 0.0
    %6509 = vmatpush2.msra.mxu0 0.0
    %6510 = vmatprep.subr.mxu0 0.0
    %6511 = vmatpush2.msra.mxu0 0.0
    %6512 = vmatprep.subr.mxu0 0.0
    %6513 = vmatpush2.msra.mxu0 0.0
    %6514 = vmatprep.subr.mxu0 0.0
    %6515 = vmatpush2.msra.mxu0 0.0
    %6516 = vmatprep.subr.mxu0 0.0
    %6517 = vmatpush2.msra.mxu0 0.0
    %6518 = vmatprep.subr.mxu0 0.0
    %6519 = vmatpush2.msra.mxu0 0.0
    %6520 = vmatprep.subr.mxu0 0.0
    %6521 = vmatpush2.msra.mxu0 0.0
    %6522 = vmatprep.subr.mxu0 0.0
    %6523 = vmatpush2.msra.mxu0 0.0
    %6524 = vmatprep.subr.mxu0 0.0
    %6525 = vmatpush2.msra.mxu0 0.0
    %6526 = vmatprep.subr.mxu0 0.0
    %6527 = vmatpush2.msra.mxu0 0.0
    %6528 = vmatprep.mubr.f32.mxu0 0.0
    %6529 = vmatmul.mubr.f32.gmra.mxu0 %v6459
    %v6530 = vpop.f32.mrf.mxu0
    %v6531 = vadd.f32 0.0, %v6530
    %v6532 = vpop.f32.mrf.mxu0
    %6533 = vmatprep.mubr.f32.mxu0 0.0
    %6534 = vmatmul.mubr.f32.gmra.mxu0 %v6462
    %v6535 = vpop.f32.mrf.mxu0
    %v6536 = vadd.f32 0.0, %v6535
    %v6537 = vpop.f32.mrf.mxu0
    %6538 = vdwg.mxu0
    %v6539 = vadd.f32 %v5792, %v6531
    %v6540 = vadd.f32 %v5793, %v6536
    %v6541 = vld [vmem:[%s3560] sm:$0x1]
    %v6542 = vld [vmem:[%s3560 + $0x1] sm:$0x1]
    %v6543 = vld [vmem:[%s3560 + $0x2] sm:$0x1]
    %v6544 = vlaneseq
    %v6545 = vshrl.u32 %v6544, 7
    %v6546 = vsub.s32 0, %v6545
    %v6547 = vrot.slane %v6541, %v6546
    %v6548 = vadd.f32 %v6539, %v6547
    %v6549 = vadd.f32 %v6540, %v6547
    %v6550 = vadd.f32 %v6548, %v3453
    %v6551 = vadd.f32 %v6549, %v3454
    %v6552 = vsel %vm67, %v6550, 0.0
    %6553 = vadd.xlane.f32.xlu0 %v6552
    %v6554 = vpop.xlane.xlu0 %6553
    %v6555 = vsel %vm67, %v6551, 0.0
    %6556 = vadd.xlane.f32.xlu0 %v6555
    %v6557 = vpop.xlane.xlu0 %6556
    %v6558 = vmul.f32 %v6554, %v3149
    %v6559 = vmul.f32 %v6557, %v3149
    %v6560 = vsub.f32 %v6550, %v6558
    %v6561 = vsub.f32 %v6551, %v6559
    %v6562 = vmul.f32 %v6560, %v6560
    %v6563 = vmul.f32 %v6561, %v6561
    %v6564 = vsel %vm67, %v6562, 0.0
    %6565 = vadd.xlane.f32.xlu0 %v6564
    %v6566 = vpop.xlane.xlu0 %6565
    %v6567 = vsel %vm67, %v6563, 0.0
    %6568 = vadd.xlane.f32.xlu0 %v6567
    %v6569 = vpop.xlane.xlu0 %6568
    %v6570 = vmul.f32 %v6566, %v3149
    %v6571 = vmul.f32 %v6569, %v3149
    %v6572 = vadd.f32 %v6570, 1e-12
    %v6573 = vadd.f32 %v6571, 1e-12
    %v6574 = vrsqrt.pop %v6572
    %v6575 = vmul.f32 %v6572, %v6574
    %vm6576 = vcmp.eq.f32.partialorder %v6572, inf
    %v6577 = vsel %vm6576, %v6572, %v6575
    %vm6578 = vcmp.eq.f32.partialorder %v6572, 0.0
    %v6579 = vand.u32 %v6572, 2147483648
    %v6580 = vsel %vm6578, %v6579, %v6577
    %v6581 = vrsqrt.pop %v6573
    %v6582 = vmul.f32 %v6573, %v6581
    %vm6583 = vcmp.eq.f32.partialorder %v6573, inf
    %v6584 = vsel %vm6583, %v6573, %v6582
    %vm6585 = vcmp.eq.f32.partialorder %v6573, 0.0
    %v6586 = vand.u32 %v6573, 2147483648
    %v6587 = vsel %vm6585, %v6586, %v6584
    %v6588 = vrcp.pop %v6580
    %v6589 = vmul.f32 %v6560, %v6588
    %v6590 = vrcp.pop %v6587
    %v6591 = vmul.f32 %v6561, %v6590
    %v6592 = vlaneseq
    %v6593 = vshrl.u32 %v6592, 7
    %v6594 = vsub.s32 0, %v6593
    %v6595 = vrot.slane %v6542, %v6594
    %v6596 = vmul.f32 %v6589, %v6595
    %v6597 = vmul.f32 %v6591, %v6595
    %v6598 = vlaneseq
    %v6599 = vshrl.u32 %v6598, 7
    %v6600 = vsub.s32 0, %v6599
    %v6601 = vrot.slane %v6543, %v6600
    %v6602 = vadd.f32 %v6596, %v6601
    %v6603 = vadd.f32 %v6597, %v6601
    %v6604 = vld [vmem:[%s3560 + $0x3] sm:$0x1]
    %s6605 = scalar_lea.vmem %s6, 32
    %v6606 = vld [vmem:[%s6605] sm:$0xff]
    %v6607 = vld [vmem:[%s6605 + $0x8] sm:$0xff]
    %v6608 = vld [vmem:[%s6605 + $0x10] sm:$0xff]
    %v6609 = vld [vmem:[%s6605 + $0x18] sm:$0xff]
    %v6610 = vlaneseq
    %v6611 = vshrl.u32 %v6610, 7
    %v6612 = vsub.s32 0, %v6611
    %v6613 = vrot.slane %v6604, %v6612
    %v6615 = vsel %vm67, %v6602, 0
    %v6618 = vsel %vm67, %v6603, 0
    %6620 = vmatprep.subr.mxu0 0.0
    %6621 = vmatpush1.msra.mxu0 0.0
    %6622 = vmatprep.subr.mxu0 0.0
    %6623 = vmatpush1.msra.mxu0 0.0
    %6624 = vmatprep.subr.mxu0 0.0
    %6625 = vmatpush1.msra.mxu0 0.0
    %6626 = vmatprep.subr.mxu0 0.0
    %6627 = vmatpush1.msra.mxu0 0.0
    %6628 = vmatprep.subr.mxu0 0.0
    %6629 = vmatpush1.msra.mxu0 0.0
    %6630 = vmatprep.subr.mxu0 0.0
    %6631 = vmatpush1.msra.mxu0 0.0
    %6632 = vmatprep.subr.mxu0 0.0
    %6633 = vmatpush1.msra.mxu0 0.0
    %6634 = vmatprep.subr.mxu0 0.0
    %6635 = vmatpush1.msra.mxu0 0.0
    %6636 = vmatprep.subr.mxu0 0.0
    %6637 = vmatpush1.msra.mxu0 0.0
    %6638 = vmatprep.subr.mxu0 0.0
    %6639 = vmatpush1.msra.mxu0 0.0
    %6640 = vmatprep.subr.mxu0 0.0
    %6641 = vmatpush1.msra.mxu0 0.0
    %6642 = vmatprep.subr.mxu0 0.0
    %6643 = vmatpush1.msra.mxu0 0.0
    %6644 = vmatprep.subr.mxu0 0.0
    %6645 = vmatpush1.msra.mxu0 %v6609
    %6646 = vmatprep.subr.mxu0 0.0
    %6647 = vmatpush1.msra.mxu0 %v6608
    %6648 = vmatprep.subr.mxu0 0.0
    %6649 = vmatpush1.msra.mxu0 %v6607
    %6650 = vmatprep.subr.mxu0 0.0
    %6651 = vmatpush1.msra.mxu0 %v6606
    %6652 = vmatprep.subr.mxu0 0.0
    %6653 = vmatpush2.msra.mxu0 0.0
    %6654 = vmatprep.subr.mxu0 0.0
    %6655 = vmatpush2.msra.mxu0 0.0
    %6656 = vmatprep.subr.mxu0 0.0
    %6657 = vmatpush2.msra.mxu0 0.0
    %6658 = vmatprep.subr.mxu0 0.0
    %6659 = vmatpush2.msra.mxu0 0.0
    %6660 = vmatprep.subr.mxu0 0.0
    %6661 = vmatpush2.msra.mxu0 0.0
    %6662 = vmatprep.subr.mxu0 0.0
    %6663 = vmatpush2.msra.mxu0 0.0
    %6664 = vmatprep.subr.mxu0 0.0
    %6665 = vmatpush2.msra.mxu0 0.0
    %6666 = vmatprep.subr.mxu0 0.0
    %6667 = vmatpush2.msra.mxu0 0.0
    %6668 = vmatprep.subr.mxu0 0.0
    %6669 = vmatpush2.msra.mxu0 0.0
    %6670 = vmatprep.subr.mxu0 0.0
    %6671 = vmatpush2.msra.mxu0 0.0
    %6672 = vmatprep.subr.mxu0 0.0
    %6673 = vmatpush2.msra.mxu0 0.0
    %6674 = vmatprep.subr.mxu0 0.0
    %6675 = vmatpush2.msra.mxu0 0.0
    %6676 = vmatprep.subr.mxu0 0.0
    %6677 = vmatpush2.msra.mxu0 0.0
    %6678 = vmatprep.subr.mxu0 0.0
    %6679 = vmatpush2.msra.mxu0 0.0
    %6680 = vmatprep.subr.mxu0 0.0
    %6681 = vmatpush2.msra.mxu0 0.0
    %6682 = vmatprep.subr.mxu0 0.0
    %6683 = vmatpush2.msra.mxu0 0.0
    %6684 = vmatprep.mubr.f32.mxu0 0.0
    %6685 = vmatmul.mubr.f32.gmra.mxu0 %v6615
    %v6686 = vpop.f32.mrf.mxu0
    %v6687 = vadd.f32 %v6613, %v6686
    %v6688 = vpop.f32.mrf.mxu0
    %6689 = vmatprep.mubr.f32.mxu0 0.0
    %6690 = vmatmul.mubr.f32.gmra.mxu0 %v6618
    %v6691 = vpop.f32.mrf.mxu0
    %v6692 = vadd.f32 %v6613, %v6691
    %v6693 = vpop.f32.mrf.mxu0
    %6694 = vdwg.mxu0
    %v6695 = vmul.f32 %v6687, 0.5
    %v6696 = vmul.f32 %v6692, 0.5
    %v6697 = vmul.f32 %v6687, 0.044715
    %v6698 = vmul.f32 %v6692, 0.044715
    %v6699 = vmul.f32 %v6697, %v6687
    %v6700 = vmul.f32 %v6698, %v6692
    %v6701 = vmul.f32 %v6699, %v6687
    %v6702 = vmul.f32 %v6700, %v6692
    %v6703 = vadd.f32 %v6687, %v6701
    %v6704 = vadd.f32 %v6692, %v6702
    %v6705 = vmul.f32 %v6703, 0.7978846
    %v6706 = vmul.f32 %v6704, 0.7978846
    %v6707 = vtanh.pop %v6705
    %v6708 = vtanh.pop %v6706
    %v6709 = vadd.f32 %v6707, 1.0
    %v6710 = vadd.f32 %v6708, 1.0
    %v6711 = vmul.f32 %v6695, %v6709
    %v6712 = vmul.f32 %v6696, %v6710
    %v6713 = vld [vmem:[%s3560 + $0x4] sm:$0x1]
    %v6714 = vld [vmem:[%s3560 + $0x5] sm:$0x1]
    %v6715 = vld [vmem:[%s3560 + $0x6] sm:$0x1]
    %s6716 = scalar_lea.vmem %s7, 64
    %v6717 = vld [vmem:[%s6716] sm:$0xff]
    %v6718 = vld [vmem:[%s6716 + $0x8] sm:$0xff]
    %v6719 = vld [vmem:[%s6716 + $0x10] sm:$0xff]
    %v6720 = vld [vmem:[%s6716 + $0x18] sm:$0xff]
    %v6721 = vld [vmem:[%s6716 + $0x20] sm:$0xff]
    %v6722 = vld [vmem:[%s6716 + $0x28] sm:$0xff]
    %v6723 = vld [vmem:[%s6716 + $0x30] sm:$0xff]
    %v6724 = vld [vmem:[%s6716 + $0x38] sm:$0xff]
    %v6725 = vlaneseq
    %v6726 = vshrl.u32 %v6725, 7
    %v6727 = vsub.s32 0, %v6726
    %v6728 = vrot.slane %v6713, %v6727
    %v6730 = vsel %vm3319, %v6711, 0
    %v6733 = vsel %vm3319, %v6712, 0
    %6735 = vmatprep.subr.mxu0 0.0
    %6736 = vmatpush1.msra.mxu0 0.0
    %6737 = vmatprep.subr.mxu0 0.0
    %6738 = vmatpush1.msra.mxu0 0.0
    %6739 = vmatprep.subr.mxu0 0.0
    %6740 = vmatpush1.msra.mxu0 0.0
    %6741 = vmatprep.subr.mxu0 0.0
    %6742 = vmatpush1.msra.mxu0 0.0
    %6743 = vmatprep.subr.mxu0 0.0
    %6744 = vmatpush1.msra.mxu0 0.0
    %6745 = vmatprep.subr.mxu0 0.0
    %6746 = vmatpush1.msra.mxu0 0.0
    %6747 = vmatprep.subr.mxu0 0.0
    %6748 = vmatpush1.msra.mxu0 0.0
    %6749 = vmatprep.subr.mxu0 0.0
    %6750 = vmatpush1.msra.mxu0 0.0
    %6751 = vmatprep.subr.mxu0 0.0
    %6752 = vmatpush1.msra.mxu0 %v6724
    %6753 = vmatprep.subr.mxu0 0.0
    %6754 = vmatpush1.msra.mxu0 %v6723
    %6755 = vmatprep.subr.mxu0 0.0
    %6756 = vmatpush1.msra.mxu0 %v6722
    %6757 = vmatprep.subr.mxu0 0.0
    %6758 = vmatpush1.msra.mxu0 %v6721
    %6759 = vmatprep.subr.mxu0 0.0
    %6760 = vmatpush1.msra.mxu0 %v6720
    %6761 = vmatprep.subr.mxu0 0.0
    %6762 = vmatpush1.msra.mxu0 %v6719
    %6763 = vmatprep.subr.mxu0 0.0
    %6764 = vmatpush1.msra.mxu0 %v6718
    %6765 = vmatprep.subr.mxu0 0.0
    %6766 = vmatpush1.msra.mxu0 %v6717
    %6767 = vmatprep.subr.mxu0 0.0
    %6768 = vmatpush2.msra.mxu0 0.0
    %6769 = vmatprep.subr.mxu0 0.0
    %6770 = vmatpush2.msra.mxu0 0.0
    %6771 = vmatprep.subr.mxu0 0.0
    %6772 = vmatpush2.msra.mxu0 0.0
    %6773 = vmatprep.subr.mxu0 0.0
    %6774 = vmatpush2.msra.mxu0 0.0
    %6775 = vmatprep.subr.mxu0 0.0
    %6776 = vmatpush2.msra.mxu0 0.0
    %6777 = vmatprep.subr.mxu0 0.0
    %6778 = vmatpush2.msra.mxu0 0.0
    %6779 = vmatprep.subr.mxu0 0.0
    %6780 = vmatpush2.msra.mxu0 0.0
    %6781 = vmatprep.subr.mxu0 0.0
    %6782 = vmatpush2.msra.mxu0 0.0
    %6783 = vmatprep.subr.mxu0 0.0
    %6784 = vmatpush2.msra.mxu0 0.0
    %6785 = vmatprep.subr.mxu0 0.0
    %6786 = vmatpush2.msra.mxu0 0.0
    %6787 = vmatprep.subr.mxu0 0.0
    %6788 = vmatpush2.msra.mxu0 0.0
    %6789 = vmatprep.subr.mxu0 0.0
    %6790 = vmatpush2.msra.mxu0 0.0
    %6791 = vmatprep.subr.mxu0 0.0
    %6792 = vmatpush2.msra.mxu0 0.0
    %6793 = vmatprep.subr.mxu0 0.0
    %6794 = vmatpush2.msra.mxu0 0.0
    %6795 = vmatprep.subr.mxu0 0.0
    %6796 = vmatpush2.msra.mxu0 0.0
    %6797 = vmatprep.subr.mxu0 0.0
    %6798 = vmatpush2.msra.mxu0 0.0
    %6799 = vmatprep.mubr.f32.mxu0 0.0
    %6800 = vmatmul.mubr.f32.gmra.mxu0 %v6730
    %v6801 = vpop.f32.mrf.mxu0
    %v6802 = vadd.f32 %v6728, %v6801
    %v6803 = vpop.f32.mrf.mxu0
    %6804 = vmatprep.mubr.f32.mxu0 0.0
    %6805 = vmatmul.mubr.f32.gmra.mxu0 %v6733
    %v6806 = vpop.f32.mrf.mxu0
    %v6807 = vadd.f32 %v6728, %v6806
    %v6808 = vpop.f32.mrf.mxu0
    %6809 = vdwg.mxu0
    %v6810 = vadd.f32 %v6802, %v6602
    %v6811 = vadd.f32 %v6807, %v6603
    %v6812 = vsel %vm67, %v6810, 0.0
    %6813 = vadd.xlane.f32.xlu0 %v6812
    %v6814 = vpop.xlane.xlu0 %6813
    %v6815 = vsel %vm67, %v6811, 0.0
    %6816 = vadd.xlane.f32.xlu0 %v6815
    %v6817 = vpop.xlane.xlu0 %6816
    %v6818 = vmul.f32 %v6814, %v3149
    %v6819 = vmul.f32 %v6817, %v3149
    %v6820 = vsub.f32 %v6810, %v6818
    %v6821 = vsub.f32 %v6811, %v6819
    %v6822 = vmul.f32 %v6820, %v6820
    %v6823 = vmul.f32 %v6821, %v6821
    %v6824 = vsel %vm67, %v6822, 0.0
    %6825 = vadd.xlane.f32.xlu0 %v6824
    %v6826 = vpop.xlane.xlu0 %6825
    %v6827 = vsel %vm67, %v6823, 0.0
    %6828 = vadd.xlane.f32.xlu0 %v6827
    %v6829 = vpop.xlane.xlu0 %6828
    %v6830 = vmul.f32 %v6826, %v3149
    %v6831 = vmul.f32 %v6829, %v3149
    %v6832 = vadd.f32 %v6830, 1e-12
    %v6833 = vadd.f32 %v6831, 1e-12
    %v6834 = vrsqrt.pop %v6832
    %v6835 = vmul.f32 %v6832, %v6834
    %vm6836 = vcmp.eq.f32.partialorder %v6832, inf
    %v6837 = vsel %vm6836, %v6832, %v6835
    %vm6838 = vcmp.eq.f32.partialorder %v6832, 0.0
    %v6839 = vand.u32 %v6832, 2147483648
    %v6840 = vsel %vm6838, %v6839, %v6837
    %v6841 = vrsqrt.pop %v6833
    %v6842 = vmul.f32 %v6833, %v6841
    %vm6843 = vcmp.eq.f32.partialorder %v6833, inf
    %v6844 = vsel %vm6843, %v6833, %v6842
    %vm6845 = vcmp.eq.f32.partialorder %v6833, 0.0
    %v6846 = vand.u32 %v6833, 2147483648
    %v6847 = vsel %vm6845, %v6846, %v6844
    %v6848 = vrcp.pop %v6840
    %v6849 = vmul.f32 %v6820, %v6848
    %v6850 = vrcp.pop %v6847
    %v6851 = vmul.f32 %v6821, %v6850
    %v6852 = vlaneseq
    %v6853 = vshrl.u32 %v6852, 7
    %v6854 = vsub.s32 0, %v6853
    %v6855 = vrot.slane %v6714, %v6854
    %v6856 = vmul.f32 %v6849, %v6855
    %v6857 = vmul.f32 %v6851, %v6855
    %v6858 = vlaneseq
    %v6859 = vshrl.u32 %v6858, 7
    %v6860 = vsub.s32 0, %v6859
    %v6861 = vrot.slane %v6715, %v6860
    %v6862 = vadd.f32 %v6856, %v6861
    %v6863 = vadd.f32 %v6857, %v6861
    %6864 = vst.msk [vmem:[#allocation2] sm:$0xff] %vm67, %v6862
    %6865 = vst.msk [vmem:[#allocation2 + $0x8] sm:$0xff] %vm67, %v6863
    // Predicated region
    $region38: #{bert_encoder_pallas.1} parent=1 // pred_check
      _
    $region39: #{bert_encoder_pallas.1} parent=1 // pred_check_branch
      %6867 = sbr.rel (0) target = $region41
    $region40: #{bert_encoder_pallas.1} parent=1 // pred_region
      %s6869 = ssub.s32 256, 256
      %6870 = vsyncadd [#allocation3], %s6869
      %s6871 = sshll.u32 [#allocation2], 4
      %s6872 = int_to_ptr.vmem [resolvable:$true] %s6871
      %6877 = dma.vmem_to_hbm [thread:$0]  %s6872, 256, %s9, [#allocation3], 128, 128, 8
    $region41: #{bert_encoder_pallas.1} parent=1 // pred_fallthru
      _
    // Predicated region
    $region42: #{bert_encoder_pallas.1} parent=1 // pred_check
      _
    $region43: #{bert_encoder_pallas.1} parent=1 // pred_check_branch
      %6879 = sbr.rel (0) target = $region45
    $region44: #{bert_encoder_pallas.1} parent=1 // pred_region
      %6880 = dma.done [#allocation3], 256
    $region45: #{bert_encoder_pallas.1} parent=1 // pred_fallthru
      _
    %6881 = vsyncpa [#allocation3], 1

</llo_original>
